<compile_context>
chip_gen: v7x
topology: tpu7x:2x2x1
jax: 0.10.0
libtpu: 0.0.40
codegen_flags: <defaults>
</compile_context>

<pallas_src>
import math
import functools

import jax
import jax.numpy as jnp
import numpy as np
from jax import lax
from jax.experimental import pallas as pl
from jax.experimental.pallas import tpu as pltpu


_NEG_INF = -1e30                       # finite mask value (no NaN even if fully masked)
_VMEM_LIMIT = 48 * 1024 * 1024         # < 64 MiB physical per-TC VMEM on v7x

# Untiled, single-buffered VMEM residency for constant weights / params
# (default blocked specs would double-buffer them even though the index never changes).
_VMEM_RESIDENT = pl.BlockSpec(memory_space=pltpu.MemorySpace.VMEM)


def _layernorm(h, gamma, beta, eps=1e-5):
    mu = jnp.mean(h, axis=-1, keepdims=True)
    var = jnp.mean((h - mu) ** 2, axis=-1, keepdims=True)
    return (h - mu) * lax.rsqrt(var + eps) * gamma + beta


def _gelu_exact(x):
    # PyTorch nn.GELU() default: 0.5 * x * (1 + erf(x / sqrt(2)))
    return 0.5 * x * (1.0 + lax.erf(x * (1.0 / math.sqrt(2.0))))


# --------------------------------------------------------------------------- #
# Stage 1: LN1 + fused QKV projection.  Grid = (batch, query-tile); each step
# does uniform work on a (TQ, D) slab and writes head-major bf16 Q/K/V.
# --------------------------------------------------------------------------- #
def qkv_kernel(x_ref, g1_ref, be1_ref, wqkv_ref, bqkv_ref,
               q_ref, k_ref, v_ref, *, num_heads, d_k):
    tq, D = x_ref.shape
    h = _layernorm(x_ref[...], g1_ref[...], be1_ref[...])
    qkv = jnp.dot(h.astype(jnp.bfloat16), wqkv_ref[...],
                  preferred_element_type=jnp.float32) + bqkv_ref[...]

    def head_major(a):                                  # (tq, D) -> (H, tq, d_k) bf16
        return a.reshape(tq, num_heads, d_k).transpose(1, 0, 2).astype(jnp.bfloat16)

    q_ref[...] = head_major(qkv[:, :D])
    k_ref[...] = head_major(qkv[:, D:2 * D])
    v_ref[...] = head_major(qkv[:, 2 * D:])


def qkv_project(x, layer, *, num_heads, tq):
    B, S, D = x.shape
    d_k = D // num_heads
    out_sds = jax.ShapeDtypeStruct((B, num_heads, S, d_k), jnp.bfloat16)
    qkv_tile = pl.BlockSpec((None, num_heads, tq, d_k), lambda b, qi: (b, 0, qi, 0))
    kern = functools.partial(qkv_kernel, num_heads=num_heads, d_k=d_k)
    return pl.pallas_call(
        kern,
        out_shape=(out_sds, out_sds, out_sds),
        grid=(B, S // tq),
        in_specs=[
            pl.BlockSpec((None, tq, D), lambda b, qi: (b, qi, 0)),   # x tile
            _VMEM_RESIDENT, _VMEM_RESIDENT,                          # ln1 gamma / beta
            _VMEM_RESIDENT, _VMEM_RESIDENT,                          # Wqkv (bf16), bqkv
        ],
        out_specs=(qkv_tile, qkv_tile, qkv_tile),
        compiler_params=pltpu.CompilerParams(
            dimension_semantics=("parallel", "parallel"),
            vmem_limit_bytes=_VMEM_LIMIT,
        ),
    )(x, layer["g1"], layer["be1"], layer["wqkv"], layer["bqkv"])


# --------------------------------------------------------------------------- #
# Stage 2: causal flash attention (K-tiled online softmax) + Wo + residual
# + LN2 + GELU FFN + residual.  Grid = (batch, query-tile), both "parallel".
# --------------------------------------------------------------------------- #
def attn_ffn_kernel(x_ref, q_ref, k_ref, v_ref,
                    wo_ref, bo_ref, w1_ref, b1_ref, w2_ref, b2_ref,
                    g2_ref, be2_ref, out_ref, *, d_k, tq):
    qi = pl.program_id(1)
    H, S, _ = k_ref.shape
    D = x_ref.shape[-1]
    scale = 1.0 / math.sqrt(d_k)

    q3 = q_ref[...]                                     # (H, TQ, d_k) bf16
    q0 = qi * tq                                        # absolute first query row
    row = q0 + lax.broadcasted_iota(jnp.int32, (tq, tq), 0)

    def kv_step(j, carry):
        m, l, acc = carry
        k0 = pl.multiple_of(j * tq, tq)
        k_t = k_ref[:, pl.ds(k0, tq), :]                # (H, TK, d_k) bf16
        v_t = v_ref[:, pl.ds(k0, tq), :]
        s = jnp.einsum("hqd,hkd->hqk", q3, k_t,
                       preferred_element_type=jnp.float32) * scale
        col = k0 + lax.broadcasted_iota(jnp.int32, (tq, tq), 1)
        s = jnp.where((col > row)[None, :, :], _NEG_INF, s)
        m_new = jnp.maximum(m, jnp.max(s, axis=-1, keepdims=True))
        alpha = jnp.exp(m - m_new)
        p = jnp.exp(s - m_new)
        l_new = alpha * l + jnp.sum(p, axis=-1, keepdims=True)
        acc_new = alpha * acc + jnp.einsum(
            "hqk,hkd->hqd", p.astype(jnp.bfloat16), v_t,
            preferred_element_type=jnp.float32)
        return m_new, l_new, acc_new

    m0 = jnp.full((H, tq, 1), _NEG_INF, jnp.float32)
    l0 = jnp.zeros((H, tq, 1), jnp.float32)
    a0 = jnp.zeros((H, tq, d_k), jnp.float32)
    # Causal: only kv tiles 0..qi contain unmasked columns for this query tile.
    _, l, acc = lax.fori_loop(0, qi + 1, kv_step, (m0, l0, a0))

    ctx = acc * pl.reciprocal(l, approx=True)           # (H, TQ, d_k) fp32, EUP recip
    attn = ctx.transpose(1, 0, 2).reshape(tq, D)
    attn = jnp.dot(attn.astype(jnp.bfloat16), wo_ref[...],
                   preferred_element_type=jnp.float32) + bo_ref[...]

    x1 = x_ref[...] + attn                              # dropout == identity (eval)

    h2 = _layernorm(x1, g2_ref[...], be2_ref[...])
    f = jnp.dot(h2.astype(jnp.bfloat16), w1_ref[...],
                preferred_element_type=jnp.float32) + b1_ref[...]
    f = _gelu_exact(f)                                  # exact erf == PyTorch default
    f = jnp.dot(f.astype(jnp.bfloat16), w2_ref[...],
                preferred_element_type=jnp.float32) + b2_ref[...]
    out_ref[...] = x1 + f


def attn_ffn(x, q, k, v, layer, *, tq):
    B, S, D = x.shape
    _, H, _, d_k = q.shape
    kern = functools.partial(attn_ffn_kernel, d_k=d_k, tq=tq)
    q_tile = pl.BlockSpec((None, H, tq, d_k), lambda b, qi: (b, 0, qi, 0))
    kv_slab = pl.BlockSpec((None, H, S, d_k), lambda b, qi: (b, 0, 0, 0))  # once / batch
    return pl.pallas_call(
        kern,
        out_shape=jax.ShapeDtypeStruct((B, S, D), jnp.float32),
        grid=(B, S // tq),
        in_specs=[
            pl.BlockSpec((None, tq, D), lambda b, qi: (b, qi, 0)),   # residual x tile
            q_tile,                                                  # Q tile
            kv_slab, kv_slab,                                        # K / V slabs
            _VMEM_RESIDENT, _VMEM_RESIDENT,                          # Wo, bo
            _VMEM_RESIDENT, _VMEM_RESIDENT,                          # W1, b1
            _VMEM_RESIDENT, _VMEM_RESIDENT,                          # W2, b2
            _VMEM_RESIDENT, _VMEM_RESIDENT,                          # ln2 gamma/beta
        ],
        out_specs=pl.BlockSpec((None, tq, D), lambda b, qi: (b, qi, 0)),
        compiler_params=pltpu.CompilerParams(
            dimension_semantics=("parallel", "parallel"),
            vmem_limit_bytes=_VMEM_LIMIT,
        ),
    )(x, q, k, v,
      layer["wo"], layer["bo"], layer["w1"], layer["b1"],
      layer["w2"], layer["b2"], layer["g2"], layer["be2"])


def decoder_block(x, layer, *, num_heads, tq):
    q, k, v = qkv_project(x, layer, num_heads=num_heads, tq=tq)
    return attn_ffn(x, q, k, v, layer, tq=tq)


# --------------------------------------------------------------------------- #
# Final LayerNorm + LM head, tiled over (batch, seq tiles, vocab tiles) so the
# (D, V) weight streams through VMEM instead of being held resident.
# --------------------------------------------------------------------------- #
def lm_head_kernel(x_ref, g_ref, be_ref, w_ref, b_ref, out_ref):
    h = _layernorm(x_ref[...], g_ref[...], be_ref[...])
    out_ref[...] = jnp.dot(h.astype(jnp.bfloat16), w_ref[...],
                           preferred_element_type=jnp.float32) + b_ref[...]


def lm_head(x, g, be, wout_bf16, bout, *, tq, tv):
    B, S, D = x.shape
    V = wout_bf16.shape[1]
    return pl.pallas_call(
        lm_head_kernel,
        out_shape=jax.ShapeDtypeStruct((B, S, V), jnp.float32),
        grid=(B, S // tq, V // tv),
        in_specs=[
            pl.BlockSpec((None, tq, D), lambda b, qi, vi: (b, qi, 0)),
            _VMEM_RESIDENT, _VMEM_RESIDENT,                          # final LN params
            pl.BlockSpec((D, tv), lambda b, qi, vi: (0, vi)),        # weight tile
            pl.BlockSpec((1, tv), lambda b, qi, vi: (0, vi)),        # bias tile
        ],
        out_specs=pl.BlockSpec((None, tq, tv), lambda b, qi, vi: (b, qi, vi)),
        compiler_params=pltpu.CompilerParams(
            dimension_semantics=("parallel", "parallel", "arbitrary"),
            vmem_limit_bytes=_VMEM_LIMIT,
        ),
    )(x, g, be, wout_bf16, bout)


# --------------------------------------------------------------------------- #
# One-time parameter preparation (hoisted out of the per-forward hot path):
# fuse QKV weights and cast all matmul weights to bf16 (halved HBM->VMEM DMA).
# --------------------------------------------------------------------------- #
def prepare_params(params):
    bf16 = lambda w: w.astype(jnp.bfloat16)
    layers = []
    for l in params["layers"]:
        layers.append(dict(
            wqkv=bf16(jnp.concatenate([l["wq"], l["wk"], l["wv"]], axis=1)),
            bqkv=jnp.concatenate([l["bq"], l["bk"], l["bv"]], axis=1),
            wo=bf16(l["wo"]), bo=l["bo"],
            w1=bf16(l["w1"]), b1=l["b1"],
            w2=bf16(l["w2"]), b2=l["b2"],
            g1=l["g1"], be1=l["be1"], g2=l["g2"], be2=l["be2"],
        ))
    return dict(
        tok_emb=params["tok_emb"], pos_emb=params["pos_emb"], layers=layers,
        g_f=params["g_f"], be_f=params["be_f"],
        wout=bf16(params["wout"]), bout=params["bout"],
    )


def gpt_forward(tokens, prepared, *, num_heads, tq, tv):
    B, S = tokens.shape
    # TODO(synk): token/position embedding gather kept in plain JAX; a Pallas
    # version would need scalar-prefetched ids + pl.Element row indexing.
    x = prepared["tok_emb"][tokens] + prepared["pos_emb"][jnp.arange(S)][None, :, :]
    # Residual stream kept fp32 for accuracy (bf16 residual is a further HBM saving
    # if tolerances allow).
    for layer in prepared["layers"]:
        x = decoder_block(x, layer, num_heads=num_heads, tq=tq)
    return lm_head(x, prepared["g_f"], prepared["be_f"],
                   prepared["wout"], prepared["bout"], tq=tq, tv=tv)


# --------------------------------------------------------------------------- #
# Plain-JAX fp32 reference mirroring the PyTorch forward (eval mode).
# --------------------------------------------------------------------------- #
def gpt_forward_ref(tokens, params, *, num_heads):
    B, S = tokens.shape
    x = params["tok_emb"][tokens] + params["pos_emb"][jnp.arange(S)][None, :, :]
    D = x.shape[-1]
    d_k = D // num_heads

    def ln(h, g, b):
        mu = jnp.mean(h, axis=-1, keepdims=True)
        var = jnp.mean((h - mu) ** 2, axis=-1, keepdims=True)
        return (h - mu) / jnp.sqrt(var + 1e-5) * g + b

    mask = jnp.triu(jnp.ones((S, S), bool), 1)
    for l in params["layers"]:
        h = ln(x, l["g1"], l["be1"])
        q = h @ l["wq"] + l["bq"]
        k = h @ l["wk"] + l["bk"]
        v = h @ l["wv"] + l["bv"]
        q = q.reshape(B, S, num_heads, d_k).transpose(0, 2, 1, 3)
        k = k.reshape(B, S, num_heads, d_k).transpose(0, 2, 1, 3)
        v = v.reshape(B, S, num_heads, d_k).transpose(0, 2, 1, 3)
        scores = jnp.einsum("bhqd,bhkd->bhqk", q, k) / math.sqrt(d_k)
        scores = jnp.where(mask, -jnp.inf, scores)
        probs = jax.nn.softmax(scores, axis=-1)
        attn = jnp.einsum("bhqk,bhkd->bhqd", probs, v)
        attn = attn.transpose(0, 2, 1, 3).reshape(B, S, D)
        x = x + (attn @ l["wo"] + l["bo"])
        h2 = ln(x, l["g2"], l["be2"])
        f = h2 @ l["w1"] + l["b1"]
        f = 0.5 * f * (1.0 + lax.erf(f / math.sqrt(2.0)))
        x = x + (f @ l["w2"] + l["b2"])
    h = ln(x, params["g_f"], params["be_f"])
    return h @ params["wout"] + params["bout"]


def make_params(key, *, vocab, max_seq, d_model, d_ff, num_layers):
    keys = jax.random.split(key, num_layers + 3)
    s = 0.02

    def lin(k, i, o):
        kw, kb = jax.random.split(k)
        return (s * jax.random.normal(kw, (i, o), jnp.float32),
                s * jax.random.normal(kb, (1, o), jnp.float32))

    layers = []
    for li in range(num_layers):
        lk = jax.random.split(keys[li], 6)
        wq, bq = lin(lk[0], d_model, d_model)
        wk, bk = lin(lk[1], d_model, d_model)
        wv, bv = lin(lk[2], d_model, d_model)
        wo, bo = lin(lk[3], d_model, d_model)
        w1, b1 = lin(lk[4], d_model, d_ff)
        w2, b2 = lin(lk[5], d_ff, d_model)
        layers.append(dict(
            wq=wq, bq=bq, wk=wk, bk=bk, wv=wv, bv=bv, wo=wo, bo=bo,
            w1=w1, b1=b1, w2=w2, b2=b2,
            g1=jnp.ones((1, d_model), jnp.float32),
            be1=jnp.zeros((1, d_model), jnp.float32),
            g2=jnp.ones((1, d_model), jnp.float32),
            be2=jnp.zeros((1, d_model), jnp.float32),
        ))
    wout, bout = lin(keys[num_layers], d_model, vocab)
    return dict(
        tok_emb=s * jax.random.normal(keys[num_layers + 1], (vocab, d_model), jnp.float32),
        pos_emb=s * jax.random.normal(keys[num_layers + 2], (max_seq, d_model), jnp.float32),
        layers=layers,
        g_f=jnp.ones((1, d_model), jnp.float32),
        be_f=jnp.zeros((1, d_model), jnp.float32),
        wout=wout, bout=bout,
    )


if __name__ == "__main__":
    # Small but kernel-friendly config: D, F, vocab multiples of 128; S = 128 so a
    # full 128-row query tile (TQ=128) exercises the intended MXU-friendly tiling.
    # NOTE: d_k = D/H = 32 < 128 underutilizes the 256-wide v6e/v7x MXU contraction
    # on the attention matmuls; that is a model-config property, not a kernel one.
    B, S, D, H, F = 2, 128, 128, 4, 256
    VOCAB, MAX_SEQ, LAYERS = 256, 128, 2
    TQ, TV = 128, 128

    key = jax.random.PRNGKey(0)
    ktok, kp = jax.random.split(key)
    tokens = jax.random.randint(ktok, (B, S), 0, VOCAB, dtype=jnp.int32)
    params = make_params(kp, vocab=VOCAB, max_seq=MAX_SEQ,
                         d_model=D, d_ff=F, num_layers=LAYERS)
    prepared = prepare_params(params)          # one-time weight fusion / bf16 cast

    logits = gpt_forward(tokens, prepared, num_heads=H, tq=TQ, tv=TV)
    logits = jax.block_until_ready(logits)

    ref = gpt_forward_ref(tokens, params, num_heads=H)
    # bf16 matmuls (fp32 accumulation) + approx reciprocal vs fp32 reference.
    np.testing.assert_allclose(np.asarray(logits), np.asarray(ref),
                               rtol=5e-2, atol=5e-2)
    print("KERNEL_OK")
</pallas_src>

<mosaic_0001>
module attributes {stable_mosaic.version = 11 : i64} {
  func.func @qkv_kernel(%arg0: i32, %arg1: i32, %arg2: memref<1x128x128xf32, #tpu.memory_space<vmem>>, %arg3: memref<1x128xf32, #tpu.memory_space<vmem>>, %arg4: memref<1x128xf32, #tpu.memory_space<vmem>>, %arg5: memref<128x384xbf16, #tpu.memory_space<vmem>>, %arg6: memref<1x384xf32, #tpu.memory_space<vmem>>, %arg7: memref<1x4x128x32xbf16, #tpu.memory_space<vmem>>, %arg8: memref<1x4x128x32xbf16, #tpu.memory_space<vmem>>, %arg9: memref<1x4x128x32xbf16, #tpu.memory_space<vmem>>) attributes {dimension_semantics = [#tpu.dimension_semantics<parallel>, #tpu.dimension_semantics<parallel>], iteration_bounds = array<i64: 2, 1>, scalar_prefetch = 0 : i64, scratch_operands = 0 : i64, tpu.core_type = #tpu.core_type<tc>, window_params = [{transform_indices = @transform_0, window_bounds = array<i64: 1, 128, 128>}, {pipeline_mode = #tpu.pipeline_mode<synchronous>, transform_indices = @transform_1, window_bounds = array<i64: 1, 128>}, {pipeline_mode = #tpu.pipeline_mode<synchronous>, transform_indices = @transform_2, window_bounds = array<i64: 1, 128>}, {pipeline_mode = #tpu.pipeline_mode<synchronous>, transform_indices = @transform_3, window_bounds = array<i64: 128, 384>}, {pipeline_mode = #tpu.pipeline_mode<synchronous>, transform_indices = @transform_4, window_bounds = array<i64: 1, 384>}, {transform_indices = @transform_5, window_bounds = array<i64: 1, 4, 128, 32>}, {transform_indices = @transform_6, window_bounds = array<i64: 1, 4, 128, 32>}, {transform_indices = @transform_7, window_bounds = array<i64: 1, 4, 128, 32>}]} {
    %c0 = arith.constant 0 : index
    %c0_0 = arith.constant 0 : index
    %c0_1 = arith.constant 0 : index
    %0 = vector.load %arg2[%c0, %c0_0, %c0_1] : memref<1x128x128xf32, #tpu.memory_space<vmem>>, vector<1x128x128xf32>
    %1 = vector.shape_cast %0 : vector<1x128x128xf32> to vector<128x128xf32>
    %c0_2 = arith.constant 0 : index
    %c0_3 = arith.constant 0 : index
    %2 = vector.load %arg3[%c0_2, %c0_3] : memref<1x128xf32, #tpu.memory_space<vmem>>, vector<1x128xf32>
    %c0_4 = arith.constant 0 : index
    %c0_5 = arith.constant 0 : index
    %3 = vector.load %arg4[%c0_4, %c0_5] : memref<1x128xf32, #tpu.memory_space<vmem>>, vector<1x128xf32>
    %cst = arith.constant dense<0.000000e+00> : vector<128xf32>
    %4 = vector.multi_reduction <add>, %1, %cst [1] : vector<128x128xf32> to vector<128xf32>
    %5 = vector.shape_cast %4 : vector<128xf32> to vector<128x1xf32>
    %cst_6 = arith.constant 1.280000e+02 : f32
    %6 = vector.broadcast %cst_6 : f32 to vector<128x1xf32>
    %7 = arith.divf %5, %6 : vector<128x1xf32>
    %8 = vector.broadcast %7 : vector<128x1xf32> to vector<128x128xf32>
    %9 = arith.subf %1, %8 : vector<128x128xf32>
    %10 = arith.mulf %9, %9 : vector<128x128xf32>
    %cst_7 = arith.constant dense<0.000000e+00> : vector<128xf32>
    %11 = vector.multi_reduction <add>, %10, %cst_7 [1] : vector<128x128xf32> to vector<128xf32>
    %12 = vector.shape_cast %11 : vector<128xf32> to vector<128x1xf32>
    %cst_8 = arith.constant 1.280000e+02 : f32
    %13 = vector.broadcast %cst_8 : f32 to vector<128x1xf32>
    %14 = arith.divf %12, %13 : vector<128x1xf32>
    %15 = vector.broadcast %7 : vector<128x1xf32> to vector<128x128xf32>
    %16 = arith.subf %1, %15 : vector<128x128xf32>
    %cst_9 = arith.constant 9.99999974E-6 : f32
    %17 = vector.broadcast %cst_9 : f32 to vector<128x1xf32>
    %18 = arith.addf %14, %17 : vector<128x1xf32>
    %19 = math.rsqrt %18 : vector<128x1xf32>
    %20 = vector.broadcast %19 : vector<128x1xf32> to vector<128x128xf32>
    %21 = arith.mulf %16, %20 : vector<128x128xf32>
    %22 = vector.broadcast %2 : vector<1x128xf32> to vector<128x128xf32>
    %23 = arith.mulf %21, %22 : vector<128x128xf32>
    %24 = vector.broadcast %3 : vector<1x128xf32> to vector<128x128xf32>
    %25 = arith.addf %23, %24 : vector<128x128xf32>
    %26 = arith.truncf %25 : vector<128x128xf32> to vector<128x128xbf16>
    %c0_10 = arith.constant 0 : index
    %c0_11 = arith.constant 0 : index
    %27 = vector.load %arg5[%c0_10, %c0_11] : memref<128x384xbf16, #tpu.memory_space<vmem>>, vector<128x384xbf16>
    %cst_12 = arith.constant dense<0.000000e+00> : vector<128x384xf32>
    %28 = tpu.matmul %26, %27, %cst_12 {dimension_numbers = #tpu.dot_dimension_numbers<[1], [0], [0], [1], [0, 0, 1, 1], [], []>} : vector<128x128xbf16>, vector<128x384xbf16>, vector<128x384xf32> -> vector<128x384xf32>
    %c0_13 = arith.constant 0 : index
    %c0_14 = arith.constant 0 : index
    %29 = vector.load %arg6[%c0_13, %c0_14] : memref<1x384xf32, #tpu.memory_space<vmem>>, vector<1x384xf32>
    %30 = vector.broadcast %29 : vector<1x384xf32> to vector<128x384xf32>
    %31 = arith.addf %28, %30 : vector<128x384xf32>
    %32 = vector.extract_strided_slice %31 {offsets = [0, 0], sizes = [128, 128], strides = [1, 1]} : vector<128x384xf32> to vector<128x128xf32>
    %33 = vector.shape_cast %32 : vector<128x128xf32> to vector<128x4x32xf32>
    %34 = tpu.transpose %33, [1, 0, 2] : vector<128x4x32xf32> -> vector<4x128x32xf32>
    %35 = arith.truncf %34 : vector<4x128x32xf32> to vector<4x128x32xbf16>
    %c0_15 = arith.constant 0 : index
    %c0_16 = arith.constant 0 : index
    %c0_17 = arith.constant 0 : index
    %c0_18 = arith.constant 0 : index
    %36 = vector.load %arg7[%c0_15, %c0_16, %c0_17, %c0_18] : memref<1x4x128x32xbf16, #tpu.memory_space<vmem>>, vector<1x4x128x32xbf16>
    %37 = vector.shape_cast %36 : vector<1x4x128x32xbf16> to vector<4x128x32xbf16>
    %38 = vector.shape_cast %35 : vector<4x128x32xbf16> to vector<1x4x128x32xbf16>
    tpu.vector_store %arg7[%c0_15, %c0_16, %c0_17, %c0_18], %38 {strides = array<i32>} : memref<1x4x128x32xbf16, #tpu.memory_space<vmem>>, vector<1x4x128x32xbf16>,
    %39 = vector.extract_strided_slice %31 {offsets = [0, 128], sizes = [128, 128], strides = [1, 1]} : vector<128x384xf32> to vector<128x128xf32>
    %40 = vector.shape_cast %39 : vector<128x128xf32> to vector<128x4x32xf32>
    %41 = tpu.transpose %40, [1, 0, 2] : vector<128x4x32xf32> -> vector<4x128x32xf32>
    %42 = arith.truncf %41 : vector<4x128x32xf32> to vector<4x128x32xbf16>
    %c0_19 = arith.constant 0 : index
    %c0_20 = arith.constant 0 : index
    %c0_21 = arith.constant 0 : index
    %c0_22 = arith.constant 0 : index
    %43 = vector.load %arg8[%c0_19, %c0_20, %c0_21, %c0_22] : memref<1x4x128x32xbf16, #tpu.memory_space<vmem>>, vector<1x4x128x32xbf16>
    %44 = vector.shape_cast %43 : vector<1x4x128x32xbf16> to vector<4x128x32xbf16>
    %45 = vector.shape_cast %42 : vector<4x128x32xbf16> to vector<1x4x128x32xbf16>
    tpu.vector_store %arg8[%c0_19, %c0_20, %c0_21, %c0_22], %45 {strides = array<i32>} : memref<1x4x128x32xbf16, #tpu.memory_space<vmem>>, vector<1x4x128x32xbf16>,
    %46 = vector.extract_strided_slice %31 {offsets = [0, 256], sizes = [128, 128], strides = [1, 1]} : vector<128x384xf32> to vector<128x128xf32>
    %47 = vector.shape_cast %46 : vector<128x128xf32> to vector<128x4x32xf32>
    %48 = tpu.transpose %47, [1, 0, 2] : vector<128x4x32xf32> -> vector<4x128x32xf32>
    %49 = arith.truncf %48 : vector<4x128x32xf32> to vector<4x128x32xbf16>
    %c0_23 = arith.constant 0 : index
    %c0_24 = arith.constant 0 : index
    %c0_25 = arith.constant 0 : index
    %c0_26 = arith.constant 0 : index
    %50 = vector.load %arg9[%c0_23, %c0_24, %c0_25, %c0_26] : memref<1x4x128x32xbf16, #tpu.memory_space<vmem>>, vector<1x4x128x32xbf16>
    %51 = vector.shape_cast %50 : vector<1x4x128x32xbf16> to vector<4x128x32xbf16>
    %52 = vector.shape_cast %49 : vector<4x128x32xbf16> to vector<1x4x128x32xbf16>
    tpu.vector_store %arg9[%c0_23, %c0_24, %c0_25, %c0_26], %52 {strides = array<i32>} : memref<1x4x128x32xbf16, #tpu.memory_space<vmem>>, vector<1x4x128x32xbf16>,
    return
  }
  func.func @transform_0(%arg0: i32, %arg1: i32) -> (i32, i32, i32) {
    %c0_i32 = arith.constant 0 : i32
    %c0_i32_0 = arith.constant 0 : i32
    return %arg0, %arg1, %c0_i32 : i32, i32, i32
  }
  func.func @transform_1(%arg0: i32, %arg1: i32) -> (i32, i32) {
    %c0_i32 = arith.constant 0 : i32
    %c0_i32_0 = arith.constant 0 : i32
    %c0_i32_1 = arith.constant 0 : i32
    return %c0_i32, %c0_i32_0 : i32, i32
  }
  func.func @transform_2(%arg0: i32, %arg1: i32) -> (i32, i32) {
    %c0_i32 = arith.constant 0 : i32
    %c0_i32_0 = arith.constant 0 : i32
    %c0_i32_1 = arith.constant 0 : i32
    return %c0_i32, %c0_i32_0 : i32, i32
  }
  func.func @transform_3(%arg0: i32, %arg1: i32) -> (i32, i32) {
    %c0_i32 = arith.constant 0 : i32
    %c0_i32_0 = arith.constant 0 : i32
    %c0_i32_1 = arith.constant 0 : i32
    return %c0_i32, %c0_i32_0 : i32, i32
  }
  func.func @transform_4(%arg0: i32, %arg1: i32) -> (i32, i32) {
    %c0_i32 = arith.constant 0 : i32
    %c0_i32_0 = arith.constant 0 : i32
    %c0_i32_1 = arith.constant 0 : i32
    return %c0_i32, %c0_i32_0 : i32, i32
  }
  func.func @transform_5(%arg0: i32, %arg1: i32) -> (i32, i32, i32, i32) {
    %c0_i32 = arith.constant 0 : i32
    %c0_i32_0 = arith.constant 0 : i32
    %c0_i32_1 = arith.constant 0 : i32
    return %arg0, %c0_i32, %arg1, %c0_i32_0 : i32, i32, i32, i32
  }
  func.func @transform_6(%arg0: i32, %arg1: i32) -> (i32, i32, i32, i32) {
    %c0_i32 = arith.constant 0 : i32
    %c0_i32_0 = arith.constant 0 : i32
    %c0_i32_1 = arith.constant 0 : i32
    return %arg0, %c0_i32, %arg1, %c0_i32_0 : i32, i32, i32, i32
  }
  func.func @transform_7(%arg0: i32, %arg1: i32) -> (i32, i32, i32, i32) {
    %c0_i32 = arith.constant 0 : i32
    %c0_i32_0 = arith.constant 0 : i32
    %c0_i32_1 = arith.constant 0 : i32
    return %arg0, %c0_i32, %arg1, %c0_i32_0 : i32, i32, i32, i32
  }
}

</mosaic_0001>

<llo_original>
// kernel: tpu_custom_call.1
$region0: #{tpu_custom_call.1}
  #allocation0 [shape = 'u32[]', space=smem, size = 0x4, offset = 0x4, fixed_abs, tag = 'smem constant byte address 0x4 - core index']
  #allocation1 [shape = 'u32[144,128]{1,0:T(1,128)}', space=vmem, size = 0x12000, scoped, tag = 'internal scratch']
  %s0 = inlined_call_operand.hbm [shape: f32[2,128,128], index: 0, kind: input, shape index: {}]
  %s1 = inlined_call_operand.vmem [shape: f32[1,128], index: 1, kind: input, shape index: {}]
  %s2 = inlined_call_operand.vmem [shape: f32[1,128], index: 2, kind: input, shape index: {}]
  %s3 = inlined_call_operand.hbm [shape: bf16[128,384], index: 3, kind: input, shape index: {}]
  %s4 = inlined_call_operand.vmem [shape: f32[1,384], index: 4, kind: input, shape index: {}]
  %s5 = inlined_call_operand.vmem [shape: bf16[2,4,128,32], index: 5, kind: output, shape index: {0}]
  %s6 = inlined_call_operand.vmem [shape: bf16[2,4,128,32], index: 6, kind: output, shape index: {1}]
  %s7 = inlined_call_operand.vmem [shape: bf16[2,4,128,32], index: 7, kind: output, shape index: {2}]
  %8 = xla_tuple %s5, %s6, %s7
  %s9 = sld [smem:[#allocation0]]
  $region77: #{tpu_custom_call.1} parent=0
    _
  %s11 = ssub.s32 1, %s9
  %s12 = scalar_select 0, %s11, %s9
  $region1: #{tpu_custom_call.1} parent=0
    #allocation2 [shape = 'u8[131072]{0}', space=vmem, size = 0x20000, scoped, tag = 'input window, operand 0']
    #allocation3 [shape = 's32[2]{0}', space=sflag, size = 0x8, scoped, tag = 'scoped memory for tpu_custom_call.1']
    #allocation4 [shape = 'u8[98304]{0}', space=vmem, size = 0x18000, scoped, tag = 'input window, operand 3, single buffered']
    #allocation5 [shape = 's32[1]{0}', space=sflag, size = 0x4, scoped, tag = 'scoped memory for tpu_custom_call.1']
    %13 = vsyncpa [#allocation3], 0
    %s14 = scalar_lea.sflag [#allocation3], 1
    %15 = vsyncpa %s14, 0
    %16 = vsyncpa [#allocation5], 0
    loop: start=0, step=1, limit=4
    $region2: #{tpu_custom_call.1} parent=1 // loop_pre_header
      _
    $region3: #{tpu_custom_call.1} parent=1 // loop_header
      %s18 = sphi 0, %s22
      %p19 = scmp.ge.s32.totalorder %s18, 4
      %s25 = sphi 0, %s37
      %s26 = sphi 0, %s33
      %s27 = sphi 0, %s25
      %s28 = sphi 0, %s26
      %s29 = sphi 0, %s27
      %s30 = sphi 0, %s28
      %s42 = sphi 0, %s44
      %s45 = sphi 0, %s42
      %s46 = sphi 0, %s45
      %s62 = sphi 0, %s46
      %s66 = sphi 0, %s66
      %s68 = sphi 0, %s66
      %s69 = sphi 0, %s68
      %s83 = sphi 0, %s69
      %s87 = sphi 0, %s87
      %s89 = sphi 0, %s87
      %s90 = sphi 0, %s89
      %s104 = sphi 0, %s90
      %s108 = sphi 0, %s108
      %s110 = sphi 0, %s108
      %s111 = sphi 0, %s110
      %s125 = sphi 0, %s111
      %s129 = sphi 0, %s129
      %s131 = sphi 0, %s129
      %s132 = sphi 0, %s131
      %s146 = sphi 0, %s132
      %s154 = sphi 0, %s156
      %s157 = sphi 0, %s154
      %s158 = sphi 0, %s157
      %s174 = sphi 0, %s158
      %s182 = sphi 0, %s184
      %s185 = sphi 0, %s182
      %s186 = sphi 0, %s185
      %s202 = sphi 0, %s186
      %s210 = sphi 0, %s212
      %s213 = sphi 0, %s210
      %s214 = sphi 0, %s213
      %s230 = sphi 0, %s214
    $region4: #{tpu_custom_call.1} parent=1 // loop_header_branch
      %21 = sbr.rel (%p19) target = $region8
    $region5: #{tpu_custom_call.1} parent=1 // loop_body
      %s23 = ssub.s32 %s18, 1
      %s24 = ssub.s32 %s18, 2
      %s31 = sadd.s32 1, %s26
      %p32 = scmp.ge.s32.totalorder %s31, 1
      %s33 = scalar_select %p32, 0, %s31
      %s34 = sadd.s32 1, %s25
      %s35 = scalar_select %p32, %s34, %s25
      %p36 = scmp.ge.s32.totalorder %s35, 2
      %s37 = scalar_select %p36, 0, %s35
      %s38 = ssub.s32 %s25, %s37
      %s39 = ssub.s32 %s26, %s33
      %s40 = sor.u32 %s38, %s39
      %p41 = scmp.eq.s32.totalorder %s40, 0
      %s43 = sadd.s32 %s42, 1
      %s44 = scalar_select %p41, %s42, %s43
      %p47 = pneg %p41
      %p48 = scmp.eq.s32.totalorder %s18, 1
      %p49 = por %p47, %p48
      %p50 = scmp.ne.s32.totalorder %s42, %s45
      %p51 = scmp.eq.s32.totalorder %s18, 0
      %p52 = por %p50, %p51
      %p53 = scmp.ne.s32.totalorder %s42, %s45
      %p54 = scmp.eq.s32.totalorder %s23, 1
      %p55 = por %p53, %p54
      %p56 = scmp.ne.s32.totalorder %s45, %s46
      %p57 = scmp.eq.s32.totalorder %s23, 0
      %p58 = por %p56, %p57
      %p59 = scmp.ne.s32.totalorder %s45, %s46
      %p60 = scmp.eq.s32.totalorder %s24, 1
      %p61 = por %p59, %p60
      %p63 = scmp.ne.s32.totalorder %s46, %s62
      %p64 = scmp.eq.s32.totalorder %s24, 0
      %p65 = por %p63, %p64
      %s67 = sadd.s32 %s66, 1
      %p70 = scmp.eq.s32.totalorder %s18, 1
      %p71 = scmp.ne.s32.totalorder %s66, %s68
      %p72 = scmp.eq.s32.totalorder %s18, 0
      %p73 = por %p71, %p72
      %p74 = scmp.ne.s32.totalorder %s66, %s68
      %p75 = scmp.eq.s32.totalorder %s23, 1
      %p76 = por %p74, %p75
      %p77 = scmp.ne.s32.totalorder %s68, %s69
      %p78 = scmp.eq.s32.totalorder %s23, 0
      %p79 = por %p77, %p78
      %p80 = scmp.ne.s32.totalorder %s68, %s69
      %p81 = scmp.eq.s32.totalorder %s24, 1
      %p82 = por %p80, %p81
      %p84 = scmp.ne.s32.totalorder %s69, %s83
      %p85 = scmp.eq.s32.totalorder %s24, 0
      %p86 = por %p84, %p85
      %s88 = sadd.s32 %s87, 1
      %p91 = scmp.eq.s32.totalorder %s18, 1
      %p92 = scmp.ne.s32.totalorder %s87, %s89
      %p93 = scmp.eq.s32.totalorder %s18, 0
      %p94 = por %p92, %p93
      %p95 = scmp.ne.s32.totalorder %s87, %s89
      %p96 = scmp.eq.s32.totalorder %s23, 1
      %p97 = por %p95, %p96
      %p98 = scmp.ne.s32.totalorder %s89, %s90
      %p99 = scmp.eq.s32.totalorder %s23, 0
      %p100 = por %p98, %p99
      %p101 = scmp.ne.s32.totalorder %s89, %s90
      %p102 = scmp.eq.s32.totalorder %s24, 1
      %p103 = por %p101, %p102
      %p105 = scmp.ne.s32.totalorder %s90, %s104
      %p106 = scmp.eq.s32.totalorder %s24, 0
      %p107 = por %p105, %p106
      %s109 = sadd.s32 %s108, 1
      %p112 = scmp.eq.s32.totalorder %s18, 1
      %p113 = scmp.ne.s32.totalorder %s108, %s110
      %p114 = scmp.eq.s32.totalorder %s18, 0
      %p115 = por %p113, %p114
      %p116 = scmp.ne.s32.totalorder %s108, %s110
      %p117 = scmp.eq.s32.totalorder %s23, 1
      %p118 = por %p116, %p117
      %p119 = scmp.ne.s32.totalorder %s110, %s111
      %p120 = scmp.eq.s32.totalorder %s23, 0
      %p121 = por %p119, %p120
      %p122 = scmp.ne.s32.totalorder %s110, %s111
      %p123 = scmp.eq.s32.totalorder %s24, 1
      %p124 = por %p122, %p123
      %p126 = scmp.ne.s32.totalorder %s111, %s125
      %p127 = scmp.eq.s32.totalorder %s24, 0
      %p128 = por %p126, %p127
      %s130 = sadd.s32 %s129, 1
      %p133 = scmp.eq.s32.totalorder %s18, 1
      %p134 = scmp.ne.s32.totalorder %s129, %s131
      %p135 = scmp.eq.s32.totalorder %s18, 0
      %p136 = por %p134, %p135
      %p137 = scmp.ne.s32.totalorder %s129, %s131
      %p138 = scmp.eq.s32.totalorder %s23, 1
      %p139 = por %p137, %p138
      %p140 = scmp.ne.s32.totalorder %s131, %s132
      %p141 = scmp.eq.s32.totalorder %s23, 0
      %p142 = por %p140, %p141
      %p143 = scmp.ne.s32.totalorder %s131, %s132
      %p144 = scmp.eq.s32.totalorder %s24, 1
      %p145 = por %p143, %p144
      %p147 = scmp.ne.s32.totalorder %s132, %s146
      %p148 = scmp.eq.s32.totalorder %s24, 0
      %p149 = por %p147, %p148
      %s150 = ssub.s32 %s25, %s37
      %s151 = ssub.s32 %s26, %s33
      %s152 = sor.u32 %s150, %s151
      %p153 = scmp.eq.s32.totalorder %s152, 0
      %s155 = sadd.s32 %s154, 1
      %s156 = scalar_select %p153, %s154, %s155
      %p159 = pneg %p153
      %p160 = scmp.eq.s32.totalorder %s18, 1
      %p161 = por %p159, %p160
      %p162 = scmp.ne.s32.totalorder %s154, %s157
      %p163 = scmp.eq.s32.totalorder %s18, 0
      %p164 = por %p162, %p163
      %p165 = scmp.ne.s32.totalorder %s154, %s157
      %p166 = scmp.eq.s32.totalorder %s23, 1
      %p167 = por %p165, %p166
      %p168 = scmp.ne.s32.totalorder %s157, %s158
      %p169 = scmp.eq.s32.totalorder %s23, 0
      %p170 = por %p168, %p169
      %p171 = scmp.ne.s32.totalorder %s157, %s158
      %p172 = scmp.eq.s32.totalorder %s24, 1
      %p173 = por %p171, %p172
      %p175 = scmp.ne.s32.totalorder %s158, %s174
      %p176 = scmp.eq.s32.totalorder %s24, 0
      %p177 = por %p175, %p176
      %s178 = ssub.s32 %s25, %s37
      %s179 = ssub.s32 %s26, %s33
      %s180 = sor.u32 %s178, %s179
      %p181 = scmp.eq.s32.totalorder %s180, 0
      %s183 = sadd.s32 %s182, 1
      %s184 = scalar_select %p181, %s182, %s183
      %p187 = pneg %p181
      %p188 = scmp.eq.s32.totalorder %s18, 1
      %p189 = por %p187, %p188
      %p190 = scmp.ne.s32.totalorder %s182, %s185
      %p191 = scmp.eq.s32.totalorder %s18, 0
      %p192 = por %p190, %p191
      %p193 = scmp.ne.s32.totalorder %s182, %s185
      %p194 = scmp.eq.s32.totalorder %s23, 1
      %p195 = por %p193, %p194
      %p196 = scmp.ne.s32.totalorder %s185, %s186
      %p197 = scmp.eq.s32.totalorder %s23, 0
      %p198 = por %p196, %p197
      %p199 = scmp.ne.s32.totalorder %s185, %s186
      %p200 = scmp.eq.s32.totalorder %s24, 1
      %p201 = por %p199, %p200
      %p203 = scmp.ne.s32.totalorder %s186, %s202
      %p204 = scmp.eq.s32.totalorder %s24, 0
      %p205 = por %p203, %p204
      %s206 = ssub.s32 %s25, %s37
      %s207 = ssub.s32 %s26, %s33
      %s208 = sor.u32 %s206, %s207
      %p209 = scmp.eq.s32.totalorder %s208, 0
      %s211 = sadd.s32 %s210, 1
      %s212 = scalar_select %p209, %s210, %s211
      %p215 = pneg %p209
      %p216 = scmp.eq.s32.totalorder %s18, 1
      %p217 = por %p215, %p216
      %p218 = scmp.ne.s32.totalorder %s210, %s213
      %p219 = scmp.eq.s32.totalorder %s18, 0
      %p220 = por %p218, %p219
      %p221 = scmp.ne.s32.totalorder %s210, %s213
      %p222 = scmp.eq.s32.totalorder %s23, 1
      %p223 = por %p221, %p222
      %p224 = scmp.ne.s32.totalorder %s213, %s214
      %p225 = scmp.eq.s32.totalorder %s23, 0
      %p226 = por %p224, %p225
      %p227 = scmp.ne.s32.totalorder %s213, %s214
      %p228 = scmp.eq.s32.totalorder %s24, 1
      %p229 = por %p227, %p228
      %p231 = scmp.ne.s32.totalorder %s214, %s230
      %p232 = scmp.eq.s32.totalorder %s24, 0
      %p233 = por %p231, %p232
      %p234 = scmp.le.s32.totalorder 1, %s18
      %p235 = scmp.lt.s32.totalorder %s18, 3
      %p236 = pnand %p234, %p235
      %p237 = pneg %p236
      // Predicated region
      $region9: #{tpu_custom_call.1} parent=5 // pred_check
        _
      $region10: #{tpu_custom_call.1} parent=5 // pred_check_branch
        %239 = sbr.rel (%p236) target = $region12
      $region11: #{tpu_custom_call.1} parent=5 // pred_region
        %s240 = ssub.s32 %s18, 1
        // Predicated region
        $region13: #{tpu_custom_call.1} parent=11 // pred_check
          %p241 = pneg %p79
        $region14: #{tpu_custom_call.1} parent=11 // pred_check_branch
          %243 = sbr.rel (%p241) target = $region16
        $region15: #{tpu_custom_call.1} parent=11 // pred_region
          _
        $region16: #{tpu_custom_call.1} parent=11 // pred_fallthru
          _
        // Predicated region
        $region17: #{tpu_custom_call.1} parent=11 // pred_check
          %p244 = pneg %p100
        $region18: #{tpu_custom_call.1} parent=11 // pred_check_branch
          %246 = sbr.rel (%p244) target = $region20
        $region19: #{tpu_custom_call.1} parent=11 // pred_region
          _
        $region20: #{tpu_custom_call.1} parent=11 // pred_fallthru
          _
        // Predicated region
        $region21: #{tpu_custom_call.1} parent=11 // pred_check
          %p247 = pneg %p121
        $region22: #{tpu_custom_call.1} parent=11 // pred_check_branch
          %249 = sbr.rel (%p247) target = $region24
        $region23: #{tpu_custom_call.1} parent=11 // pred_region
          %s251 = ssub.s32 3072, 3072
          %252 = vsyncadd [#allocation5], %s251
          %s253 = sshll.u32 [#allocation4], 4
          %s254 = int_to_ptr.vmem [resolvable:$true] %s253
          %259 = dma.hbm_to_vmem [thread:$0]  %s3, 3072, %s254, [#allocation5], 192, 192, 12
        $region24: #{tpu_custom_call.1} parent=11 // pred_fallthru
          _
        // Predicated region
        $region25: #{tpu_custom_call.1} parent=11 // pred_check
          %p260 = pneg %p142
        $region26: #{tpu_custom_call.1} parent=11 // pred_check_branch
          %262 = sbr.rel (%p260) target = $region28
        $region27: #{tpu_custom_call.1} parent=11 // pred_region
          _
        $region28: #{tpu_custom_call.1} parent=11 // pred_fallthru
          _
      $region12: #{tpu_custom_call.1} parent=5 // pred_fallthru
        _
      %p263 = scmp.lt.s32.totalorder %s18, 2
      // Predicated region
      $region29: #{tpu_custom_call.1} parent=5 // pred_check
        %p264 = pneg %p263
      $region30: #{tpu_custom_call.1} parent=5 // pred_check_branch
        %266 = sbr.rel (%p264) target = $region32
      $region31: #{tpu_custom_call.1} parent=5 // pred_region
        // Predicated region
        $region33: #{tpu_custom_call.1} parent=31 // pred_check
          %p267 = pneg %p52
        $region34: #{tpu_custom_call.1} parent=31 // pred_check_branch
          %269 = sbr.rel (%p267) target = $region36
        $region35: #{tpu_custom_call.1} parent=31 // pred_region
          %s270 = sand.u32 %s42, 1
          %s271 = scalar_lea.sflag [#allocation3], %s270
          %s272 = sand.u32 %s42, 1
          %s273 = smul.addr %s272, 128
          %s274 = scalar_lea.vmem [#allocation2], %s273
          %s275 = smul.u32 16, %s26
          %s277 = ssub.s32 2048, 2048
          %278 = vsyncadd %s271, %s277
          %s279 = smul.addr %s25, 16
          %s280 = sadd.s32 %s275, %s279
          %s281 = smul.addr %s280, 128
          %s282 = scalar_lea.hbm %s0, %s281
          %s283 = sshll.u32 %s274, 4
          %s284 = int_to_ptr.vmem [resolvable:$true] %s283
          %289 = dma.hbm_to_vmem [thread:$0]  %s282, 2048, %s284, %s271, 128, 128, 8
        $region36: #{tpu_custom_call.1} parent=31 // pred_fallthru
          _
      $region32: #{tpu_custom_call.1} parent=5 // pred_fallthru
        _
      %p290 = scmp.le.s32.totalorder 1, %s18
      %p291 = scmp.lt.s32.totalorder %s18, 3
      %p292 = pnand %p290, %p291
      %p293 = pneg %p292
      // Predicated region
      $region37: #{tpu_custom_call.1} parent=5 // pred_check
        _
      $region38: #{tpu_custom_call.1} parent=5 // pred_check_branch
        %295 = sbr.rel (%p292) target = $region40
      $region39: #{tpu_custom_call.1} parent=5 // pred_region
        %s296 = ssub.s32 %s18, 1
        %s297 = sand.u32 %s45, 1
        %s298 = scalar_lea.sflag [#allocation3], %s297
        %s299 = sand.u32 %s45, 1
        %s300 = smul.addr %s299, 128
        %s301 = scalar_lea.vmem [#allocation2], %s300
        // Predicated region
        $region41: #{tpu_custom_call.1} parent=39 // pred_check
          %p302 = pneg %p58
        $region42: #{tpu_custom_call.1} parent=39 // pred_check_branch
          %304 = sbr.rel (%p302) target = $region44
        $region43: #{tpu_custom_call.1} parent=39 // pred_region
          %305 = dma.done %s298, 2048
        $region44: #{tpu_custom_call.1} parent=39 // pred_fallthru
          _
        // Predicated region
        $region45: #{tpu_custom_call.1} parent=39 // pred_check
          %p306 = pneg %p121
        $region46: #{tpu_custom_call.1} parent=39 // pred_check_branch
          %308 = sbr.rel (%p306) target = $region48
        $region47: #{tpu_custom_call.1} parent=39 // pred_region
          %309 = dma.done [#allocation5], 3072
        $region48: #{tpu_custom_call.1} parent=39 // pred_fallthru
          _
        %s310 = sand.u32 %s45, 1
        %s311 = scalar_lea.sflag [#allocation3], %s310
        %s312 = sand.u32 %s45, 1
        %s313 = smul.addr %s312, 128
        %s314 = scalar_lea.vmem [#allocation2], %s313
        %p315 = pneg %p58
        %p316 = pneg %p55
        %p317 = pneg %p79
        %p318 = pneg %p76
        %p319 = pneg %p100
        %p320 = pneg %p97
        %p321 = pneg %p121
        %p322 = pneg %p118
        %p323 = pneg %p142
        %p324 = pneg %p139
        %p325 = pneg %p170
        %p326 = pneg %p167
        %s327 = smul.u32 16, %s28
        %p328 = scmp.lt.s32.totalorder %s27, 1
        %s329 = scalar_select %p328, %s27, 1
        %p330 = scmp.lt.s32.totalorder %s327, 15
        %s331 = scalar_select %p330, %s327, 15
        %s332 = smul.addr %s329, 64
        %s333 = sadd.s32 %s331, %s332
        %s334 = smul.addr %s333, 4
        %s335 = scalar_lea.vmem %s5, %s334
        %p336 = pneg %p198
        %p337 = pneg %p195
        %s338 = smul.u32 16, %s28
        %p339 = scmp.lt.s32.totalorder %s27, 1
        %s340 = scalar_select %p339, %s27, 1
        %p341 = scmp.lt.s32.totalorder %s338, 15
        %s342 = scalar_select %p341, %s338, 15
        %s343 = smul.addr %s340, 64
        %s344 = sadd.s32 %s342, %s343
        %s345 = smul.addr %s344, 4
        %s346 = scalar_lea.vmem %s6, %s345
        %p347 = pneg %p226
        %p348 = pneg %p223
        %s349 = smul.u32 16, %s28
        %p350 = scmp.lt.s32.totalorder %s27, 1
        %s351 = scalar_select %p350, %s27, 1
        %p352 = scmp.lt.s32.totalorder %s349, 15
        %s353 = scalar_select %p352, %s349, 15
        %s354 = smul.addr %s351, 64
        %s355 = sadd.s32 %s353, %s354
        %s356 = smul.addr %s355, 4
        %s357 = scalar_lea.vmem %s7, %s356
        %s358 = smul.u32 16, %s28
        %s359 = smul.u32 16, %s28
        %p360 = scmp.lt.s32.totalorder %s27, 1
        %s361 = scalar_select %p360, %s27, 1
        %p362 = scmp.lt.s32.totalorder %s359, 15
        %s363 = scalar_select %p362, %s359, 15
        %s364 = smul.addr %s361, 64
        %s365 = sadd.s32 %s363, %s364
        %s366 = smul.addr %s365, 4
        %s367 = scalar_lea.vmem %s5, %s366
        %s368 = smul.u32 16, %s28
        %s369 = smul.u32 16, %s28
        %p370 = scmp.lt.s32.totalorder %s27, 1
        %s371 = scalar_select %p370, %s27, 1
        %p372 = scmp.lt.s32.totalorder %s369, 15
        %s373 = scalar_select %p372, %s369, 15
        %s374 = smul.addr %s371, 64
        %s375 = sadd.s32 %s373, %s374
        %s376 = smul.addr %s375, 4
        %s377 = scalar_lea.vmem %s6, %s376
        %s378 = smul.u32 16, %s28
        %s379 = smul.u32 16, %s28
        %p380 = scmp.lt.s32.totalorder %s27, 1
        %s381 = scalar_select %p380, %s27, 1
        %p382 = scmp.lt.s32.totalorder %s379, 15
        %s383 = scalar_select %p382, %s379, 15
        %s384 = smul.addr %s381, 64
        %s385 = sadd.s32 %s383, %s384
        %s386 = smul.addr %s385, 4
        %s387 = scalar_lea.vmem %s7, %s386
        %s388 = smul.u32 16, %s28
        %v390 = vld [vmem:[%s301] sm:$0xff]
        %v391 = vld [vmem:[%s301 + $0x8] sm:$0xff]
        %v392 = vld [vmem:[%s301 + $0x10] sm:$0xff]
        %v393 = vld [vmem:[%s301 + $0x18] sm:$0xff]
        %v394 = vld [vmem:[%s301 + $0x20] sm:$0xff]
        %v395 = vld [vmem:[%s301 + $0x28] sm:$0xff]
        %v396 = vld [vmem:[%s301 + $0x30] sm:$0xff]
        %v397 = vld [vmem:[%s301 + $0x38] sm:$0xff]
        %v398 = vld [vmem:[%s301 + $0x40] sm:$0xff]
        %v399 = vld [vmem:[%s301 + $0x48] sm:$0xff]
        %v400 = vld [vmem:[%s301 + $0x50] sm:$0xff]
        %v401 = vld [vmem:[%s301 + $0x58] sm:$0xff]
        %v402 = vld [vmem:[%s301 + $0x60] sm:$0xff]
        %v403 = vld [vmem:[%s301 + $0x68] sm:$0xff]
        %v404 = vld [vmem:[%s301 + $0x70] sm:$0xff]
        %v405 = vld [vmem:[%s301 + $0x78] sm:$0xff]
        %v406 = vld [vmem:[%s1] sm:$0x1]
        %v407 = vld [vmem:[%s2] sm:$0x1]
        %408 = vadd.xlane.f32.xlu0 %v390
        %v409 = vpop.xlane.xlu0 %408
        %410 = vadd.xlane.f32.xlu0 %v391
        %v411 = vpop.xlane.xlu0 %410
        %412 = vadd.xlane.f32.xlu0 %v392
        %v413 = vpop.xlane.xlu0 %412
        %414 = vadd.xlane.f32.xlu0 %v393
        %v415 = vpop.xlane.xlu0 %414
        %416 = vadd.xlane.f32.xlu0 %v394
        %v417 = vpop.xlane.xlu0 %416
        %418 = vadd.xlane.f32.xlu0 %v395
        %v419 = vpop.xlane.xlu0 %418
        %420 = vadd.xlane.f32.xlu0 %v396
        %v421 = vpop.xlane.xlu0 %420
        %422 = vadd.xlane.f32.xlu0 %v397
        %v423 = vpop.xlane.xlu0 %422
        %424 = vadd.xlane.f32.xlu0 %v398
        %v425 = vpop.xlane.xlu0 %424
        %426 = vadd.xlane.f32.xlu0 %v399
        %v427 = vpop.xlane.xlu0 %426
        %428 = vadd.xlane.f32.xlu0 %v400
        %v429 = vpop.xlane.xlu0 %428
        %430 = vadd.xlane.f32.xlu0 %v401
        %v431 = vpop.xlane.xlu0 %430
        %432 = vadd.xlane.f32.xlu0 %v402
        %v433 = vpop.xlane.xlu0 %432
        %434 = vadd.xlane.f32.xlu0 %v403
        %v435 = vpop.xlane.xlu0 %434
        %436 = vadd.xlane.f32.xlu0 %v404
        %v437 = vpop.xlane.xlu0 %436
        %438 = vadd.xlane.f32.xlu0 %v405
        %v439 = vpop.xlane.xlu0 %438
        %v440 = vrcp.pop 128.0
        %v441 = vmul.f32 %v409, %v440
        %v442 = vmul.f32 %v411, %v440
        %v443 = vmul.f32 %v413, %v440
        %v444 = vmul.f32 %v415, %v440
        %v445 = vmul.f32 %v417, %v440
        %v446 = vmul.f32 %v419, %v440
        %v447 = vmul.f32 %v421, %v440
        %v448 = vmul.f32 %v423, %v440
        %v449 = vmul.f32 %v425, %v440
        %v450 = vmul.f32 %v427, %v440
        %v451 = vmul.f32 %v429, %v440
        %v452 = vmul.f32 %v431, %v440
        %v453 = vmul.f32 %v433, %v440
        %v454 = vmul.f32 %v435, %v440
        %v455 = vmul.f32 %v437, %v440
        %v456 = vmul.f32 %v439, %v440
        %v457 = vsub.f32 %v390, %v441
        %v458 = vsub.f32 %v391, %v442
        %v459 = vsub.f32 %v392, %v443
        %v460 = vsub.f32 %v393, %v444
        %v461 = vsub.f32 %v394, %v445
        %v462 = vsub.f32 %v395, %v446
        %v463 = vsub.f32 %v396, %v447
        %v464 = vsub.f32 %v397, %v448
        %v465 = vsub.f32 %v398, %v449
        %v466 = vsub.f32 %v399, %v450
        %v467 = vsub.f32 %v400, %v451
        %v468 = vsub.f32 %v401, %v452
        %v469 = vsub.f32 %v402, %v453
        %v470 = vsub.f32 %v403, %v454
        %v471 = vsub.f32 %v404, %v455
        %v472 = vsub.f32 %v405, %v456
        %v473 = vmul.f32 %v457, %v457
        %v474 = vmul.f32 %v458, %v458
        %v475 = vmul.f32 %v459, %v459
        %v476 = vmul.f32 %v460, %v460
        %v477 = vmul.f32 %v461, %v461
        %v478 = vmul.f32 %v462, %v462
        %v479 = vmul.f32 %v463, %v463
        %v480 = vmul.f32 %v464, %v464
        %v481 = vmul.f32 %v465, %v465
        %v482 = vmul.f32 %v466, %v466
        %v483 = vmul.f32 %v467, %v467
        %v484 = vmul.f32 %v468, %v468
        %v485 = vmul.f32 %v469, %v469
        %v486 = vmul.f32 %v470, %v470
        %v487 = vmul.f32 %v471, %v471
        %v488 = vmul.f32 %v472, %v472
        %489 = vadd.xlane.f32.xlu0 %v473
        %v490 = vpop.xlane.xlu0 %489
        %491 = vadd.xlane.f32.xlu0 %v474
        %v492 = vpop.xlane.xlu0 %491
        %493 = vadd.xlane.f32.xlu0 %v475
        %v494 = vpop.xlane.xlu0 %493
        %495 = vadd.xlane.f32.xlu0 %v476
        %v496 = vpop.xlane.xlu0 %495
        %497 = vadd.xlane.f32.xlu0 %v477
        %v498 = vpop.xlane.xlu0 %497
        %499 = vadd.xlane.f32.xlu0 %v478
        %v500 = vpop.xlane.xlu0 %499
        %501 = vadd.xlane.f32.xlu0 %v479
        %v502 = vpop.xlane.xlu0 %501
        %503 = vadd.xlane.f32.xlu0 %v480
        %v504 = vpop.xlane.xlu0 %503
        %505 = vadd.xlane.f32.xlu0 %v481
        %v506 = vpop.xlane.xlu0 %505
        %507 = vadd.xlane.f32.xlu0 %v482
        %v508 = vpop.xlane.xlu0 %507
        %509 = vadd.xlane.f32.xlu0 %v483
        %v510 = vpop.xlane.xlu0 %509
        %511 = vadd.xlane.f32.xlu0 %v484
        %v512 = vpop.xlane.xlu0 %511
        %513 = vadd.xlane.f32.xlu0 %v485
        %v514 = vpop.xlane.xlu0 %513
        %515 = vadd.xlane.f32.xlu0 %v486
        %v516 = vpop.xlane.xlu0 %515
        %517 = vadd.xlane.f32.xlu0 %v487
        %v518 = vpop.xlane.xlu0 %517
        %519 = vadd.xlane.f32.xlu0 %v488
        %v520 = vpop.xlane.xlu0 %519
        %v521 = vmul.f32 %v490, %v440
        %v522 = vmul.f32 %v492, %v440
        %v523 = vmul.f32 %v494, %v440
        %v524 = vmul.f32 %v496, %v440
        %v525 = vmul.f32 %v498, %v440
        %v526 = vmul.f32 %v500, %v440
        %v527 = vmul.f32 %v502, %v440
        %v528 = vmul.f32 %v504, %v440
        %v529 = vmul.f32 %v506, %v440
        %v530 = vmul.f32 %v508, %v440
        %v531 = vmul.f32 %v510, %v440
        %v532 = vmul.f32 %v512, %v440
        %v533 = vmul.f32 %v514, %v440
        %v534 = vmul.f32 %v516, %v440
        %v535 = vmul.f32 %v518, %v440
        %v536 = vmul.f32 %v520, %v440
        %v537 = vadd.f32 %v521, 1e-05
        %v538 = vadd.f32 %v522, 1e-05
        %v539 = vadd.f32 %v523, 1e-05
        %v540 = vadd.f32 %v524, 1e-05
        %v541 = vadd.f32 %v525, 1e-05
        %v542 = vadd.f32 %v526, 1e-05
        %v543 = vadd.f32 %v527, 1e-05
        %v544 = vadd.f32 %v528, 1e-05
        %v545 = vadd.f32 %v529, 1e-05
        %v546 = vadd.f32 %v530, 1e-05
        %v547 = vadd.f32 %v531, 1e-05
        %v548 = vadd.f32 %v532, 1e-05
        %v549 = vadd.f32 %v533, 1e-05
        %v550 = vadd.f32 %v534, 1e-05
        %v551 = vadd.f32 %v535, 1e-05
        %v552 = vadd.f32 %v536, 1e-05
        %v553 = vrsqrt.pop %v537
        %v554 = vrsqrt.pop %v538
        %v555 = vrsqrt.pop %v539
        %v556 = vrsqrt.pop %v540
        %v557 = vrsqrt.pop %v541
        %v558 = vrsqrt.pop %v542
        %v559 = vrsqrt.pop %v543
        %v560 = vrsqrt.pop %v544
        %v561 = vrsqrt.pop %v545
        %v562 = vrsqrt.pop %v546
        %v563 = vrsqrt.pop %v547
        %v564 = vrsqrt.pop %v548
        %v565 = vrsqrt.pop %v549
        %v566 = vrsqrt.pop %v550
        %v567 = vrsqrt.pop %v551
        %v568 = vrsqrt.pop %v552
        %v569 = vmul.f32 %v457, %v553
        %v570 = vmul.f32 %v458, %v554
        %v571 = vmul.f32 %v459, %v555
        %v572 = vmul.f32 %v460, %v556
        %v573 = vmul.f32 %v461, %v557
        %v574 = vmul.f32 %v462, %v558
        %v575 = vmul.f32 %v463, %v559
        %v576 = vmul.f32 %v464, %v560
        %v577 = vmul.f32 %v465, %v561
        %v578 = vmul.f32 %v466, %v562
        %v579 = vmul.f32 %v467, %v563
        %v580 = vmul.f32 %v468, %v564
        %v581 = vmul.f32 %v469, %v565
        %v582 = vmul.f32 %v470, %v566
        %v583 = vmul.f32 %v471, %v567
        %v584 = vmul.f32 %v472, %v568
        %v586 = vlaneseq
        %v587 = vshrl.u32 %v586, 7
        %v588 = vsub.s32 0, %v587
        %v589 = vrot.slane %v406, %v588
        %v591 = vmul.f32 %v569, %v589
        %v592 = vmul.f32 %v570, %v589
        %v593 = vmul.f32 %v571, %v589
        %v594 = vmul.f32 %v572, %v589
        %v595 = vmul.f32 %v573, %v589
        %v596 = vmul.f32 %v574, %v589
        %v597 = vmul.f32 %v575, %v589
        %v598 = vmul.f32 %v576, %v589
        %v599 = vmul.f32 %v577, %v589
        %v600 = vmul.f32 %v578, %v589
        %v601 = vmul.f32 %v579, %v589
        %v602 = vmul.f32 %v580, %v589
        %v603 = vmul.f32 %v581, %v589
        %v604 = vmul.f32 %v582, %v589
        %v605 = vmul.f32 %v583, %v589
        %v606 = vmul.f32 %v584, %v589
        %v608 = vlaneseq
        %v609 = vshrl.u32 %v608, 7
        %v610 = vsub.s32 0, %v609
        %v611 = vrot.slane %v407, %v610
        %v613 = vadd.f32 %v591, %v611
        %v614 = vadd.f32 %v592, %v611
        %v615 = vadd.f32 %v593, %v611
        %v616 = vadd.f32 %v594, %v611
        %v617 = vadd.f32 %v595, %v611
        %v618 = vadd.f32 %v596, %v611
        %v619 = vadd.f32 %v597, %v611
        %v620 = vadd.f32 %v598, %v611
        %v621 = vadd.f32 %v599, %v611
        %v622 = vadd.f32 %v600, %v611
        %v623 = vadd.f32 %v601, %v611
        %v624 = vadd.f32 %v602, %v611
        %v625 = vadd.f32 %v603, %v611
        %v626 = vadd.f32 %v604, %v611
        %v627 = vadd.f32 %v605, %v611
        %v628 = vadd.f32 %v606, %v611
        %v629 = vpack.c.bf16 %v614, %v613
        %v630 = vpack.c.bf16 %v616, %v615
        %v631 = vpack.c.bf16 %v618, %v617
        %v632 = vpack.c.bf16 %v620, %v619
        %v633 = vpack.c.bf16 %v622, %v621
        %v634 = vpack.c.bf16 %v624, %v623
        %v635 = vpack.c.bf16 %v626, %v625
        %v636 = vpack.c.bf16 %v628, %v627
        %v637 = vld [vmem:[#allocation4] sm:$0xff]
        %v638 = vld [vmem:[#allocation4 + $0x8] sm:$0xf]
        %v639 = vld [vmem:[#allocation4 + $0xc] sm:$0xff]
        %v640 = vld [vmem:[#allocation4 + $0x14] sm:$0xf]
        %v641 = vld [vmem:[#allocation4 + $0x18] sm:$0xff]
        %v642 = vld [vmem:[#allocation4 + $0x20] sm:$0xf]
        %v643 = vld [vmem:[#allocation4 + $0x24] sm:$0xff]
        %v644 = vld [vmem:[#allocation4 + $0x2c] sm:$0xf]
        %v645 = vld [vmem:[#allocation4 + $0x30] sm:$0xff]
        %v646 = vld [vmem:[#allocation4 + $0x38] sm:$0xf]
        %v647 = vld [vmem:[#allocation4 + $0x3c] sm:$0xff]
        %v648 = vld [vmem:[#allocation4 + $0x44] sm:$0xf]
        %v649 = vld [vmem:[#allocation4 + $0x48] sm:$0xff]
        %v650 = vld [vmem:[#allocation4 + $0x50] sm:$0xf]
        %v651 = vld [vmem:[#allocation4 + $0x54] sm:$0xff]
        %v652 = vld [vmem:[#allocation4 + $0x5c] sm:$0xf]
        %v653 = vld [vmem:[#allocation4 + $0x60] sm:$0xff]
        %v654 = vld [vmem:[#allocation4 + $0x68] sm:$0xf]
        %v655 = vld [vmem:[#allocation4 + $0x6c] sm:$0xff]
        %v656 = vld [vmem:[#allocation4 + $0x74] sm:$0xf]
        %v657 = vld [vmem:[#allocation4 + $0x78] sm:$0xff]
        %v658 = vld [vmem:[#allocation4 + $0x80] sm:$0xf]
        %v659 = vld [vmem:[#allocation4 + $0x84] sm:$0xff]
        %v660 = vld [vmem:[#allocation4 + $0x8c] sm:$0xf]
        %v661 = vld [vmem:[#allocation4 + $0x90] sm:$0xff]
        %v662 = vld [vmem:[#allocation4 + $0x98] sm:$0xf]
        %v663 = vld [vmem:[#allocation4 + $0x9c] sm:$0xff]
        %v664 = vld [vmem:[#allocation4 + $0xa4] sm:$0xf]
        %v665 = vld [vmem:[#allocation4 + $0xa8] sm:$0xff]
        %v666 = vld [vmem:[#allocation4 + $0xb0] sm:$0xf]
        %v667 = vld [vmem:[#allocation4 + $0xb4] sm:$0xff]
        %v668 = vld [vmem:[#allocation4 + $0xbc] sm:$0xf]
        %v669 = vld [vmem:[%s4] sm:$0x7]
        %v671 = vlaneseq
        %v672 = vshrl.u32 %v671, 7
        %v673 = vsub.s32 0, %v672
        %v674 = vrot.slane %v669, %v673
        %v675 = vlaneseq
        %v676 = vshrl.u32 %v675, 7
        %v677 = vsub.s32 1, %v676
        %v678 = vrot.slane %v669, %v677
        %v679 = vlaneseq
        %v680 = vshrl.u32 %v679, 7
        %v681 = vsub.s32 2, %v680
        %v682 = vrot.slane %v669, %v681
        %v718 = vunpack.c.l.b16 %v637
        %v719 = vunpack.c.h.b16 %v637
        %v720 = vunpack.c.l.b16 %v638
        %v721 = vunpack.c.l.b16 %v639
        %v722 = vunpack.c.h.b16 %v639
        %v723 = vunpack.c.l.b16 %v640
        %v724 = vunpack.c.l.b16 %v641
        %v725 = vunpack.c.h.b16 %v641
        %v726 = vunpack.c.l.b16 %v642
        %v727 = vunpack.c.l.b16 %v643
        %v728 = vunpack.c.h.b16 %v643
        %v729 = vunpack.c.l.b16 %v644
        %v730 = vunpack.c.l.b16 %v645
        %v731 = vunpack.c.h.b16 %v645
        %v732 = vunpack.c.l.b16 %v646
        %v733 = vunpack.c.l.b16 %v647
        %v734 = vunpack.c.h.b16 %v647
        %v735 = vunpack.c.l.b16 %v648
        %v736 = vunpack.c.l.b16 %v649
        %v737 = vunpack.c.h.b16 %v649
        %v738 = vunpack.c.l.b16 %v650
        %v739 = vunpack.c.l.b16 %v651
        %v740 = vunpack.c.h.b16 %v651
        %v741 = vunpack.c.l.b16 %v652
        %v742 = vunpack.c.l.b16 %v653
        %v743 = vunpack.c.h.b16 %v653
        %v744 = vunpack.c.l.b16 %v654
        %v745 = vunpack.c.l.b16 %v655
        %v746 = vunpack.c.h.b16 %v655
        %v747 = vunpack.c.l.b16 %v656
        %v748 = vunpack.c.l.b16 %v657
        %v749 = vunpack.c.h.b16 %v657
        %v750 = vunpack.c.l.b16 %v658
        %v751 = vunpack.c.l.b16 %v659
        %v752 = vunpack.c.h.b16 %v659
        %v753 = vunpack.c.l.b16 %v660
        %v754 = vunpack.c.l.b16 %v661
        %v755 = vunpack.c.h.b16 %v661
        %v756 = vunpack.c.l.b16 %v662
        %v757 = vunpack.c.l.b16 %v663
        %v758 = vunpack.c.h.b16 %v663
        %v759 = vunpack.c.l.b16 %v664
        %v760 = vunpack.c.l.b16 %v665
        %v761 = vunpack.c.h.b16 %v665
        %v762 = vunpack.c.l.b16 %v666
        %v763 = vunpack.c.l.b16 %v667
        %v764 = vunpack.c.h.b16 %v667
        %v765 = vunpack.c.l.b16 %v668
        %v766 = vpack.c.b16 %v721, %v718
        %v767 = vpack.c.b16 %v722, %v719
        %v768 = vpack.c.b16 %v723, %v720
        %v769 = vpack.c.b16 %v727, %v724
        %v770 = vpack.c.b16 %v728, %v725
        %v771 = vpack.c.b16 %v729, %v726
        %v772 = vpack.c.b16 %v733, %v730
        %v773 = vpack.c.b16 %v734, %v731
        %v774 = vpack.c.b16 %v735, %v732
        %v775 = vpack.c.b16 %v739, %v736
        %v776 = vpack.c.b16 %v740, %v737
        %v777 = vpack.c.b16 %v741, %v738
        %v778 = vpack.c.b16 %v745, %v742
        %v779 = vpack.c.b16 %v746, %v743
        %v780 = vpack.c.b16 %v747, %v744
        %v781 = vpack.c.b16 %v751, %v748
        %v782 = vpack.c.b16 %v752, %v749
        %v783 = vpack.c.b16 %v753, %v750
        %v784 = vpack.c.b16 %v757, %v754
        %v785 = vpack.c.b16 %v758, %v755
        %v786 = vpack.c.b16 %v759, %v756
        %v787 = vpack.c.b16 %v763, %v760
        %v788 = vpack.c.b16 %v764, %v761
        %v789 = vpack.c.b16 %v765, %v762
        %814 = vmatprep.subr.bf16.mxu0 %v767
        %815 = vmatpush1.bf16.msra.mxu0 %v766
        %816 = vmatprep.subr.bf16.mxu0 %v770
        %817 = vmatpush1.bf16.msra.mxu0 %v769
        %818 = vmatprep.subr.bf16.mxu0 %v773
        %819 = vmatpush1.bf16.msra.mxu0 %v772
        %820 = vmatprep.subr.bf16.mxu0 %v776
        %821 = vmatpush1.bf16.msra.mxu0 %v775
        %822 = vmatprep.subr.bf16.mxu0 %v779
        %823 = vmatpush1.bf16.msra.mxu0 %v778
        %824 = vmatprep.subr.bf16.mxu0 %v782
        %825 = vmatpush1.bf16.msra.mxu0 %v781
        %826 = vmatprep.subr.bf16.mxu0 %v785
        %827 = vmatpush1.bf16.msra.mxu0 %v784
        %828 = vmatprep.subr.bf16.mxu0 %v788
        %829 = vmatpush1.bf16.msra.mxu0 %v787
        %830 = vmatprep.subr.bf16.mxu0 0
        %831 = vmatpush1.bf16.msra.mxu0 0
        %832 = vmatprep.subr.bf16.mxu0 0
        %833 = vmatpush1.bf16.msra.mxu0 0
        %834 = vmatprep.subr.bf16.mxu0 0
        %835 = vmatpush1.bf16.msra.mxu0 0
        %836 = vmatprep.subr.bf16.mxu0 0
        %837 = vmatpush1.bf16.msra.mxu0 0
        %838 = vmatprep.subr.bf16.mxu0 0
        %839 = vmatpush1.bf16.msra.mxu0 0
        %840 = vmatprep.subr.bf16.mxu0 0
        %841 = vmatpush1.bf16.msra.mxu0 0
        %842 = vmatprep.subr.bf16.mxu0 0
        %843 = vmatpush1.bf16.msra.mxu0 0
        %844 = vmatprep.subr.bf16.mxu0 0
        %845 = vmatpush1.bf16.msra.mxu0 0
        %846 = vmatprep.mubr.bf16.mxu0 0
        %847 = vmatmul.mubr.bf16.gmra.mrb[0].mxu0 %v629
        %v848 = vpop.f32.mrb[0].mxu0
        %v849 = vadd.f32 %v674, %v848
        %v850 = vpop.f32.mrb[0].mxu0
        %v851 = vadd.f32 %v678, %v850
        %v852 = vpop.f32.mrb[0].mxu0
        %v853 = vadd.f32 %v674, %v852
        %v854 = vpop.f32.mrb[0].mxu0
        %v855 = vadd.f32 %v678, %v854
        %856 = vmatprep.mubr.bf16.mxu0 0
        %857 = vmatmul.mubr.bf16.gmra.mrb[0].mxu0 %v630
        %v858 = vpop.f32.mrb[0].mxu0
        %v859 = vadd.f32 %v674, %v858
        %v860 = vpop.f32.mrb[0].mxu0
        %v861 = vadd.f32 %v678, %v860
        %v862 = vpop.f32.mrb[0].mxu0
        %v863 = vadd.f32 %v674, %v862
        %v864 = vpop.f32.mrb[0].mxu0
        %v865 = vadd.f32 %v678, %v864
        %866 = vmatprep.mubr.bf16.mxu0 0
        %867 = vmatmul.mubr.bf16.gmra.mrb[0].mxu0 %v631
        %v868 = vpop.f32.mrb[0].mxu0
        %v869 = vadd.f32 %v674, %v868
        %v870 = vpop.f32.mrb[0].mxu0
        %v871 = vadd.f32 %v678, %v870
        %v872 = vpop.f32.mrb[0].mxu0
        %v873 = vadd.f32 %v674, %v872
        %v874 = vpop.f32.mrb[0].mxu0
        %v875 = vadd.f32 %v678, %v874
        %876 = vmatprep.mubr.bf16.mxu0 0
        %877 = vmatmul.mubr.bf16.gmra.mrb[0].mxu0 %v632
        %v878 = vpop.f32.mrb[0].mxu0
        %v879 = vadd.f32 %v674, %v878
        %v880 = vpop.f32.mrb[0].mxu0
        %v881 = vadd.f32 %v678, %v880
        %v882 = vpop.f32.mrb[0].mxu0
        %v883 = vadd.f32 %v674, %v882
        %v884 = vpop.f32.mrb[0].mxu0
        %v885 = vadd.f32 %v678, %v884
        %886 = vmatprep.mubr.bf16.mxu0 0
        %887 = vmatmul.mubr.bf16.gmra.mrb[0].mxu0 %v633
        %v888 = vpop.f32.mrb[0].mxu0
        %v889 = vadd.f32 %v674, %v888
        %v890 = vpop.f32.mrb[0].mxu0
        %v891 = vadd.f32 %v678, %v890
        %v892 = vpop.f32.mrb[0].mxu0
        %v893 = vadd.f32 %v674, %v892
        %v894 = vpop.f32.mrb[0].mxu0
        %v895 = vadd.f32 %v678, %v894
        %896 = vmatprep.mubr.bf16.mxu0 0
        %897 = vmatmul.mubr.bf16.gmra.mrb[0].mxu0 %v634
        %v898 = vpop.f32.mrb[0].mxu0
        %v899 = vadd.f32 %v674, %v898
        %v900 = vpop.f32.mrb[0].mxu0
        %v901 = vadd.f32 %v678, %v900
        %v902 = vpop.f32.mrb[0].mxu0
        %v903 = vadd.f32 %v674, %v902
        %v904 = vpop.f32.mrb[0].mxu0
        %v905 = vadd.f32 %v678, %v904
        %906 = vmatprep.mubr.bf16.mxu0 0
        %907 = vmatmul.mubr.bf16.gmra.mrb[0].mxu0 %v635
        %v908 = vpop.f32.mrb[0].mxu0
        %v909 = vadd.f32 %v674, %v908
        %v910 = vpop.f32.mrb[0].mxu0
        %v911 = vadd.f32 %v678, %v910
        %v912 = vpop.f32.mrb[0].mxu0
        %v913 = vadd.f32 %v674, %v912
        %v914 = vpop.f32.mrb[0].mxu0
        %v915 = vadd.f32 %v678, %v914
        %916 = vmatprep.mubr.bf16.mxu0 0
        %917 = vmatmul.mubr.bf16.gmra.mrb[0].mxu0 %v636
        %v918 = vpop.f32.mrb[0].mxu0
        %v919 = vadd.f32 %v674, %v918
        %v920 = vpop.f32.mrb[0].mxu0
        %v921 = vadd.f32 %v678, %v920
        %v922 = vpop.f32.mrb[0].mxu0
        %v923 = vadd.f32 %v674, %v922
        %v924 = vpop.f32.mrb[0].mxu0
        %v925 = vadd.f32 %v678, %v924
        %926 = vdwg.mxu0
        %927 = vmatprep.subr.bf16.mxu0 0
        %928 = vmatpush1.bf16.msra.mxu0 %v768
        %929 = vmatprep.subr.bf16.mxu0 0
        %930 = vmatpush1.bf16.msra.mxu0 %v771
        %931 = vmatprep.subr.bf16.mxu0 0
        %932 = vmatpush1.bf16.msra.mxu0 %v774
        %933 = vmatprep.subr.bf16.mxu0 0
        %934 = vmatpush1.bf16.msra.mxu0 %v777
        %935 = vmatprep.subr.bf16.mxu0 0
        %936 = vmatpush1.bf16.msra.mxu0 %v780
        %937 = vmatprep.subr.bf16.mxu0 0
        %938 = vmatpush1.bf16.msra.mxu0 %v783
        %939 = vmatprep.subr.bf16.mxu0 0
        %940 = vmatpush1.bf16.msra.mxu0 %v786
        %941 = vmatprep.subr.bf16.mxu0 0
        %942 = vmatpush1.bf16.msra.mxu0 %v789
        %943 = vmatprep.subr.bf16.mxu0 0
        %944 = vmatpush1.bf16.msra.mxu0 0
        %945 = vmatprep.subr.bf16.mxu0 0
        %946 = vmatpush1.bf16.msra.mxu0 0
        %947 = vmatprep.subr.bf16.mxu0 0
        %948 = vmatpush1.bf16.msra.mxu0 0
        %949 = vmatprep.subr.bf16.mxu0 0
        %950 = vmatpush1.bf16.msra.mxu0 0
        %951 = vmatprep.subr.bf16.mxu0 0
        %952 = vmatpush1.bf16.msra.mxu0 0
        %953 = vmatprep.subr.bf16.mxu0 0
        %954 = vmatpush1.bf16.msra.mxu0 0
        %955 = vmatprep.subr.bf16.mxu0 0
        %956 = vmatpush1.bf16.msra.mxu0 0
        %957 = vmatprep.subr.bf16.mxu0 0
        %958 = vmatpush1.bf16.msra.mxu0 0
        %959 = vmatprep.mubr.bf16.mxu0 0
        %960 = vmatmul.mubr.bf16.gmra.mrb[0].mxu0 %v629
        %v961 = vpop.f32.mrb[0].mxu0
        %v962 = vadd.f32 %v682, %v961
        %v963 = vpop.f32.mrb[0].mxu0
        %v964 = vpop.f32.mrb[0].mxu0
        %v965 = vadd.f32 %v682, %v964
        %v966 = vpop.f32.mrb[0].mxu0
        %967 = vmatprep.mubr.bf16.mxu0 0
        %968 = vmatmul.mubr.bf16.gmra.mrb[0].mxu0 %v630
        %v969 = vpop.f32.mrb[0].mxu0
        %v970 = vadd.f32 %v682, %v969
        %v971 = vpop.f32.mrb[0].mxu0
        %v972 = vpop.f32.mrb[0].mxu0
        %v973 = vadd.f32 %v682, %v972
        %v974 = vpop.f32.mrb[0].mxu0
        %975 = vmatprep.mubr.bf16.mxu0 0
        %976 = vmatmul.mubr.bf16.gmra.mrb[0].mxu0 %v631
        %v977 = vpop.f32.mrb[0].mxu0
        %v978 = vadd.f32 %v682, %v977
        %v979 = vpop.f32.mrb[0].mxu0
        %v980 = vpop.f32.mrb[0].mxu0
        %v981 = vadd.f32 %v682, %v980
        %v982 = vpop.f32.mrb[0].mxu0
        %983 = vmatprep.mubr.bf16.mxu0 0
        %984 = vmatmul.mubr.bf16.gmra.mrb[0].mxu0 %v632
        %v985 = vpop.f32.mrb[0].mxu0
        %v986 = vadd.f32 %v682, %v985
        %v987 = vpop.f32.mrb[0].mxu0
        %v988 = vpop.f32.mrb[0].mxu0
        %v989 = vadd.f32 %v682, %v988
        %v990 = vpop.f32.mrb[0].mxu0
        %991 = vmatprep.mubr.bf16.mxu0 0
        %992 = vmatmul.mubr.bf16.gmra.mrb[0].mxu0 %v633
        %v993 = vpop.f32.mrb[0].mxu0
        %v994 = vadd.f32 %v682, %v993
        %v995 = vpop.f32.mrb[0].mxu0
        %v996 = vpop.f32.mrb[0].mxu0
        %v997 = vadd.f32 %v682, %v996
        %v998 = vpop.f32.mrb[0].mxu0
        %999 = vmatprep.mubr.bf16.mxu0 0
        %1000 = vmatmul.mubr.bf16.gmra.mrb[0].mxu0 %v634
        %v1001 = vpop.f32.mrb[0].mxu0
        %v1002 = vadd.f32 %v682, %v1001
        %v1003 = vpop.f32.mrb[0].mxu0
        %v1004 = vpop.f32.mrb[0].mxu0
        %v1005 = vadd.f32 %v682, %v1004
        %v1006 = vpop.f32.mrb[0].mxu0
        %1007 = vmatprep.mubr.bf16.mxu0 0
        %1008 = vmatmul.mubr.bf16.gmra.mrb[0].mxu0 %v635
        %v1009 = vpop.f32.mrb[0].mxu0
        %v1010 = vadd.f32 %v682, %v1009
        %v1011 = vpop.f32.mrb[0].mxu0
        %v1012 = vpop.f32.mrb[0].mxu0
        %v1013 = vadd.f32 %v682, %v1012
        %v1014 = vpop.f32.mrb[0].mxu0
        %1015 = vmatprep.mubr.bf16.mxu0 0
        %1016 = vmatmul.mubr.bf16.gmra.mrb[0].mxu0 %v636
        %v1017 = vpop.f32.mrb[0].mxu0
        %v1018 = vadd.f32 %v682, %v1017
        %v1019 = vpop.f32.mrb[0].mxu0
        %v1020 = vpop.f32.mrb[0].mxu0
        %v1021 = vadd.f32 %v682, %v1020
        %v1022 = vpop.f32.mrb[0].mxu0
        %1023 = vdwg.mxu0
        %1040 = vrot.lane.b32.xlu0 %v849, 96
        %v1041 = vpop.permute.xlu0 %1040
        %1042 = vrot.lane.b32.xlu0 %v853, 96
        %v1043 = vpop.permute.xlu0 %1042
        %1044 = vrot.lane.b32.xlu0 %v859, 96
        %v1045 = vpop.permute.xlu0 %1044
        %1046 = vrot.lane.b32.xlu0 %v863, 96
        %v1047 = vpop.permute.xlu0 %1046
        %1048 = vrot.lane.b32.xlu0 %v869, 96
        %v1049 = vpop.permute.xlu0 %1048
        %1050 = vrot.lane.b32.xlu0 %v873, 96
        %v1051 = vpop.permute.xlu0 %1050
        %1052 = vrot.lane.b32.xlu0 %v879, 96
        %v1053 = vpop.permute.xlu0 %1052
        %1054 = vrot.lane.b32.xlu0 %v883, 96
        %v1055 = vpop.permute.xlu0 %1054
        %1056 = vrot.lane.b32.xlu0 %v889, 96
        %v1057 = vpop.permute.xlu0 %1056
        %1058 = vrot.lane.b32.xlu0 %v893, 96
        %v1059 = vpop.permute.xlu0 %1058
        %1060 = vrot.lane.b32.xlu0 %v899, 96
        %v1061 = vpop.permute.xlu0 %1060
        %1062 = vrot.lane.b32.xlu0 %v903, 96
        %v1063 = vpop.permute.xlu0 %1062
        %1064 = vrot.lane.b32.xlu0 %v909, 96
        %v1065 = vpop.permute.xlu0 %1064
        %1066 = vrot.lane.b32.xlu0 %v913, 96
        %v1067 = vpop.permute.xlu0 %1066
        %1068 = vrot.lane.b32.xlu0 %v919, 96
        %v1069 = vpop.permute.xlu0 %1068
        %1070 = vrot.lane.b32.xlu0 %v923, 96
        %v1071 = vpop.permute.xlu0 %1070
        %1088 = vrot.lane.b32.xlu0 %v849, 64
        %v1089 = vpop.permute.xlu0 %1088
        %1090 = vrot.lane.b32.xlu0 %v853, 64
        %v1091 = vpop.permute.xlu0 %1090
        %1092 = vrot.lane.b32.xlu0 %v859, 64
        %v1093 = vpop.permute.xlu0 %1092
        %1094 = vrot.lane.b32.xlu0 %v863, 64
        %v1095 = vpop.permute.xlu0 %1094
        %1096 = vrot.lane.b32.xlu0 %v869, 64
        %v1097 = vpop.permute.xlu0 %1096
        %1098 = vrot.lane.b32.xlu0 %v873, 64
        %v1099 = vpop.permute.xlu0 %1098
        %1100 = vrot.lane.b32.xlu0 %v879, 64
        %v1101 = vpop.permute.xlu0 %1100
        %1102 = vrot.lane.b32.xlu0 %v883, 64
        %v1103 = vpop.permute.xlu0 %1102
        %1104 = vrot.lane.b32.xlu0 %v889, 64
        %v1105 = vpop.permute.xlu0 %1104
        %1106 = vrot.lane.b32.xlu0 %v893, 64
        %v1107 = vpop.permute.xlu0 %1106
        %1108 = vrot.lane.b32.xlu0 %v899, 64
        %v1109 = vpop.permute.xlu0 %1108
        %1110 = vrot.lane.b32.xlu0 %v903, 64
        %v1111 = vpop.permute.xlu0 %1110
        %1112 = vrot.lane.b32.xlu0 %v909, 64
        %v1113 = vpop.permute.xlu0 %1112
        %1114 = vrot.lane.b32.xlu0 %v913, 64
        %v1115 = vpop.permute.xlu0 %1114
        %1116 = vrot.lane.b32.xlu0 %v919, 64
        %v1117 = vpop.permute.xlu0 %1116
        %1118 = vrot.lane.b32.xlu0 %v923, 64
        %v1119 = vpop.permute.xlu0 %1118
        %1136 = vrot.lane.b32.xlu0 %v849, 32
        %v1137 = vpop.permute.xlu0 %1136
        %1138 = vrot.lane.b32.xlu0 %v853, 32
        %v1139 = vpop.permute.xlu0 %1138
        %1140 = vrot.lane.b32.xlu0 %v859, 32
        %v1141 = vpop.permute.xlu0 %1140
        %1142 = vrot.lane.b32.xlu0 %v863, 32
        %v1143 = vpop.permute.xlu0 %1142
        %1144 = vrot.lane.b32.xlu0 %v869, 32
        %v1145 = vpop.permute.xlu0 %1144
        %1146 = vrot.lane.b32.xlu0 %v873, 32
        %v1147 = vpop.permute.xlu0 %1146
        %1148 = vrot.lane.b32.xlu0 %v879, 32
        %v1149 = vpop.permute.xlu0 %1148
        %1150 = vrot.lane.b32.xlu0 %v883, 32
        %v1151 = vpop.permute.xlu0 %1150
        %1152 = vrot.lane.b32.xlu0 %v889, 32
        %v1153 = vpop.permute.xlu0 %1152
        %1154 = vrot.lane.b32.xlu0 %v893, 32
        %v1155 = vpop.permute.xlu0 %1154
        %1156 = vrot.lane.b32.xlu0 %v899, 32
        %v1157 = vpop.permute.xlu0 %1156
        %1158 = vrot.lane.b32.xlu0 %v903, 32
        %v1159 = vpop.permute.xlu0 %1158
        %1160 = vrot.lane.b32.xlu0 %v909, 32
        %v1161 = vpop.permute.xlu0 %1160
        %1162 = vrot.lane.b32.xlu0 %v913, 32
        %v1163 = vpop.permute.xlu0 %1162
        %1164 = vrot.lane.b32.xlu0 %v919, 32
        %v1165 = vpop.permute.xlu0 %1164
        %1166 = vrot.lane.b32.xlu0 %v923, 32
        %v1167 = vpop.permute.xlu0 %1166
        %v1184 = vcombine.low %v849, %v1089
        %v1185 = vcombine.high %v849, %v1089
        %v1187 = vunpack.c.l.s4 1983009808
        %v1188 = vunpack.c.0.s8 %v1187
        %v1189 = vlaneseq
        %v1190 = vshrl.u32 %v1189, 7
        %v1191 = vsub.s32 %v1188, %v1190
        %v1192 = vrot.slane %v1184, %v1191
        %v1194 = vunpack.c.l.s4 1983009808
        %v1195 = vunpack.c.0.s8 %v1194
        %v1196 = vlaneseq
        %v1197 = vshrl.u32 %v1196, 7
        %v1198 = vsub.s32 %v1195, %v1197
        %v1199 = vrot.slane %v1185, %v1198
        %v1200 = vcombine.low %v1041, %v1137
        %v1201 = vcombine.high %v1041, %v1137
        %v1203 = vunpack.c.l.s4 1983009808
        %v1204 = vunpack.c.0.s8 %v1203
        %v1205 = vlaneseq
        %v1206 = vshrl.u32 %v1205, 7
        %v1207 = vsub.s32 %v1204, %v1206
        %v1208 = vrot.slane %v1200, %v1207
        %v1210 = vunpack.c.l.s4 1983009808
        %v1211 = vunpack.c.0.s8 %v1210
        %v1212 = vlaneseq
        %v1213 = vshrl.u32 %v1212, 7
        %v1214 = vsub.s32 %v1211, %v1213
        %v1215 = vrot.slane %v1201, %v1214
        %v1216 = vcombine.low %v1192, %v1208
        %v1217 = vcombine.high %v1192, %v1208
        %v1219 = vunpack.c.l.s4 1934713408
        %v1220 = vunpack.c.0.s8 %v1219
        %v1221 = vlaneseq
        %v1222 = vshrl.u32 %v1221, 7
        %v1223 = vsub.s32 %v1220, %v1222
        %v1224 = vrot.slane %v1216, %v1223
        %v1226 = vunpack.c.l.s4 1934713408
        %v1227 = vunpack.c.0.s8 %v1226
        %v1228 = vlaneseq
        %v1229 = vshrl.u32 %v1228, 7
        %v1230 = vsub.s32 %v1227, %v1229
        %v1231 = vrot.slane %v1217, %v1230
        %v1232 = vcombine.low %v1199, %v1215
        %v1233 = vcombine.high %v1199, %v1215
        %v1235 = vunpack.c.l.s4 1934713408
        %v1236 = vunpack.c.0.s8 %v1235
        %v1237 = vlaneseq
        %v1238 = vshrl.u32 %v1237, 7
        %v1239 = vsub.s32 %v1236, %v1238
        %v1240 = vrot.slane %v1232, %v1239
        %v1242 = vunpack.c.l.s4 1934713408
        %v1243 = vunpack.c.0.s8 %v1242
        %v1244 = vlaneseq
        %v1245 = vshrl.u32 %v1244, 7
        %v1246 = vsub.s32 %v1243, %v1245
        %v1247 = vrot.slane %v1233, %v1246
        %v1248 = vcombine.high %v1224, 0.0
        %v1249 = vcombine.high %v1231, 0.0
        %v1250 = vcombine.high %v1240, 0.0
        %v1251 = vcombine.high %v1247, 0.0
        %v1252 = vcombine.low %v853, %v1091
        %v1253 = vcombine.high %v853, %v1091
        %v1255 = vunpack.c.l.s4 1983009808
        %v1256 = vunpack.c.0.s8 %v1255
        %v1257 = vlaneseq
        %v1258 = vshrl.u32 %v1257, 7
        %v1259 = vsub.s32 %v1256, %v1258
        %v1260 = vrot.slane %v1252, %v1259
        %v1262 = vunpack.c.l.s4 1983009808
        %v1263 = vunpack.c.0.s8 %v1262
        %v1264 = vlaneseq
        %v1265 = vshrl.u32 %v1264, 7
        %v1266 = vsub.s32 %v1263, %v1265
        %v1267 = vrot.slane %v1253, %v1266
        %v1268 = vcombine.low %v1043, %v1139
        %v1269 = vcombine.high %v1043, %v1139
        %v1271 = vunpack.c.l.s4 1983009808
        %v1272 = vunpack.c.0.s8 %v1271
        %v1273 = vlaneseq
        %v1274 = vshrl.u32 %v1273, 7
        %v1275 = vsub.s32 %v1272, %v1274
        %v1276 = vrot.slane %v1268, %v1275
        %v1278 = vunpack.c.l.s4 1983009808
        %v1279 = vunpack.c.0.s8 %v1278
        %v1280 = vlaneseq
        %v1281 = vshrl.u32 %v1280, 7
        %v1282 = vsub.s32 %v1279, %v1281
        %v1283 = vrot.slane %v1269, %v1282
        %v1284 = vcombine.low %v1260, %v1276
        %v1285 = vcombine.high %v1260, %v1276
        %v1287 = vunpack.c.l.s4 1934713408
        %v1288 = vunpack.c.0.s8 %v1287
        %v1289 = vlaneseq
        %v1290 = vshrl.u32 %v1289, 7
        %v1291 = vsub.s32 %v1288, %v1290
        %v1292 = vrot.slane %v1284, %v1291
        %v1294 = vunpack.c.l.s4 1934713408
        %v1295 = vunpack.c.0.s8 %v1294
        %v1296 = vlaneseq
        %v1297 = vshrl.u32 %v1296, 7
        %v1298 = vsub.s32 %v1295, %v1297
        %v1299 = vrot.slane %v1285, %v1298
        %v1300 = vcombine.low %v1267, %v1283
        %v1301 = vcombine.high %v1267, %v1283
        %v1303 = vunpack.c.l.s4 1934713408
        %v1304 = vunpack.c.0.s8 %v1303
        %v1305 = vlaneseq
        %v1306 = vshrl.u32 %v1305, 7
        %v1307 = vsub.s32 %v1304, %v1306
        %v1308 = vrot.slane %v1300, %v1307
        %v1310 = vunpack.c.l.s4 1934713408
        %v1311 = vunpack.c.0.s8 %v1310
        %v1312 = vlaneseq
        %v1313 = vshrl.u32 %v1312, 7
        %v1314 = vsub.s32 %v1311, %v1313
        %v1315 = vrot.slane %v1301, %v1314
        %v1316 = vcombine.high %v1292, 0.0
        %v1317 = vcombine.high %v1299, 0.0
        %v1318 = vcombine.high %v1308, 0.0
        %v1319 = vcombine.high %v1315, 0.0
        %v1320 = vcombine.low %v859, %v1093
        %v1321 = vcombine.high %v859, %v1093
        %v1323 = vunpack.c.l.s4 1983009808
        %v1324 = vunpack.c.0.s8 %v1323
        %v1325 = vlaneseq
        %v1326 = vshrl.u32 %v1325, 7
        %v1327 = vsub.s32 %v1324, %v1326
        %v1328 = vrot.slane %v1320, %v1327
        %v1330 = vunpack.c.l.s4 1983009808
        %v1331 = vunpack.c.0.s8 %v1330
        %v1332 = vlaneseq
        %v1333 = vshrl.u32 %v1332, 7
        %v1334 = vsub.s32 %v1331, %v1333
        %v1335 = vrot.slane %v1321, %v1334
        %v1336 = vcombine.low %v1045, %v1141
        %v1337 = vcombine.high %v1045, %v1141
        %v1339 = vunpack.c.l.s4 1983009808
        %v1340 = vunpack.c.0.s8 %v1339
        %v1341 = vlaneseq
        %v1342 = vshrl.u32 %v1341, 7
        %v1343 = vsub.s32 %v1340, %v1342
        %v1344 = vrot.slane %v1336, %v1343
        %v1346 = vunpack.c.l.s4 1983009808
        %v1347 = vunpack.c.0.s8 %v1346
        %v1348 = vlaneseq
        %v1349 = vshrl.u32 %v1348, 7
        %v1350 = vsub.s32 %v1347, %v1349
        %v1351 = vrot.slane %v1337, %v1350
        %v1352 = vcombine.low %v1328, %v1344
        %v1353 = vcombine.high %v1328, %v1344
        %v1355 = vunpack.c.l.s4 1934713408
        %v1356 = vunpack.c.0.s8 %v1355
        %v1357 = vlaneseq
        %v1358 = vshrl.u32 %v1357, 7
        %v1359 = vsub.s32 %v1356, %v1358
        %v1360 = vrot.slane %v1352, %v1359
        %v1362 = vunpack.c.l.s4 1934713408
        %v1363 = vunpack.c.0.s8 %v1362
        %v1364 = vlaneseq
        %v1365 = vshrl.u32 %v1364, 7
        %v1366 = vsub.s32 %v1363, %v1365
        %v1367 = vrot.slane %v1353, %v1366
        %v1368 = vcombine.low %v1335, %v1351
        %v1369 = vcombine.high %v1335, %v1351
        %v1371 = vunpack.c.l.s4 1934713408
        %v1372 = vunpack.c.0.s8 %v1371
        %v1373 = vlaneseq
        %v1374 = vshrl.u32 %v1373, 7
        %v1375 = vsub.s32 %v1372, %v1374
        %v1376 = vrot.slane %v1368, %v1375
        %v1378 = vunpack.c.l.s4 1934713408
        %v1379 = vunpack.c.0.s8 %v1378
        %v1380 = vlaneseq
        %v1381 = vshrl.u32 %v1380, 7
        %v1382 = vsub.s32 %v1379, %v1381
        %v1383 = vrot.slane %v1369, %v1382
        %v1384 = vcombine.high %v1360, 0.0
        %v1385 = vcombine.high %v1367, 0.0
        %v1386 = vcombine.high %v1376, 0.0
        %v1387 = vcombine.high %v1383, 0.0
        %v1388 = vcombine.low %v863, %v1095
        %v1389 = vcombine.high %v863, %v1095
        %v1391 = vunpack.c.l.s4 1983009808
        %v1392 = vunpack.c.0.s8 %v1391
        %v1393 = vlaneseq
        %v1394 = vshrl.u32 %v1393, 7
        %v1395 = vsub.s32 %v1392, %v1394
        %v1396 = vrot.slane %v1388, %v1395
        %v1398 = vunpack.c.l.s4 1983009808
        %v1399 = vunpack.c.0.s8 %v1398
        %v1400 = vlaneseq
        %v1401 = vshrl.u32 %v1400, 7
        %v1402 = vsub.s32 %v1399, %v1401
        %v1403 = vrot.slane %v1389, %v1402
        %v1404 = vcombine.low %v1047, %v1143
        %v1405 = vcombine.high %v1047, %v1143
        %v1407 = vunpack.c.l.s4 1983009808
        %v1408 = vunpack.c.0.s8 %v1407
        %v1409 = vlaneseq
        %v1410 = vshrl.u32 %v1409, 7
        %v1411 = vsub.s32 %v1408, %v1410
        %v1412 = vrot.slane %v1404, %v1411
        %v1414 = vunpack.c.l.s4 1983009808
        %v1415 = vunpack.c.0.s8 %v1414
        %v1416 = vlaneseq
        %v1417 = vshrl.u32 %v1416, 7
        %v1418 = vsub.s32 %v1415, %v1417
        %v1419 = vrot.slane %v1405, %v1418
        %v1420 = vcombine.low %v1396, %v1412
        %v1421 = vcombine.high %v1396, %v1412
        %v1423 = vunpack.c.l.s4 1934713408
        %v1424 = vunpack.c.0.s8 %v1423
        %v1425 = vlaneseq
        %v1426 = vshrl.u32 %v1425, 7
        %v1427 = vsub.s32 %v1424, %v1426
        %v1428 = vrot.slane %v1420, %v1427
        %v1430 = vunpack.c.l.s4 1934713408
        %v1431 = vunpack.c.0.s8 %v1430
        %v1432 = vlaneseq
        %v1433 = vshrl.u32 %v1432, 7
        %v1434 = vsub.s32 %v1431, %v1433
        %v1435 = vrot.slane %v1421, %v1434
        %v1436 = vcombine.low %v1403, %v1419
        %v1437 = vcombine.high %v1403, %v1419
        %v1439 = vunpack.c.l.s4 1934713408
        %v1440 = vunpack.c.0.s8 %v1439
        %v1441 = vlaneseq
        %v1442 = vshrl.u32 %v1441, 7
        %v1443 = vsub.s32 %v1440, %v1442
        %v1444 = vrot.slane %v1436, %v1443
        %v1446 = vunpack.c.l.s4 1934713408
        %v1447 = vunpack.c.0.s8 %v1446
        %v1448 = vlaneseq
        %v1449 = vshrl.u32 %v1448, 7
        %v1450 = vsub.s32 %v1447, %v1449
        %v1451 = vrot.slane %v1437, %v1450
        %v1452 = vcombine.high %v1428, 0.0
        %v1453 = vcombine.high %v1435, 0.0
        %v1454 = vcombine.high %v1444, 0.0
        %v1455 = vcombine.high %v1451, 0.0
        %v1456 = vcombine.low %v869, %v1097
        %v1457 = vcombine.high %v869, %v1097
        %v1459 = vunpack.c.l.s4 1983009808
        %v1460 = vunpack.c.0.s8 %v1459
        %v1461 = vlaneseq
        %v1462 = vshrl.u32 %v1461, 7
        %v1463 = vsub.s32 %v1460, %v1462
        %v1464 = vrot.slane %v1456, %v1463
        %v1466 = vunpack.c.l.s4 1983009808
        %v1467 = vunpack.c.0.s8 %v1466
        %v1468 = vlaneseq
        %v1469 = vshrl.u32 %v1468, 7
        %v1470 = vsub.s32 %v1467, %v1469
        %v1471 = vrot.slane %v1457, %v1470
        %v1472 = vcombine.low %v1049, %v1145
        %v1473 = vcombine.high %v1049, %v1145
        %v1475 = vunpack.c.l.s4 1983009808
        %v1476 = vunpack.c.0.s8 %v1475
        %v1477 = vlaneseq
        %v1478 = vshrl.u32 %v1477, 7
        %v1479 = vsub.s32 %v1476, %v1478
        %v1480 = vrot.slane %v1472, %v1479
        %v1482 = vunpack.c.l.s4 1983009808
        %v1483 = vunpack.c.0.s8 %v1482
        %v1484 = vlaneseq
        %v1485 = vshrl.u32 %v1484, 7
        %v1486 = vsub.s32 %v1483, %v1485
        %v1487 = vrot.slane %v1473, %v1486
        %v1488 = vcombine.low %v1464, %v1480
        %v1489 = vcombine.high %v1464, %v1480
        %v1491 = vunpack.c.l.s4 1934713408
        %v1492 = vunpack.c.0.s8 %v1491
        %v1493 = vlaneseq
        %v1494 = vshrl.u32 %v1493, 7
        %v1495 = vsub.s32 %v1492, %v1494
        %v1496 = vrot.slane %v1488, %v1495
        %v1498 = vunpack.c.l.s4 1934713408
        %v1499 = vunpack.c.0.s8 %v1498
        %v1500 = vlaneseq
        %v1501 = vshrl.u32 %v1500, 7
        %v1502 = vsub.s32 %v1499, %v1501
        %v1503 = vrot.slane %v1489, %v1502
        %v1504 = vcombine.low %v1471, %v1487
        %v1505 = vcombine.high %v1471, %v1487
        %v1507 = vunpack.c.l.s4 1934713408
        %v1508 = vunpack.c.0.s8 %v1507
        %v1509 = vlaneseq
        %v1510 = vshrl.u32 %v1509, 7
        %v1511 = vsub.s32 %v1508, %v1510
        %v1512 = vrot.slane %v1504, %v1511
        %v1514 = vunpack.c.l.s4 1934713408
        %v1515 = vunpack.c.0.s8 %v1514
        %v1516 = vlaneseq
        %v1517 = vshrl.u32 %v1516, 7
        %v1518 = vsub.s32 %v1515, %v1517
        %v1519 = vrot.slane %v1505, %v1518
        %v1520 = vcombine.high %v1496, 0.0
        %v1521 = vcombine.high %v1503, 0.0
        %v1522 = vcombine.high %v1512, 0.0
        %v1523 = vcombine.high %v1519, 0.0
        %v1524 = vcombine.low %v873, %v1099
        %v1525 = vcombine.high %v873, %v1099
        %v1527 = vunpack.c.l.s4 1983009808
        %v1528 = vunpack.c.0.s8 %v1527
        %v1529 = vlaneseq
        %v1530 = vshrl.u32 %v1529, 7
        %v1531 = vsub.s32 %v1528, %v1530
        %v1532 = vrot.slane %v1524, %v1531
        %v1534 = vunpack.c.l.s4 1983009808
        %v1535 = vunpack.c.0.s8 %v1534
        %v1536 = vlaneseq
        %v1537 = vshrl.u32 %v1536, 7
        %v1538 = vsub.s32 %v1535, %v1537
        %v1539 = vrot.slane %v1525, %v1538
        %v1540 = vcombine.low %v1051, %v1147
        %v1541 = vcombine.high %v1051, %v1147
        %v1543 = vunpack.c.l.s4 1983009808
        %v1544 = vunpack.c.0.s8 %v1543
        %v1545 = vlaneseq
        %v1546 = vshrl.u32 %v1545, 7
        %v1547 = vsub.s32 %v1544, %v1546
        %v1548 = vrot.slane %v1540, %v1547
        %v1550 = vunpack.c.l.s4 1983009808
        %v1551 = vunpack.c.0.s8 %v1550
        %v1552 = vlaneseq
        %v1553 = vshrl.u32 %v1552, 7
        %v1554 = vsub.s32 %v1551, %v1553
        %v1555 = vrot.slane %v1541, %v1554
        %v1556 = vcombine.low %v1532, %v1548
        %v1557 = vcombine.high %v1532, %v1548
        %v1559 = vunpack.c.l.s4 1934713408
        %v1560 = vunpack.c.0.s8 %v1559
        %v1561 = vlaneseq
        %v1562 = vshrl.u32 %v1561, 7
        %v1563 = vsub.s32 %v1560, %v1562
        %v1564 = vrot.slane %v1556, %v1563
        %v1566 = vunpack.c.l.s4 1934713408
        %v1567 = vunpack.c.0.s8 %v1566
        %v1568 = vlaneseq
        %v1569 = vshrl.u32 %v1568, 7
        %v1570 = vsub.s32 %v1567, %v1569
        %v1571 = vrot.slane %v1557, %v1570
        %v1572 = vcombine.low %v1539, %v1555
        %v1573 = vcombine.high %v1539, %v1555
        %v1575 = vunpack.c.l.s4 1934713408
        %v1576 = vunpack.c.0.s8 %v1575
        %v1577 = vlaneseq
        %v1578 = vshrl.u32 %v1577, 7
        %v1579 = vsub.s32 %v1576, %v1578
        %v1580 = vrot.slane %v1572, %v1579
        %v1582 = vunpack.c.l.s4 1934713408
        %v1583 = vunpack.c.0.s8 %v1582
        %v1584 = vlaneseq
        %v1585 = vshrl.u32 %v1584, 7
        %v1586 = vsub.s32 %v1583, %v1585
        %v1587 = vrot.slane %v1573, %v1586
        %v1588 = vcombine.high %v1564, 0.0
        %v1589 = vcombine.high %v1571, 0.0
        %v1590 = vcombine.high %v1580, 0.0
        %v1591 = vcombine.high %v1587, 0.0
        %v1592 = vcombine.low %v879, %v1101
        %v1593 = vcombine.high %v879, %v1101
        %v1595 = vunpack.c.l.s4 1983009808
        %v1596 = vunpack.c.0.s8 %v1595
        %v1597 = vlaneseq
        %v1598 = vshrl.u32 %v1597, 7
        %v1599 = vsub.s32 %v1596, %v1598
        %v1600 = vrot.slane %v1592, %v1599
        %v1602 = vunpack.c.l.s4 1983009808
        %v1603 = vunpack.c.0.s8 %v1602
        %v1604 = vlaneseq
        %v1605 = vshrl.u32 %v1604, 7
        %v1606 = vsub.s32 %v1603, %v1605
        %v1607 = vrot.slane %v1593, %v1606
        %v1608 = vcombine.low %v1053, %v1149
        %v1609 = vcombine.high %v1053, %v1149
        %v1611 = vunpack.c.l.s4 1983009808
        %v1612 = vunpack.c.0.s8 %v1611
        %v1613 = vlaneseq
        %v1614 = vshrl.u32 %v1613, 7
        %v1615 = vsub.s32 %v1612, %v1614
        %v1616 = vrot.slane %v1608, %v1615
        %v1618 = vunpack.c.l.s4 1983009808
        %v1619 = vunpack.c.0.s8 %v1618
        %v1620 = vlaneseq
        %v1621 = vshrl.u32 %v1620, 7
        %v1622 = vsub.s32 %v1619, %v1621
        %v1623 = vrot.slane %v1609, %v1622
        %v1624 = vcombine.low %v1600, %v1616
        %v1625 = vcombine.high %v1600, %v1616
        %v1627 = vunpack.c.l.s4 1934713408
        %v1628 = vunpack.c.0.s8 %v1627
        %v1629 = vlaneseq
        %v1630 = vshrl.u32 %v1629, 7
        %v1631 = vsub.s32 %v1628, %v1630
        %v1632 = vrot.slane %v1624, %v1631
        %v1634 = vunpack.c.l.s4 1934713408
        %v1635 = vunpack.c.0.s8 %v1634
        %v1636 = vlaneseq
        %v1637 = vshrl.u32 %v1636, 7
        %v1638 = vsub.s32 %v1635, %v1637
        %v1639 = vrot.slane %v1625, %v1638
        %v1640 = vcombine.low %v1607, %v1623
        %v1641 = vcombine.high %v1607, %v1623
        %v1643 = vunpack.c.l.s4 1934713408
        %v1644 = vunpack.c.0.s8 %v1643
        %v1645 = vlaneseq
        %v1646 = vshrl.u32 %v1645, 7
        %v1647 = vsub.s32 %v1644, %v1646
        %v1648 = vrot.slane %v1640, %v1647
        %v1650 = vunpack.c.l.s4 1934713408
        %v1651 = vunpack.c.0.s8 %v1650
        %v1652 = vlaneseq
        %v1653 = vshrl.u32 %v1652, 7
        %v1654 = vsub.s32 %v1651, %v1653
        %v1655 = vrot.slane %v1641, %v1654
        %v1656 = vcombine.high %v1632, 0.0
        %v1657 = vcombine.high %v1639, 0.0
        %v1658 = vcombine.high %v1648, 0.0
        %v1659 = vcombine.high %v1655, 0.0
        %v1660 = vcombine.low %v883, %v1103
        %v1661 = vcombine.high %v883, %v1103
        %v1663 = vunpack.c.l.s4 1983009808
        %v1664 = vunpack.c.0.s8 %v1663
        %v1665 = vlaneseq
        %v1666 = vshrl.u32 %v1665, 7
        %v1667 = vsub.s32 %v1664, %v1666
        %v1668 = vrot.slane %v1660, %v1667
        %v1670 = vunpack.c.l.s4 1983009808
        %v1671 = vunpack.c.0.s8 %v1670
        %v1672 = vlaneseq
        %v1673 = vshrl.u32 %v1672, 7
        %v1674 = vsub.s32 %v1671, %v1673
        %v1675 = vrot.slane %v1661, %v1674
        %v1676 = vcombine.low %v1055, %v1151
        %v1677 = vcombine.high %v1055, %v1151
        %v1679 = vunpack.c.l.s4 1983009808
        %v1680 = vunpack.c.0.s8 %v1679
        %v1681 = vlaneseq
        %v1682 = vshrl.u32 %v1681, 7
        %v1683 = vsub.s32 %v1680, %v1682
        %v1684 = vrot.slane %v1676, %v1683
        %v1686 = vunpack.c.l.s4 1983009808
        %v1687 = vunpack.c.0.s8 %v1686
        %v1688 = vlaneseq
        %v1689 = vshrl.u32 %v1688, 7
        %v1690 = vsub.s32 %v1687, %v1689
        %v1691 = vrot.slane %v1677, %v1690
        %v1692 = vcombine.low %v1668, %v1684
        %v1693 = vcombine.high %v1668, %v1684
        %v1695 = vunpack.c.l.s4 1934713408
        %v1696 = vunpack.c.0.s8 %v1695
        %v1697 = vlaneseq
        %v1698 = vshrl.u32 %v1697, 7
        %v1699 = vsub.s32 %v1696, %v1698
        %v1700 = vrot.slane %v1692, %v1699
        %v1702 = vunpack.c.l.s4 1934713408
        %v1703 = vunpack.c.0.s8 %v1702
        %v1704 = vlaneseq
        %v1705 = vshrl.u32 %v1704, 7
        %v1706 = vsub.s32 %v1703, %v1705
        %v1707 = vrot.slane %v1693, %v1706
        %v1708 = vcombine.low %v1675, %v1691
        %v1709 = vcombine.high %v1675, %v1691
        %v1711 = vunpack.c.l.s4 1934713408
        %v1712 = vunpack.c.0.s8 %v1711
        %v1713 = vlaneseq
        %v1714 = vshrl.u32 %v1713, 7
        %v1715 = vsub.s32 %v1712, %v1714
        %v1716 = vrot.slane %v1708, %v1715
        %v1718 = vunpack.c.l.s4 1934713408
        %v1719 = vunpack.c.0.s8 %v1718
        %v1720 = vlaneseq
        %v1721 = vshrl.u32 %v1720, 7
        %v1722 = vsub.s32 %v1719, %v1721
        %v1723 = vrot.slane %v1709, %v1722
        %v1724 = vcombine.high %v1700, 0.0
        %v1725 = vcombine.high %v1707, 0.0
        %v1726 = vcombine.high %v1716, 0.0
        %v1727 = vcombine.high %v1723, 0.0
        %v1728 = vcombine.low %v889, %v1105
        %v1729 = vcombine.high %v889, %v1105
        %v1731 = vunpack.c.l.s4 1983009808
        %v1732 = vunpack.c.0.s8 %v1731
        %v1733 = vlaneseq
        %v1734 = vshrl.u32 %v1733, 7
        %v1735 = vsub.s32 %v1732, %v1734
        %v1736 = vrot.slane %v1728, %v1735
        %v1738 = vunpack.c.l.s4 1983009808
        %v1739 = vunpack.c.0.s8 %v1738
        %v1740 = vlaneseq
        %v1741 = vshrl.u32 %v1740, 7
        %v1742 = vsub.s32 %v1739, %v1741
        %v1743 = vrot.slane %v1729, %v1742
        %v1744 = vcombine.low %v1057, %v1153
        %v1745 = vcombine.high %v1057, %v1153
        %v1747 = vunpack.c.l.s4 1983009808
        %v1748 = vunpack.c.0.s8 %v1747
        %v1749 = vlaneseq
        %v1750 = vshrl.u32 %v1749, 7
        %v1751 = vsub.s32 %v1748, %v1750
        %v1752 = vrot.slane %v1744, %v1751
        %v1754 = vunpack.c.l.s4 1983009808
        %v1755 = vunpack.c.0.s8 %v1754
        %v1756 = vlaneseq
        %v1757 = vshrl.u32 %v1756, 7
        %v1758 = vsub.s32 %v1755, %v1757
        %v1759 = vrot.slane %v1745, %v1758
        %v1760 = vcombine.low %v1736, %v1752
        %v1761 = vcombine.high %v1736, %v1752
        %v1763 = vunpack.c.l.s4 1934713408
        %v1764 = vunpack.c.0.s8 %v1763
        %v1765 = vlaneseq
        %v1766 = vshrl.u32 %v1765, 7
        %v1767 = vsub.s32 %v1764, %v1766
        %v1768 = vrot.slane %v1760, %v1767
        %v1770 = vunpack.c.l.s4 1934713408
        %v1771 = vunpack.c.0.s8 %v1770
        %v1772 = vlaneseq
        %v1773 = vshrl.u32 %v1772, 7
        %v1774 = vsub.s32 %v1771, %v1773
        %v1775 = vrot.slane %v1761, %v1774
        %v1776 = vcombine.low %v1743, %v1759
        %v1777 = vcombine.high %v1743, %v1759
        %v1779 = vunpack.c.l.s4 1934713408
        %v1780 = vunpack.c.0.s8 %v1779
        %v1781 = vlaneseq
        %v1782 = vshrl.u32 %v1781, 7
        %v1783 = vsub.s32 %v1780, %v1782
        %v1784 = vrot.slane %v1776, %v1783
        %v1786 = vunpack.c.l.s4 1934713408
        %v1787 = vunpack.c.0.s8 %v1786
        %v1788 = vlaneseq
        %v1789 = vshrl.u32 %v1788, 7
        %v1790 = vsub.s32 %v1787, %v1789
        %v1791 = vrot.slane %v1777, %v1790
        %v1792 = vcombine.high %v1768, 0.0
        %v1793 = vcombine.high %v1775, 0.0
        %v1794 = vcombine.high %v1784, 0.0
        %v1795 = vcombine.high %v1791, 0.0
        %v1796 = vcombine.low %v893, %v1107
        %v1797 = vcombine.high %v893, %v1107
        %v1799 = vunpack.c.l.s4 1983009808
        %v1800 = vunpack.c.0.s8 %v1799
        %v1801 = vlaneseq
        %v1802 = vshrl.u32 %v1801, 7
        %v1803 = vsub.s32 %v1800, %v1802
        %v1804 = vrot.slane %v1796, %v1803
        %v1806 = vunpack.c.l.s4 1983009808
        %v1807 = vunpack.c.0.s8 %v1806
        %v1808 = vlaneseq
        %v1809 = vshrl.u32 %v1808, 7
        %v1810 = vsub.s32 %v1807, %v1809
        %v1811 = vrot.slane %v1797, %v1810
        %v1812 = vcombine.low %v1059, %v1155
        %v1813 = vcombine.high %v1059, %v1155
        %v1815 = vunpack.c.l.s4 1983009808
        %v1816 = vunpack.c.0.s8 %v1815
        %v1817 = vlaneseq
        %v1818 = vshrl.u32 %v1817, 7
        %v1819 = vsub.s32 %v1816, %v1818
        %v1820 = vrot.slane %v1812, %v1819
        %v1822 = vunpack.c.l.s4 1983009808
        %v1823 = vunpack.c.0.s8 %v1822
        %v1824 = vlaneseq
        %v1825 = vshrl.u32 %v1824, 7
        %v1826 = vsub.s32 %v1823, %v1825
        %v1827 = vrot.slane %v1813, %v1826
        %v1828 = vcombine.low %v1804, %v1820
        %v1829 = vcombine.high %v1804, %v1820
        %v1831 = vunpack.c.l.s4 1934713408
        %v1832 = vunpack.c.0.s8 %v1831
        %v1833 = vlaneseq
        %v1834 = vshrl.u32 %v1833, 7
        %v1835 = vsub.s32 %v1832, %v1834
        %v1836 = vrot.slane %v1828, %v1835
        %v1838 = vunpack.c.l.s4 1934713408
        %v1839 = vunpack.c.0.s8 %v1838
        %v1840 = vlaneseq
        %v1841 = vshrl.u32 %v1840, 7
        %v1842 = vsub.s32 %v1839, %v1841
        %v1843 = vrot.slane %v1829, %v1842
        %v1844 = vcombine.low %v1811, %v1827
        %v1845 = vcombine.high %v1811, %v1827
        %v1847 = vunpack.c.l.s4 1934713408
        %v1848 = vunpack.c.0.s8 %v1847
        %v1849 = vlaneseq
        %v1850 = vshrl.u32 %v1849, 7
        %v1851 = vsub.s32 %v1848, %v1850
        %v1852 = vrot.slane %v1844, %v1851
        %v1854 = vunpack.c.l.s4 1934713408
        %v1855 = vunpack.c.0.s8 %v1854
        %v1856 = vlaneseq
        %v1857 = vshrl.u32 %v1856, 7
        %v1858 = vsub.s32 %v1855, %v1857
        %v1859 = vrot.slane %v1845, %v1858
        %v1860 = vcombine.high %v1836, 0.0
        %v1861 = vcombine.high %v1843, 0.0
        %v1862 = vcombine.high %v1852, 0.0
        %v1863 = vcombine.high %v1859, 0.0
        %v1864 = vcombine.low %v899, %v1109
        %v1865 = vcombine.high %v899, %v1109
        %v1867 = vunpack.c.l.s4 1983009808
        %v1868 = vunpack.c.0.s8 %v1867
        %v1869 = vlaneseq
        %v1870 = vshrl.u32 %v1869, 7
        %v1871 = vsub.s32 %v1868, %v1870
        %v1872 = vrot.slane %v1864, %v1871
        %v1874 = vunpack.c.l.s4 1983009808
        %v1875 = vunpack.c.0.s8 %v1874
        %v1876 = vlaneseq
        %v1877 = vshrl.u32 %v1876, 7
        %v1878 = vsub.s32 %v1875, %v1877
        %v1879 = vrot.slane %v1865, %v1878
        %v1880 = vcombine.low %v1061, %v1157
        %v1881 = vcombine.high %v1061, %v1157
        %v1883 = vunpack.c.l.s4 1983009808
        %v1884 = vunpack.c.0.s8 %v1883
        %v1885 = vlaneseq
        %v1886 = vshrl.u32 %v1885, 7
        %v1887 = vsub.s32 %v1884, %v1886
        %v1888 = vrot.slane %v1880, %v1887
        %v1890 = vunpack.c.l.s4 1983009808
        %v1891 = vunpack.c.0.s8 %v1890
        %v1892 = vlaneseq
        %v1893 = vshrl.u32 %v1892, 7
        %v1894 = vsub.s32 %v1891, %v1893
        %v1895 = vrot.slane %v1881, %v1894
        %v1896 = vcombine.low %v1872, %v1888
        %v1897 = vcombine.high %v1872, %v1888
        %v1899 = vunpack.c.l.s4 1934713408
        %v1900 = vunpack.c.0.s8 %v1899
        %v1901 = vlaneseq
        %v1902 = vshrl.u32 %v1901, 7
        %v1903 = vsub.s32 %v1900, %v1902
        %v1904 = vrot.slane %v1896, %v1903
        %v1906 = vunpack.c.l.s4 1934713408
        %v1907 = vunpack.c.0.s8 %v1906
        %v1908 = vlaneseq
        %v1909 = vshrl.u32 %v1908, 7
        %v1910 = vsub.s32 %v1907, %v1909
        %v1911 = vrot.slane %v1897, %v1910
        %v1912 = vcombine.low %v1879, %v1895
        %v1913 = vcombine.high %v1879, %v1895
        %v1915 = vunpack.c.l.s4 1934713408
        %v1916 = vunpack.c.0.s8 %v1915
        %v1917 = vlaneseq
        %v1918 = vshrl.u32 %v1917, 7
        %v1919 = vsub.s32 %v1916, %v1918
        %v1920 = vrot.slane %v1912, %v1919
        %v1922 = vunpack.c.l.s4 1934713408
        %v1923 = vunpack.c.0.s8 %v1922
        %v1924 = vlaneseq
        %v1925 = vshrl.u32 %v1924, 7
        %v1926 = vsub.s32 %v1923, %v1925
        %v1927 = vrot.slane %v1913, %v1926
        %v1928 = vcombine.high %v1904, 0.0
        %v1929 = vcombine.high %v1911, 0.0
        %v1930 = vcombine.high %v1920, 0.0
        %v1931 = vcombine.high %v1927, 0.0
        %v1932 = vcombine.low %v903, %v1111
        %v1933 = vcombine.high %v903, %v1111
        %v1935 = vunpack.c.l.s4 1983009808
        %v1936 = vunpack.c.0.s8 %v1935
        %v1937 = vlaneseq
        %v1938 = vshrl.u32 %v1937, 7
        %v1939 = vsub.s32 %v1936, %v1938
        %v1940 = vrot.slane %v1932, %v1939
        %v1942 = vunpack.c.l.s4 1983009808
        %v1943 = vunpack.c.0.s8 %v1942
        %v1944 = vlaneseq
        %v1945 = vshrl.u32 %v1944, 7
        %v1946 = vsub.s32 %v1943, %v1945
        %v1947 = vrot.slane %v1933, %v1946
        %v1948 = vcombine.low %v1063, %v1159
        %v1949 = vcombine.high %v1063, %v1159
        %v1951 = vunpack.c.l.s4 1983009808
        %v1952 = vunpack.c.0.s8 %v1951
        %v1953 = vlaneseq
        %v1954 = vshrl.u32 %v1953, 7
        %v1955 = vsub.s32 %v1952, %v1954
        %v1956 = vrot.slane %v1948, %v1955
        %v1958 = vunpack.c.l.s4 1983009808
        %v1959 = vunpack.c.0.s8 %v1958
        %v1960 = vlaneseq
        %v1961 = vshrl.u32 %v1960, 7
        %v1962 = vsub.s32 %v1959, %v1961
        %v1963 = vrot.slane %v1949, %v1962
        %v1964 = vcombine.low %v1940, %v1956
        %v1965 = vcombine.high %v1940, %v1956
        %v1967 = vunpack.c.l.s4 1934713408
        %v1968 = vunpack.c.0.s8 %v1967
        %v1969 = vlaneseq
        %v1970 = vshrl.u32 %v1969, 7
        %v1971 = vsub.s32 %v1968, %v1970
        %v1972 = vrot.slane %v1964, %v1971
        %v1974 = vunpack.c.l.s4 1934713408
        %v1975 = vunpack.c.0.s8 %v1974
        %v1976 = vlaneseq
        %v1977 = vshrl.u32 %v1976, 7
        %v1978 = vsub.s32 %v1975, %v1977
        %v1979 = vrot.slane %v1965, %v1978
        %v1980 = vcombine.low %v1947, %v1963
        %v1981 = vcombine.high %v1947, %v1963
        %v1983 = vunpack.c.l.s4 1934713408
        %v1984 = vunpack.c.0.s8 %v1983
        %v1985 = vlaneseq
        %v1986 = vshrl.u32 %v1985, 7
        %v1987 = vsub.s32 %v1984, %v1986
        %v1988 = vrot.slane %v1980, %v1987
        %v1990 = vunpack.c.l.s4 1934713408
        %v1991 = vunpack.c.0.s8 %v1990
        %v1992 = vlaneseq
        %v1993 = vshrl.u32 %v1992, 7
        %v1994 = vsub.s32 %v1991, %v1993
        %v1995 = vrot.slane %v1981, %v1994
        %v1996 = vcombine.high %v1972, 0.0
        %v1997 = vcombine.high %v1979, 0.0
        %v1998 = vcombine.high %v1988, 0.0
        %v1999 = vcombine.high %v1995, 0.0
        %v2000 = vcombine.low %v909, %v1113
        %v2001 = vcombine.high %v909, %v1113
        %v2003 = vunpack.c.l.s4 1983009808
        %v2004 = vunpack.c.0.s8 %v2003
        %v2005 = vlaneseq
        %v2006 = vshrl.u32 %v2005, 7
        %v2007 = vsub.s32 %v2004, %v2006
        %v2008 = vrot.slane %v2000, %v2007
        %v2010 = vunpack.c.l.s4 1983009808
        %v2011 = vunpack.c.0.s8 %v2010
        %v2012 = vlaneseq
        %v2013 = vshrl.u32 %v2012, 7
        %v2014 = vsub.s32 %v2011, %v2013
        %v2015 = vrot.slane %v2001, %v2014
        %v2016 = vcombine.low %v1065, %v1161
        %v2017 = vcombine.high %v1065, %v1161
        %v2019 = vunpack.c.l.s4 1983009808
        %v2020 = vunpack.c.0.s8 %v2019
        %v2021 = vlaneseq
        %v2022 = vshrl.u32 %v2021, 7
        %v2023 = vsub.s32 %v2020, %v2022
        %v2024 = vrot.slane %v2016, %v2023
        %v2026 = vunpack.c.l.s4 1983009808
        %v2027 = vunpack.c.0.s8 %v2026
        %v2028 = vlaneseq
        %v2029 = vshrl.u32 %v2028, 7
        %v2030 = vsub.s32 %v2027, %v2029
        %v2031 = vrot.slane %v2017, %v2030
        %v2032 = vcombine.low %v2008, %v2024
        %v2033 = vcombine.high %v2008, %v2024
        %v2035 = vunpack.c.l.s4 1934713408
        %v2036 = vunpack.c.0.s8 %v2035
        %v2037 = vlaneseq
        %v2038 = vshrl.u32 %v2037, 7
        %v2039 = vsub.s32 %v2036, %v2038
        %v2040 = vrot.slane %v2032, %v2039
        %v2042 = vunpack.c.l.s4 1934713408
        %v2043 = vunpack.c.0.s8 %v2042
        %v2044 = vlaneseq
        %v2045 = vshrl.u32 %v2044, 7
        %v2046 = vsub.s32 %v2043, %v2045
        %v2047 = vrot.slane %v2033, %v2046
        %v2048 = vcombine.low %v2015, %v2031
        %v2049 = vcombine.high %v2015, %v2031
        %v2051 = vunpack.c.l.s4 1934713408
        %v2052 = vunpack.c.0.s8 %v2051
        %v2053 = vlaneseq
        %v2054 = vshrl.u32 %v2053, 7
        %v2055 = vsub.s32 %v2052, %v2054
        %v2056 = vrot.slane %v2048, %v2055
        %v2058 = vunpack.c.l.s4 1934713408
        %v2059 = vunpack.c.0.s8 %v2058
        %v2060 = vlaneseq
        %v2061 = vshrl.u32 %v2060, 7
        %v2062 = vsub.s32 %v2059, %v2061
        %v2063 = vrot.slane %v2049, %v2062
        %v2064 = vcombine.high %v2040, 0.0
        %v2065 = vcombine.high %v2047, 0.0
        %v2066 = vcombine.high %v2056, 0.0
        %v2067 = vcombine.high %v2063, 0.0
        %v2068 = vcombine.low %v913, %v1115
        %v2069 = vcombine.high %v913, %v1115
        %v2071 = vunpack.c.l.s4 1983009808
        %v2072 = vunpack.c.0.s8 %v2071
        %v2073 = vlaneseq
        %v2074 = vshrl.u32 %v2073, 7
        %v2075 = vsub.s32 %v2072, %v2074
        %v2076 = vrot.slane %v2068, %v2075
        %v2078 = vunpack.c.l.s4 1983009808
        %v2079 = vunpack.c.0.s8 %v2078
        %v2080 = vlaneseq
        %v2081 = vshrl.u32 %v2080, 7
        %v2082 = vsub.s32 %v2079, %v2081
        %v2083 = vrot.slane %v2069, %v2082
        %v2084 = vcombine.low %v1067, %v1163
        %v2085 = vcombine.high %v1067, %v1163
        %v2087 = vunpack.c.l.s4 1983009808
        %v2088 = vunpack.c.0.s8 %v2087
        %v2089 = vlaneseq
        %v2090 = vshrl.u32 %v2089, 7
        %v2091 = vsub.s32 %v2088, %v2090
        %v2092 = vrot.slane %v2084, %v2091
        %v2094 = vunpack.c.l.s4 1983009808
        %v2095 = vunpack.c.0.s8 %v2094
        %v2096 = vlaneseq
        %v2097 = vshrl.u32 %v2096, 7
        %v2098 = vsub.s32 %v2095, %v2097
        %v2099 = vrot.slane %v2085, %v2098
        %v2100 = vcombine.low %v2076, %v2092
        %v2101 = vcombine.high %v2076, %v2092
        %v2103 = vunpack.c.l.s4 1934713408
        %v2104 = vunpack.c.0.s8 %v2103
        %v2105 = vlaneseq
        %v2106 = vshrl.u32 %v2105, 7
        %v2107 = vsub.s32 %v2104, %v2106
        %v2108 = vrot.slane %v2100, %v2107
        %v2110 = vunpack.c.l.s4 1934713408
        %v2111 = vunpack.c.0.s8 %v2110
        %v2112 = vlaneseq
        %v2113 = vshrl.u32 %v2112, 7
        %v2114 = vsub.s32 %v2111, %v2113
        %v2115 = vrot.slane %v2101, %v2114
        %v2116 = vcombine.low %v2083, %v2099
        %v2117 = vcombine.high %v2083, %v2099
        %v2119 = vunpack.c.l.s4 1934713408
        %v2120 = vunpack.c.0.s8 %v2119
        %v2121 = vlaneseq
        %v2122 = vshrl.u32 %v2121, 7
        %v2123 = vsub.s32 %v2120, %v2122
        %v2124 = vrot.slane %v2116, %v2123
        %v2126 = vunpack.c.l.s4 1934713408
        %v2127 = vunpack.c.0.s8 %v2126
        %v2128 = vlaneseq
        %v2129 = vshrl.u32 %v2128, 7
        %v2130 = vsub.s32 %v2127, %v2129
        %v2131 = vrot.slane %v2117, %v2130
        %v2132 = vcombine.high %v2108, 0.0
        %v2133 = vcombine.high %v2115, 0.0
        %v2134 = vcombine.high %v2124, 0.0
        %v2135 = vcombine.high %v2131, 0.0
        %v2136 = vcombine.low %v919, %v1117
        %v2137 = vcombine.high %v919, %v1117
        %v2139 = vunpack.c.l.s4 1983009808
        %v2140 = vunpack.c.0.s8 %v2139
        %v2141 = vlaneseq
        %v2142 = vshrl.u32 %v2141, 7
        %v2143 = vsub.s32 %v2140, %v2142
        %v2144 = vrot.slane %v2136, %v2143
        %v2146 = vunpack.c.l.s4 1983009808
        %v2147 = vunpack.c.0.s8 %v2146
        %v2148 = vlaneseq
        %v2149 = vshrl.u32 %v2148, 7
        %v2150 = vsub.s32 %v2147, %v2149
        %v2151 = vrot.slane %v2137, %v2150
        %v2152 = vcombine.low %v1069, %v1165
        %v2153 = vcombine.high %v1069, %v1165
        %v2155 = vunpack.c.l.s4 1983009808
        %v2156 = vunpack.c.0.s8 %v2155
        %v2157 = vlaneseq
        %v2158 = vshrl.u32 %v2157, 7
        %v2159 = vsub.s32 %v2156, %v2158
        %v2160 = vrot.slane %v2152, %v2159
        %v2162 = vunpack.c.l.s4 1983009808
        %v2163 = vunpack.c.0.s8 %v2162
        %v2164 = vlaneseq
        %v2165 = vshrl.u32 %v2164, 7
        %v2166 = vsub.s32 %v2163, %v2165
        %v2167 = vrot.slane %v2153, %v2166
        %v2168 = vcombine.low %v2144, %v2160
        %v2169 = vcombine.high %v2144, %v2160
        %v2171 = vunpack.c.l.s4 1934713408
        %v2172 = vunpack.c.0.s8 %v2171
        %v2173 = vlaneseq
        %v2174 = vshrl.u32 %v2173, 7
        %v2175 = vsub.s32 %v2172, %v2174
        %v2176 = vrot.slane %v2168, %v2175
        %v2178 = vunpack.c.l.s4 1934713408
        %v2179 = vunpack.c.0.s8 %v2178
        %v2180 = vlaneseq
        %v2181 = vshrl.u32 %v2180, 7
        %v2182 = vsub.s32 %v2179, %v2181
        %v2183 = vrot.slane %v2169, %v2182
        %v2184 = vcombine.low %v2151, %v2167
        %v2185 = vcombine.high %v2151, %v2167
        %v2187 = vunpack.c.l.s4 1934713408
        %v2188 = vunpack.c.0.s8 %v2187
        %v2189 = vlaneseq
        %v2190 = vshrl.u32 %v2189, 7
        %v2191 = vsub.s32 %v2188, %v2190
        %v2192 = vrot.slane %v2184, %v2191
        %v2194 = vunpack.c.l.s4 1934713408
        %v2195 = vunpack.c.0.s8 %v2194
        %v2196 = vlaneseq
        %v2197 = vshrl.u32 %v2196, 7
        %v2198 = vsub.s32 %v2195, %v2197
        %v2199 = vrot.slane %v2185, %v2198
        %v2200 = vcombine.high %v2176, 0.0
        %v2201 = vcombine.high %v2183, 0.0
        %v2202 = vcombine.high %v2192, 0.0
        %v2203 = vcombine.high %v2199, 0.0
        %v2204 = vcombine.low %v923, %v1119
        %v2205 = vcombine.high %v923, %v1119
        %v2207 = vunpack.c.l.s4 1983009808
        %v2208 = vunpack.c.0.s8 %v2207
        %v2209 = vlaneseq
        %v2210 = vshrl.u32 %v2209, 7
        %v2211 = vsub.s32 %v2208, %v2210
        %v2212 = vrot.slane %v2204, %v2211
        %v2214 = vunpack.c.l.s4 1983009808
        %v2215 = vunpack.c.0.s8 %v2214
        %v2216 = vlaneseq
        %v2217 = vshrl.u32 %v2216, 7
        %v2218 = vsub.s32 %v2215, %v2217
        %v2219 = vrot.slane %v2205, %v2218
        %v2220 = vcombine.low %v1071, %v1167
        %v2221 = vcombine.high %v1071, %v1167
        %v2223 = vunpack.c.l.s4 1983009808
        %v2224 = vunpack.c.0.s8 %v2223
        %v2225 = vlaneseq
        %v2226 = vshrl.u32 %v2225, 7
        %v2227 = vsub.s32 %v2224, %v2226
        %v2228 = vrot.slane %v2220, %v2227
        %v2230 = vunpack.c.l.s4 1983009808
        %v2231 = vunpack.c.0.s8 %v2230
        %v2232 = vlaneseq
        %v2233 = vshrl.u32 %v2232, 7
        %v2234 = vsub.s32 %v2231, %v2233
        %v2235 = vrot.slane %v2221, %v2234
        %v2236 = vcombine.low %v2212, %v2228
        %v2237 = vcombine.high %v2212, %v2228
        %v2239 = vunpack.c.l.s4 1934713408
        %v2240 = vunpack.c.0.s8 %v2239
        %v2241 = vlaneseq
        %v2242 = vshrl.u32 %v2241, 7
        %v2243 = vsub.s32 %v2240, %v2242
        %v2244 = vrot.slane %v2236, %v2243
        %v2246 = vunpack.c.l.s4 1934713408
        %v2247 = vunpack.c.0.s8 %v2246
        %v2248 = vlaneseq
        %v2249 = vshrl.u32 %v2248, 7
        %v2250 = vsub.s32 %v2247, %v2249
        %v2251 = vrot.slane %v2237, %v2250
        %v2252 = vcombine.low %v2219, %v2235
        %v2253 = vcombine.high %v2219, %v2235
        %v2255 = vunpack.c.l.s4 1934713408
        %v2256 = vunpack.c.0.s8 %v2255
        %v2257 = vlaneseq
        %v2258 = vshrl.u32 %v2257, 7
        %v2259 = vsub.s32 %v2256, %v2258
        %v2260 = vrot.slane %v2252, %v2259
        %v2262 = vunpack.c.l.s4 1934713408
        %v2263 = vunpack.c.0.s8 %v2262
        %v2264 = vlaneseq
        %v2265 = vshrl.u32 %v2264, 7
        %v2266 = vsub.s32 %v2263, %v2265
        %v2267 = vrot.slane %v2253, %v2266
        %v2268 = vcombine.high %v2244, 0.0
        %v2269 = vcombine.high %v2251, 0.0
        %v2270 = vcombine.high %v2260, 0.0
        %v2271 = vcombine.high %v2267, 0.0
        %v2272 = vcombine.low %v1224, %v1231
        %v2274 = vunpack.c.l.s4 1983009808
        %v2275 = vunpack.c.0.s8 %v2274
        %v2276 = vlaneseq
        %v2277 = vshrl.u32 %v2276, 7
        %v2278 = vsub.s32 %v2275, %v2277
        %v2279 = vrot.slane %v2272, %v2278
        %v2280 = vcombine.low %v1248, %v1249
        %v2282 = vunpack.c.l.s4 1983009808
        %v2283 = vunpack.c.0.s8 %v2282
        %v2284 = vlaneseq
        %v2285 = vshrl.u32 %v2284, 7
        %v2286 = vsub.s32 %v2283, %v2285
        %v2287 = vrot.slane %v2280, %v2286
        %v2288 = vcombine.low %v1240, %v1247
        %v2290 = vunpack.c.l.s4 1983009808
        %v2291 = vunpack.c.0.s8 %v2290
        %v2292 = vlaneseq
        %v2293 = vshrl.u32 %v2292, 7
        %v2294 = vsub.s32 %v2291, %v2293
        %v2295 = vrot.slane %v2288, %v2294
        %v2296 = vcombine.low %v1250, %v1251
        %v2298 = vunpack.c.l.s4 1983009808
        %v2299 = vunpack.c.0.s8 %v2298
        %v2300 = vlaneseq
        %v2301 = vshrl.u32 %v2300, 7
        %v2302 = vsub.s32 %v2299, %v2301
        %v2303 = vrot.slane %v2296, %v2302
        %v2304 = vcombine.low %v2279, %v2287
        %v2305 = vcombine.high %v2279, %v2287
        %v2307 = vunpack.c.l.s4 1934713408
        %v2308 = vunpack.c.0.s8 %v2307
        %v2309 = vlaneseq
        %v2310 = vshrl.u32 %v2309, 7
        %v2311 = vsub.s32 %v2308, %v2310
        %v2312 = vrot.slane %v2304, %v2311
        %v2314 = vunpack.c.l.s4 1934713408
        %v2315 = vunpack.c.0.s8 %v2314
        %v2316 = vlaneseq
        %v2317 = vshrl.u32 %v2316, 7
        %v2318 = vsub.s32 %v2315, %v2317
        %v2319 = vrot.slane %v2305, %v2318
        %v2320 = vcombine.low %v2295, %v2303
        %v2321 = vcombine.high %v2295, %v2303
        %v2323 = vunpack.c.l.s4 1934713408
        %v2324 = vunpack.c.0.s8 %v2323
        %v2325 = vlaneseq
        %v2326 = vshrl.u32 %v2325, 7
        %v2327 = vsub.s32 %v2324, %v2326
        %v2328 = vrot.slane %v2320, %v2327
        %v2330 = vunpack.c.l.s4 1934713408
        %v2331 = vunpack.c.0.s8 %v2330
        %v2332 = vlaneseq
        %v2333 = vshrl.u32 %v2332, 7
        %v2334 = vsub.s32 %v2331, %v2333
        %v2335 = vrot.slane %v2321, %v2334
        %v2336 = vcombine.low %v2312, %v2328
        %v2337 = vcombine.high %v2312, %v2328
        %v2338 = vcombine.low %v2319, %v2335
        %v2339 = vcombine.high %v2319, %v2335
        %v2340 = vcombine.low %v1292, %v1299
        %v2342 = vunpack.c.l.s4 1983009808
        %v2343 = vunpack.c.0.s8 %v2342
        %v2344 = vlaneseq
        %v2345 = vshrl.u32 %v2344, 7
        %v2346 = vsub.s32 %v2343, %v2345
        %v2347 = vrot.slane %v2340, %v2346
        %v2348 = vcombine.low %v1316, %v1317
        %v2350 = vunpack.c.l.s4 1983009808
        %v2351 = vunpack.c.0.s8 %v2350
        %v2352 = vlaneseq
        %v2353 = vshrl.u32 %v2352, 7
        %v2354 = vsub.s32 %v2351, %v2353
        %v2355 = vrot.slane %v2348, %v2354
        %v2356 = vcombine.low %v1308, %v1315
        %v2358 = vunpack.c.l.s4 1983009808
        %v2359 = vunpack.c.0.s8 %v2358
        %v2360 = vlaneseq
        %v2361 = vshrl.u32 %v2360, 7
        %v2362 = vsub.s32 %v2359, %v2361
        %v2363 = vrot.slane %v2356, %v2362
        %v2364 = vcombine.low %v1318, %v1319
        %v2366 = vunpack.c.l.s4 1983009808
        %v2367 = vunpack.c.0.s8 %v2366
        %v2368 = vlaneseq
        %v2369 = vshrl.u32 %v2368, 7
        %v2370 = vsub.s32 %v2367, %v2369
        %v2371 = vrot.slane %v2364, %v2370
        %v2372 = vcombine.low %v2347, %v2355
        %v2373 = vcombine.high %v2347, %v2355
        %v2375 = vunpack.c.l.s4 1934713408
        %v2376 = vunpack.c.0.s8 %v2375
        %v2377 = vlaneseq
        %v2378 = vshrl.u32 %v2377, 7
        %v2379 = vsub.s32 %v2376, %v2378
        %v2380 = vrot.slane %v2372, %v2379
        %v2382 = vunpack.c.l.s4 1934713408
        %v2383 = vunpack.c.0.s8 %v2382
        %v2384 = vlaneseq
        %v2385 = vshrl.u32 %v2384, 7
        %v2386 = vsub.s32 %v2383, %v2385
        %v2387 = vrot.slane %v2373, %v2386
        %v2388 = vcombine.low %v2363, %v2371
        %v2389 = vcombine.high %v2363, %v2371
        %v2391 = vunpack.c.l.s4 1934713408
        %v2392 = vunpack.c.0.s8 %v2391
        %v2393 = vlaneseq
        %v2394 = vshrl.u32 %v2393, 7
        %v2395 = vsub.s32 %v2392, %v2394
        %v2396 = vrot.slane %v2388, %v2395
        %v2398 = vunpack.c.l.s4 1934713408
        %v2399 = vunpack.c.0.s8 %v2398
        %v2400 = vlaneseq
        %v2401 = vshrl.u32 %v2400, 7
        %v2402 = vsub.s32 %v2399, %v2401
        %v2403 = vrot.slane %v2389, %v2402
        %v2404 = vcombine.low %v2380, %v2396
        %v2405 = vcombine.high %v2380, %v2396
        %v2406 = vcombine.low %v2387, %v2403
        %v2407 = vcombine.high %v2387, %v2403
        %v2408 = vcombine.low %v1360, %v1367
        %v2410 = vunpack.c.l.s4 1983009808
        %v2411 = vunpack.c.0.s8 %v2410
        %v2412 = vlaneseq
        %v2413 = vshrl.u32 %v2412, 7
        %v2414 = vsub.s32 %v2411, %v2413
        %v2415 = vrot.slane %v2408, %v2414
        %v2416 = vcombine.low %v1384, %v1385
        %v2418 = vunpack.c.l.s4 1983009808
        %v2419 = vunpack.c.0.s8 %v2418
        %v2420 = vlaneseq
        %v2421 = vshrl.u32 %v2420, 7
        %v2422 = vsub.s32 %v2419, %v2421
        %v2423 = vrot.slane %v2416, %v2422
        %v2424 = vcombine.low %v1376, %v1383
        %v2426 = vunpack.c.l.s4 1983009808
        %v2427 = vunpack.c.0.s8 %v2426
        %v2428 = vlaneseq
        %v2429 = vshrl.u32 %v2428, 7
        %v2430 = vsub.s32 %v2427, %v2429
        %v2431 = vrot.slane %v2424, %v2430
        %v2432 = vcombine.low %v1386, %v1387
        %v2434 = vunpack.c.l.s4 1983009808
        %v2435 = vunpack.c.0.s8 %v2434
        %v2436 = vlaneseq
        %v2437 = vshrl.u32 %v2436, 7
        %v2438 = vsub.s32 %v2435, %v2437
        %v2439 = vrot.slane %v2432, %v2438
        %v2440 = vcombine.low %v2415, %v2423
        %v2441 = vcombine.high %v2415, %v2423
        %v2443 = vunpack.c.l.s4 1934713408
        %v2444 = vunpack.c.0.s8 %v2443
        %v2445 = vlaneseq
        %v2446 = vshrl.u32 %v2445, 7
        %v2447 = vsub.s32 %v2444, %v2446
        %v2448 = vrot.slane %v2440, %v2447
        %v2450 = vunpack.c.l.s4 1934713408
        %v2451 = vunpack.c.0.s8 %v2450
        %v2452 = vlaneseq
        %v2453 = vshrl.u32 %v2452, 7
        %v2454 = vsub.s32 %v2451, %v2453
        %v2455 = vrot.slane %v2441, %v2454
        %v2456 = vcombine.low %v2431, %v2439
        %v2457 = vcombine.high %v2431, %v2439
        %v2459 = vunpack.c.l.s4 1934713408
        %v2460 = vunpack.c.0.s8 %v2459
        %v2461 = vlaneseq
        %v2462 = vshrl.u32 %v2461, 7
        %v2463 = vsub.s32 %v2460, %v2462
        %v2464 = vrot.slane %v2456, %v2463
        %v2466 = vunpack.c.l.s4 1934713408
        %v2467 = vunpack.c.0.s8 %v2466
        %v2468 = vlaneseq
        %v2469 = vshrl.u32 %v2468, 7
        %v2470 = vsub.s32 %v2467, %v2469
        %v2471 = vrot.slane %v2457, %v2470
        %v2472 = vcombine.low %v2448, %v2464
        %v2473 = vcombine.high %v2448, %v2464
        %v2474 = vcombine.low %v2455, %v2471
        %v2475 = vcombine.high %v2455, %v2471
        %v2476 = vcombine.low %v1428, %v1435
        %v2478 = vunpack.c.l.s4 1983009808
        %v2479 = vunpack.c.0.s8 %v2478
        %v2480 = vlaneseq
        %v2481 = vshrl.u32 %v2480, 7
        %v2482 = vsub.s32 %v2479, %v2481
        %v2483 = vrot.slane %v2476, %v2482
        %v2484 = vcombine.low %v1452, %v1453
        %v2486 = vunpack.c.l.s4 1983009808
        %v2487 = vunpack.c.0.s8 %v2486
        %v2488 = vlaneseq
        %v2489 = vshrl.u32 %v2488, 7
        %v2490 = vsub.s32 %v2487, %v2489
        %v2491 = vrot.slane %v2484, %v2490
        %v2492 = vcombine.low %v1444, %v1451
        %v2494 = vunpack.c.l.s4 1983009808
        %v2495 = vunpack.c.0.s8 %v2494
        %v2496 = vlaneseq
        %v2497 = vshrl.u32 %v2496, 7
        %v2498 = vsub.s32 %v2495, %v2497
        %v2499 = vrot.slane %v2492, %v2498
        %v2500 = vcombine.low %v1454, %v1455
        %v2502 = vunpack.c.l.s4 1983009808
        %v2503 = vunpack.c.0.s8 %v2502
        %v2504 = vlaneseq
        %v2505 = vshrl.u32 %v2504, 7
        %v2506 = vsub.s32 %v2503, %v2505
        %v2507 = vrot.slane %v2500, %v2506
        %v2508 = vcombine.low %v2483, %v2491
        %v2509 = vcombine.high %v2483, %v2491
        %v2511 = vunpack.c.l.s4 1934713408
        %v2512 = vunpack.c.0.s8 %v2511
        %v2513 = vlaneseq
        %v2514 = vshrl.u32 %v2513, 7
        %v2515 = vsub.s32 %v2512, %v2514
        %v2516 = vrot.slane %v2508, %v2515
        %v2518 = vunpack.c.l.s4 1934713408
        %v2519 = vunpack.c.0.s8 %v2518
        %v2520 = vlaneseq
        %v2521 = vshrl.u32 %v2520, 7
        %v2522 = vsub.s32 %v2519, %v2521
        %v2523 = vrot.slane %v2509, %v2522
        %v2524 = vcombine.low %v2499, %v2507
        %v2525 = vcombine.high %v2499, %v2507
        %v2527 = vunpack.c.l.s4 1934713408
        %v2528 = vunpack.c.0.s8 %v2527
        %v2529 = vlaneseq
        %v2530 = vshrl.u32 %v2529, 7
        %v2531 = vsub.s32 %v2528, %v2530
        %v2532 = vrot.slane %v2524, %v2531
        %v2534 = vunpack.c.l.s4 1934713408
        %v2535 = vunpack.c.0.s8 %v2534
        %v2536 = vlaneseq
        %v2537 = vshrl.u32 %v2536, 7
        %v2538 = vsub.s32 %v2535, %v2537
        %v2539 = vrot.slane %v2525, %v2538
        %v2540 = vcombine.low %v2516, %v2532
        %v2541 = vcombine.high %v2516, %v2532
        %v2542 = vcombine.low %v2523, %v2539
        %v2543 = vcombine.high %v2523, %v2539
        %v2544 = vcombine.low %v1496, %v1503
        %v2546 = vunpack.c.l.s4 1983009808
        %v2547 = vunpack.c.0.s8 %v2546
        %v2548 = vlaneseq
        %v2549 = vshrl.u32 %v2548, 7
        %v2550 = vsub.s32 %v2547, %v2549
        %v2551 = vrot.slane %v2544, %v2550
        %v2552 = vcombine.low %v1520, %v1521
        %v2554 = vunpack.c.l.s4 1983009808
        %v2555 = vunpack.c.0.s8 %v2554
        %v2556 = vlaneseq
        %v2557 = vshrl.u32 %v2556, 7
        %v2558 = vsub.s32 %v2555, %v2557
        %v2559 = vrot.slane %v2552, %v2558
        %v2560 = vcombine.low %v1512, %v1519
        %v2562 = vunpack.c.l.s4 1983009808
        %v2563 = vunpack.c.0.s8 %v2562
        %v2564 = vlaneseq
        %v2565 = vshrl.u32 %v2564, 7
        %v2566 = vsub.s32 %v2563, %v2565
        %v2567 = vrot.slane %v2560, %v2566
        %v2568 = vcombine.low %v1522, %v1523
        %v2570 = vunpack.c.l.s4 1983009808
        %v2571 = vunpack.c.0.s8 %v2570
        %v2572 = vlaneseq
        %v2573 = vshrl.u32 %v2572, 7
        %v2574 = vsub.s32 %v2571, %v2573
        %v2575 = vrot.slane %v2568, %v2574
        %v2576 = vcombine.low %v2551, %v2559
        %v2577 = vcombine.high %v2551, %v2559
        %v2579 = vunpack.c.l.s4 1934713408
        %v2580 = vunpack.c.0.s8 %v2579
        %v2581 = vlaneseq
        %v2582 = vshrl.u32 %v2581, 7
        %v2583 = vsub.s32 %v2580, %v2582
        %v2584 = vrot.slane %v2576, %v2583
        %v2586 = vunpack.c.l.s4 1934713408
        %v2587 = vunpack.c.0.s8 %v2586
        %v2588 = vlaneseq
        %v2589 = vshrl.u32 %v2588, 7
        %v2590 = vsub.s32 %v2587, %v2589
        %v2591 = vrot.slane %v2577, %v2590
        %v2592 = vcombine.low %v2567, %v2575
        %v2593 = vcombine.high %v2567, %v2575
        %v2595 = vunpack.c.l.s4 1934713408
        %v2596 = vunpack.c.0.s8 %v2595
        %v2597 = vlaneseq
        %v2598 = vshrl.u32 %v2597, 7
        %v2599 = vsub.s32 %v2596, %v2598
        %v2600 = vrot.slane %v2592, %v2599
        %v2602 = vunpack.c.l.s4 1934713408
        %v2603 = vunpack.c.0.s8 %v2602
        %v2604 = vlaneseq
        %v2605 = vshrl.u32 %v2604, 7
        %v2606 = vsub.s32 %v2603, %v2605
        %v2607 = vrot.slane %v2593, %v2606
        %v2608 = vcombine.low %v2584, %v2600
        %v2609 = vcombine.high %v2584, %v2600
        %v2610 = vcombine.low %v2591, %v2607
        %v2611 = vcombine.high %v2591, %v2607
        %v2612 = vcombine.low %v1564, %v1571
        %v2614 = vunpack.c.l.s4 1983009808
        %v2615 = vunpack.c.0.s8 %v2614
        %v2616 = vlaneseq
        %v2617 = vshrl.u32 %v2616, 7
        %v2618 = vsub.s32 %v2615, %v2617
        %v2619 = vrot.slane %v2612, %v2618
        %v2620 = vcombine.low %v1588, %v1589
        %v2622 = vunpack.c.l.s4 1983009808
        %v2623 = vunpack.c.0.s8 %v2622
        %v2624 = vlaneseq
        %v2625 = vshrl.u32 %v2624, 7
        %v2626 = vsub.s32 %v2623, %v2625
        %v2627 = vrot.slane %v2620, %v2626
        %v2628 = vcombine.low %v1580, %v1587
        %v2630 = vunpack.c.l.s4 1983009808
        %v2631 = vunpack.c.0.s8 %v2630
        %v2632 = vlaneseq
        %v2633 = vshrl.u32 %v2632, 7
        %v2634 = vsub.s32 %v2631, %v2633
        %v2635 = vrot.slane %v2628, %v2634
        %v2636 = vcombine.low %v1590, %v1591
        %v2638 = vunpack.c.l.s4 1983009808
        %v2639 = vunpack.c.0.s8 %v2638
        %v2640 = vlaneseq
        %v2641 = vshrl.u32 %v2640, 7
        %v2642 = vsub.s32 %v2639, %v2641
        %v2643 = vrot.slane %v2636, %v2642
        %v2644 = vcombine.low %v2619, %v2627
        %v2645 = vcombine.high %v2619, %v2627
        %v2647 = vunpack.c.l.s4 1934713408
        %v2648 = vunpack.c.0.s8 %v2647
        %v2649 = vlaneseq
        %v2650 = vshrl.u32 %v2649, 7
        %v2651 = vsub.s32 %v2648, %v2650
        %v2652 = vrot.slane %v2644, %v2651
        %v2654 = vunpack.c.l.s4 1934713408
        %v2655 = vunpack.c.0.s8 %v2654
        %v2656 = vlaneseq
        %v2657 = vshrl.u32 %v2656, 7
        %v2658 = vsub.s32 %v2655, %v2657
        %v2659 = vrot.slane %v2645, %v2658
        %v2660 = vcombine.low %v2635, %v2643
        %v2661 = vcombine.high %v2635, %v2643
        %v2663 = vunpack.c.l.s4 1934713408
        %v2664 = vunpack.c.0.s8 %v2663
        %v2665 = vlaneseq
        %v2666 = vshrl.u32 %v2665, 7
        %v2667 = vsub.s32 %v2664, %v2666
        %v2668 = vrot.slane %v2660, %v2667
        %v2670 = vunpack.c.l.s4 1934713408
        %v2671 = vunpack.c.0.s8 %v2670
        %v2672 = vlaneseq
        %v2673 = vshrl.u32 %v2672, 7
        %v2674 = vsub.s32 %v2671, %v2673
        %v2675 = vrot.slane %v2661, %v2674
        %v2676 = vcombine.low %v2652, %v2668
        %v2677 = vcombine.high %v2652, %v2668
        %v2678 = vcombine.low %v2659, %v2675
        %v2679 = vcombine.high %v2659, %v2675
        %v2680 = vcombine.low %v1632, %v1639
        %v2682 = vunpack.c.l.s4 1983009808
        %v2683 = vunpack.c.0.s8 %v2682
        %v2684 = vlaneseq
        %v2685 = vshrl.u32 %v2684, 7
        %v2686 = vsub.s32 %v2683, %v2685
        %v2687 = vrot.slane %v2680, %v2686
        %v2688 = vcombine.low %v1656, %v1657
        %v2690 = vunpack.c.l.s4 1983009808
        %v2691 = vunpack.c.0.s8 %v2690
        %v2692 = vlaneseq
        %v2693 = vshrl.u32 %v2692, 7
        %v2694 = vsub.s32 %v2691, %v2693
        %v2695 = vrot.slane %v2688, %v2694
        %v2696 = vcombine.low %v1648, %v1655
        %v2698 = vunpack.c.l.s4 1983009808
        %v2699 = vunpack.c.0.s8 %v2698
        %v2700 = vlaneseq
        %v2701 = vshrl.u32 %v2700, 7
        %v2702 = vsub.s32 %v2699, %v2701
        %v2703 = vrot.slane %v2696, %v2702
        %v2704 = vcombine.low %v1658, %v1659
        %v2706 = vunpack.c.l.s4 1983009808
        %v2707 = vunpack.c.0.s8 %v2706
        %v2708 = vlaneseq
        %v2709 = vshrl.u32 %v2708, 7
        %v2710 = vsub.s32 %v2707, %v2709
        %v2711 = vrot.slane %v2704, %v2710
        %v2712 = vcombine.low %v2687, %v2695
        %v2713 = vcombine.high %v2687, %v2695
        %v2715 = vunpack.c.l.s4 1934713408
        %v2716 = vunpack.c.0.s8 %v2715
        %v2717 = vlaneseq
        %v2718 = vshrl.u32 %v2717, 7
        %v2719 = vsub.s32 %v2716, %v2718
        %v2720 = vrot.slane %v2712, %v2719
        %v2722 = vunpack.c.l.s4 1934713408
        %v2723 = vunpack.c.0.s8 %v2722
        %v2724 = vlaneseq
        %v2725 = vshrl.u32 %v2724, 7
        %v2726 = vsub.s32 %v2723, %v2725
        %v2727 = vrot.slane %v2713, %v2726
        %v2728 = vcombine.low %v2703, %v2711
        %v2729 = vcombine.high %v2703, %v2711
        %v2731 = vunpack.c.l.s4 1934713408
        %v2732 = vunpack.c.0.s8 %v2731
        %v2733 = vlaneseq
        %v2734 = vshrl.u32 %v2733, 7
        %v2735 = vsub.s32 %v2732, %v2734
        %v2736 = vrot.slane %v2728, %v2735
        %v2738 = vunpack.c.l.s4 1934713408
        %v2739 = vunpack.c.0.s8 %v2738
        %v2740 = vlaneseq
        %v2741 = vshrl.u32 %v2740, 7
        %v2742 = vsub.s32 %v2739, %v2741
        %v2743 = vrot.slane %v2729, %v2742
        %v2744 = vcombine.low %v2720, %v2736
        %v2745 = vcombine.high %v2720, %v2736
        %v2746 = vcombine.low %v2727, %v2743
        %v2747 = vcombine.high %v2727, %v2743
        %v2748 = vcombine.low %v1700, %v1707
        %v2750 = vunpack.c.l.s4 1983009808
        %v2751 = vunpack.c.0.s8 %v2750
        %v2752 = vlaneseq
        %v2753 = vshrl.u32 %v2752, 7
        %v2754 = vsub.s32 %v2751, %v2753
        %v2755 = vrot.slane %v2748, %v2754
        %v2756 = vcombine.low %v1724, %v1725
        %v2758 = vunpack.c.l.s4 1983009808
        %v2759 = vunpack.c.0.s8 %v2758
        %v2760 = vlaneseq
        %v2761 = vshrl.u32 %v2760, 7
        %v2762 = vsub.s32 %v2759, %v2761
        %v2763 = vrot.slane %v2756, %v2762
        %v2764 = vcombine.low %v1716, %v1723
        %v2766 = vunpack.c.l.s4 1983009808
        %v2767 = vunpack.c.0.s8 %v2766
        %v2768 = vlaneseq
        %v2769 = vshrl.u32 %v2768, 7
        %v2770 = vsub.s32 %v2767, %v2769
        %v2771 = vrot.slane %v2764, %v2770
        %v2772 = vcombine.low %v1726, %v1727
        %v2774 = vunpack.c.l.s4 1983009808
        %v2775 = vunpack.c.0.s8 %v2774
        %v2776 = vlaneseq
        %v2777 = vshrl.u32 %v2776, 7
        %v2778 = vsub.s32 %v2775, %v2777
        %v2779 = vrot.slane %v2772, %v2778
        %v2780 = vcombine.low %v2755, %v2763
        %v2781 = vcombine.high %v2755, %v2763
        %v2783 = vunpack.c.l.s4 1934713408
        %v2784 = vunpack.c.0.s8 %v2783
        %v2785 = vlaneseq
        %v2786 = vshrl.u32 %v2785, 7
        %v2787 = vsub.s32 %v2784, %v2786
        %v2788 = vrot.slane %v2780, %v2787
        %v2790 = vunpack.c.l.s4 1934713408
        %v2791 = vunpack.c.0.s8 %v2790
        %v2792 = vlaneseq
        %v2793 = vshrl.u32 %v2792, 7
        %v2794 = vsub.s32 %v2791, %v2793
        %v2795 = vrot.slane %v2781, %v2794
        %v2796 = vcombine.low %v2771, %v2779
        %v2797 = vcombine.high %v2771, %v2779
        %v2799 = vunpack.c.l.s4 1934713408
        %v2800 = vunpack.c.0.s8 %v2799
        %v2801 = vlaneseq
        %v2802 = vshrl.u32 %v2801, 7
        %v2803 = vsub.s32 %v2800, %v2802
        %v2804 = vrot.slane %v2796, %v2803
        %v2806 = vunpack.c.l.s4 1934713408
        %v2807 = vunpack.c.0.s8 %v2806
        %v2808 = vlaneseq
        %v2809 = vshrl.u32 %v2808, 7
        %v2810 = vsub.s32 %v2807, %v2809
        %v2811 = vrot.slane %v2797, %v2810
        %v2812 = vcombine.low %v2788, %v2804
        %v2813 = vcombine.high %v2788, %v2804
        %v2814 = vcombine.low %v2795, %v2811
        %v2815 = vcombine.high %v2795, %v2811
        %v2816 = vcombine.low %v1768, %v1775
        %v2818 = vunpack.c.l.s4 1983009808
        %v2819 = vunpack.c.0.s8 %v2818
        %v2820 = vlaneseq
        %v2821 = vshrl.u32 %v2820, 7
        %v2822 = vsub.s32 %v2819, %v2821
        %v2823 = vrot.slane %v2816, %v2822
        %v2824 = vcombine.low %v1792, %v1793
        %v2826 = vunpack.c.l.s4 1983009808
        %v2827 = vunpack.c.0.s8 %v2826
        %v2828 = vlaneseq
        %v2829 = vshrl.u32 %v2828, 7
        %v2830 = vsub.s32 %v2827, %v2829
        %v2831 = vrot.slane %v2824, %v2830
        %v2832 = vcombine.low %v1784, %v1791
        %v2834 = vunpack.c.l.s4 1983009808
        %v2835 = vunpack.c.0.s8 %v2834
        %v2836 = vlaneseq
        %v2837 = vshrl.u32 %v2836, 7
        %v2838 = vsub.s32 %v2835, %v2837
        %v2839 = vrot.slane %v2832, %v2838
        %v2840 = vcombine.low %v1794, %v1795
        %v2842 = vunpack.c.l.s4 1983009808
        %v2843 = vunpack.c.0.s8 %v2842
        %v2844 = vlaneseq
        %v2845 = vshrl.u32 %v2844, 7
        %v2846 = vsub.s32 %v2843, %v2845
        %v2847 = vrot.slane %v2840, %v2846
        %v2848 = vcombine.low %v2823, %v2831
        %v2849 = vcombine.high %v2823, %v2831
        %v2851 = vunpack.c.l.s4 1934713408
        %v2852 = vunpack.c.0.s8 %v2851
        %v2853 = vlaneseq
        %v2854 = vshrl.u32 %v2853, 7
        %v2855 = vsub.s32 %v2852, %v2854
        %v2856 = vrot.slane %v2848, %v2855
        %v2858 = vunpack.c.l.s4 1934713408
        %v2859 = vunpack.c.0.s8 %v2858
        %v2860 = vlaneseq
        %v2861 = vshrl.u32 %v2860, 7
        %v2862 = vsub.s32 %v2859, %v2861
        %v2863 = vrot.slane %v2849, %v2862
        %v2864 = vcombine.low %v2839, %v2847
        %v2865 = vcombine.high %v2839, %v2847
        %v2867 = vunpack.c.l.s4 1934713408
        %v2868 = vunpack.c.0.s8 %v2867
        %v2869 = vlaneseq
        %v2870 = vshrl.u32 %v2869, 7
        %v2871 = vsub.s32 %v2868, %v2870
        %v2872 = vrot.slane %v2864, %v2871
        %v2874 = vunpack.c.l.s4 1934713408
        %v2875 = vunpack.c.0.s8 %v2874
        %v2876 = vlaneseq
        %v2877 = vshrl.u32 %v2876, 7
        %v2878 = vsub.s32 %v2875, %v2877
        %v2879 = vrot.slane %v2865, %v2878
        %v2880 = vcombine.low %v2856, %v2872
        %v2881 = vcombine.high %v2856, %v2872
        %v2882 = vcombine.low %v2863, %v2879
        %v2883 = vcombine.high %v2863, %v2879
        %v2884 = vcombine.low %v1836, %v1843
        %v2886 = vunpack.c.l.s4 1983009808
        %v2887 = vunpack.c.0.s8 %v2886
        %v2888 = vlaneseq
        %v2889 = vshrl.u32 %v2888, 7
        %v2890 = vsub.s32 %v2887, %v2889
        %v2891 = vrot.slane %v2884, %v2890
        %v2892 = vcombine.low %v1860, %v1861
        %v2894 = vunpack.c.l.s4 1983009808
        %v2895 = vunpack.c.0.s8 %v2894
        %v2896 = vlaneseq
        %v2897 = vshrl.u32 %v2896, 7
        %v2898 = vsub.s32 %v2895, %v2897
        %v2899 = vrot.slane %v2892, %v2898
        %v2900 = vcombine.low %v1852, %v1859
        %v2902 = vunpack.c.l.s4 1983009808
        %v2903 = vunpack.c.0.s8 %v2902
        %v2904 = vlaneseq
        %v2905 = vshrl.u32 %v2904, 7
        %v2906 = vsub.s32 %v2903, %v2905
        %v2907 = vrot.slane %v2900, %v2906
        %v2908 = vcombine.low %v1862, %v1863
        %v2910 = vunpack.c.l.s4 1983009808
        %v2911 = vunpack.c.0.s8 %v2910
        %v2912 = vlaneseq
        %v2913 = vshrl.u32 %v2912, 7
        %v2914 = vsub.s32 %v2911, %v2913
        %v2915 = vrot.slane %v2908, %v2914
        %v2916 = vcombine.low %v2891, %v2899
        %v2917 = vcombine.high %v2891, %v2899
        %v2919 = vunpack.c.l.s4 1934713408
        %v2920 = vunpack.c.0.s8 %v2919
        %v2921 = vlaneseq
        %v2922 = vshrl.u32 %v2921, 7
        %v2923 = vsub.s32 %v2920, %v2922
        %v2924 = vrot.slane %v2916, %v2923
        %v2926 = vunpack.c.l.s4 1934713408
        %v2927 = vunpack.c.0.s8 %v2926
        %v2928 = vlaneseq
        %v2929 = vshrl.u32 %v2928, 7
        %v2930 = vsub.s32 %v2927, %v2929
        %v2931 = vrot.slane %v2917, %v2930
        %v2932 = vcombine.low %v2907, %v2915
        %v2933 = vcombine.high %v2907, %v2915
        %v2935 = vunpack.c.l.s4 1934713408
        %v2936 = vunpack.c.0.s8 %v2935
        %v2937 = vlaneseq
        %v2938 = vshrl.u32 %v2937, 7
        %v2939 = vsub.s32 %v2936, %v2938
        %v2940 = vrot.slane %v2932, %v2939
        %v2942 = vunpack.c.l.s4 1934713408
        %v2943 = vunpack.c.0.s8 %v2942
        %v2944 = vlaneseq
        %v2945 = vshrl.u32 %v2944, 7
        %v2946 = vsub.s32 %v2943, %v2945
        %v2947 = vrot.slane %v2933, %v2946
        %v2948 = vcombine.low %v2924, %v2940
        %v2949 = vcombine.high %v2924, %v2940
        %v2950 = vcombine.low %v2931, %v2947
        %v2951 = vcombine.high %v2931, %v2947
        %v2952 = vcombine.low %v1904, %v1911
        %v2954 = vunpack.c.l.s4 1983009808
        %v2955 = vunpack.c.0.s8 %v2954
        %v2956 = vlaneseq
        %v2957 = vshrl.u32 %v2956, 7
        %v2958 = vsub.s32 %v2955, %v2957
        %v2959 = vrot.slane %v2952, %v2958
        %v2960 = vcombine.low %v1928, %v1929
        %v2962 = vunpack.c.l.s4 1983009808
        %v2963 = vunpack.c.0.s8 %v2962
        %v2964 = vlaneseq
        %v2965 = vshrl.u32 %v2964, 7
        %v2966 = vsub.s32 %v2963, %v2965
        %v2967 = vrot.slane %v2960, %v2966
        %v2968 = vcombine.low %v1920, %v1927
        %v2970 = vunpack.c.l.s4 1983009808
        %v2971 = vunpack.c.0.s8 %v2970
        %v2972 = vlaneseq
        %v2973 = vshrl.u32 %v2972, 7
        %v2974 = vsub.s32 %v2971, %v2973
        %v2975 = vrot.slane %v2968, %v2974
        %v2976 = vcombine.low %v1930, %v1931
        %v2978 = vunpack.c.l.s4 1983009808
        %v2979 = vunpack.c.0.s8 %v2978
        %v2980 = vlaneseq
        %v2981 = vshrl.u32 %v2980, 7
        %v2982 = vsub.s32 %v2979, %v2981
        %v2983 = vrot.slane %v2976, %v2982
        %v2984 = vcombine.low %v2959, %v2967
        %v2985 = vcombine.high %v2959, %v2967
        %v2987 = vunpack.c.l.s4 1934713408
        %v2988 = vunpack.c.0.s8 %v2987
        %v2989 = vlaneseq
        %v2990 = vshrl.u32 %v2989, 7
        %v2991 = vsub.s32 %v2988, %v2990
        %v2992 = vrot.slane %v2984, %v2991
        %v2994 = vunpack.c.l.s4 1934713408
        %v2995 = vunpack.c.0.s8 %v2994
        %v2996 = vlaneseq
        %v2997 = vshrl.u32 %v2996, 7
        %v2998 = vsub.s32 %v2995, %v2997
        %v2999 = vrot.slane %v2985, %v2998
        %v3000 = vcombine.low %v2975, %v2983
        %v3001 = vcombine.high %v2975, %v2983
        %v3003 = vunpack.c.l.s4 1934713408
        %v3004 = vunpack.c.0.s8 %v3003
        %v3005 = vlaneseq
        %v3006 = vshrl.u32 %v3005, 7
        %v3007 = vsub.s32 %v3004, %v3006
        %v3008 = vrot.slane %v3000, %v3007
        %v3010 = vunpack.c.l.s4 1934713408
        %v3011 = vunpack.c.0.s8 %v3010
        %v3012 = vlaneseq
        %v3013 = vshrl.u32 %v3012, 7
        %v3014 = vsub.s32 %v3011, %v3013
        %v3015 = vrot.slane %v3001, %v3014
        %v3016 = vcombine.low %v2992, %v3008
        %v3017 = vcombine.high %v2992, %v3008
        %v3018 = vcombine.low %v2999, %v3015
        %v3019 = vcombine.high %v2999, %v3015
        %v3020 = vcombine.low %v1972, %v1979
        %v3022 = vunpack.c.l.s4 1983009808
        %v3023 = vunpack.c.0.s8 %v3022
        %v3024 = vlaneseq
        %v3025 = vshrl.u32 %v3024, 7
        %v3026 = vsub.s32 %v3023, %v3025
        %v3027 = vrot.slane %v3020, %v3026
        %v3028 = vcombine.low %v1996, %v1997
        %v3030 = vunpack.c.l.s4 1983009808
        %v3031 = vunpack.c.0.s8 %v3030
        %v3032 = vlaneseq
        %v3033 = vshrl.u32 %v3032, 7
        %v3034 = vsub.s32 %v3031, %v3033
        %v3035 = vrot.slane %v3028, %v3034
        %v3036 = vcombine.low %v1988, %v1995
        %v3038 = vunpack.c.l.s4 1983009808
        %v3039 = vunpack.c.0.s8 %v3038
        %v3040 = vlaneseq
        %v3041 = vshrl.u32 %v3040, 7
        %v3042 = vsub.s32 %v3039, %v3041
        %v3043 = vrot.slane %v3036, %v3042
        %v3044 = vcombine.low %v1998, %v1999
        %v3046 = vunpack.c.l.s4 1983009808
        %v3047 = vunpack.c.0.s8 %v3046
        %v3048 = vlaneseq
        %v3049 = vshrl.u32 %v3048, 7
        %v3050 = vsub.s32 %v3047, %v3049
        %v3051 = vrot.slane %v3044, %v3050
        %v3052 = vcombine.low %v3027, %v3035
        %v3053 = vcombine.high %v3027, %v3035
        %v3055 = vunpack.c.l.s4 1934713408
        %v3056 = vunpack.c.0.s8 %v3055
        %v3057 = vlaneseq
        %v3058 = vshrl.u32 %v3057, 7
        %v3059 = vsub.s32 %v3056, %v3058
        %v3060 = vrot.slane %v3052, %v3059
        %v3062 = vunpack.c.l.s4 1934713408
        %v3063 = vunpack.c.0.s8 %v3062
        %v3064 = vlaneseq
        %v3065 = vshrl.u32 %v3064, 7
        %v3066 = vsub.s32 %v3063, %v3065
        %v3067 = vrot.slane %v3053, %v3066
        %v3068 = vcombine.low %v3043, %v3051
        %v3069 = vcombine.high %v3043, %v3051
        %v3071 = vunpack.c.l.s4 1934713408
        %v3072 = vunpack.c.0.s8 %v3071
        %v3073 = vlaneseq
        %v3074 = vshrl.u32 %v3073, 7
        %v3075 = vsub.s32 %v3072, %v3074
        %v3076 = vrot.slane %v3068, %v3075
        %v3078 = vunpack.c.l.s4 1934713408
        %v3079 = vunpack.c.0.s8 %v3078
        %v3080 = vlaneseq
        %v3081 = vshrl.u32 %v3080, 7
        %v3082 = vsub.s32 %v3079, %v3081
        %v3083 = vrot.slane %v3069, %v3082
        %v3084 = vcombine.low %v3060, %v3076
        %v3085 = vcombine.high %v3060, %v3076
        %v3086 = vcombine.low %v3067, %v3083
        %v3087 = vcombine.high %v3067, %v3083
        %v3088 = vcombine.low %v2040, %v2047
        %v3090 = vunpack.c.l.s4 1983009808
        %v3091 = vunpack.c.0.s8 %v3090
        %v3092 = vlaneseq
        %v3093 = vshrl.u32 %v3092, 7
        %v3094 = vsub.s32 %v3091, %v3093
        %v3095 = vrot.slane %v3088, %v3094
        %v3096 = vcombine.low %v2064, %v2065
        %v3098 = vunpack.c.l.s4 1983009808
        %v3099 = vunpack.c.0.s8 %v3098
        %v3100 = vlaneseq
        %v3101 = vshrl.u32 %v3100, 7
        %v3102 = vsub.s32 %v3099, %v3101
        %v3103 = vrot.slane %v3096, %v3102
        %v3104 = vcombine.low %v2056, %v2063
        %v3106 = vunpack.c.l.s4 1983009808
        %v3107 = vunpack.c.0.s8 %v3106
        %v3108 = vlaneseq
        %v3109 = vshrl.u32 %v3108, 7
        %v3110 = vsub.s32 %v3107, %v3109
        %v3111 = vrot.slane %v3104, %v3110
        %v3112 = vcombine.low %v2066, %v2067
        %v3114 = vunpack.c.l.s4 1983009808
        %v3115 = vunpack.c.0.s8 %v3114
        %v3116 = vlaneseq
        %v3117 = vshrl.u32 %v3116, 7
        %v3118 = vsub.s32 %v3115, %v3117
        %v3119 = vrot.slane %v3112, %v3118
        %v3120 = vcombine.low %v3095, %v3103
        %v3121 = vcombine.high %v3095, %v3103
        %v3123 = vunpack.c.l.s4 1934713408
        %v3124 = vunpack.c.0.s8 %v3123
        %v3125 = vlaneseq
        %v3126 = vshrl.u32 %v3125, 7
        %v3127 = vsub.s32 %v3124, %v3126
        %v3128 = vrot.slane %v3120, %v3127
        %v3130 = vunpack.c.l.s4 1934713408
        %v3131 = vunpack.c.0.s8 %v3130
        %v3132 = vlaneseq
        %v3133 = vshrl.u32 %v3132, 7
        %v3134 = vsub.s32 %v3131, %v3133
        %v3135 = vrot.slane %v3121, %v3134
        %v3136 = vcombine.low %v3111, %v3119
        %v3137 = vcombine.high %v3111, %v3119
        %v3139 = vunpack.c.l.s4 1934713408
        %v3140 = vunpack.c.0.s8 %v3139
        %v3141 = vlaneseq
        %v3142 = vshrl.u32 %v3141, 7
        %v3143 = vsub.s32 %v3140, %v3142
        %v3144 = vrot.slane %v3136, %v3143
        %v3146 = vunpack.c.l.s4 1934713408
        %v3147 = vunpack.c.0.s8 %v3146
        %v3148 = vlaneseq
        %v3149 = vshrl.u32 %v3148, 7
        %v3150 = vsub.s32 %v3147, %v3149
        %v3151 = vrot.slane %v3137, %v3150
        %v3152 = vcombine.low %v3128, %v3144
        %v3153 = vcombine.high %v3128, %v3144
        %v3154 = vcombine.low %v3135, %v3151
        %v3155 = vcombine.high %v3135, %v3151
        %v3156 = vcombine.low %v2108, %v2115
        %v3158 = vunpack.c.l.s4 1983009808
        %v3159 = vunpack.c.0.s8 %v3158
        %v3160 = vlaneseq
        %v3161 = vshrl.u32 %v3160, 7
        %v3162 = vsub.s32 %v3159, %v3161
        %v3163 = vrot.slane %v3156, %v3162
        %v3164 = vcombine.low %v2132, %v2133
        %v3166 = vunpack.c.l.s4 1983009808
        %v3167 = vunpack.c.0.s8 %v3166
        %v3168 = vlaneseq
        %v3169 = vshrl.u32 %v3168, 7
        %v3170 = vsub.s32 %v3167, %v3169
        %v3171 = vrot.slane %v3164, %v3170
        %v3172 = vcombine.low %v2124, %v2131
        %v3174 = vunpack.c.l.s4 1983009808
        %v3175 = vunpack.c.0.s8 %v3174
        %v3176 = vlaneseq
        %v3177 = vshrl.u32 %v3176, 7
        %v3178 = vsub.s32 %v3175, %v3177
        %v3179 = vrot.slane %v3172, %v3178
        %v3180 = vcombine.low %v2134, %v2135
        %v3182 = vunpack.c.l.s4 1983009808
        %v3183 = vunpack.c.0.s8 %v3182
        %v3184 = vlaneseq
        %v3185 = vshrl.u32 %v3184, 7
        %v3186 = vsub.s32 %v3183, %v3185
        %v3187 = vrot.slane %v3180, %v3186
        %v3188 = vcombine.low %v3163, %v3171
        %v3189 = vcombine.high %v3163, %v3171
        %v3191 = vunpack.c.l.s4 1934713408
        %v3192 = vunpack.c.0.s8 %v3191
        %v3193 = vlaneseq
        %v3194 = vshrl.u32 %v3193, 7
        %v3195 = vsub.s32 %v3192, %v3194
        %v3196 = vrot.slane %v3188, %v3195
        %v3198 = vunpack.c.l.s4 1934713408
        %v3199 = vunpack.c.0.s8 %v3198
        %v3200 = vlaneseq
        %v3201 = vshrl.u32 %v3200, 7
        %v3202 = vsub.s32 %v3199, %v3201
        %v3203 = vrot.slane %v3189, %v3202
        %v3204 = vcombine.low %v3179, %v3187
        %v3205 = vcombine.high %v3179, %v3187
        %v3207 = vunpack.c.l.s4 1934713408
        %v3208 = vunpack.c.0.s8 %v3207
        %v3209 = vlaneseq
        %v3210 = vshrl.u32 %v3209, 7
        %v3211 = vsub.s32 %v3208, %v3210
        %v3212 = vrot.slane %v3204, %v3211
        %v3214 = vunpack.c.l.s4 1934713408
        %v3215 = vunpack.c.0.s8 %v3214
        %v3216 = vlaneseq
        %v3217 = vshrl.u32 %v3216, 7
        %v3218 = vsub.s32 %v3215, %v3217
        %v3219 = vrot.slane %v3205, %v3218
        %v3220 = vcombine.low %v3196, %v3212
        %v3221 = vcombine.high %v3196, %v3212
        %v3222 = vcombine.low %v3203, %v3219
        %v3223 = vcombine.high %v3203, %v3219
        %v3224 = vcombine.low %v2176, %v2183
        %v3226 = vunpack.c.l.s4 1983009808
        %v3227 = vunpack.c.0.s8 %v3226
        %v3228 = vlaneseq
        %v3229 = vshrl.u32 %v3228, 7
        %v3230 = vsub.s32 %v3227, %v3229
        %v3231 = vrot.slane %v3224, %v3230
        %v3232 = vcombine.low %v2200, %v2201
        %v3234 = vunpack.c.l.s4 1983009808
        %v3235 = vunpack.c.0.s8 %v3234
        %v3236 = vlaneseq
        %v3237 = vshrl.u32 %v3236, 7
        %v3238 = vsub.s32 %v3235, %v3237
        %v3239 = vrot.slane %v3232, %v3238
        %v3240 = vcombine.low %v2192, %v2199
        %v3242 = vunpack.c.l.s4 1983009808
        %v3243 = vunpack.c.0.s8 %v3242
        %v3244 = vlaneseq
        %v3245 = vshrl.u32 %v3244, 7
        %v3246 = vsub.s32 %v3243, %v3245
        %v3247 = vrot.slane %v3240, %v3246
        %v3248 = vcombine.low %v2202, %v2203
        %v3250 = vunpack.c.l.s4 1983009808
        %v3251 = vunpack.c.0.s8 %v3250
        %v3252 = vlaneseq
        %v3253 = vshrl.u32 %v3252, 7
        %v3254 = vsub.s32 %v3251, %v3253
        %v3255 = vrot.slane %v3248, %v3254
        %v3256 = vcombine.low %v3231, %v3239
        %v3257 = vcombine.high %v3231, %v3239
        %v3259 = vunpack.c.l.s4 1934713408
        %v3260 = vunpack.c.0.s8 %v3259
        %v3261 = vlaneseq
        %v3262 = vshrl.u32 %v3261, 7
        %v3263 = vsub.s32 %v3260, %v3262
        %v3264 = vrot.slane %v3256, %v3263
        %v3266 = vunpack.c.l.s4 1934713408
        %v3267 = vunpack.c.0.s8 %v3266
        %v3268 = vlaneseq
        %v3269 = vshrl.u32 %v3268, 7
        %v3270 = vsub.s32 %v3267, %v3269
        %v3271 = vrot.slane %v3257, %v3270
        %v3272 = vcombine.low %v3247, %v3255
        %v3273 = vcombine.high %v3247, %v3255
        %v3275 = vunpack.c.l.s4 1934713408
        %v3276 = vunpack.c.0.s8 %v3275
        %v3277 = vlaneseq
        %v3278 = vshrl.u32 %v3277, 7
        %v3279 = vsub.s32 %v3276, %v3278
        %v3280 = vrot.slane %v3272, %v3279
        %v3282 = vunpack.c.l.s4 1934713408
        %v3283 = vunpack.c.0.s8 %v3282
        %v3284 = vlaneseq
        %v3285 = vshrl.u32 %v3284, 7
        %v3286 = vsub.s32 %v3283, %v3285
        %v3287 = vrot.slane %v3273, %v3286
        %v3288 = vcombine.low %v3264, %v3280
        %v3289 = vcombine.high %v3264, %v3280
        %v3290 = vcombine.low %v3271, %v3287
        %v3291 = vcombine.high %v3271, %v3287
        %v3292 = vcombine.low %v2244, %v2251
        %v3294 = vunpack.c.l.s4 1983009808
        %v3295 = vunpack.c.0.s8 %v3294
        %v3296 = vlaneseq
        %v3297 = vshrl.u32 %v3296, 7
        %v3298 = vsub.s32 %v3295, %v3297
        %v3299 = vrot.slane %v3292, %v3298
        %v3300 = vcombine.low %v2268, %v2269
        %v3302 = vunpack.c.l.s4 1983009808
        %v3303 = vunpack.c.0.s8 %v3302
        %v3304 = vlaneseq
        %v3305 = vshrl.u32 %v3304, 7
        %v3306 = vsub.s32 %v3303, %v3305
        %v3307 = vrot.slane %v3300, %v3306
        %v3308 = vcombine.low %v2260, %v2267
        %v3310 = vunpack.c.l.s4 1983009808
        %v3311 = vunpack.c.0.s8 %v3310
        %v3312 = vlaneseq
        %v3313 = vshrl.u32 %v3312, 7
        %v3314 = vsub.s32 %v3311, %v3313
        %v3315 = vrot.slane %v3308, %v3314
        %v3316 = vcombine.low %v2270, %v2271
        %v3318 = vunpack.c.l.s4 1983009808
        %v3319 = vunpack.c.0.s8 %v3318
        %v3320 = vlaneseq
        %v3321 = vshrl.u32 %v3320, 7
        %v3322 = vsub.s32 %v3319, %v3321
        %v3323 = vrot.slane %v3316, %v3322
        %v3324 = vcombine.low %v3299, %v3307
        %v3325 = vcombine.high %v3299, %v3307
        %v3327 = vunpack.c.l.s4 1934713408
        %v3328 = vunpack.c.0.s8 %v3327
        %v3329 = vlaneseq
        %v3330 = vshrl.u32 %v3329, 7
        %v3331 = vsub.s32 %v3328, %v3330
        %v3332 = vrot.slane %v3324, %v3331
        %v3334 = vunpack.c.l.s4 1934713408
        %v3335 = vunpack.c.0.s8 %v3334
        %v3336 = vlaneseq
        %v3337 = vshrl.u32 %v3336, 7
        %v3338 = vsub.s32 %v3335, %v3337
        %v3339 = vrot.slane %v3325, %v3338
        %v3340 = vcombine.low %v3315, %v3323
        %v3341 = vcombine.high %v3315, %v3323
        %v3343 = vunpack.c.l.s4 1934713408
        %v3344 = vunpack.c.0.s8 %v3343
        %v3345 = vlaneseq
        %v3346 = vshrl.u32 %v3345, 7
        %v3347 = vsub.s32 %v3344, %v3346
        %v3348 = vrot.slane %v3340, %v3347
        %v3350 = vunpack.c.l.s4 1934713408
        %v3351 = vunpack.c.0.s8 %v3350
        %v3352 = vlaneseq
        %v3353 = vshrl.u32 %v3352, 7
        %v3354 = vsub.s32 %v3351, %v3353
        %v3355 = vrot.slane %v3341, %v3354
        %v3356 = vcombine.low %v3332, %v3348
        %v3357 = vcombine.high %v3332, %v3348
        %v3358 = vcombine.low %v3339, %v3355
        %v3359 = vcombine.high %v3339, %v3355
        %v3360 = vpack.c.bf16 %v2404, %v2336
        %v3361 = vpack.c.bf16 %v2540, %v2472
        %v3362 = vpack.c.bf16 %v2676, %v2608
        %v3363 = vpack.c.bf16 %v2812, %v2744
        %v3364 = vpack.c.bf16 %v2948, %v2880
        %v3365 = vpack.c.bf16 %v3084, %v3016
        %v3366 = vpack.c.bf16 %v3220, %v3152
        %v3367 = vpack.c.bf16 %v3356, %v3288
        %v3368 = vpack.c.bf16 %v2405, %v2337
        %v3369 = vpack.c.bf16 %v2541, %v2473
        %v3370 = vpack.c.bf16 %v2677, %v2609
        %v3371 = vpack.c.bf16 %v2813, %v2745
        %v3372 = vpack.c.bf16 %v2949, %v2881
        %v3373 = vpack.c.bf16 %v3085, %v3017
        %v3374 = vpack.c.bf16 %v3221, %v3153
        %v3375 = vpack.c.bf16 %v3357, %v3289
        %v3376 = vpack.c.bf16 %v2406, %v2338
        %v3377 = vpack.c.bf16 %v2542, %v2474
        %v3378 = vpack.c.bf16 %v2678, %v2610
        %v3379 = vpack.c.bf16 %v2814, %v2746
        %v3380 = vpack.c.bf16 %v2950, %v2882
        %v3381 = vpack.c.bf16 %v3086, %v3018
        %v3382 = vpack.c.bf16 %v3222, %v3154
        %v3383 = vpack.c.bf16 %v3358, %v3290
        %v3384 = vpack.c.bf16 %v2407, %v2339
        %v3385 = vpack.c.bf16 %v2543, %v2475
        %v3386 = vpack.c.bf16 %v2679, %v2611
        %v3387 = vpack.c.bf16 %v2815, %v2747
        %v3388 = vpack.c.bf16 %v2951, %v2883
        %v3389 = vpack.c.bf16 %v3087, %v3019
        %v3390 = vpack.c.bf16 %v3223, %v3155
        %v3391 = vpack.c.bf16 %v3359, %v3291
        %v3424 = vunpack.c.l.b16 %v3360
        %v3425 = vunpack.c.h.b16 %v3360
        %v3426 = vunpack.c.l.b16 %v3361
        %v3427 = vunpack.c.h.b16 %v3361
        %v3428 = vunpack.c.l.b16 %v3362
        %v3429 = vunpack.c.h.b16 %v3362
        %v3430 = vunpack.c.l.b16 %v3363
        %v3431 = vunpack.c.h.b16 %v3363
        %v3432 = vunpack.c.l.b16 %v3364
        %v3433 = vunpack.c.h.b16 %v3364
        %v3434 = vunpack.c.l.b16 %v3365
        %v3435 = vunpack.c.h.b16 %v3365
        %v3436 = vunpack.c.l.b16 %v3366
        %v3437 = vunpack.c.h.b16 %v3366
        %v3438 = vunpack.c.l.b16 %v3367
        %v3439 = vunpack.c.h.b16 %v3367
        %v3440 = vunpack.c.l.b16 %v3368
        %v3441 = vunpack.c.h.b16 %v3368
        %v3442 = vunpack.c.l.b16 %v3369
        %v3443 = vunpack.c.h.b16 %v3369
        %v3444 = vunpack.c.l.b16 %v3370
        %v3445 = vunpack.c.h.b16 %v3370
        %v3446 = vunpack.c.l.b16 %v3371
        %v3447 = vunpack.c.h.b16 %v3371
        %v3448 = vunpack.c.l.b16 %v3372
        %v3449 = vunpack.c.h.b16 %v3372
        %v3450 = vunpack.c.l.b16 %v3373
        %v3451 = vunpack.c.h.b16 %v3373
        %v3452 = vunpack.c.l.b16 %v3374
        %v3453 = vunpack.c.h.b16 %v3374
        %v3454 = vunpack.c.l.b16 %v3375
        %v3455 = vunpack.c.h.b16 %v3375
        %v3456 = vunpack.c.l.b16 %v3376
        %v3457 = vunpack.c.h.b16 %v3376
        %v3458 = vunpack.c.l.b16 %v3377
        %v3459 = vunpack.c.h.b16 %v3377
        %v3460 = vunpack.c.l.b16 %v3378
        %v3461 = vunpack.c.h.b16 %v3378
        %v3462 = vunpack.c.l.b16 %v3379
        %v3463 = vunpack.c.h.b16 %v3379
        %v3464 = vunpack.c.l.b16 %v3380
        %v3465 = vunpack.c.h.b16 %v3380
        %v3466 = vunpack.c.l.b16 %v3381
        %v3467 = vunpack.c.h.b16 %v3381
        %v3468 = vunpack.c.l.b16 %v3382
        %v3469 = vunpack.c.h.b16 %v3382
        %v3470 = vunpack.c.l.b16 %v3383
        %v3471 = vunpack.c.h.b16 %v3383
        %v3472 = vunpack.c.l.b16 %v3384
        %v3473 = vunpack.c.h.b16 %v3384
        %v3474 = vunpack.c.l.b16 %v3385
        %v3475 = vunpack.c.h.b16 %v3385
        %v3476 = vunpack.c.l.b16 %v3386
        %v3477 = vunpack.c.h.b16 %v3386
        %v3478 = vunpack.c.l.b16 %v3387
        %v3479 = vunpack.c.h.b16 %v3387
        %v3480 = vunpack.c.l.b16 %v3388
        %v3481 = vunpack.c.h.b16 %v3388
        %v3482 = vunpack.c.l.b16 %v3389
        %v3483 = vunpack.c.h.b16 %v3389
        %v3484 = vunpack.c.l.b16 %v3390
        %v3485 = vunpack.c.h.b16 %v3390
        %v3486 = vunpack.c.l.b16 %v3391
        %v3487 = vunpack.c.h.b16 %v3391
        %v3488 = vpack.c.b16 %v3424, %v3424
        %v3489 = vpack.c.b16 %v3425, %v3425
        %v3490 = vpack.c.b16 %v3426, %v3426
        %v3491 = vpack.c.b16 %v3427, %v3427
        %v3492 = vpack.c.b16 %v3428, %v3428
        %v3493 = vpack.c.b16 %v3429, %v3429
        %v3494 = vpack.c.b16 %v3430, %v3430
        %v3495 = vpack.c.b16 %v3431, %v3431
        %v3496 = vpack.c.b16 %v3432, %v3432
        %v3497 = vpack.c.b16 %v3433, %v3433
        %v3498 = vpack.c.b16 %v3434, %v3434
        %v3499 = vpack.c.b16 %v3435, %v3435
        %v3500 = vpack.c.b16 %v3436, %v3436
        %v3501 = vpack.c.b16 %v3437, %v3437
        %v3502 = vpack.c.b16 %v3438, %v3438
        %v3503 = vpack.c.b16 %v3439, %v3439
        %v3504 = vpack.c.b16 %v3440, %v3440
        %v3505 = vpack.c.b16 %v3441, %v3441
        %v3506 = vpack.c.b16 %v3442, %v3442
        %v3507 = vpack.c.b16 %v3443, %v3443
        %v3508 = vpack.c.b16 %v3444, %v3444
        %v3509 = vpack.c.b16 %v3445, %v3445
        %v3510 = vpack.c.b16 %v3446, %v3446
        %v3511 = vpack.c.b16 %v3447, %v3447
        %v3512 = vpack.c.b16 %v3448, %v3448
        %v3513 = vpack.c.b16 %v3449, %v3449
        %v3514 = vpack.c.b16 %v3450, %v3450
        %v3515 = vpack.c.b16 %v3451, %v3451
        %v3516 = vpack.c.b16 %v3452, %v3452
        %v3517 = vpack.c.b16 %v3453, %v3453
        %v3518 = vpack.c.b16 %v3454, %v3454
        %v3519 = vpack.c.b16 %v3455, %v3455
        %v3520 = vpack.c.b16 %v3456, %v3456
        %v3521 = vpack.c.b16 %v3457, %v3457
        %v3522 = vpack.c.b16 %v3458, %v3458
        %v3523 = vpack.c.b16 %v3459, %v3459
        %v3524 = vpack.c.b16 %v3460, %v3460
        %v3525 = vpack.c.b16 %v3461, %v3461
        %v3526 = vpack.c.b16 %v3462, %v3462
        %v3527 = vpack.c.b16 %v3463, %v3463
        %v3528 = vpack.c.b16 %v3464, %v3464
        %v3529 = vpack.c.b16 %v3465, %v3465
        %v3530 = vpack.c.b16 %v3466, %v3466
        %v3531 = vpack.c.b16 %v3467, %v3467
        %v3532 = vpack.c.b16 %v3468, %v3468
        %v3533 = vpack.c.b16 %v3469, %v3469
        %v3534 = vpack.c.b16 %v3470, %v3470
        %v3535 = vpack.c.b16 %v3471, %v3471
        %v3536 = vpack.c.b16 %v3472, %v3472
        %v3537 = vpack.c.b16 %v3473, %v3473
        %v3538 = vpack.c.b16 %v3474, %v3474
        %v3539 = vpack.c.b16 %v3475, %v3475
        %v3540 = vpack.c.b16 %v3476, %v3476
        %v3541 = vpack.c.b16 %v3477, %v3477
        %v3542 = vpack.c.b16 %v3478, %v3478
        %v3543 = vpack.c.b16 %v3479, %v3479
        %v3544 = vpack.c.b16 %v3480, %v3480
        %v3545 = vpack.c.b16 %v3481, %v3481
        %v3546 = vpack.c.b16 %v3482, %v3482
        %v3547 = vpack.c.b16 %v3483, %v3483
        %v3548 = vpack.c.b16 %v3484, %v3484
        %v3549 = vpack.c.b16 %v3485, %v3485
        %v3550 = vpack.c.b16 %v3486, %v3486
        %v3551 = vpack.c.b16 %v3487, %v3487
        %vm3616 = vcmask 257024
        %3617 = vst.msk [vmem:[%s367] sm:$0xf] %vm3616, %v3488
        %3618 = vst.msk [vmem:[%s367 + $0x4] sm:$0xf] %vm3616, %v3489
        %3619 = vst.msk [vmem:[%s367 + $0x8] sm:$0xf] %vm3616, %v3490
        %3620 = vst.msk [vmem:[%s367 + $0xc] sm:$0xf] %vm3616, %v3491
        %3621 = vst.msk [vmem:[%s367 + $0x10] sm:$0xf] %vm3616, %v3492
        %3622 = vst.msk [vmem:[%s367 + $0x14] sm:$0xf] %vm3616, %v3493
        %3623 = vst.msk [vmem:[%s367 + $0x18] sm:$0xf] %vm3616, %v3494
        %3624 = vst.msk [vmem:[%s367 + $0x1c] sm:$0xf] %vm3616, %v3495
        %3625 = vst.msk [vmem:[%s367 + $0x20] sm:$0xf] %vm3616, %v3496
        %3626 = vst.msk [vmem:[%s367 + $0x24] sm:$0xf] %vm3616, %v3497
        %3627 = vst.msk [vmem:[%s367 + $0x28] sm:$0xf] %vm3616, %v3498
        %3628 = vst.msk [vmem:[%s367 + $0x2c] sm:$0xf] %vm3616, %v3499
        %3629 = vst.msk [vmem:[%s367 + $0x30] sm:$0xf] %vm3616, %v3500
        %3630 = vst.msk [vmem:[%s367 + $0x34] sm:$0xf] %vm3616, %v3501
        %3631 = vst.msk [vmem:[%s367 + $0x38] sm:$0xf] %vm3616, %v3502
        %3632 = vst.msk [vmem:[%s367 + $0x3c] sm:$0xf] %vm3616, %v3503
        %3633 = vst.msk [vmem:[%s367 + $0x40] sm:$0xf] %vm3616, %v3504
        %3634 = vst.msk [vmem:[%s367 + $0x44] sm:$0xf] %vm3616, %v3505
        %3635 = vst.msk [vmem:[%s367 + $0x48] sm:$0xf] %vm3616, %v3506
        %3636 = vst.msk [vmem:[%s367 + $0x4c] sm:$0xf] %vm3616, %v3507
        %3637 = vst.msk [vmem:[%s367 + $0x50] sm:$0xf] %vm3616, %v3508
        %3638 = vst.msk [vmem:[%s367 + $0x54] sm:$0xf] %vm3616, %v3509
        %3639 = vst.msk [vmem:[%s367 + $0x58] sm:$0xf] %vm3616, %v3510
        %3640 = vst.msk [vmem:[%s367 + $0x5c] sm:$0xf] %vm3616, %v3511
        %3641 = vst.msk [vmem:[%s367 + $0x60] sm:$0xf] %vm3616, %v3512
        %3642 = vst.msk [vmem:[%s367 + $0x64] sm:$0xf] %vm3616, %v3513
        %3643 = vst.msk [vmem:[%s367 + $0x68] sm:$0xf] %vm3616, %v3514
        %3644 = vst.msk [vmem:[%s367 + $0x6c] sm:$0xf] %vm3616, %v3515
        %3645 = vst.msk [vmem:[%s367 + $0x70] sm:$0xf] %vm3616, %v3516
        %3646 = vst.msk [vmem:[%s367 + $0x74] sm:$0xf] %vm3616, %v3517
        %3647 = vst.msk [vmem:[%s367 + $0x78] sm:$0xf] %vm3616, %v3518
        %3648 = vst.msk [vmem:[%s367 + $0x7c] sm:$0xf] %vm3616, %v3519
        %3649 = vst.msk [vmem:[%s367 + $0x80] sm:$0xf] %vm3616, %v3520
        %3650 = vst.msk [vmem:[%s367 + $0x84] sm:$0xf] %vm3616, %v3521
        %3651 = vst.msk [vmem:[%s367 + $0x88] sm:$0xf] %vm3616, %v3522
        %3652 = vst.msk [vmem:[%s367 + $0x8c] sm:$0xf] %vm3616, %v3523
        %3653 = vst.msk [vmem:[%s367 + $0x90] sm:$0xf] %vm3616, %v3524
        %3654 = vst.msk [vmem:[%s367 + $0x94] sm:$0xf] %vm3616, %v3525
        %3655 = vst.msk [vmem:[%s367 + $0x98] sm:$0xf] %vm3616, %v3526
        %3656 = vst.msk [vmem:[%s367 + $0x9c] sm:$0xf] %vm3616, %v3527
        %3657 = vst.msk [vmem:[%s367 + $0xa0] sm:$0xf] %vm3616, %v3528
        %3658 = vst.msk [vmem:[%s367 + $0xa4] sm:$0xf] %vm3616, %v3529
        %3659 = vst.msk [vmem:[%s367 + $0xa8] sm:$0xf] %vm3616, %v3530
        %3660 = vst.msk [vmem:[%s367 + $0xac] sm:$0xf] %vm3616, %v3531
        %3661 = vst.msk [vmem:[%s367 + $0xb0] sm:$0xf] %vm3616, %v3532
        %3662 = vst.msk [vmem:[%s367 + $0xb4] sm:$0xf] %vm3616, %v3533
        %3663 = vst.msk [vmem:[%s367 + $0xb8] sm:$0xf] %vm3616, %v3534
        %3664 = vst.msk [vmem:[%s367 + $0xbc] sm:$0xf] %vm3616, %v3535
        %3665 = vst.msk [vmem:[%s367 + $0xc0] sm:$0xf] %vm3616, %v3536
        %3666 = vst.msk [vmem:[%s367 + $0xc4] sm:$0xf] %vm3616, %v3537
        %3667 = vst.msk [vmem:[%s367 + $0xc8] sm:$0xf] %vm3616, %v3538
        %3668 = vst.msk [vmem:[%s367 + $0xcc] sm:$0xf] %vm3616, %v3539
        %3669 = vst.msk [vmem:[%s367 + $0xd0] sm:$0xf] %vm3616, %v3540
        %3670 = vst.msk [vmem:[%s367 + $0xd4] sm:$0xf] %vm3616, %v3541
        %3671 = vst.msk [vmem:[%s367 + $0xd8] sm:$0xf] %vm3616, %v3542
        %3672 = vst.msk [vmem:[%s367 + $0xdc] sm:$0xf] %vm3616, %v3543
        %3673 = vst.msk [vmem:[%s367 + $0xe0] sm:$0xf] %vm3616, %v3544
        %3674 = vst.msk [vmem:[%s367 + $0xe4] sm:$0xf] %vm3616, %v3545
        %3675 = vst.msk [vmem:[%s367 + $0xe8] sm:$0xf] %vm3616, %v3546
        %3676 = vst.msk [vmem:[%s367 + $0xec] sm:$0xf] %vm3616, %v3547
        %3677 = vst.msk [vmem:[%s367 + $0xf0] sm:$0xf] %vm3616, %v3548
        %3678 = vst.msk [vmem:[%s367 + $0xf4] sm:$0xf] %vm3616, %v3549
        %3679 = vst.msk [vmem:[%s367 + $0xf8] sm:$0xf] %vm3616, %v3550
        %3680 = vst.msk [vmem:[%s367 + $0xfc] sm:$0xf] %vm3616, %v3551
        %3697 = vrot.lane.b32.xlu0 %v851, 96
        %v3698 = vpop.permute.xlu0 %3697
        %3699 = vrot.lane.b32.xlu0 %v855, 96
        %v3700 = vpop.permute.xlu0 %3699
        %3701 = vrot.lane.b32.xlu0 %v861, 96
        %v3702 = vpop.permute.xlu0 %3701
        %3703 = vrot.lane.b32.xlu0 %v865, 96
        %v3704 = vpop.permute.xlu0 %3703
        %3705 = vrot.lane.b32.xlu0 %v871, 96
        %v3706 = vpop.permute.xlu0 %3705
        %3707 = vrot.lane.b32.xlu0 %v875, 96
        %v3708 = vpop.permute.xlu0 %3707
        %3709 = vrot.lane.b32.xlu0 %v881, 96
        %v3710 = vpop.permute.xlu0 %3709
        %3711 = vrot.lane.b32.xlu0 %v885, 96
        %v3712 = vpop.permute.xlu0 %3711
        %3713 = vrot.lane.b32.xlu0 %v891, 96
        %v3714 = vpop.permute.xlu0 %3713
        %3715 = vrot.lane.b32.xlu0 %v895, 96
        %v3716 = vpop.permute.xlu0 %3715
        %3717 = vrot.lane.b32.xlu0 %v901, 96
        %v3718 = vpop.permute.xlu0 %3717
        %3719 = vrot.lane.b32.xlu0 %v905, 96
        %v3720 = vpop.permute.xlu0 %3719
        %3721 = vrot.lane.b32.xlu0 %v911, 96
        %v3722 = vpop.permute.xlu0 %3721
        %3723 = vrot.lane.b32.xlu0 %v915, 96
        %v3724 = vpop.permute.xlu0 %3723
        %3725 = vrot.lane.b32.xlu0 %v921, 96
        %v3726 = vpop.permute.xlu0 %3725
        %3727 = vrot.lane.b32.xlu0 %v925, 96
        %v3728 = vpop.permute.xlu0 %3727
        %3745 = vrot.lane.b32.xlu0 %v851, 64
        %v3746 = vpop.permute.xlu0 %3745
        %3747 = vrot.lane.b32.xlu0 %v855, 64
        %v3748 = vpop.permute.xlu0 %3747
        %3749 = vrot.lane.b32.xlu0 %v861, 64
        %v3750 = vpop.permute.xlu0 %3749
        %3751 = vrot.lane.b32.xlu0 %v865, 64
        %v3752 = vpop.permute.xlu0 %3751
        %3753 = vrot.lane.b32.xlu0 %v871, 64
        %v3754 = vpop.permute.xlu0 %3753
        %3755 = vrot.lane.b32.xlu0 %v875, 64
        %v3756 = vpop.permute.xlu0 %3755
        %3757 = vrot.lane.b32.xlu0 %v881, 64
        %v3758 = vpop.permute.xlu0 %3757
        %3759 = vrot.lane.b32.xlu0 %v885, 64
        %v3760 = vpop.permute.xlu0 %3759
        %3761 = vrot.lane.b32.xlu0 %v891, 64
        %v3762 = vpop.permute.xlu0 %3761
        %3763 = vrot.lane.b32.xlu0 %v895, 64
        %v3764 = vpop.permute.xlu0 %3763
        %3765 = vrot.lane.b32.xlu0 %v901, 64
        %v3766 = vpop.permute.xlu0 %3765
        %3767 = vrot.lane.b32.xlu0 %v905, 64
        %v3768 = vpop.permute.xlu0 %3767
        %3769 = vrot.lane.b32.xlu0 %v911, 64
        %v3770 = vpop.permute.xlu0 %3769
        %3771 = vrot.lane.b32.xlu0 %v915, 64
        %v3772 = vpop.permute.xlu0 %3771
        %3773 = vrot.lane.b32.xlu0 %v921, 64
        %v3774 = vpop.permute.xlu0 %3773
        %3775 = vrot.lane.b32.xlu0 %v925, 64
        %v3776 = vpop.permute.xlu0 %3775
        %3793 = vrot.lane.b32.xlu0 %v851, 32
        %v3794 = vpop.permute.xlu0 %3793
        %3795 = vrot.lane.b32.xlu0 %v855, 32
        %v3796 = vpop.permute.xlu0 %3795
        %3797 = vrot.lane.b32.xlu0 %v861, 32
        %v3798 = vpop.permute.xlu0 %3797
        %3799 = vrot.lane.b32.xlu0 %v865, 32
        %v3800 = vpop.permute.xlu0 %3799
        %3801 = vrot.lane.b32.xlu0 %v871, 32
        %v3802 = vpop.permute.xlu0 %3801
        %3803 = vrot.lane.b32.xlu0 %v875, 32
        %v3804 = vpop.permute.xlu0 %3803
        %3805 = vrot.lane.b32.xlu0 %v881, 32
        %v3806 = vpop.permute.xlu0 %3805
        %3807 = vrot.lane.b32.xlu0 %v885, 32
        %v3808 = vpop.permute.xlu0 %3807
        %3809 = vrot.lane.b32.xlu0 %v891, 32
        %v3810 = vpop.permute.xlu0 %3809
        %3811 = vrot.lane.b32.xlu0 %v895, 32
        %v3812 = vpop.permute.xlu0 %3811
        %3813 = vrot.lane.b32.xlu0 %v901, 32
        %v3814 = vpop.permute.xlu0 %3813
        %3815 = vrot.lane.b32.xlu0 %v905, 32
        %v3816 = vpop.permute.xlu0 %3815
        %3817 = vrot.lane.b32.xlu0 %v911, 32
        %v3818 = vpop.permute.xlu0 %3817
        %3819 = vrot.lane.b32.xlu0 %v915, 32
        %v3820 = vpop.permute.xlu0 %3819
        %3821 = vrot.lane.b32.xlu0 %v921, 32
        %v3822 = vpop.permute.xlu0 %3821
        %3823 = vrot.lane.b32.xlu0 %v925, 32
        %v3824 = vpop.permute.xlu0 %3823
        %v3841 = vcombine.low %v851, %v3746
        %v3842 = vcombine.high %v851, %v3746
        %v3844 = vunpack.c.l.s4 1983009808
        %v3845 = vunpack.c.0.s8 %v3844
        %v3846 = vlaneseq
        %v3847 = vshrl.u32 %v3846, 7
        %v3848 = vsub.s32 %v3845, %v3847
        %v3849 = vrot.slane %v3841, %v3848
        %v3851 = vunpack.c.l.s4 1983009808
        %v3852 = vunpack.c.0.s8 %v3851
        %v3853 = vlaneseq
        %v3854 = vshrl.u32 %v3853, 7
        %v3855 = vsub.s32 %v3852, %v3854
        %v3856 = vrot.slane %v3842, %v3855
        %v3857 = vcombine.low %v3698, %v3794
        %v3858 = vcombine.high %v3698, %v3794
        %v3860 = vunpack.c.l.s4 1983009808
        %v3861 = vunpack.c.0.s8 %v3860
        %v3862 = vlaneseq
        %v3863 = vshrl.u32 %v3862, 7
        %v3864 = vsub.s32 %v3861, %v3863
        %v3865 = vrot.slane %v3857, %v3864
        %v3867 = vunpack.c.l.s4 1983009808
        %v3868 = vunpack.c.0.s8 %v3867
        %v3869 = vlaneseq
        %v3870 = vshrl.u32 %v3869, 7
        %v3871 = vsub.s32 %v3868, %v3870
        %v3872 = vrot.slane %v3858, %v3871
        %v3873 = vcombine.low %v3849, %v3865
        %v3874 = vcombine.high %v3849, %v3865
        %v3876 = vunpack.c.l.s4 1934713408
        %v3877 = vunpack.c.0.s8 %v3876
        %v3878 = vlaneseq
        %v3879 = vshrl.u32 %v3878, 7
        %v3880 = vsub.s32 %v3877, %v3879
        %v3881 = vrot.slane %v3873, %v3880
        %v3883 = vunpack.c.l.s4 1934713408
        %v3884 = vunpack.c.0.s8 %v3883
        %v3885 = vlaneseq
        %v3886 = vshrl.u32 %v3885, 7
        %v3887 = vsub.s32 %v3884, %v3886
        %v3888 = vrot.slane %v3874, %v3887
        %v3889 = vcombine.low %v3856, %v3872
        %v3890 = vcombine.high %v3856, %v3872
        %v3892 = vunpack.c.l.s4 1934713408
        %v3893 = vunpack.c.0.s8 %v3892
        %v3894 = vlaneseq
        %v3895 = vshrl.u32 %v3894, 7
        %v3896 = vsub.s32 %v3893, %v3895
        %v3897 = vrot.slane %v3889, %v3896
        %v3899 = vunpack.c.l.s4 1934713408
        %v3900 = vunpack.c.0.s8 %v3899
        %v3901 = vlaneseq
        %v3902 = vshrl.u32 %v3901, 7
        %v3903 = vsub.s32 %v3900, %v3902
        %v3904 = vrot.slane %v3890, %v3903
        %v3905 = vcombine.high %v3881, 0.0
        %v3906 = vcombine.high %v3888, 0.0
        %v3907 = vcombine.high %v3897, 0.0
        %v3908 = vcombine.high %v3904, 0.0
        %v3909 = vcombine.low %v855, %v3748
        %v3910 = vcombine.high %v855, %v3748
        %v3912 = vunpack.c.l.s4 1983009808
        %v3913 = vunpack.c.0.s8 %v3912
        %v3914 = vlaneseq
        %v3915 = vshrl.u32 %v3914, 7
        %v3916 = vsub.s32 %v3913, %v3915
        %v3917 = vrot.slane %v3909, %v3916
        %v3919 = vunpack.c.l.s4 1983009808
        %v3920 = vunpack.c.0.s8 %v3919
        %v3921 = vlaneseq
        %v3922 = vshrl.u32 %v3921, 7
        %v3923 = vsub.s32 %v3920, %v3922
        %v3924 = vrot.slane %v3910, %v3923
        %v3925 = vcombine.low %v3700, %v3796
        %v3926 = vcombine.high %v3700, %v3796
        %v3928 = vunpack.c.l.s4 1983009808
        %v3929 = vunpack.c.0.s8 %v3928
        %v3930 = vlaneseq
        %v3931 = vshrl.u32 %v3930, 7
        %v3932 = vsub.s32 %v3929, %v3931
        %v3933 = vrot.slane %v3925, %v3932
        %v3935 = vunpack.c.l.s4 1983009808
        %v3936 = vunpack.c.0.s8 %v3935
        %v3937 = vlaneseq
        %v3938 = vshrl.u32 %v3937, 7
        %v3939 = vsub.s32 %v3936, %v3938
        %v3940 = vrot.slane %v3926, %v3939
        %v3941 = vcombine.low %v3917, %v3933
        %v3942 = vcombine.high %v3917, %v3933
        %v3944 = vunpack.c.l.s4 1934713408
        %v3945 = vunpack.c.0.s8 %v3944
        %v3946 = vlaneseq
        %v3947 = vshrl.u32 %v3946, 7
        %v3948 = vsub.s32 %v3945, %v3947
        %v3949 = vrot.slane %v3941, %v3948
        %v3951 = vunpack.c.l.s4 1934713408
        %v3952 = vunpack.c.0.s8 %v3951
        %v3953 = vlaneseq
        %v3954 = vshrl.u32 %v3953, 7
        %v3955 = vsub.s32 %v3952, %v3954
        %v3956 = vrot.slane %v3942, %v3955
        %v3957 = vcombine.low %v3924, %v3940
        %v3958 = vcombine.high %v3924, %v3940
        %v3960 = vunpack.c.l.s4 1934713408
        %v3961 = vunpack.c.0.s8 %v3960
        %v3962 = vlaneseq
        %v3963 = vshrl.u32 %v3962, 7
        %v3964 = vsub.s32 %v3961, %v3963
        %v3965 = vrot.slane %v3957, %v3964
        %v3967 = vunpack.c.l.s4 1934713408
        %v3968 = vunpack.c.0.s8 %v3967
        %v3969 = vlaneseq
        %v3970 = vshrl.u32 %v3969, 7
        %v3971 = vsub.s32 %v3968, %v3970
        %v3972 = vrot.slane %v3958, %v3971
        %v3973 = vcombine.high %v3949, 0.0
        %v3974 = vcombine.high %v3956, 0.0
        %v3975 = vcombine.high %v3965, 0.0
        %v3976 = vcombine.high %v3972, 0.0
        %v3977 = vcombine.low %v861, %v3750
        %v3978 = vcombine.high %v861, %v3750
        %v3980 = vunpack.c.l.s4 1983009808
        %v3981 = vunpack.c.0.s8 %v3980
        %v3982 = vlaneseq
        %v3983 = vshrl.u32 %v3982, 7
        %v3984 = vsub.s32 %v3981, %v3983
        %v3985 = vrot.slane %v3977, %v3984
        %v3987 = vunpack.c.l.s4 1983009808
        %v3988 = vunpack.c.0.s8 %v3987
        %v3989 = vlaneseq
        %v3990 = vshrl.u32 %v3989, 7
        %v3991 = vsub.s32 %v3988, %v3990
        %v3992 = vrot.slane %v3978, %v3991
        %v3993 = vcombine.low %v3702, %v3798
        %v3994 = vcombine.high %v3702, %v3798
        %v3996 = vunpack.c.l.s4 1983009808
        %v3997 = vunpack.c.0.s8 %v3996
        %v3998 = vlaneseq
        %v3999 = vshrl.u32 %v3998, 7
        %v4000 = vsub.s32 %v3997, %v3999
        %v4001 = vrot.slane %v3993, %v4000
        %v4003 = vunpack.c.l.s4 1983009808
        %v4004 = vunpack.c.0.s8 %v4003
        %v4005 = vlaneseq
        %v4006 = vshrl.u32 %v4005, 7
        %v4007 = vsub.s32 %v4004, %v4006
        %v4008 = vrot.slane %v3994, %v4007
        %v4009 = vcombine.low %v3985, %v4001
        %v4010 = vcombine.high %v3985, %v4001
        %v4012 = vunpack.c.l.s4 1934713408
        %v4013 = vunpack.c.0.s8 %v4012
        %v4014 = vlaneseq
        %v4015 = vshrl.u32 %v4014, 7
        %v4016 = vsub.s32 %v4013, %v4015
        %v4017 = vrot.slane %v4009, %v4016
        %v4019 = vunpack.c.l.s4 1934713408
        %v4020 = vunpack.c.0.s8 %v4019
        %v4021 = vlaneseq
        %v4022 = vshrl.u32 %v4021, 7
        %v4023 = vsub.s32 %v4020, %v4022
        %v4024 = vrot.slane %v4010, %v4023
        %v4025 = vcombine.low %v3992, %v4008
        %v4026 = vcombine.high %v3992, %v4008
        %v4028 = vunpack.c.l.s4 1934713408
        %v4029 = vunpack.c.0.s8 %v4028
        %v4030 = vlaneseq
        %v4031 = vshrl.u32 %v4030, 7
        %v4032 = vsub.s32 %v4029, %v4031
        %v4033 = vrot.slane %v4025, %v4032
        %v4035 = vunpack.c.l.s4 1934713408
        %v4036 = vunpack.c.0.s8 %v4035
        %v4037 = vlaneseq
        %v4038 = vshrl.u32 %v4037, 7
        %v4039 = vsub.s32 %v4036, %v4038
        %v4040 = vrot.slane %v4026, %v4039
        %v4041 = vcombine.high %v4017, 0.0
        %v4042 = vcombine.high %v4024, 0.0
        %v4043 = vcombine.high %v4033, 0.0
        %v4044 = vcombine.high %v4040, 0.0
        %v4045 = vcombine.low %v865, %v3752
        %v4046 = vcombine.high %v865, %v3752
        %v4048 = vunpack.c.l.s4 1983009808
        %v4049 = vunpack.c.0.s8 %v4048
        %v4050 = vlaneseq
        %v4051 = vshrl.u32 %v4050, 7
        %v4052 = vsub.s32 %v4049, %v4051
        %v4053 = vrot.slane %v4045, %v4052
        %v4055 = vunpack.c.l.s4 1983009808
        %v4056 = vunpack.c.0.s8 %v4055
        %v4057 = vlaneseq
        %v4058 = vshrl.u32 %v4057, 7
        %v4059 = vsub.s32 %v4056, %v4058
        %v4060 = vrot.slane %v4046, %v4059
        %v4061 = vcombine.low %v3704, %v3800
        %v4062 = vcombine.high %v3704, %v3800
        %v4064 = vunpack.c.l.s4 1983009808
        %v4065 = vunpack.c.0.s8 %v4064
        %v4066 = vlaneseq
        %v4067 = vshrl.u32 %v4066, 7
        %v4068 = vsub.s32 %v4065, %v4067
        %v4069 = vrot.slane %v4061, %v4068
        %v4071 = vunpack.c.l.s4 1983009808
        %v4072 = vunpack.c.0.s8 %v4071
        %v4073 = vlaneseq
        %v4074 = vshrl.u32 %v4073, 7
        %v4075 = vsub.s32 %v4072, %v4074
        %v4076 = vrot.slane %v4062, %v4075
        %v4077 = vcombine.low %v4053, %v4069
        %v4078 = vcombine.high %v4053, %v4069
        %v4080 = vunpack.c.l.s4 1934713408
        %v4081 = vunpack.c.0.s8 %v4080
        %v4082 = vlaneseq
        %v4083 = vshrl.u32 %v4082, 7
        %v4084 = vsub.s32 %v4081, %v4083
        %v4085 = vrot.slane %v4077, %v4084
        %v4087 = vunpack.c.l.s4 1934713408
        %v4088 = vunpack.c.0.s8 %v4087
        %v4089 = vlaneseq
        %v4090 = vshrl.u32 %v4089, 7
        %v4091 = vsub.s32 %v4088, %v4090
        %v4092 = vrot.slane %v4078, %v4091
        %v4093 = vcombine.low %v4060, %v4076
        %v4094 = vcombine.high %v4060, %v4076
        %v4096 = vunpack.c.l.s4 1934713408
        %v4097 = vunpack.c.0.s8 %v4096
        %v4098 = vlaneseq
        %v4099 = vshrl.u32 %v4098, 7
        %v4100 = vsub.s32 %v4097, %v4099
        %v4101 = vrot.slane %v4093, %v4100
        %v4103 = vunpack.c.l.s4 1934713408
        %v4104 = vunpack.c.0.s8 %v4103
        %v4105 = vlaneseq
        %v4106 = vshrl.u32 %v4105, 7
        %v4107 = vsub.s32 %v4104, %v4106
        %v4108 = vrot.slane %v4094, %v4107
        %v4109 = vcombine.high %v4085, 0.0
        %v4110 = vcombine.high %v4092, 0.0
        %v4111 = vcombine.high %v4101, 0.0
        %v4112 = vcombine.high %v4108, 0.0
        %v4113 = vcombine.low %v871, %v3754
        %v4114 = vcombine.high %v871, %v3754
        %v4116 = vunpack.c.l.s4 1983009808
        %v4117 = vunpack.c.0.s8 %v4116
        %v4118 = vlaneseq
        %v4119 = vshrl.u32 %v4118, 7
        %v4120 = vsub.s32 %v4117, %v4119
        %v4121 = vrot.slane %v4113, %v4120
        %v4123 = vunpack.c.l.s4 1983009808
        %v4124 = vunpack.c.0.s8 %v4123
        %v4125 = vlaneseq
        %v4126 = vshrl.u32 %v4125, 7
        %v4127 = vsub.s32 %v4124, %v4126
        %v4128 = vrot.slane %v4114, %v4127
        %v4129 = vcombine.low %v3706, %v3802
        %v4130 = vcombine.high %v3706, %v3802
        %v4132 = vunpack.c.l.s4 1983009808
        %v4133 = vunpack.c.0.s8 %v4132
        %v4134 = vlaneseq
        %v4135 = vshrl.u32 %v4134, 7
        %v4136 = vsub.s32 %v4133, %v4135
        %v4137 = vrot.slane %v4129, %v4136
        %v4139 = vunpack.c.l.s4 1983009808
        %v4140 = vunpack.c.0.s8 %v4139
        %v4141 = vlaneseq
        %v4142 = vshrl.u32 %v4141, 7
        %v4143 = vsub.s32 %v4140, %v4142
        %v4144 = vrot.slane %v4130, %v4143
        %v4145 = vcombine.low %v4121, %v4137
        %v4146 = vcombine.high %v4121, %v4137
        %v4148 = vunpack.c.l.s4 1934713408
        %v4149 = vunpack.c.0.s8 %v4148
        %v4150 = vlaneseq
        %v4151 = vshrl.u32 %v4150, 7
        %v4152 = vsub.s32 %v4149, %v4151
        %v4153 = vrot.slane %v4145, %v4152
        %v4155 = vunpack.c.l.s4 1934713408
        %v4156 = vunpack.c.0.s8 %v4155
        %v4157 = vlaneseq
        %v4158 = vshrl.u32 %v4157, 7
        %v4159 = vsub.s32 %v4156, %v4158
        %v4160 = vrot.slane %v4146, %v4159
        %v4161 = vcombine.low %v4128, %v4144
        %v4162 = vcombine.high %v4128, %v4144
        %v4164 = vunpack.c.l.s4 1934713408
        %v4165 = vunpack.c.0.s8 %v4164
        %v4166 = vlaneseq
        %v4167 = vshrl.u32 %v4166, 7
        %v4168 = vsub.s32 %v4165, %v4167
        %v4169 = vrot.slane %v4161, %v4168
        %v4171 = vunpack.c.l.s4 1934713408
        %v4172 = vunpack.c.0.s8 %v4171
        %v4173 = vlaneseq
        %v4174 = vshrl.u32 %v4173, 7
        %v4175 = vsub.s32 %v4172, %v4174
        %v4176 = vrot.slane %v4162, %v4175
        %v4177 = vcombine.high %v4153, 0.0
        %v4178 = vcombine.high %v4160, 0.0
        %v4179 = vcombine.high %v4169, 0.0
        %v4180 = vcombine.high %v4176, 0.0
        %v4181 = vcombine.low %v875, %v3756
        %v4182 = vcombine.high %v875, %v3756
        %v4184 = vunpack.c.l.s4 1983009808
        %v4185 = vunpack.c.0.s8 %v4184
        %v4186 = vlaneseq
        %v4187 = vshrl.u32 %v4186, 7
        %v4188 = vsub.s32 %v4185, %v4187
        %v4189 = vrot.slane %v4181, %v4188
        %v4191 = vunpack.c.l.s4 1983009808
        %v4192 = vunpack.c.0.s8 %v4191
        %v4193 = vlaneseq
        %v4194 = vshrl.u32 %v4193, 7
        %v4195 = vsub.s32 %v4192, %v4194
        %v4196 = vrot.slane %v4182, %v4195
        %v4197 = vcombine.low %v3708, %v3804
        %v4198 = vcombine.high %v3708, %v3804
        %v4200 = vunpack.c.l.s4 1983009808
        %v4201 = vunpack.c.0.s8 %v4200
        %v4202 = vlaneseq
        %v4203 = vshrl.u32 %v4202, 7
        %v4204 = vsub.s32 %v4201, %v4203
        %v4205 = vrot.slane %v4197, %v4204
        %v4207 = vunpack.c.l.s4 1983009808
        %v4208 = vunpack.c.0.s8 %v4207
        %v4209 = vlaneseq
        %v4210 = vshrl.u32 %v4209, 7
        %v4211 = vsub.s32 %v4208, %v4210
        %v4212 = vrot.slane %v4198, %v4211
        %v4213 = vcombine.low %v4189, %v4205
        %v4214 = vcombine.high %v4189, %v4205
        %v4216 = vunpack.c.l.s4 1934713408
        %v4217 = vunpack.c.0.s8 %v4216
        %v4218 = vlaneseq
        %v4219 = vshrl.u32 %v4218, 7
        %v4220 = vsub.s32 %v4217, %v4219
        %v4221 = vrot.slane %v4213, %v4220
        %v4223 = vunpack.c.l.s4 1934713408
        %v4224 = vunpack.c.0.s8 %v4223
        %v4225 = vlaneseq
        %v4226 = vshrl.u32 %v4225, 7
        %v4227 = vsub.s32 %v4224, %v4226
        %v4228 = vrot.slane %v4214, %v4227
        %v4229 = vcombine.low %v4196, %v4212
        %v4230 = vcombine.high %v4196, %v4212
        %v4232 = vunpack.c.l.s4 1934713408
        %v4233 = vunpack.c.0.s8 %v4232
        %v4234 = vlaneseq
        %v4235 = vshrl.u32 %v4234, 7
        %v4236 = vsub.s32 %v4233, %v4235
        %v4237 = vrot.slane %v4229, %v4236
        %v4239 = vunpack.c.l.s4 1934713408
        %v4240 = vunpack.c.0.s8 %v4239
        %v4241 = vlaneseq
        %v4242 = vshrl.u32 %v4241, 7
        %v4243 = vsub.s32 %v4240, %v4242
        %v4244 = vrot.slane %v4230, %v4243
        %v4245 = vcombine.high %v4221, 0.0
        %v4246 = vcombine.high %v4228, 0.0
        %v4247 = vcombine.high %v4237, 0.0
        %v4248 = vcombine.high %v4244, 0.0
        %v4249 = vcombine.low %v881, %v3758
        %v4250 = vcombine.high %v881, %v3758
        %v4252 = vunpack.c.l.s4 1983009808
        %v4253 = vunpack.c.0.s8 %v4252
        %v4254 = vlaneseq
        %v4255 = vshrl.u32 %v4254, 7
        %v4256 = vsub.s32 %v4253, %v4255
        %v4257 = vrot.slane %v4249, %v4256
        %v4259 = vunpack.c.l.s4 1983009808
        %v4260 = vunpack.c.0.s8 %v4259
        %v4261 = vlaneseq
        %v4262 = vshrl.u32 %v4261, 7
        %v4263 = vsub.s32 %v4260, %v4262
        %v4264 = vrot.slane %v4250, %v4263
        %v4265 = vcombine.low %v3710, %v3806
        %v4266 = vcombine.high %v3710, %v3806
        %v4268 = vunpack.c.l.s4 1983009808
        %v4269 = vunpack.c.0.s8 %v4268
        %v4270 = vlaneseq
        %v4271 = vshrl.u32 %v4270, 7
        %v4272 = vsub.s32 %v4269, %v4271
        %v4273 = vrot.slane %v4265, %v4272
        %v4275 = vunpack.c.l.s4 1983009808
        %v4276 = vunpack.c.0.s8 %v4275
        %v4277 = vlaneseq
        %v4278 = vshrl.u32 %v4277, 7
        %v4279 = vsub.s32 %v4276, %v4278
        %v4280 = vrot.slane %v4266, %v4279
        %v4281 = vcombine.low %v4257, %v4273
        %v4282 = vcombine.high %v4257, %v4273
        %v4284 = vunpack.c.l.s4 1934713408
        %v4285 = vunpack.c.0.s8 %v4284
        %v4286 = vlaneseq
        %v4287 = vshrl.u32 %v4286, 7
        %v4288 = vsub.s32 %v4285, %v4287
        %v4289 = vrot.slane %v4281, %v4288
        %v4291 = vunpack.c.l.s4 1934713408
        %v4292 = vunpack.c.0.s8 %v4291
        %v4293 = vlaneseq
        %v4294 = vshrl.u32 %v4293, 7
        %v4295 = vsub.s32 %v4292, %v4294
        %v4296 = vrot.slane %v4282, %v4295
        %v4297 = vcombine.low %v4264, %v4280
        %v4298 = vcombine.high %v4264, %v4280
        %v4300 = vunpack.c.l.s4 1934713408
        %v4301 = vunpack.c.0.s8 %v4300
        %v4302 = vlaneseq
        %v4303 = vshrl.u32 %v4302, 7
        %v4304 = vsub.s32 %v4301, %v4303
        %v4305 = vrot.slane %v4297, %v4304
        %v4307 = vunpack.c.l.s4 1934713408
        %v4308 = vunpack.c.0.s8 %v4307
        %v4309 = vlaneseq
        %v4310 = vshrl.u32 %v4309, 7
        %v4311 = vsub.s32 %v4308, %v4310
        %v4312 = vrot.slane %v4298, %v4311
        %v4313 = vcombine.high %v4289, 0.0
        %v4314 = vcombine.high %v4296, 0.0
        %v4315 = vcombine.high %v4305, 0.0
        %v4316 = vcombine.high %v4312, 0.0
        %v4317 = vcombine.low %v885, %v3760
        %v4318 = vcombine.high %v885, %v3760
        %v4320 = vunpack.c.l.s4 1983009808
        %v4321 = vunpack.c.0.s8 %v4320
        %v4322 = vlaneseq
        %v4323 = vshrl.u32 %v4322, 7
        %v4324 = vsub.s32 %v4321, %v4323
        %v4325 = vrot.slane %v4317, %v4324
        %v4327 = vunpack.c.l.s4 1983009808
        %v4328 = vunpack.c.0.s8 %v4327
        %v4329 = vlaneseq
        %v4330 = vshrl.u32 %v4329, 7
        %v4331 = vsub.s32 %v4328, %v4330
        %v4332 = vrot.slane %v4318, %v4331
        %v4333 = vcombine.low %v3712, %v3808
        %v4334 = vcombine.high %v3712, %v3808
        %v4336 = vunpack.c.l.s4 1983009808
        %v4337 = vunpack.c.0.s8 %v4336
        %v4338 = vlaneseq
        %v4339 = vshrl.u32 %v4338, 7
        %v4340 = vsub.s32 %v4337, %v4339
        %v4341 = vrot.slane %v4333, %v4340
        %v4343 = vunpack.c.l.s4 1983009808
        %v4344 = vunpack.c.0.s8 %v4343
        %v4345 = vlaneseq
        %v4346 = vshrl.u32 %v4345, 7
        %v4347 = vsub.s32 %v4344, %v4346
        %v4348 = vrot.slane %v4334, %v4347
        %v4349 = vcombine.low %v4325, %v4341
        %v4350 = vcombine.high %v4325, %v4341
        %v4352 = vunpack.c.l.s4 1934713408
        %v4353 = vunpack.c.0.s8 %v4352
        %v4354 = vlaneseq
        %v4355 = vshrl.u32 %v4354, 7
        %v4356 = vsub.s32 %v4353, %v4355
        %v4357 = vrot.slane %v4349, %v4356
        %v4359 = vunpack.c.l.s4 1934713408
        %v4360 = vunpack.c.0.s8 %v4359
        %v4361 = vlaneseq
        %v4362 = vshrl.u32 %v4361, 7
        %v4363 = vsub.s32 %v4360, %v4362
        %v4364 = vrot.slane %v4350, %v4363
        %v4365 = vcombine.low %v4332, %v4348
        %v4366 = vcombine.high %v4332, %v4348
        %v4368 = vunpack.c.l.s4 1934713408
        %v4369 = vunpack.c.0.s8 %v4368
        %v4370 = vlaneseq
        %v4371 = vshrl.u32 %v4370, 7
        %v4372 = vsub.s32 %v4369, %v4371
        %v4373 = vrot.slane %v4365, %v4372
        %v4375 = vunpack.c.l.s4 1934713408
        %v4376 = vunpack.c.0.s8 %v4375
        %v4377 = vlaneseq
        %v4378 = vshrl.u32 %v4377, 7
        %v4379 = vsub.s32 %v4376, %v4378
        %v4380 = vrot.slane %v4366, %v4379
        %v4381 = vcombine.high %v4357, 0.0
        %v4382 = vcombine.high %v4364, 0.0
        %v4383 = vcombine.high %v4373, 0.0
        %v4384 = vcombine.high %v4380, 0.0
        %v4385 = vcombine.low %v891, %v3762
        %v4386 = vcombine.high %v891, %v3762
        %v4388 = vunpack.c.l.s4 1983009808
        %v4389 = vunpack.c.0.s8 %v4388
        %v4390 = vlaneseq
        %v4391 = vshrl.u32 %v4390, 7
        %v4392 = vsub.s32 %v4389, %v4391
        %v4393 = vrot.slane %v4385, %v4392
        %v4395 = vunpack.c.l.s4 1983009808
        %v4396 = vunpack.c.0.s8 %v4395
        %v4397 = vlaneseq
        %v4398 = vshrl.u32 %v4397, 7
        %v4399 = vsub.s32 %v4396, %v4398
        %v4400 = vrot.slane %v4386, %v4399
        %v4401 = vcombine.low %v3714, %v3810
        %v4402 = vcombine.high %v3714, %v3810
        %v4404 = vunpack.c.l.s4 1983009808
        %v4405 = vunpack.c.0.s8 %v4404
        %v4406 = vlaneseq
        %v4407 = vshrl.u32 %v4406, 7
        %v4408 = vsub.s32 %v4405, %v4407
        %v4409 = vrot.slane %v4401, %v4408
        %v4411 = vunpack.c.l.s4 1983009808
        %v4412 = vunpack.c.0.s8 %v4411
        %v4413 = vlaneseq
        %v4414 = vshrl.u32 %v4413, 7
        %v4415 = vsub.s32 %v4412, %v4414
        %v4416 = vrot.slane %v4402, %v4415
        %v4417 = vcombine.low %v4393, %v4409
        %v4418 = vcombine.high %v4393, %v4409
        %v4420 = vunpack.c.l.s4 1934713408
        %v4421 = vunpack.c.0.s8 %v4420
        %v4422 = vlaneseq
        %v4423 = vshrl.u32 %v4422, 7
        %v4424 = vsub.s32 %v4421, %v4423
        %v4425 = vrot.slane %v4417, %v4424
        %v4427 = vunpack.c.l.s4 1934713408
        %v4428 = vunpack.c.0.s8 %v4427
        %v4429 = vlaneseq
        %v4430 = vshrl.u32 %v4429, 7
        %v4431 = vsub.s32 %v4428, %v4430
        %v4432 = vrot.slane %v4418, %v4431
        %v4433 = vcombine.low %v4400, %v4416
        %v4434 = vcombine.high %v4400, %v4416
        %v4436 = vunpack.c.l.s4 1934713408
        %v4437 = vunpack.c.0.s8 %v4436
        %v4438 = vlaneseq
        %v4439 = vshrl.u32 %v4438, 7
        %v4440 = vsub.s32 %v4437, %v4439
        %v4441 = vrot.slane %v4433, %v4440
        %v4443 = vunpack.c.l.s4 1934713408
        %v4444 = vunpack.c.0.s8 %v4443
        %v4445 = vlaneseq
        %v4446 = vshrl.u32 %v4445, 7
        %v4447 = vsub.s32 %v4444, %v4446
        %v4448 = vrot.slane %v4434, %v4447
        %v4449 = vcombine.high %v4425, 0.0
        %v4450 = vcombine.high %v4432, 0.0
        %v4451 = vcombine.high %v4441, 0.0
        %v4452 = vcombine.high %v4448, 0.0
        %v4453 = vcombine.low %v895, %v3764
        %v4454 = vcombine.high %v895, %v3764
        %v4456 = vunpack.c.l.s4 1983009808
        %v4457 = vunpack.c.0.s8 %v4456
        %v4458 = vlaneseq
        %v4459 = vshrl.u32 %v4458, 7
        %v4460 = vsub.s32 %v4457, %v4459
        %v4461 = vrot.slane %v4453, %v4460
        %v4463 = vunpack.c.l.s4 1983009808
        %v4464 = vunpack.c.0.s8 %v4463
        %v4465 = vlaneseq
        %v4466 = vshrl.u32 %v4465, 7
        %v4467 = vsub.s32 %v4464, %v4466
        %v4468 = vrot.slane %v4454, %v4467
        %v4469 = vcombine.low %v3716, %v3812
        %v4470 = vcombine.high %v3716, %v3812
        %v4472 = vunpack.c.l.s4 1983009808
        %v4473 = vunpack.c.0.s8 %v4472
        %v4474 = vlaneseq
        %v4475 = vshrl.u32 %v4474, 7
        %v4476 = vsub.s32 %v4473, %v4475
        %v4477 = vrot.slane %v4469, %v4476
        %v4479 = vunpack.c.l.s4 1983009808
        %v4480 = vunpack.c.0.s8 %v4479
        %v4481 = vlaneseq
        %v4482 = vshrl.u32 %v4481, 7
        %v4483 = vsub.s32 %v4480, %v4482
        %v4484 = vrot.slane %v4470, %v4483
        %v4485 = vcombine.low %v4461, %v4477
        %v4486 = vcombine.high %v4461, %v4477
        %v4488 = vunpack.c.l.s4 1934713408
        %v4489 = vunpack.c.0.s8 %v4488
        %v4490 = vlaneseq
        %v4491 = vshrl.u32 %v4490, 7
        %v4492 = vsub.s32 %v4489, %v4491
        %v4493 = vrot.slane %v4485, %v4492
        %v4495 = vunpack.c.l.s4 1934713408
        %v4496 = vunpack.c.0.s8 %v4495
        %v4497 = vlaneseq
        %v4498 = vshrl.u32 %v4497, 7
        %v4499 = vsub.s32 %v4496, %v4498
        %v4500 = vrot.slane %v4486, %v4499
        %v4501 = vcombine.low %v4468, %v4484
        %v4502 = vcombine.high %v4468, %v4484
        %v4504 = vunpack.c.l.s4 1934713408
        %v4505 = vunpack.c.0.s8 %v4504
        %v4506 = vlaneseq
        %v4507 = vshrl.u32 %v4506, 7
        %v4508 = vsub.s32 %v4505, %v4507
        %v4509 = vrot.slane %v4501, %v4508
        %v4511 = vunpack.c.l.s4 1934713408
        %v4512 = vunpack.c.0.s8 %v4511
        %v4513 = vlaneseq
        %v4514 = vshrl.u32 %v4513, 7
        %v4515 = vsub.s32 %v4512, %v4514
        %v4516 = vrot.slane %v4502, %v4515
        %v4517 = vcombine.high %v4493, 0.0
        %v4518 = vcombine.high %v4500, 0.0
        %v4519 = vcombine.high %v4509, 0.0
        %v4520 = vcombine.high %v4516, 0.0
        %v4521 = vcombine.low %v901, %v3766
        %v4522 = vcombine.high %v901, %v3766
        %v4524 = vunpack.c.l.s4 1983009808
        %v4525 = vunpack.c.0.s8 %v4524
        %v4526 = vlaneseq
        %v4527 = vshrl.u32 %v4526, 7
        %v4528 = vsub.s32 %v4525, %v4527
        %v4529 = vrot.slane %v4521, %v4528
        %v4531 = vunpack.c.l.s4 1983009808
        %v4532 = vunpack.c.0.s8 %v4531
        %v4533 = vlaneseq
        %v4534 = vshrl.u32 %v4533, 7
        %v4535 = vsub.s32 %v4532, %v4534
        %v4536 = vrot.slane %v4522, %v4535
        %v4537 = vcombine.low %v3718, %v3814
        %v4538 = vcombine.high %v3718, %v3814
        %v4540 = vunpack.c.l.s4 1983009808
        %v4541 = vunpack.c.0.s8 %v4540
        %v4542 = vlaneseq
        %v4543 = vshrl.u32 %v4542, 7
        %v4544 = vsub.s32 %v4541, %v4543
        %v4545 = vrot.slane %v4537, %v4544
        %v4547 = vunpack.c.l.s4 1983009808
        %v4548 = vunpack.c.0.s8 %v4547
        %v4549 = vlaneseq
        %v4550 = vshrl.u32 %v4549, 7
        %v4551 = vsub.s32 %v4548, %v4550
        %v4552 = vrot.slane %v4538, %v4551
        %v4553 = vcombine.low %v4529, %v4545
        %v4554 = vcombine.high %v4529, %v4545
        %v4556 = vunpack.c.l.s4 1934713408
        %v4557 = vunpack.c.0.s8 %v4556
        %v4558 = vlaneseq
        %v4559 = vshrl.u32 %v4558, 7
        %v4560 = vsub.s32 %v4557, %v4559
        %v4561 = vrot.slane %v4553, %v4560
        %v4563 = vunpack.c.l.s4 1934713408
        %v4564 = vunpack.c.0.s8 %v4563
        %v4565 = vlaneseq
        %v4566 = vshrl.u32 %v4565, 7
        %v4567 = vsub.s32 %v4564, %v4566
        %v4568 = vrot.slane %v4554, %v4567
        %v4569 = vcombine.low %v4536, %v4552
        %v4570 = vcombine.high %v4536, %v4552
        %v4572 = vunpack.c.l.s4 1934713408
        %v4573 = vunpack.c.0.s8 %v4572
        %v4574 = vlaneseq
        %v4575 = vshrl.u32 %v4574, 7
        %v4576 = vsub.s32 %v4573, %v4575
        %v4577 = vrot.slane %v4569, %v4576
        %v4579 = vunpack.c.l.s4 1934713408
        %v4580 = vunpack.c.0.s8 %v4579
        %v4581 = vlaneseq
        %v4582 = vshrl.u32 %v4581, 7
        %v4583 = vsub.s32 %v4580, %v4582
        %v4584 = vrot.slane %v4570, %v4583
        %v4585 = vcombine.high %v4561, 0.0
        %v4586 = vcombine.high %v4568, 0.0
        %v4587 = vcombine.high %v4577, 0.0
        %v4588 = vcombine.high %v4584, 0.0
        %v4589 = vcombine.low %v905, %v3768
        %v4590 = vcombine.high %v905, %v3768
        %v4592 = vunpack.c.l.s4 1983009808
        %v4593 = vunpack.c.0.s8 %v4592
        %v4594 = vlaneseq
        %v4595 = vshrl.u32 %v4594, 7
        %v4596 = vsub.s32 %v4593, %v4595
        %v4597 = vrot.slane %v4589, %v4596
        %v4599 = vunpack.c.l.s4 1983009808
        %v4600 = vunpack.c.0.s8 %v4599
        %v4601 = vlaneseq
        %v4602 = vshrl.u32 %v4601, 7
        %v4603 = vsub.s32 %v4600, %v4602
        %v4604 = vrot.slane %v4590, %v4603
        %v4605 = vcombine.low %v3720, %v3816
        %v4606 = vcombine.high %v3720, %v3816
        %v4608 = vunpack.c.l.s4 1983009808
        %v4609 = vunpack.c.0.s8 %v4608
        %v4610 = vlaneseq
        %v4611 = vshrl.u32 %v4610, 7
        %v4612 = vsub.s32 %v4609, %v4611
        %v4613 = vrot.slane %v4605, %v4612
        %v4615 = vunpack.c.l.s4 1983009808
        %v4616 = vunpack.c.0.s8 %v4615
        %v4617 = vlaneseq
        %v4618 = vshrl.u32 %v4617, 7
        %v4619 = vsub.s32 %v4616, %v4618
        %v4620 = vrot.slane %v4606, %v4619
        %v4621 = vcombine.low %v4597, %v4613
        %v4622 = vcombine.high %v4597, %v4613
        %v4624 = vunpack.c.l.s4 1934713408
        %v4625 = vunpack.c.0.s8 %v4624
        %v4626 = vlaneseq
        %v4627 = vshrl.u32 %v4626, 7
        %v4628 = vsub.s32 %v4625, %v4627
        %v4629 = vrot.slane %v4621, %v4628
        %v4631 = vunpack.c.l.s4 1934713408
        %v4632 = vunpack.c.0.s8 %v4631
        %v4633 = vlaneseq
        %v4634 = vshrl.u32 %v4633, 7
        %v4635 = vsub.s32 %v4632, %v4634
        %v4636 = vrot.slane %v4622, %v4635
        %v4637 = vcombine.low %v4604, %v4620
        %v4638 = vcombine.high %v4604, %v4620
        %v4640 = vunpack.c.l.s4 1934713408
        %v4641 = vunpack.c.0.s8 %v4640
        %v4642 = vlaneseq
        %v4643 = vshrl.u32 %v4642, 7
        %v4644 = vsub.s32 %v4641, %v4643
        %v4645 = vrot.slane %v4637, %v4644
        %v4647 = vunpack.c.l.s4 1934713408
        %v4648 = vunpack.c.0.s8 %v4647
        %v4649 = vlaneseq
        %v4650 = vshrl.u32 %v4649, 7
        %v4651 = vsub.s32 %v4648, %v4650
        %v4652 = vrot.slane %v4638, %v4651
        %v4653 = vcombine.high %v4629, 0.0
        %v4654 = vcombine.high %v4636, 0.0
        %v4655 = vcombine.high %v4645, 0.0
        %v4656 = vcombine.high %v4652, 0.0
        %v4657 = vcombine.low %v911, %v3770
        %v4658 = vcombine.high %v911, %v3770
        %v4660 = vunpack.c.l.s4 1983009808
        %v4661 = vunpack.c.0.s8 %v4660
        %v4662 = vlaneseq
        %v4663 = vshrl.u32 %v4662, 7
        %v4664 = vsub.s32 %v4661, %v4663
        %v4665 = vrot.slane %v4657, %v4664
        %v4667 = vunpack.c.l.s4 1983009808
        %v4668 = vunpack.c.0.s8 %v4667
        %v4669 = vlaneseq
        %v4670 = vshrl.u32 %v4669, 7
        %v4671 = vsub.s32 %v4668, %v4670
        %v4672 = vrot.slane %v4658, %v4671
        %v4673 = vcombine.low %v3722, %v3818
        %v4674 = vcombine.high %v3722, %v3818
        %v4676 = vunpack.c.l.s4 1983009808
        %v4677 = vunpack.c.0.s8 %v4676
        %v4678 = vlaneseq
        %v4679 = vshrl.u32 %v4678, 7
        %v4680 = vsub.s32 %v4677, %v4679
        %v4681 = vrot.slane %v4673, %v4680
        %v4683 = vunpack.c.l.s4 1983009808
        %v4684 = vunpack.c.0.s8 %v4683
        %v4685 = vlaneseq
        %v4686 = vshrl.u32 %v4685, 7
        %v4687 = vsub.s32 %v4684, %v4686
        %v4688 = vrot.slane %v4674, %v4687
        %v4689 = vcombine.low %v4665, %v4681
        %v4690 = vcombine.high %v4665, %v4681
        %v4692 = vunpack.c.l.s4 1934713408
        %v4693 = vunpack.c.0.s8 %v4692
        %v4694 = vlaneseq
        %v4695 = vshrl.u32 %v4694, 7
        %v4696 = vsub.s32 %v4693, %v4695
        %v4697 = vrot.slane %v4689, %v4696
        %v4699 = vunpack.c.l.s4 1934713408
        %v4700 = vunpack.c.0.s8 %v4699
        %v4701 = vlaneseq
        %v4702 = vshrl.u32 %v4701, 7
        %v4703 = vsub.s32 %v4700, %v4702
        %v4704 = vrot.slane %v4690, %v4703
        %v4705 = vcombine.low %v4672, %v4688
        %v4706 = vcombine.high %v4672, %v4688
        %v4708 = vunpack.c.l.s4 1934713408
        %v4709 = vunpack.c.0.s8 %v4708
        %v4710 = vlaneseq
        %v4711 = vshrl.u32 %v4710, 7
        %v4712 = vsub.s32 %v4709, %v4711
        %v4713 = vrot.slane %v4705, %v4712
        %v4715 = vunpack.c.l.s4 1934713408
        %v4716 = vunpack.c.0.s8 %v4715
        %v4717 = vlaneseq
        %v4718 = vshrl.u32 %v4717, 7
        %v4719 = vsub.s32 %v4716, %v4718
        %v4720 = vrot.slane %v4706, %v4719
        %v4721 = vcombine.high %v4697, 0.0
        %v4722 = vcombine.high %v4704, 0.0
        %v4723 = vcombine.high %v4713, 0.0
        %v4724 = vcombine.high %v4720, 0.0
        %v4725 = vcombine.low %v915, %v3772
        %v4726 = vcombine.high %v915, %v3772
        %v4728 = vunpack.c.l.s4 1983009808
        %v4729 = vunpack.c.0.s8 %v4728
        %v4730 = vlaneseq
        %v4731 = vshrl.u32 %v4730, 7
        %v4732 = vsub.s32 %v4729, %v4731
        %v4733 = vrot.slane %v4725, %v4732
        %v4735 = vunpack.c.l.s4 1983009808
        %v4736 = vunpack.c.0.s8 %v4735
        %v4737 = vlaneseq
        %v4738 = vshrl.u32 %v4737, 7
        %v4739 = vsub.s32 %v4736, %v4738
        %v4740 = vrot.slane %v4726, %v4739
        %v4741 = vcombine.low %v3724, %v3820
        %v4742 = vcombine.high %v3724, %v3820
        %v4744 = vunpack.c.l.s4 1983009808
        %v4745 = vunpack.c.0.s8 %v4744
        %v4746 = vlaneseq
        %v4747 = vshrl.u32 %v4746, 7
        %v4748 = vsub.s32 %v4745, %v4747
        %v4749 = vrot.slane %v4741, %v4748
        %v4751 = vunpack.c.l.s4 1983009808
        %v4752 = vunpack.c.0.s8 %v4751
        %v4753 = vlaneseq
        %v4754 = vshrl.u32 %v4753, 7
        %v4755 = vsub.s32 %v4752, %v4754
        %v4756 = vrot.slane %v4742, %v4755
        %v4757 = vcombine.low %v4733, %v4749
        %v4758 = vcombine.high %v4733, %v4749
        %v4760 = vunpack.c.l.s4 1934713408
        %v4761 = vunpack.c.0.s8 %v4760
        %v4762 = vlaneseq
        %v4763 = vshrl.u32 %v4762, 7
        %v4764 = vsub.s32 %v4761, %v4763
        %v4765 = vrot.slane %v4757, %v4764
        %v4767 = vunpack.c.l.s4 1934713408
        %v4768 = vunpack.c.0.s8 %v4767
        %v4769 = vlaneseq
        %v4770 = vshrl.u32 %v4769, 7
        %v4771 = vsub.s32 %v4768, %v4770
        %v4772 = vrot.slane %v4758, %v4771
        %v4773 = vcombine.low %v4740, %v4756
        %v4774 = vcombine.high %v4740, %v4756
        %v4776 = vunpack.c.l.s4 1934713408
        %v4777 = vunpack.c.0.s8 %v4776
        %v4778 = vlaneseq
        %v4779 = vshrl.u32 %v4778, 7
        %v4780 = vsub.s32 %v4777, %v4779
        %v4781 = vrot.slane %v4773, %v4780
        %v4783 = vunpack.c.l.s4 1934713408
        %v4784 = vunpack.c.0.s8 %v4783
        %v4785 = vlaneseq
        %v4786 = vshrl.u32 %v4785, 7
        %v4787 = vsub.s32 %v4784, %v4786
        %v4788 = vrot.slane %v4774, %v4787
        %v4789 = vcombine.high %v4765, 0.0
        %v4790 = vcombine.high %v4772, 0.0
        %v4791 = vcombine.high %v4781, 0.0
        %v4792 = vcombine.high %v4788, 0.0
        %v4793 = vcombine.low %v921, %v3774
        %v4794 = vcombine.high %v921, %v3774
        %v4796 = vunpack.c.l.s4 1983009808
        %v4797 = vunpack.c.0.s8 %v4796
        %v4798 = vlaneseq
        %v4799 = vshrl.u32 %v4798, 7
        %v4800 = vsub.s32 %v4797, %v4799
        %v4801 = vrot.slane %v4793, %v4800
        %v4803 = vunpack.c.l.s4 1983009808
        %v4804 = vunpack.c.0.s8 %v4803
        %v4805 = vlaneseq
        %v4806 = vshrl.u32 %v4805, 7
        %v4807 = vsub.s32 %v4804, %v4806
        %v4808 = vrot.slane %v4794, %v4807
        %v4809 = vcombine.low %v3726, %v3822
        %v4810 = vcombine.high %v3726, %v3822
        %v4812 = vunpack.c.l.s4 1983009808
        %v4813 = vunpack.c.0.s8 %v4812
        %v4814 = vlaneseq
        %v4815 = vshrl.u32 %v4814, 7
        %v4816 = vsub.s32 %v4813, %v4815
        %v4817 = vrot.slane %v4809, %v4816
        %v4819 = vunpack.c.l.s4 1983009808
        %v4820 = vunpack.c.0.s8 %v4819
        %v4821 = vlaneseq
        %v4822 = vshrl.u32 %v4821, 7
        %v4823 = vsub.s32 %v4820, %v4822
        %v4824 = vrot.slane %v4810, %v4823
        %v4825 = vcombine.low %v4801, %v4817
        %v4826 = vcombine.high %v4801, %v4817
        %v4828 = vunpack.c.l.s4 1934713408
        %v4829 = vunpack.c.0.s8 %v4828
        %v4830 = vlaneseq
        %v4831 = vshrl.u32 %v4830, 7
        %v4832 = vsub.s32 %v4829, %v4831
        %v4833 = vrot.slane %v4825, %v4832
        %v4835 = vunpack.c.l.s4 1934713408
        %v4836 = vunpack.c.0.s8 %v4835
        %v4837 = vlaneseq
        %v4838 = vshrl.u32 %v4837, 7
        %v4839 = vsub.s32 %v4836, %v4838
        %v4840 = vrot.slane %v4826, %v4839
        %v4841 = vcombine.low %v4808, %v4824
        %v4842 = vcombine.high %v4808, %v4824
        %v4844 = vunpack.c.l.s4 1934713408
        %v4845 = vunpack.c.0.s8 %v4844
        %v4846 = vlaneseq
        %v4847 = vshrl.u32 %v4846, 7
        %v4848 = vsub.s32 %v4845, %v4847
        %v4849 = vrot.slane %v4841, %v4848
        %v4851 = vunpack.c.l.s4 1934713408
        %v4852 = vunpack.c.0.s8 %v4851
        %v4853 = vlaneseq
        %v4854 = vshrl.u32 %v4853, 7
        %v4855 = vsub.s32 %v4852, %v4854
        %v4856 = vrot.slane %v4842, %v4855
        %v4857 = vcombine.high %v4833, 0.0
        %v4858 = vcombine.high %v4840, 0.0
        %v4859 = vcombine.high %v4849, 0.0
        %v4860 = vcombine.high %v4856, 0.0
        %v4861 = vcombine.low %v925, %v3776
        %v4862 = vcombine.high %v925, %v3776
        %v4864 = vunpack.c.l.s4 1983009808
        %v4865 = vunpack.c.0.s8 %v4864
        %v4866 = vlaneseq
        %v4867 = vshrl.u32 %v4866, 7
        %v4868 = vsub.s32 %v4865, %v4867
        %v4869 = vrot.slane %v4861, %v4868
        %v4871 = vunpack.c.l.s4 1983009808
        %v4872 = vunpack.c.0.s8 %v4871
        %v4873 = vlaneseq
        %v4874 = vshrl.u32 %v4873, 7
        %v4875 = vsub.s32 %v4872, %v4874
        %v4876 = vrot.slane %v4862, %v4875
        %v4877 = vcombine.low %v3728, %v3824
        %v4878 = vcombine.high %v3728, %v3824
        %v4880 = vunpack.c.l.s4 1983009808
        %v4881 = vunpack.c.0.s8 %v4880
        %v4882 = vlaneseq
        %v4883 = vshrl.u32 %v4882, 7
        %v4884 = vsub.s32 %v4881, %v4883
        %v4885 = vrot.slane %v4877, %v4884
        %v4887 = vunpack.c.l.s4 1983009808
        %v4888 = vunpack.c.0.s8 %v4887
        %v4889 = vlaneseq
        %v4890 = vshrl.u32 %v4889, 7
        %v4891 = vsub.s32 %v4888, %v4890
        %v4892 = vrot.slane %v4878, %v4891
        %v4893 = vcombine.low %v4869, %v4885
        %v4894 = vcombine.high %v4869, %v4885
        %v4896 = vunpack.c.l.s4 1934713408
        %v4897 = vunpack.c.0.s8 %v4896
        %v4898 = vlaneseq
        %v4899 = vshrl.u32 %v4898, 7
        %v4900 = vsub.s32 %v4897, %v4899
        %v4901 = vrot.slane %v4893, %v4900
        %v4903 = vunpack.c.l.s4 1934713408
        %v4904 = vunpack.c.0.s8 %v4903
        %v4905 = vlaneseq
        %v4906 = vshrl.u32 %v4905, 7
        %v4907 = vsub.s32 %v4904, %v4906
        %v4908 = vrot.slane %v4894, %v4907
        %v4909 = vcombine.low %v4876, %v4892
        %v4910 = vcombine.high %v4876, %v4892
        %v4912 = vunpack.c.l.s4 1934713408
        %v4913 = vunpack.c.0.s8 %v4912
        %v4914 = vlaneseq
        %v4915 = vshrl.u32 %v4914, 7
        %v4916 = vsub.s32 %v4913, %v4915
        %v4917 = vrot.slane %v4909, %v4916
        %v4919 = vunpack.c.l.s4 1934713408
        %v4920 = vunpack.c.0.s8 %v4919
        %v4921 = vlaneseq
        %v4922 = vshrl.u32 %v4921, 7
        %v4923 = vsub.s32 %v4920, %v4922
        %v4924 = vrot.slane %v4910, %v4923
        %v4925 = vcombine.high %v4901, 0.0
        %v4926 = vcombine.high %v4908, 0.0
        %v4927 = vcombine.high %v4917, 0.0
        %v4928 = vcombine.high %v4924, 0.0
        %v4929 = vcombine.low %v3881, %v3888
        %v4931 = vunpack.c.l.s4 1983009808
        %v4932 = vunpack.c.0.s8 %v4931
        %v4933 = vlaneseq
        %v4934 = vshrl.u32 %v4933, 7
        %v4935 = vsub.s32 %v4932, %v4934
        %v4936 = vrot.slane %v4929, %v4935
        %v4937 = vcombine.low %v3905, %v3906
        %v4939 = vunpack.c.l.s4 1983009808
        %v4940 = vunpack.c.0.s8 %v4939
        %v4941 = vlaneseq
        %v4942 = vshrl.u32 %v4941, 7
        %v4943 = vsub.s32 %v4940, %v4942
        %v4944 = vrot.slane %v4937, %v4943
        %v4945 = vcombine.low %v3897, %v3904
        %v4947 = vunpack.c.l.s4 1983009808
        %v4948 = vunpack.c.0.s8 %v4947
        %v4949 = vlaneseq
        %v4950 = vshrl.u32 %v4949, 7
        %v4951 = vsub.s32 %v4948, %v4950
        %v4952 = vrot.slane %v4945, %v4951
        %v4953 = vcombine.low %v3907, %v3908
        %v4955 = vunpack.c.l.s4 1983009808
        %v4956 = vunpack.c.0.s8 %v4955
        %v4957 = vlaneseq
        %v4958 = vshrl.u32 %v4957, 7
        %v4959 = vsub.s32 %v4956, %v4958
        %v4960 = vrot.slane %v4953, %v4959
        %v4961 = vcombine.low %v4936, %v4944
        %v4962 = vcombine.high %v4936, %v4944
        %v4964 = vunpack.c.l.s4 1934713408
        %v4965 = vunpack.c.0.s8 %v4964
        %v4966 = vlaneseq
        %v4967 = vshrl.u32 %v4966, 7
        %v4968 = vsub.s32 %v4965, %v4967
        %v4969 = vrot.slane %v4961, %v4968
        %v4971 = vunpack.c.l.s4 1934713408
        %v4972 = vunpack.c.0.s8 %v4971
        %v4973 = vlaneseq
        %v4974 = vshrl.u32 %v4973, 7
        %v4975 = vsub.s32 %v4972, %v4974
        %v4976 = vrot.slane %v4962, %v4975
        %v4977 = vcombine.low %v4952, %v4960
        %v4978 = vcombine.high %v4952, %v4960
        %v4980 = vunpack.c.l.s4 1934713408
        %v4981 = vunpack.c.0.s8 %v4980
        %v4982 = vlaneseq
        %v4983 = vshrl.u32 %v4982, 7
        %v4984 = vsub.s32 %v4981, %v4983
        %v4985 = vrot.slane %v4977, %v4984
        %v4987 = vunpack.c.l.s4 1934713408
        %v4988 = vunpack.c.0.s8 %v4987
        %v4989 = vlaneseq
        %v4990 = vshrl.u32 %v4989, 7
        %v4991 = vsub.s32 %v4988, %v4990
        %v4992 = vrot.slane %v4978, %v4991
        %v4993 = vcombine.low %v4969, %v4985
        %v4994 = vcombine.high %v4969, %v4985
        %v4995 = vcombine.low %v4976, %v4992
        %v4996 = vcombine.high %v4976, %v4992
        %v4997 = vcombine.low %v3949, %v3956
        %v4999 = vunpack.c.l.s4 1983009808
        %v5000 = vunpack.c.0.s8 %v4999
        %v5001 = vlaneseq
        %v5002 = vshrl.u32 %v5001, 7
        %v5003 = vsub.s32 %v5000, %v5002
        %v5004 = vrot.slane %v4997, %v5003
        %v5005 = vcombine.low %v3973, %v3974
        %v5007 = vunpack.c.l.s4 1983009808
        %v5008 = vunpack.c.0.s8 %v5007
        %v5009 = vlaneseq
        %v5010 = vshrl.u32 %v5009, 7
        %v5011 = vsub.s32 %v5008, %v5010
        %v5012 = vrot.slane %v5005, %v5011
        %v5013 = vcombine.low %v3965, %v3972
        %v5015 = vunpack.c.l.s4 1983009808
        %v5016 = vunpack.c.0.s8 %v5015
        %v5017 = vlaneseq
        %v5018 = vshrl.u32 %v5017, 7
        %v5019 = vsub.s32 %v5016, %v5018
        %v5020 = vrot.slane %v5013, %v5019
        %v5021 = vcombine.low %v3975, %v3976
        %v5023 = vunpack.c.l.s4 1983009808
        %v5024 = vunpack.c.0.s8 %v5023
        %v5025 = vlaneseq
        %v5026 = vshrl.u32 %v5025, 7
        %v5027 = vsub.s32 %v5024, %v5026
        %v5028 = vrot.slane %v5021, %v5027
        %v5029 = vcombine.low %v5004, %v5012
        %v5030 = vcombine.high %v5004, %v5012
        %v5032 = vunpack.c.l.s4 1934713408
        %v5033 = vunpack.c.0.s8 %v5032
        %v5034 = vlaneseq
        %v5035 = vshrl.u32 %v5034, 7
        %v5036 = vsub.s32 %v5033, %v5035
        %v5037 = vrot.slane %v5029, %v5036
        %v5039 = vunpack.c.l.s4 1934713408
        %v5040 = vunpack.c.0.s8 %v5039
        %v5041 = vlaneseq
        %v5042 = vshrl.u32 %v5041, 7
        %v5043 = vsub.s32 %v5040, %v5042
        %v5044 = vrot.slane %v5030, %v5043
        %v5045 = vcombine.low %v5020, %v5028
        %v5046 = vcombine.high %v5020, %v5028
        %v5048 = vunpack.c.l.s4 1934713408
        %v5049 = vunpack.c.0.s8 %v5048
        %v5050 = vlaneseq
        %v5051 = vshrl.u32 %v5050, 7
        %v5052 = vsub.s32 %v5049, %v5051
        %v5053 = vrot.slane %v5045, %v5052
        %v5055 = vunpack.c.l.s4 1934713408
        %v5056 = vunpack.c.0.s8 %v5055
        %v5057 = vlaneseq
        %v5058 = vshrl.u32 %v5057, 7
        %v5059 = vsub.s32 %v5056, %v5058
        %v5060 = vrot.slane %v5046, %v5059
        %v5061 = vcombine.low %v5037, %v5053
        %v5062 = vcombine.high %v5037, %v5053
        %v5063 = vcombine.low %v5044, %v5060
        %v5064 = vcombine.high %v5044, %v5060
        %v5065 = vcombine.low %v4017, %v4024
        %v5067 = vunpack.c.l.s4 1983009808
        %v5068 = vunpack.c.0.s8 %v5067
        %v5069 = vlaneseq
        %v5070 = vshrl.u32 %v5069, 7
        %v5071 = vsub.s32 %v5068, %v5070
        %v5072 = vrot.slane %v5065, %v5071
        %v5073 = vcombine.low %v4041, %v4042
        %v5075 = vunpack.c.l.s4 1983009808
        %v5076 = vunpack.c.0.s8 %v5075
        %v5077 = vlaneseq
        %v5078 = vshrl.u32 %v5077, 7
        %v5079 = vsub.s32 %v5076, %v5078
        %v5080 = vrot.slane %v5073, %v5079
        %v5081 = vcombine.low %v4033, %v4040
        %v5083 = vunpack.c.l.s4 1983009808
        %v5084 = vunpack.c.0.s8 %v5083
        %v5085 = vlaneseq
        %v5086 = vshrl.u32 %v5085, 7
        %v5087 = vsub.s32 %v5084, %v5086
        %v5088 = vrot.slane %v5081, %v5087
        %v5089 = vcombine.low %v4043, %v4044
        %v5091 = vunpack.c.l.s4 1983009808
        %v5092 = vunpack.c.0.s8 %v5091
        %v5093 = vlaneseq
        %v5094 = vshrl.u32 %v5093, 7
        %v5095 = vsub.s32 %v5092, %v5094
        %v5096 = vrot.slane %v5089, %v5095
        %v5097 = vcombine.low %v5072, %v5080
        %v5098 = vcombine.high %v5072, %v5080
        %v5100 = vunpack.c.l.s4 1934713408
        %v5101 = vunpack.c.0.s8 %v5100
        %v5102 = vlaneseq
        %v5103 = vshrl.u32 %v5102, 7
        %v5104 = vsub.s32 %v5101, %v5103
        %v5105 = vrot.slane %v5097, %v5104
        %v5107 = vunpack.c.l.s4 1934713408
        %v5108 = vunpack.c.0.s8 %v5107
        %v5109 = vlaneseq
        %v5110 = vshrl.u32 %v5109, 7
        %v5111 = vsub.s32 %v5108, %v5110
        %v5112 = vrot.slane %v5098, %v5111
        %v5113 = vcombine.low %v5088, %v5096
        %v5114 = vcombine.high %v5088, %v5096
        %v5116 = vunpack.c.l.s4 1934713408
        %v5117 = vunpack.c.0.s8 %v5116
        %v5118 = vlaneseq
        %v5119 = vshrl.u32 %v5118, 7
        %v5120 = vsub.s32 %v5117, %v5119
        %v5121 = vrot.slane %v5113, %v5120
        %v5123 = vunpack.c.l.s4 1934713408
        %v5124 = vunpack.c.0.s8 %v5123
        %v5125 = vlaneseq
        %v5126 = vshrl.u32 %v5125, 7
        %v5127 = vsub.s32 %v5124, %v5126
        %v5128 = vrot.slane %v5114, %v5127
        %v5129 = vcombine.low %v5105, %v5121
        %v5130 = vcombine.high %v5105, %v5121
        %v5131 = vcombine.low %v5112, %v5128
        %v5132 = vcombine.high %v5112, %v5128
        %v5133 = vcombine.low %v4085, %v4092
        %v5135 = vunpack.c.l.s4 1983009808
        %v5136 = vunpack.c.0.s8 %v5135
        %v5137 = vlaneseq
        %v5138 = vshrl.u32 %v5137, 7
        %v5139 = vsub.s32 %v5136, %v5138
        %v5140 = vrot.slane %v5133, %v5139
        %v5141 = vcombine.low %v4109, %v4110
        %v5143 = vunpack.c.l.s4 1983009808
        %v5144 = vunpack.c.0.s8 %v5143
        %v5145 = vlaneseq
        %v5146 = vshrl.u32 %v5145, 7
        %v5147 = vsub.s32 %v5144, %v5146
        %v5148 = vrot.slane %v5141, %v5147
        %v5149 = vcombine.low %v4101, %v4108
        %v5151 = vunpack.c.l.s4 1983009808
        %v5152 = vunpack.c.0.s8 %v5151
        %v5153 = vlaneseq
        %v5154 = vshrl.u32 %v5153, 7
        %v5155 = vsub.s32 %v5152, %v5154
        %v5156 = vrot.slane %v5149, %v5155
        %v5157 = vcombine.low %v4111, %v4112
        %v5159 = vunpack.c.l.s4 1983009808
        %v5160 = vunpack.c.0.s8 %v5159
        %v5161 = vlaneseq
        %v5162 = vshrl.u32 %v5161, 7
        %v5163 = vsub.s32 %v5160, %v5162
        %v5164 = vrot.slane %v5157, %v5163
        %v5165 = vcombine.low %v5140, %v5148
        %v5166 = vcombine.high %v5140, %v5148
        %v5168 = vunpack.c.l.s4 1934713408
        %v5169 = vunpack.c.0.s8 %v5168
        %v5170 = vlaneseq
        %v5171 = vshrl.u32 %v5170, 7
        %v5172 = vsub.s32 %v5169, %v5171
        %v5173 = vrot.slane %v5165, %v5172
        %v5175 = vunpack.c.l.s4 1934713408
        %v5176 = vunpack.c.0.s8 %v5175
        %v5177 = vlaneseq
        %v5178 = vshrl.u32 %v5177, 7
        %v5179 = vsub.s32 %v5176, %v5178
        %v5180 = vrot.slane %v5166, %v5179
        %v5181 = vcombine.low %v5156, %v5164
        %v5182 = vcombine.high %v5156, %v5164
        %v5184 = vunpack.c.l.s4 1934713408
        %v5185 = vunpack.c.0.s8 %v5184
        %v5186 = vlaneseq
        %v5187 = vshrl.u32 %v5186, 7
        %v5188 = vsub.s32 %v5185, %v5187
        %v5189 = vrot.slane %v5181, %v5188
        %v5191 = vunpack.c.l.s4 1934713408
        %v5192 = vunpack.c.0.s8 %v5191
        %v5193 = vlaneseq
        %v5194 = vshrl.u32 %v5193, 7
        %v5195 = vsub.s32 %v5192, %v5194
        %v5196 = vrot.slane %v5182, %v5195
        %v5197 = vcombine.low %v5173, %v5189
        %v5198 = vcombine.high %v5173, %v5189
        %v5199 = vcombine.low %v5180, %v5196
        %v5200 = vcombine.high %v5180, %v5196
        %v5201 = vcombine.low %v4153, %v4160
        %v5203 = vunpack.c.l.s4 1983009808
        %v5204 = vunpack.c.0.s8 %v5203
        %v5205 = vlaneseq
        %v5206 = vshrl.u32 %v5205, 7
        %v5207 = vsub.s32 %v5204, %v5206
        %v5208 = vrot.slane %v5201, %v5207
        %v5209 = vcombine.low %v4177, %v4178
        %v5211 = vunpack.c.l.s4 1983009808
        %v5212 = vunpack.c.0.s8 %v5211
        %v5213 = vlaneseq
        %v5214 = vshrl.u32 %v5213, 7
        %v5215 = vsub.s32 %v5212, %v5214
        %v5216 = vrot.slane %v5209, %v5215
        %v5217 = vcombine.low %v4169, %v4176
        %v5219 = vunpack.c.l.s4 1983009808
        %v5220 = vunpack.c.0.s8 %v5219
        %v5221 = vlaneseq
        %v5222 = vshrl.u32 %v5221, 7
        %v5223 = vsub.s32 %v5220, %v5222
        %v5224 = vrot.slane %v5217, %v5223
        %v5225 = vcombine.low %v4179, %v4180
        %v5227 = vunpack.c.l.s4 1983009808
        %v5228 = vunpack.c.0.s8 %v5227
        %v5229 = vlaneseq
        %v5230 = vshrl.u32 %v5229, 7
        %v5231 = vsub.s32 %v5228, %v5230
        %v5232 = vrot.slane %v5225, %v5231
        %v5233 = vcombine.low %v5208, %v5216
        %v5234 = vcombine.high %v5208, %v5216
        %v5236 = vunpack.c.l.s4 1934713408
        %v5237 = vunpack.c.0.s8 %v5236
        %v5238 = vlaneseq
        %v5239 = vshrl.u32 %v5238, 7
        %v5240 = vsub.s32 %v5237, %v5239
        %v5241 = vrot.slane %v5233, %v5240
        %v5243 = vunpack.c.l.s4 1934713408
        %v5244 = vunpack.c.0.s8 %v5243
        %v5245 = vlaneseq
        %v5246 = vshrl.u32 %v5245, 7
        %v5247 = vsub.s32 %v5244, %v5246
        %v5248 = vrot.slane %v5234, %v5247
        %v5249 = vcombine.low %v5224, %v5232
        %v5250 = vcombine.high %v5224, %v5232
        %v5252 = vunpack.c.l.s4 1934713408
        %v5253 = vunpack.c.0.s8 %v5252
        %v5254 = vlaneseq
        %v5255 = vshrl.u32 %v5254, 7
        %v5256 = vsub.s32 %v5253, %v5255
        %v5257 = vrot.slane %v5249, %v5256
        %v5259 = vunpack.c.l.s4 1934713408
        %v5260 = vunpack.c.0.s8 %v5259
        %v5261 = vlaneseq
        %v5262 = vshrl.u32 %v5261, 7
        %v5263 = vsub.s32 %v5260, %v5262
        %v5264 = vrot.slane %v5250, %v5263
        %v5265 = vcombine.low %v5241, %v5257
        %v5266 = vcombine.high %v5241, %v5257
        %v5267 = vcombine.low %v5248, %v5264
        %v5268 = vcombine.high %v5248, %v5264
        %v5269 = vcombine.low %v4221, %v4228
        %v5271 = vunpack.c.l.s4 1983009808
        %v5272 = vunpack.c.0.s8 %v5271
        %v5273 = vlaneseq
        %v5274 = vshrl.u32 %v5273, 7
        %v5275 = vsub.s32 %v5272, %v5274
        %v5276 = vrot.slane %v5269, %v5275
        %v5277 = vcombine.low %v4245, %v4246
        %v5279 = vunpack.c.l.s4 1983009808
        %v5280 = vunpack.c.0.s8 %v5279
        %v5281 = vlaneseq
        %v5282 = vshrl.u32 %v5281, 7
        %v5283 = vsub.s32 %v5280, %v5282
        %v5284 = vrot.slane %v5277, %v5283
        %v5285 = vcombine.low %v4237, %v4244
        %v5287 = vunpack.c.l.s4 1983009808
        %v5288 = vunpack.c.0.s8 %v5287
        %v5289 = vlaneseq
        %v5290 = vshrl.u32 %v5289, 7
        %v5291 = vsub.s32 %v5288, %v5290
        %v5292 = vrot.slane %v5285, %v5291
        %v5293 = vcombine.low %v4247, %v4248
        %v5295 = vunpack.c.l.s4 1983009808
        %v5296 = vunpack.c.0.s8 %v5295
        %v5297 = vlaneseq
        %v5298 = vshrl.u32 %v5297, 7
        %v5299 = vsub.s32 %v5296, %v5298
        %v5300 = vrot.slane %v5293, %v5299
        %v5301 = vcombine.low %v5276, %v5284
        %v5302 = vcombine.high %v5276, %v5284
        %v5304 = vunpack.c.l.s4 1934713408
        %v5305 = vunpack.c.0.s8 %v5304
        %v5306 = vlaneseq
        %v5307 = vshrl.u32 %v5306, 7
        %v5308 = vsub.s32 %v5305, %v5307
        %v5309 = vrot.slane %v5301, %v5308
        %v5311 = vunpack.c.l.s4 1934713408
        %v5312 = vunpack.c.0.s8 %v5311
        %v5313 = vlaneseq
        %v5314 = vshrl.u32 %v5313, 7
        %v5315 = vsub.s32 %v5312, %v5314
        %v5316 = vrot.slane %v5302, %v5315
        %v5317 = vcombine.low %v5292, %v5300
        %v5318 = vcombine.high %v5292, %v5300
        %v5320 = vunpack.c.l.s4 1934713408
        %v5321 = vunpack.c.0.s8 %v5320
        %v5322 = vlaneseq
        %v5323 = vshrl.u32 %v5322, 7
        %v5324 = vsub.s32 %v5321, %v5323
        %v5325 = vrot.slane %v5317, %v5324
        %v5327 = vunpack.c.l.s4 1934713408
        %v5328 = vunpack.c.0.s8 %v5327
        %v5329 = vlaneseq
        %v5330 = vshrl.u32 %v5329, 7
        %v5331 = vsub.s32 %v5328, %v5330
        %v5332 = vrot.slane %v5318, %v5331
        %v5333 = vcombine.low %v5309, %v5325
        %v5334 = vcombine.high %v5309, %v5325
        %v5335 = vcombine.low %v5316, %v5332
        %v5336 = vcombine.high %v5316, %v5332
        %v5337 = vcombine.low %v4289, %v4296
        %v5339 = vunpack.c.l.s4 1983009808
        %v5340 = vunpack.c.0.s8 %v5339
        %v5341 = vlaneseq
        %v5342 = vshrl.u32 %v5341, 7
        %v5343 = vsub.s32 %v5340, %v5342
        %v5344 = vrot.slane %v5337, %v5343
        %v5345 = vcombine.low %v4313, %v4314
        %v5347 = vunpack.c.l.s4 1983009808
        %v5348 = vunpack.c.0.s8 %v5347
        %v5349 = vlaneseq
        %v5350 = vshrl.u32 %v5349, 7
        %v5351 = vsub.s32 %v5348, %v5350
        %v5352 = vrot.slane %v5345, %v5351
        %v5353 = vcombine.low %v4305, %v4312
        %v5355 = vunpack.c.l.s4 1983009808
        %v5356 = vunpack.c.0.s8 %v5355
        %v5357 = vlaneseq
        %v5358 = vshrl.u32 %v5357, 7
        %v5359 = vsub.s32 %v5356, %v5358
        %v5360 = vrot.slane %v5353, %v5359
        %v5361 = vcombine.low %v4315, %v4316
        %v5363 = vunpack.c.l.s4 1983009808
        %v5364 = vunpack.c.0.s8 %v5363
        %v5365 = vlaneseq
        %v5366 = vshrl.u32 %v5365, 7
        %v5367 = vsub.s32 %v5364, %v5366
        %v5368 = vrot.slane %v5361, %v5367
        %v5369 = vcombine.low %v5344, %v5352
        %v5370 = vcombine.high %v5344, %v5352
        %v5372 = vunpack.c.l.s4 1934713408
        %v5373 = vunpack.c.0.s8 %v5372
        %v5374 = vlaneseq
        %v5375 = vshrl.u32 %v5374, 7
        %v5376 = vsub.s32 %v5373, %v5375
        %v5377 = vrot.slane %v5369, %v5376
        %v5379 = vunpack.c.l.s4 1934713408
        %v5380 = vunpack.c.0.s8 %v5379
        %v5381 = vlaneseq
        %v5382 = vshrl.u32 %v5381, 7
        %v5383 = vsub.s32 %v5380, %v5382
        %v5384 = vrot.slane %v5370, %v5383
        %v5385 = vcombine.low %v5360, %v5368
        %v5386 = vcombine.high %v5360, %v5368
        %v5388 = vunpack.c.l.s4 1934713408
        %v5389 = vunpack.c.0.s8 %v5388
        %v5390 = vlaneseq
        %v5391 = vshrl.u32 %v5390, 7
        %v5392 = vsub.s32 %v5389, %v5391
        %v5393 = vrot.slane %v5385, %v5392
        %v5395 = vunpack.c.l.s4 1934713408
        %v5396 = vunpack.c.0.s8 %v5395
        %v5397 = vlaneseq
        %v5398 = vshrl.u32 %v5397, 7
        %v5399 = vsub.s32 %v5396, %v5398
        %v5400 = vrot.slane %v5386, %v5399
        %v5401 = vcombine.low %v5377, %v5393
        %v5402 = vcombine.high %v5377, %v5393
        %v5403 = vcombine.low %v5384, %v5400
        %v5404 = vcombine.high %v5384, %v5400
        %v5405 = vcombine.low %v4357, %v4364
        %v5407 = vunpack.c.l.s4 1983009808
        %v5408 = vunpack.c.0.s8 %v5407
        %v5409 = vlaneseq
        %v5410 = vshrl.u32 %v5409, 7
        %v5411 = vsub.s32 %v5408, %v5410
        %v5412 = vrot.slane %v5405, %v5411
        %v5413 = vcombine.low %v4381, %v4382
        %v5415 = vunpack.c.l.s4 1983009808
        %v5416 = vunpack.c.0.s8 %v5415
        %v5417 = vlaneseq
        %v5418 = vshrl.u32 %v5417, 7
        %v5419 = vsub.s32 %v5416, %v5418
        %v5420 = vrot.slane %v5413, %v5419
        %v5421 = vcombine.low %v4373, %v4380
        %v5423 = vunpack.c.l.s4 1983009808
        %v5424 = vunpack.c.0.s8 %v5423
        %v5425 = vlaneseq
        %v5426 = vshrl.u32 %v5425, 7
        %v5427 = vsub.s32 %v5424, %v5426
        %v5428 = vrot.slane %v5421, %v5427
        %v5429 = vcombine.low %v4383, %v4384
        %v5431 = vunpack.c.l.s4 1983009808
        %v5432 = vunpack.c.0.s8 %v5431
        %v5433 = vlaneseq
        %v5434 = vshrl.u32 %v5433, 7
        %v5435 = vsub.s32 %v5432, %v5434
        %v5436 = vrot.slane %v5429, %v5435
        %v5437 = vcombine.low %v5412, %v5420
        %v5438 = vcombine.high %v5412, %v5420
        %v5440 = vunpack.c.l.s4 1934713408
        %v5441 = vunpack.c.0.s8 %v5440
        %v5442 = vlaneseq
        %v5443 = vshrl.u32 %v5442, 7
        %v5444 = vsub.s32 %v5441, %v5443
        %v5445 = vrot.slane %v5437, %v5444
        %v5447 = vunpack.c.l.s4 1934713408
        %v5448 = vunpack.c.0.s8 %v5447
        %v5449 = vlaneseq
        %v5450 = vshrl.u32 %v5449, 7
        %v5451 = vsub.s32 %v5448, %v5450
        %v5452 = vrot.slane %v5438, %v5451
        %v5453 = vcombine.low %v5428, %v5436
        %v5454 = vcombine.high %v5428, %v5436
        %v5456 = vunpack.c.l.s4 1934713408
        %v5457 = vunpack.c.0.s8 %v5456
        %v5458 = vlaneseq
        %v5459 = vshrl.u32 %v5458, 7
        %v5460 = vsub.s32 %v5457, %v5459
        %v5461 = vrot.slane %v5453, %v5460
        %v5463 = vunpack.c.l.s4 1934713408
        %v5464 = vunpack.c.0.s8 %v5463
        %v5465 = vlaneseq
        %v5466 = vshrl.u32 %v5465, 7
        %v5467 = vsub.s32 %v5464, %v5466
        %v5468 = vrot.slane %v5454, %v5467
        %v5469 = vcombine.low %v5445, %v5461
        %v5470 = vcombine.high %v5445, %v5461
        %v5471 = vcombine.low %v5452, %v5468
        %v5472 = vcombine.high %v5452, %v5468
        %v5473 = vcombine.low %v4425, %v4432
        %v5475 = vunpack.c.l.s4 1983009808
        %v5476 = vunpack.c.0.s8 %v5475
        %v5477 = vlaneseq
        %v5478 = vshrl.u32 %v5477, 7
        %v5479 = vsub.s32 %v5476, %v5478
        %v5480 = vrot.slane %v5473, %v5479
        %v5481 = vcombine.low %v4449, %v4450
        %v5483 = vunpack.c.l.s4 1983009808
        %v5484 = vunpack.c.0.s8 %v5483
        %v5485 = vlaneseq
        %v5486 = vshrl.u32 %v5485, 7
        %v5487 = vsub.s32 %v5484, %v5486
        %v5488 = vrot.slane %v5481, %v5487
        %v5489 = vcombine.low %v4441, %v4448
        %v5491 = vunpack.c.l.s4 1983009808
        %v5492 = vunpack.c.0.s8 %v5491
        %v5493 = vlaneseq
        %v5494 = vshrl.u32 %v5493, 7
        %v5495 = vsub.s32 %v5492, %v5494
        %v5496 = vrot.slane %v5489, %v5495
        %v5497 = vcombine.low %v4451, %v4452
        %v5499 = vunpack.c.l.s4 1983009808
        %v5500 = vunpack.c.0.s8 %v5499
        %v5501 = vlaneseq
        %v5502 = vshrl.u32 %v5501, 7
        %v5503 = vsub.s32 %v5500, %v5502
        %v5504 = vrot.slane %v5497, %v5503
        %v5505 = vcombine.low %v5480, %v5488
        %v5506 = vcombine.high %v5480, %v5488
        %v5508 = vunpack.c.l.s4 1934713408
        %v5509 = vunpack.c.0.s8 %v5508
        %v5510 = vlaneseq
        %v5511 = vshrl.u32 %v5510, 7
        %v5512 = vsub.s32 %v5509, %v5511
        %v5513 = vrot.slane %v5505, %v5512
        %v5515 = vunpack.c.l.s4 1934713408
        %v5516 = vunpack.c.0.s8 %v5515
        %v5517 = vlaneseq
        %v5518 = vshrl.u32 %v5517, 7
        %v5519 = vsub.s32 %v5516, %v5518
        %v5520 = vrot.slane %v5506, %v5519
        %v5521 = vcombine.low %v5496, %v5504
        %v5522 = vcombine.high %v5496, %v5504
        %v5524 = vunpack.c.l.s4 1934713408
        %v5525 = vunpack.c.0.s8 %v5524
        %v5526 = vlaneseq
        %v5527 = vshrl.u32 %v5526, 7
        %v5528 = vsub.s32 %v5525, %v5527
        %v5529 = vrot.slane %v5521, %v5528
        %v5531 = vunpack.c.l.s4 1934713408
        %v5532 = vunpack.c.0.s8 %v5531
        %v5533 = vlaneseq
        %v5534 = vshrl.u32 %v5533, 7
        %v5535 = vsub.s32 %v5532, %v5534
        %v5536 = vrot.slane %v5522, %v5535
        %v5537 = vcombine.low %v5513, %v5529
        %v5538 = vcombine.high %v5513, %v5529
        %v5539 = vcombine.low %v5520, %v5536
        %v5540 = vcombine.high %v5520, %v5536
        %v5541 = vcombine.low %v4493, %v4500
        %v5543 = vunpack.c.l.s4 1983009808
        %v5544 = vunpack.c.0.s8 %v5543
        %v5545 = vlaneseq
        %v5546 = vshrl.u32 %v5545, 7
        %v5547 = vsub.s32 %v5544, %v5546
        %v5548 = vrot.slane %v5541, %v5547
        %v5549 = vcombine.low %v4517, %v4518
        %v5551 = vunpack.c.l.s4 1983009808
        %v5552 = vunpack.c.0.s8 %v5551
        %v5553 = vlaneseq
        %v5554 = vshrl.u32 %v5553, 7
        %v5555 = vsub.s32 %v5552, %v5554
        %v5556 = vrot.slane %v5549, %v5555
        %v5557 = vcombine.low %v4509, %v4516
        %v5559 = vunpack.c.l.s4 1983009808
        %v5560 = vunpack.c.0.s8 %v5559
        %v5561 = vlaneseq
        %v5562 = vshrl.u32 %v5561, 7
        %v5563 = vsub.s32 %v5560, %v5562
        %v5564 = vrot.slane %v5557, %v5563
        %v5565 = vcombine.low %v4519, %v4520
        %v5567 = vunpack.c.l.s4 1983009808
        %v5568 = vunpack.c.0.s8 %v5567
        %v5569 = vlaneseq
        %v5570 = vshrl.u32 %v5569, 7
        %v5571 = vsub.s32 %v5568, %v5570
        %v5572 = vrot.slane %v5565, %v5571
        %v5573 = vcombine.low %v5548, %v5556
        %v5574 = vcombine.high %v5548, %v5556
        %v5576 = vunpack.c.l.s4 1934713408
        %v5577 = vunpack.c.0.s8 %v5576
        %v5578 = vlaneseq
        %v5579 = vshrl.u32 %v5578, 7
        %v5580 = vsub.s32 %v5577, %v5579
        %v5581 = vrot.slane %v5573, %v5580
        %v5583 = vunpack.c.l.s4 1934713408
        %v5584 = vunpack.c.0.s8 %v5583
        %v5585 = vlaneseq
        %v5586 = vshrl.u32 %v5585, 7
        %v5587 = vsub.s32 %v5584, %v5586
        %v5588 = vrot.slane %v5574, %v5587
        %v5589 = vcombine.low %v5564, %v5572
        %v5590 = vcombine.high %v5564, %v5572
        %v5592 = vunpack.c.l.s4 1934713408
        %v5593 = vunpack.c.0.s8 %v5592
        %v5594 = vlaneseq
        %v5595 = vshrl.u32 %v5594, 7
        %v5596 = vsub.s32 %v5593, %v5595
        %v5597 = vrot.slane %v5589, %v5596
        %v5599 = vunpack.c.l.s4 1934713408
        %v5600 = vunpack.c.0.s8 %v5599
        %v5601 = vlaneseq
        %v5602 = vshrl.u32 %v5601, 7
        %v5603 = vsub.s32 %v5600, %v5602
        %v5604 = vrot.slane %v5590, %v5603
        %v5605 = vcombine.low %v5581, %v5597
        %v5606 = vcombine.high %v5581, %v5597
        %v5607 = vcombine.low %v5588, %v5604
        %v5608 = vcombine.high %v5588, %v5604
        %v5609 = vcombine.low %v4561, %v4568
        %v5611 = vunpack.c.l.s4 1983009808
        %v5612 = vunpack.c.0.s8 %v5611
        %v5613 = vlaneseq
        %v5614 = vshrl.u32 %v5613, 7
        %v5615 = vsub.s32 %v5612, %v5614
        %v5616 = vrot.slane %v5609, %v5615
        %v5617 = vcombine.low %v4585, %v4586
        %v5619 = vunpack.c.l.s4 1983009808
        %v5620 = vunpack.c.0.s8 %v5619
        %v5621 = vlaneseq
        %v5622 = vshrl.u32 %v5621, 7
        %v5623 = vsub.s32 %v5620, %v5622
        %v5624 = vrot.slane %v5617, %v5623
        %v5625 = vcombine.low %v4577, %v4584
        %v5627 = vunpack.c.l.s4 1983009808
        %v5628 = vunpack.c.0.s8 %v5627
        %v5629 = vlaneseq
        %v5630 = vshrl.u32 %v5629, 7
        %v5631 = vsub.s32 %v5628, %v5630
        %v5632 = vrot.slane %v5625, %v5631
        %v5633 = vcombine.low %v4587, %v4588
        %v5635 = vunpack.c.l.s4 1983009808
        %v5636 = vunpack.c.0.s8 %v5635
        %v5637 = vlaneseq
        %v5638 = vshrl.u32 %v5637, 7
        %v5639 = vsub.s32 %v5636, %v5638
        %v5640 = vrot.slane %v5633, %v5639
        %v5641 = vcombine.low %v5616, %v5624
        %v5642 = vcombine.high %v5616, %v5624
        %v5644 = vunpack.c.l.s4 1934713408
        %v5645 = vunpack.c.0.s8 %v5644
        %v5646 = vlaneseq
        %v5647 = vshrl.u32 %v5646, 7
        %v5648 = vsub.s32 %v5645, %v5647
        %v5649 = vrot.slane %v5641, %v5648
        %v5651 = vunpack.c.l.s4 1934713408
        %v5652 = vunpack.c.0.s8 %v5651
        %v5653 = vlaneseq
        %v5654 = vshrl.u32 %v5653, 7
        %v5655 = vsub.s32 %v5652, %v5654
        %v5656 = vrot.slane %v5642, %v5655
        %v5657 = vcombine.low %v5632, %v5640
        %v5658 = vcombine.high %v5632, %v5640
        %v5660 = vunpack.c.l.s4 1934713408
        %v5661 = vunpack.c.0.s8 %v5660
        %v5662 = vlaneseq
        %v5663 = vshrl.u32 %v5662, 7
        %v5664 = vsub.s32 %v5661, %v5663
        %v5665 = vrot.slane %v5657, %v5664
        %v5667 = vunpack.c.l.s4 1934713408
        %v5668 = vunpack.c.0.s8 %v5667
        %v5669 = vlaneseq
        %v5670 = vshrl.u32 %v5669, 7
        %v5671 = vsub.s32 %v5668, %v5670
        %v5672 = vrot.slane %v5658, %v5671
        %v5673 = vcombine.low %v5649, %v5665
        %v5674 = vcombine.high %v5649, %v5665
        %v5675 = vcombine.low %v5656, %v5672
        %v5676 = vcombine.high %v5656, %v5672
        %v5677 = vcombine.low %v4629, %v4636
        %v5679 = vunpack.c.l.s4 1983009808
        %v5680 = vunpack.c.0.s8 %v5679
        %v5681 = vlaneseq
        %v5682 = vshrl.u32 %v5681, 7
        %v5683 = vsub.s32 %v5680, %v5682
        %v5684 = vrot.slane %v5677, %v5683
        %v5685 = vcombine.low %v4653, %v4654
        %v5687 = vunpack.c.l.s4 1983009808
        %v5688 = vunpack.c.0.s8 %v5687
        %v5689 = vlaneseq
        %v5690 = vshrl.u32 %v5689, 7
        %v5691 = vsub.s32 %v5688, %v5690
        %v5692 = vrot.slane %v5685, %v5691
        %v5693 = vcombine.low %v4645, %v4652
        %v5695 = vunpack.c.l.s4 1983009808
        %v5696 = vunpack.c.0.s8 %v5695
        %v5697 = vlaneseq
        %v5698 = vshrl.u32 %v5697, 7
        %v5699 = vsub.s32 %v5696, %v5698
        %v5700 = vrot.slane %v5693, %v5699
        %v5701 = vcombine.low %v4655, %v4656
        %v5703 = vunpack.c.l.s4 1983009808
        %v5704 = vunpack.c.0.s8 %v5703
        %v5705 = vlaneseq
        %v5706 = vshrl.u32 %v5705, 7
        %v5707 = vsub.s32 %v5704, %v5706
        %v5708 = vrot.slane %v5701, %v5707
        %v5709 = vcombine.low %v5684, %v5692
        %v5710 = vcombine.high %v5684, %v5692
        %v5712 = vunpack.c.l.s4 1934713408
        %v5713 = vunpack.c.0.s8 %v5712
        %v5714 = vlaneseq
        %v5715 = vshrl.u32 %v5714, 7
        %v5716 = vsub.s32 %v5713, %v5715
        %v5717 = vrot.slane %v5709, %v5716
        %v5719 = vunpack.c.l.s4 1934713408
        %v5720 = vunpack.c.0.s8 %v5719
        %v5721 = vlaneseq
        %v5722 = vshrl.u32 %v5721, 7
        %v5723 = vsub.s32 %v5720, %v5722
        %v5724 = vrot.slane %v5710, %v5723
        %v5725 = vcombine.low %v5700, %v5708
        %v5726 = vcombine.high %v5700, %v5708
        %v5728 = vunpack.c.l.s4 1934713408
        %v5729 = vunpack.c.0.s8 %v5728
        %v5730 = vlaneseq
        %v5731 = vshrl.u32 %v5730, 7
        %v5732 = vsub.s32 %v5729, %v5731
        %v5733 = vrot.slane %v5725, %v5732
        %v5735 = vunpack.c.l.s4 1934713408
        %v5736 = vunpack.c.0.s8 %v5735
        %v5737 = vlaneseq
        %v5738 = vshrl.u32 %v5737, 7
        %v5739 = vsub.s32 %v5736, %v5738
        %v5740 = vrot.slane %v5726, %v5739
        %v5741 = vcombine.low %v5717, %v5733
        %v5742 = vcombine.high %v5717, %v5733
        %v5743 = vcombine.low %v5724, %v5740
        %v5744 = vcombine.high %v5724, %v5740
        %v5745 = vcombine.low %v4697, %v4704
        %v5747 = vunpack.c.l.s4 1983009808
        %v5748 = vunpack.c.0.s8 %v5747
        %v5749 = vlaneseq
        %v5750 = vshrl.u32 %v5749, 7
        %v5751 = vsub.s32 %v5748, %v5750
        %v5752 = vrot.slane %v5745, %v5751
        %v5753 = vcombine.low %v4721, %v4722
        %v5755 = vunpack.c.l.s4 1983009808
        %v5756 = vunpack.c.0.s8 %v5755
        %v5757 = vlaneseq
        %v5758 = vshrl.u32 %v5757, 7
        %v5759 = vsub.s32 %v5756, %v5758
        %v5760 = vrot.slane %v5753, %v5759
        %v5761 = vcombine.low %v4713, %v4720
        %v5763 = vunpack.c.l.s4 1983009808
        %v5764 = vunpack.c.0.s8 %v5763
        %v5765 = vlaneseq
        %v5766 = vshrl.u32 %v5765, 7
        %v5767 = vsub.s32 %v5764, %v5766
        %v5768 = vrot.slane %v5761, %v5767
        %v5769 = vcombine.low %v4723, %v4724
        %v5771 = vunpack.c.l.s4 1983009808
        %v5772 = vunpack.c.0.s8 %v5771
        %v5773 = vlaneseq
        %v5774 = vshrl.u32 %v5773, 7
        %v5775 = vsub.s32 %v5772, %v5774
        %v5776 = vrot.slane %v5769, %v5775
        %v5777 = vcombine.low %v5752, %v5760
        %v5778 = vcombine.high %v5752, %v5760
        %v5780 = vunpack.c.l.s4 1934713408
        %v5781 = vunpack.c.0.s8 %v5780
        %v5782 = vlaneseq
        %v5783 = vshrl.u32 %v5782, 7
        %v5784 = vsub.s32 %v5781, %v5783
        %v5785 = vrot.slane %v5777, %v5784
        %v5787 = vunpack.c.l.s4 1934713408
        %v5788 = vunpack.c.0.s8 %v5787
        %v5789 = vlaneseq
        %v5790 = vshrl.u32 %v5789, 7
        %v5791 = vsub.s32 %v5788, %v5790
        %v5792 = vrot.slane %v5778, %v5791
        %v5793 = vcombine.low %v5768, %v5776
        %v5794 = vcombine.high %v5768, %v5776
        %v5796 = vunpack.c.l.s4 1934713408
        %v5797 = vunpack.c.0.s8 %v5796
        %v5798 = vlaneseq
        %v5799 = vshrl.u32 %v5798, 7
        %v5800 = vsub.s32 %v5797, %v5799
        %v5801 = vrot.slane %v5793, %v5800
        %v5803 = vunpack.c.l.s4 1934713408
        %v5804 = vunpack.c.0.s8 %v5803
        %v5805 = vlaneseq
        %v5806 = vshrl.u32 %v5805, 7
        %v5807 = vsub.s32 %v5804, %v5806
        %v5808 = vrot.slane %v5794, %v5807
        %v5809 = vcombine.low %v5785, %v5801
        %v5810 = vcombine.high %v5785, %v5801
        %v5811 = vcombine.low %v5792, %v5808
        %v5812 = vcombine.high %v5792, %v5808
        %v5813 = vcombine.low %v4765, %v4772
        %v5815 = vunpack.c.l.s4 1983009808
        %v5816 = vunpack.c.0.s8 %v5815
        %v5817 = vlaneseq
        %v5818 = vshrl.u32 %v5817, 7
        %v5819 = vsub.s32 %v5816, %v5818
        %v5820 = vrot.slane %v5813, %v5819
        %v5821 = vcombine.low %v4789, %v4790
        %v5823 = vunpack.c.l.s4 1983009808
        %v5824 = vunpack.c.0.s8 %v5823
        %v5825 = vlaneseq
        %v5826 = vshrl.u32 %v5825, 7
        %v5827 = vsub.s32 %v5824, %v5826
        %v5828 = vrot.slane %v5821, %v5827
        %v5829 = vcombine.low %v4781, %v4788
        %v5831 = vunpack.c.l.s4 1983009808
        %v5832 = vunpack.c.0.s8 %v5831
        %v5833 = vlaneseq
        %v5834 = vshrl.u32 %v5833, 7
        %v5835 = vsub.s32 %v5832, %v5834
        %v5836 = vrot.slane %v5829, %v5835
        %v5837 = vcombine.low %v4791, %v4792
        %v5839 = vunpack.c.l.s4 1983009808
        %v5840 = vunpack.c.0.s8 %v5839
        %v5841 = vlaneseq
        %v5842 = vshrl.u32 %v5841, 7
        %v5843 = vsub.s32 %v5840, %v5842
        %v5844 = vrot.slane %v5837, %v5843
        %v5845 = vcombine.low %v5820, %v5828
        %v5846 = vcombine.high %v5820, %v5828
        %v5848 = vunpack.c.l.s4 1934713408
        %v5849 = vunpack.c.0.s8 %v5848
        %v5850 = vlaneseq
        %v5851 = vshrl.u32 %v5850, 7
        %v5852 = vsub.s32 %v5849, %v5851
        %v5853 = vrot.slane %v5845, %v5852
        %v5855 = vunpack.c.l.s4 1934713408
        %v5856 = vunpack.c.0.s8 %v5855
        %v5857 = vlaneseq
        %v5858 = vshrl.u32 %v5857, 7
        %v5859 = vsub.s32 %v5856, %v5858
        %v5860 = vrot.slane %v5846, %v5859
        %v5861 = vcombine.low %v5836, %v5844
        %v5862 = vcombine.high %v5836, %v5844
        %v5864 = vunpack.c.l.s4 1934713408
        %v5865 = vunpack.c.0.s8 %v5864
        %v5866 = vlaneseq
        %v5867 = vshrl.u32 %v5866, 7
        %v5868 = vsub.s32 %v5865, %v5867
        %v5869 = vrot.slane %v5861, %v5868
        %v5871 = vunpack.c.l.s4 1934713408
        %v5872 = vunpack.c.0.s8 %v5871
        %v5873 = vlaneseq
        %v5874 = vshrl.u32 %v5873, 7
        %v5875 = vsub.s32 %v5872, %v5874
        %v5876 = vrot.slane %v5862, %v5875
        %v5877 = vcombine.low %v5853, %v5869
        %v5878 = vcombine.high %v5853, %v5869
        %v5879 = vcombine.low %v5860, %v5876
        %v5880 = vcombine.high %v5860, %v5876
        %v5881 = vcombine.low %v4833, %v4840
        %v5883 = vunpack.c.l.s4 1983009808
        %v5884 = vunpack.c.0.s8 %v5883
        %v5885 = vlaneseq
        %v5886 = vshrl.u32 %v5885, 7
        %v5887 = vsub.s32 %v5884, %v5886
        %v5888 = vrot.slane %v5881, %v5887
        %v5889 = vcombine.low %v4857, %v4858
        %v5891 = vunpack.c.l.s4 1983009808
        %v5892 = vunpack.c.0.s8 %v5891
        %v5893 = vlaneseq
        %v5894 = vshrl.u32 %v5893, 7
        %v5895 = vsub.s32 %v5892, %v5894
        %v5896 = vrot.slane %v5889, %v5895
        %v5897 = vcombine.low %v4849, %v4856
        %v5899 = vunpack.c.l.s4 1983009808
        %v5900 = vunpack.c.0.s8 %v5899
        %v5901 = vlaneseq
        %v5902 = vshrl.u32 %v5901, 7
        %v5903 = vsub.s32 %v5900, %v5902
        %v5904 = vrot.slane %v5897, %v5903
        %v5905 = vcombine.low %v4859, %v4860
        %v5907 = vunpack.c.l.s4 1983009808
        %v5908 = vunpack.c.0.s8 %v5907
        %v5909 = vlaneseq
        %v5910 = vshrl.u32 %v5909, 7
        %v5911 = vsub.s32 %v5908, %v5910
        %v5912 = vrot.slane %v5905, %v5911
        %v5913 = vcombine.low %v5888, %v5896
        %v5914 = vcombine.high %v5888, %v5896
        %v5916 = vunpack.c.l.s4 1934713408
        %v5917 = vunpack.c.0.s8 %v5916
        %v5918 = vlaneseq
        %v5919 = vshrl.u32 %v5918, 7
        %v5920 = vsub.s32 %v5917, %v5919
        %v5921 = vrot.slane %v5913, %v5920
        %v5923 = vunpack.c.l.s4 1934713408
        %v5924 = vunpack.c.0.s8 %v5923
        %v5925 = vlaneseq
        %v5926 = vshrl.u32 %v5925, 7
        %v5927 = vsub.s32 %v5924, %v5926
        %v5928 = vrot.slane %v5914, %v5927
        %v5929 = vcombine.low %v5904, %v5912
        %v5930 = vcombine.high %v5904, %v5912
        %v5932 = vunpack.c.l.s4 1934713408
        %v5933 = vunpack.c.0.s8 %v5932
        %v5934 = vlaneseq
        %v5935 = vshrl.u32 %v5934, 7
        %v5936 = vsub.s32 %v5933, %v5935
        %v5937 = vrot.slane %v5929, %v5936
        %v5939 = vunpack.c.l.s4 1934713408
        %v5940 = vunpack.c.0.s8 %v5939
        %v5941 = vlaneseq
        %v5942 = vshrl.u32 %v5941, 7
        %v5943 = vsub.s32 %v5940, %v5942
        %v5944 = vrot.slane %v5930, %v5943
        %v5945 = vcombine.low %v5921, %v5937
        %v5946 = vcombine.high %v5921, %v5937
        %v5947 = vcombine.low %v5928, %v5944
        %v5948 = vcombine.high %v5928, %v5944
        %v5949 = vcombine.low %v4901, %v4908
        %v5951 = vunpack.c.l.s4 1983009808
        %v5952 = vunpack.c.0.s8 %v5951
        %v5953 = vlaneseq
        %v5954 = vshrl.u32 %v5953, 7
        %v5955 = vsub.s32 %v5952, %v5954
        %v5956 = vrot.slane %v5949, %v5955
        %v5957 = vcombine.low %v4925, %v4926
        %v5959 = vunpack.c.l.s4 1983009808
        %v5960 = vunpack.c.0.s8 %v5959
        %v5961 = vlaneseq
        %v5962 = vshrl.u32 %v5961, 7
        %v5963 = vsub.s32 %v5960, %v5962
        %v5964 = vrot.slane %v5957, %v5963
        %v5965 = vcombine.low %v4917, %v4924
        %v5967 = vunpack.c.l.s4 1983009808
        %v5968 = vunpack.c.0.s8 %v5967
        %v5969 = vlaneseq
        %v5970 = vshrl.u32 %v5969, 7
        %v5971 = vsub.s32 %v5968, %v5970
        %v5972 = vrot.slane %v5965, %v5971
        %v5973 = vcombine.low %v4927, %v4928
        %v5975 = vunpack.c.l.s4 1983009808
        %v5976 = vunpack.c.0.s8 %v5975
        %v5977 = vlaneseq
        %v5978 = vshrl.u32 %v5977, 7
        %v5979 = vsub.s32 %v5976, %v5978
        %v5980 = vrot.slane %v5973, %v5979
        %v5981 = vcombine.low %v5956, %v5964
        %v5982 = vcombine.high %v5956, %v5964
        %v5984 = vunpack.c.l.s4 1934713408
        %v5985 = vunpack.c.0.s8 %v5984
        %v5986 = vlaneseq
        %v5987 = vshrl.u32 %v5986, 7
        %v5988 = vsub.s32 %v5985, %v5987
        %v5989 = vrot.slane %v5981, %v5988
        %v5991 = vunpack.c.l.s4 1934713408
        %v5992 = vunpack.c.0.s8 %v5991
        %v5993 = vlaneseq
        %v5994 = vshrl.u32 %v5993, 7
        %v5995 = vsub.s32 %v5992, %v5994
        %v5996 = vrot.slane %v5982, %v5995
        %v5997 = vcombine.low %v5972, %v5980
        %v5998 = vcombine.high %v5972, %v5980
        %v6000 = vunpack.c.l.s4 1934713408
        %v6001 = vunpack.c.0.s8 %v6000
        %v6002 = vlaneseq
        %v6003 = vshrl.u32 %v6002, 7
        %v6004 = vsub.s32 %v6001, %v6003
        %v6005 = vrot.slane %v5997, %v6004
        %v6007 = vunpack.c.l.s4 1934713408
        %v6008 = vunpack.c.0.s8 %v6007
        %v6009 = vlaneseq
        %v6010 = vshrl.u32 %v6009, 7
        %v6011 = vsub.s32 %v6008, %v6010
        %v6012 = vrot.slane %v5998, %v6011
        %v6013 = vcombine.low %v5989, %v6005
        %v6014 = vcombine.high %v5989, %v6005
        %v6015 = vcombine.low %v5996, %v6012
        %v6016 = vcombine.high %v5996, %v6012
        %v6017 = vpack.c.bf16 %v5061, %v4993
        %v6018 = vpack.c.bf16 %v5197, %v5129
        %v6019 = vpack.c.bf16 %v5333, %v5265
        %v6020 = vpack.c.bf16 %v5469, %v5401
        %v6021 = vpack.c.bf16 %v5605, %v5537
        %v6022 = vpack.c.bf16 %v5741, %v5673
        %v6023 = vpack.c.bf16 %v5877, %v5809
        %v6024 = vpack.c.bf16 %v6013, %v5945
        %v6025 = vpack.c.bf16 %v5062, %v4994
        %v6026 = vpack.c.bf16 %v5198, %v5130
        %v6027 = vpack.c.bf16 %v5334, %v5266
        %v6028 = vpack.c.bf16 %v5470, %v5402
        %v6029 = vpack.c.bf16 %v5606, %v5538
        %v6030 = vpack.c.bf16 %v5742, %v5674
        %v6031 = vpack.c.bf16 %v5878, %v5810
        %v6032 = vpack.c.bf16 %v6014, %v5946
        %v6033 = vpack.c.bf16 %v5063, %v4995
        %v6034 = vpack.c.bf16 %v5199, %v5131
        %v6035 = vpack.c.bf16 %v5335, %v5267
        %v6036 = vpack.c.bf16 %v5471, %v5403
        %v6037 = vpack.c.bf16 %v5607, %v5539
        %v6038 = vpack.c.bf16 %v5743, %v5675
        %v6039 = vpack.c.bf16 %v5879, %v5811
        %v6040 = vpack.c.bf16 %v6015, %v5947
        %v6041 = vpack.c.bf16 %v5064, %v4996
        %v6042 = vpack.c.bf16 %v5200, %v5132
        %v6043 = vpack.c.bf16 %v5336, %v5268
        %v6044 = vpack.c.bf16 %v5472, %v5404
        %v6045 = vpack.c.bf16 %v5608, %v5540
        %v6046 = vpack.c.bf16 %v5744, %v5676
        %v6047 = vpack.c.bf16 %v5880, %v5812
        %v6048 = vpack.c.bf16 %v6016, %v5948
        %v6081 = vunpack.c.l.b16 %v6017
        %v6082 = vunpack.c.h.b16 %v6017
        %v6083 = vunpack.c.l.b16 %v6018
        %v6084 = vunpack.c.h.b16 %v6018
        %v6085 = vunpack.c.l.b16 %v6019
        %v6086 = vunpack.c.h.b16 %v6019
        %v6087 = vunpack.c.l.b16 %v6020
        %v6088 = vunpack.c.h.b16 %v6020
        %v6089 = vunpack.c.l.b16 %v6021
        %v6090 = vunpack.c.h.b16 %v6021
        %v6091 = vunpack.c.l.b16 %v6022
        %v6092 = vunpack.c.h.b16 %v6022
        %v6093 = vunpack.c.l.b16 %v6023
        %v6094 = vunpack.c.h.b16 %v6023
        %v6095 = vunpack.c.l.b16 %v6024
        %v6096 = vunpack.c.h.b16 %v6024
        %v6097 = vunpack.c.l.b16 %v6025
        %v6098 = vunpack.c.h.b16 %v6025
        %v6099 = vunpack.c.l.b16 %v6026
        %v6100 = vunpack.c.h.b16 %v6026
        %v6101 = vunpack.c.l.b16 %v6027
        %v6102 = vunpack.c.h.b16 %v6027
        %v6103 = vunpack.c.l.b16 %v6028
        %v6104 = vunpack.c.h.b16 %v6028
        %v6105 = vunpack.c.l.b16 %v6029
        %v6106 = vunpack.c.h.b16 %v6029
        %v6107 = vunpack.c.l.b16 %v6030
        %v6108 = vunpack.c.h.b16 %v6030
        %v6109 = vunpack.c.l.b16 %v6031
        %v6110 = vunpack.c.h.b16 %v6031
        %v6111 = vunpack.c.l.b16 %v6032
        %v6112 = vunpack.c.h.b16 %v6032
        %v6113 = vunpack.c.l.b16 %v6033
        %v6114 = vunpack.c.h.b16 %v6033
        %v6115 = vunpack.c.l.b16 %v6034
        %v6116 = vunpack.c.h.b16 %v6034
        %v6117 = vunpack.c.l.b16 %v6035
        %v6118 = vunpack.c.h.b16 %v6035
        %v6119 = vunpack.c.l.b16 %v6036
        %v6120 = vunpack.c.h.b16 %v6036
        %v6121 = vunpack.c.l.b16 %v6037
        %v6122 = vunpack.c.h.b16 %v6037
        %v6123 = vunpack.c.l.b16 %v6038
        %v6124 = vunpack.c.h.b16 %v6038
        %v6125 = vunpack.c.l.b16 %v6039
        %v6126 = vunpack.c.h.b16 %v6039
        %v6127 = vunpack.c.l.b16 %v6040
        %v6128 = vunpack.c.h.b16 %v6040
        %v6129 = vunpack.c.l.b16 %v6041
        %v6130 = vunpack.c.h.b16 %v6041
        %v6131 = vunpack.c.l.b16 %v6042
        %v6132 = vunpack.c.h.b16 %v6042
        %v6133 = vunpack.c.l.b16 %v6043
        %v6134 = vunpack.c.h.b16 %v6043
        %v6135 = vunpack.c.l.b16 %v6044
        %v6136 = vunpack.c.h.b16 %v6044
        %v6137 = vunpack.c.l.b16 %v6045
        %v6138 = vunpack.c.h.b16 %v6045
        %v6139 = vunpack.c.l.b16 %v6046
        %v6140 = vunpack.c.h.b16 %v6046
        %v6141 = vunpack.c.l.b16 %v6047
        %v6142 = vunpack.c.h.b16 %v6047
        %v6143 = vunpack.c.l.b16 %v6048
        %v6144 = vunpack.c.h.b16 %v6048
        %v6145 = vpack.c.b16 %v6081, %v6081
        %v6146 = vpack.c.b16 %v6082, %v6082
        %v6147 = vpack.c.b16 %v6083, %v6083
        %v6148 = vpack.c.b16 %v6084, %v6084
        %v6149 = vpack.c.b16 %v6085, %v6085
        %v6150 = vpack.c.b16 %v6086, %v6086
        %v6151 = vpack.c.b16 %v6087, %v6087
        %v6152 = vpack.c.b16 %v6088, %v6088
        %v6153 = vpack.c.b16 %v6089, %v6089
        %v6154 = vpack.c.b16 %v6090, %v6090
        %v6155 = vpack.c.b16 %v6091, %v6091
        %v6156 = vpack.c.b16 %v6092, %v6092
        %v6157 = vpack.c.b16 %v6093, %v6093
        %v6158 = vpack.c.b16 %v6094, %v6094
        %v6159 = vpack.c.b16 %v6095, %v6095
        %v6160 = vpack.c.b16 %v6096, %v6096
        %v6161 = vpack.c.b16 %v6097, %v6097
        %v6162 = vpack.c.b16 %v6098, %v6098
        %v6163 = vpack.c.b16 %v6099, %v6099
        %v6164 = vpack.c.b16 %v6100, %v6100
        %v6165 = vpack.c.b16 %v6101, %v6101
        %v6166 = vpack.c.b16 %v6102, %v6102
        %v6167 = vpack.c.b16 %v6103, %v6103
        %v6168 = vpack.c.b16 %v6104, %v6104
        %v6169 = vpack.c.b16 %v6105, %v6105
        %v6170 = vpack.c.b16 %v6106, %v6106
        %v6171 = vpack.c.b16 %v6107, %v6107
        %v6172 = vpack.c.b16 %v6108, %v6108
        %v6173 = vpack.c.b16 %v6109, %v6109
        %v6174 = vpack.c.b16 %v6110, %v6110
        %v6175 = vpack.c.b16 %v6111, %v6111
        %v6176 = vpack.c.b16 %v6112, %v6112
        %v6177 = vpack.c.b16 %v6113, %v6113
        %v6178 = vpack.c.b16 %v6114, %v6114
        %v6179 = vpack.c.b16 %v6115, %v6115
        %v6180 = vpack.c.b16 %v6116, %v6116
        %v6181 = vpack.c.b16 %v6117, %v6117
        %v6182 = vpack.c.b16 %v6118, %v6118
        %v6183 = vpack.c.b16 %v6119, %v6119
        %v6184 = vpack.c.b16 %v6120, %v6120
        %v6185 = vpack.c.b16 %v6121, %v6121
        %v6186 = vpack.c.b16 %v6122, %v6122
        %v6187 = vpack.c.b16 %v6123, %v6123
        %v6188 = vpack.c.b16 %v6124, %v6124
        %v6189 = vpack.c.b16 %v6125, %v6125
        %v6190 = vpack.c.b16 %v6126, %v6126
        %v6191 = vpack.c.b16 %v6127, %v6127
        %v6192 = vpack.c.b16 %v6128, %v6128
        %v6193 = vpack.c.b16 %v6129, %v6129
        %v6194 = vpack.c.b16 %v6130, %v6130
        %v6195 = vpack.c.b16 %v6131, %v6131
        %v6196 = vpack.c.b16 %v6132, %v6132
        %v6197 = vpack.c.b16 %v6133, %v6133
        %v6198 = vpack.c.b16 %v6134, %v6134
        %v6199 = vpack.c.b16 %v6135, %v6135
        %v6200 = vpack.c.b16 %v6136, %v6136
        %v6201 = vpack.c.b16 %v6137, %v6137
        %v6202 = vpack.c.b16 %v6138, %v6138
        %v6203 = vpack.c.b16 %v6139, %v6139
        %v6204 = vpack.c.b16 %v6140, %v6140
        %v6205 = vpack.c.b16 %v6141, %v6141
        %v6206 = vpack.c.b16 %v6142, %v6142
        %v6207 = vpack.c.b16 %v6143, %v6143
        %v6208 = vpack.c.b16 %v6144, %v6144
        %6273 = vst.msk [vmem:[%s377] sm:$0xf] %vm3616, %v6145
        %6274 = vst.msk [vmem:[%s377 + $0x4] sm:$0xf] %vm3616, %v6146
        %6275 = vst.msk [vmem:[%s377 + $0x8] sm:$0xf] %vm3616, %v6147
        %6276 = vst.msk [vmem:[%s377 + $0xc] sm:$0xf] %vm3616, %v6148
        %6277 = vst.msk [vmem:[%s377 + $0x10] sm:$0xf] %vm3616, %v6149
        %6278 = vst.msk [vmem:[%s377 + $0x14] sm:$0xf] %vm3616, %v6150
        %6279 = vst.msk [vmem:[%s377 + $0x18] sm:$0xf] %vm3616, %v6151
        %6280 = vst.msk [vmem:[%s377 + $0x1c] sm:$0xf] %vm3616, %v6152
        %6281 = vst.msk [vmem:[%s377 + $0x20] sm:$0xf] %vm3616, %v6153
        %6282 = vst.msk [vmem:[%s377 + $0x24] sm:$0xf] %vm3616, %v6154
        %6283 = vst.msk [vmem:[%s377 + $0x28] sm:$0xf] %vm3616, %v6155
        %6284 = vst.msk [vmem:[%s377 + $0x2c] sm:$0xf] %vm3616, %v6156
        %6285 = vst.msk [vmem:[%s377 + $0x30] sm:$0xf] %vm3616, %v6157
        %6286 = vst.msk [vmem:[%s377 + $0x34] sm:$0xf] %vm3616, %v6158
        %6287 = vst.msk [vmem:[%s377 + $0x38] sm:$0xf] %vm3616, %v6159
        %6288 = vst.msk [vmem:[%s377 + $0x3c] sm:$0xf] %vm3616, %v6160
        %6289 = vst.msk [vmem:[%s377 + $0x40] sm:$0xf] %vm3616, %v6161
        %6290 = vst.msk [vmem:[%s377 + $0x44] sm:$0xf] %vm3616, %v6162
        %6291 = vst.msk [vmem:[%s377 + $0x48] sm:$0xf] %vm3616, %v6163
        %6292 = vst.msk [vmem:[%s377 + $0x4c] sm:$0xf] %vm3616, %v6164
        %6293 = vst.msk [vmem:[%s377 + $0x50] sm:$0xf] %vm3616, %v6165
        %6294 = vst.msk [vmem:[%s377 + $0x54] sm:$0xf] %vm3616, %v6166
        %6295 = vst.msk [vmem:[%s377 + $0x58] sm:$0xf] %vm3616, %v6167
        %6296 = vst.msk [vmem:[%s377 + $0x5c] sm:$0xf] %vm3616, %v6168
        %6297 = vst.msk [vmem:[%s377 + $0x60] sm:$0xf] %vm3616, %v6169
        %6298 = vst.msk [vmem:[%s377 + $0x64] sm:$0xf] %vm3616, %v6170
        %6299 = vst.msk [vmem:[%s377 + $0x68] sm:$0xf] %vm3616, %v6171
        %6300 = vst.msk [vmem:[%s377 + $0x6c] sm:$0xf] %vm3616, %v6172
        %6301 = vst.msk [vmem:[%s377 + $0x70] sm:$0xf] %vm3616, %v6173
        %6302 = vst.msk [vmem:[%s377 + $0x74] sm:$0xf] %vm3616, %v6174
        %6303 = vst.msk [vmem:[%s377 + $0x78] sm:$0xf] %vm3616, %v6175
        %6304 = vst.msk [vmem:[%s377 + $0x7c] sm:$0xf] %vm3616, %v6176
        %6305 = vst.msk [vmem:[%s377 + $0x80] sm:$0xf] %vm3616, %v6177
        %6306 = vst.msk [vmem:[%s377 + $0x84] sm:$0xf] %vm3616, %v6178
        %6307 = vst.msk [vmem:[%s377 + $0x88] sm:$0xf] %vm3616, %v6179
        %6308 = vst.msk [vmem:[%s377 + $0x8c] sm:$0xf] %vm3616, %v6180
        %6309 = vst.msk [vmem:[%s377 + $0x90] sm:$0xf] %vm3616, %v6181
        %6310 = vst.msk [vmem:[%s377 + $0x94] sm:$0xf] %vm3616, %v6182
        %6311 = vst.msk [vmem:[%s377 + $0x98] sm:$0xf] %vm3616, %v6183
        %6312 = vst.msk [vmem:[%s377 + $0x9c] sm:$0xf] %vm3616, %v6184
        %6313 = vst.msk [vmem:[%s377 + $0xa0] sm:$0xf] %vm3616, %v6185
        %6314 = vst.msk [vmem:[%s377 + $0xa4] sm:$0xf] %vm3616, %v6186
        %6315 = vst.msk [vmem:[%s377 + $0xa8] sm:$0xf] %vm3616, %v6187
        %6316 = vst.msk [vmem:[%s377 + $0xac] sm:$0xf] %vm3616, %v6188
        %6317 = vst.msk [vmem:[%s377 + $0xb0] sm:$0xf] %vm3616, %v6189
        %6318 = vst.msk [vmem:[%s377 + $0xb4] sm:$0xf] %vm3616, %v6190
        %6319 = vst.msk [vmem:[%s377 + $0xb8] sm:$0xf] %vm3616, %v6191
        %6320 = vst.msk [vmem:[%s377 + $0xbc] sm:$0xf] %vm3616, %v6192
        %6321 = vst.msk [vmem:[%s377 + $0xc0] sm:$0xf] %vm3616, %v6193
        %6322 = vst.msk [vmem:[%s377 + $0xc4] sm:$0xf] %vm3616, %v6194
        %6323 = vst.msk [vmem:[%s377 + $0xc8] sm:$0xf] %vm3616, %v6195
        %6324 = vst.msk [vmem:[%s377 + $0xcc] sm:$0xf] %vm3616, %v6196
        %6325 = vst.msk [vmem:[%s377 + $0xd0] sm:$0xf] %vm3616, %v6197
        %6326 = vst.msk [vmem:[%s377 + $0xd4] sm:$0xf] %vm3616, %v6198
        %6327 = vst.msk [vmem:[%s377 + $0xd8] sm:$0xf] %vm3616, %v6199
        %6328 = vst.msk [vmem:[%s377 + $0xdc] sm:$0xf] %vm3616, %v6200
        %6329 = vst.msk [vmem:[%s377 + $0xe0] sm:$0xf] %vm3616, %v6201
        %6330 = vst.msk [vmem:[%s377 + $0xe4] sm:$0xf] %vm3616, %v6202
        %6331 = vst.msk [vmem:[%s377 + $0xe8] sm:$0xf] %vm3616, %v6203
        %6332 = vst.msk [vmem:[%s377 + $0xec] sm:$0xf] %vm3616, %v6204
        %6333 = vst.msk [vmem:[%s377 + $0xf0] sm:$0xf] %vm3616, %v6205
        %6334 = vst.msk [vmem:[%s377 + $0xf4] sm:$0xf] %vm3616, %v6206
        %6335 = vst.msk [vmem:[%s377 + $0xf8] sm:$0xf] %vm3616, %v6207
        %6336 = vst.msk [vmem:[%s377 + $0xfc] sm:$0xf] %vm3616, %v6208
        %6353 = vrot.lane.b32.xlu0 %v962, 96
        %v6354 = vpop.permute.xlu0 %6353
        %6355 = vrot.lane.b32.xlu0 %v965, 96
        %v6356 = vpop.permute.xlu0 %6355
        %6357 = vrot.lane.b32.xlu0 %v970, 96
        %v6358 = vpop.permute.xlu0 %6357
        %6359 = vrot.lane.b32.xlu0 %v973, 96
        %v6360 = vpop.permute.xlu0 %6359
        %6361 = vrot.lane.b32.xlu0 %v978, 96
        %v6362 = vpop.permute.xlu0 %6361
        %6363 = vrot.lane.b32.xlu0 %v981, 96
        %v6364 = vpop.permute.xlu0 %6363
        %6365 = vrot.lane.b32.xlu0 %v986, 96
        %v6366 = vpop.permute.xlu0 %6365
        %6367 = vrot.lane.b32.xlu0 %v989, 96
        %v6368 = vpop.permute.xlu0 %6367
        %6369 = vrot.lane.b32.xlu0 %v994, 96
        %v6370 = vpop.permute.xlu0 %6369
        %6371 = vrot.lane.b32.xlu0 %v997, 96
        %v6372 = vpop.permute.xlu0 %6371
        %6373 = vrot.lane.b32.xlu0 %v1002, 96
        %v6374 = vpop.permute.xlu0 %6373
        %6375 = vrot.lane.b32.xlu0 %v1005, 96
        %v6376 = vpop.permute.xlu0 %6375
        %6377 = vrot.lane.b32.xlu0 %v1010, 96
        %v6378 = vpop.permute.xlu0 %6377
        %6379 = vrot.lane.b32.xlu0 %v1013, 96
        %v6380 = vpop.permute.xlu0 %6379
        %6381 = vrot.lane.b32.xlu0 %v1018, 96
        %v6382 = vpop.permute.xlu0 %6381
        %6383 = vrot.lane.b32.xlu0 %v1021, 96
        %v6384 = vpop.permute.xlu0 %6383
        %6401 = vrot.lane.b32.xlu0 %v962, 64
        %v6402 = vpop.permute.xlu0 %6401
        %6403 = vrot.lane.b32.xlu0 %v965, 64
        %v6404 = vpop.permute.xlu0 %6403
        %6405 = vrot.lane.b32.xlu0 %v970, 64
        %v6406 = vpop.permute.xlu0 %6405
        %6407 = vrot.lane.b32.xlu0 %v973, 64
        %v6408 = vpop.permute.xlu0 %6407
        %6409 = vrot.lane.b32.xlu0 %v978, 64
        %v6410 = vpop.permute.xlu0 %6409
        %6411 = vrot.lane.b32.xlu0 %v981, 64
        %v6412 = vpop.permute.xlu0 %6411
        %6413 = vrot.lane.b32.xlu0 %v986, 64
        %v6414 = vpop.permute.xlu0 %6413
        %6415 = vrot.lane.b32.xlu0 %v989, 64
        %v6416 = vpop.permute.xlu0 %6415
        %6417 = vrot.lane.b32.xlu0 %v994, 64
        %v6418 = vpop.permute.xlu0 %6417
        %6419 = vrot.lane.b32.xlu0 %v997, 64
        %v6420 = vpop.permute.xlu0 %6419
        %6421 = vrot.lane.b32.xlu0 %v1002, 64
        %v6422 = vpop.permute.xlu0 %6421
        %6423 = vrot.lane.b32.xlu0 %v1005, 64
        %v6424 = vpop.permute.xlu0 %6423
        %6425 = vrot.lane.b32.xlu0 %v1010, 64
        %v6426 = vpop.permute.xlu0 %6425
        %6427 = vrot.lane.b32.xlu0 %v1013, 64
        %v6428 = vpop.permute.xlu0 %6427
        %6429 = vrot.lane.b32.xlu0 %v1018, 64
        %v6430 = vpop.permute.xlu0 %6429
        %6431 = vrot.lane.b32.xlu0 %v1021, 64
        %v6432 = vpop.permute.xlu0 %6431
        %6449 = vrot.lane.b32.xlu0 %v962, 32
        %v6450 = vpop.permute.xlu0 %6449
        %6451 = vrot.lane.b32.xlu0 %v965, 32
        %v6452 = vpop.permute.xlu0 %6451
        %6453 = vrot.lane.b32.xlu0 %v970, 32
        %v6454 = vpop.permute.xlu0 %6453
        %6455 = vrot.lane.b32.xlu0 %v973, 32
        %v6456 = vpop.permute.xlu0 %6455
        %6457 = vrot.lane.b32.xlu0 %v978, 32
        %v6458 = vpop.permute.xlu0 %6457
        %6459 = vrot.lane.b32.xlu0 %v981, 32
        %v6460 = vpop.permute.xlu0 %6459
        %6461 = vrot.lane.b32.xlu0 %v986, 32
        %v6462 = vpop.permute.xlu0 %6461
        %6463 = vrot.lane.b32.xlu0 %v989, 32
        %v6464 = vpop.permute.xlu0 %6463
        %6465 = vrot.lane.b32.xlu0 %v994, 32
        %v6466 = vpop.permute.xlu0 %6465
        %6467 = vrot.lane.b32.xlu0 %v997, 32
        %v6468 = vpop.permute.xlu0 %6467
        %6469 = vrot.lane.b32.xlu0 %v1002, 32
        %v6470 = vpop.permute.xlu0 %6469
        %6471 = vrot.lane.b32.xlu0 %v1005, 32
        %v6472 = vpop.permute.xlu0 %6471
        %6473 = vrot.lane.b32.xlu0 %v1010, 32
        %v6474 = vpop.permute.xlu0 %6473
        %6475 = vrot.lane.b32.xlu0 %v1013, 32
        %v6476 = vpop.permute.xlu0 %6475
        %6477 = vrot.lane.b32.xlu0 %v1018, 32
        %v6478 = vpop.permute.xlu0 %6477
        %6479 = vrot.lane.b32.xlu0 %v1021, 32
        %v6480 = vpop.permute.xlu0 %6479
        %v6497 = vcombine.low %v962, %v6402
        %v6498 = vcombine.high %v962, %v6402
        %v6500 = vunpack.c.l.s4 1983009808
        %v6501 = vunpack.c.0.s8 %v6500
        %v6502 = vlaneseq
        %v6503 = vshrl.u32 %v6502, 7
        %v6504 = vsub.s32 %v6501, %v6503
        %v6505 = vrot.slane %v6497, %v6504
        %v6507 = vunpack.c.l.s4 1983009808
        %v6508 = vunpack.c.0.s8 %v6507
        %v6509 = vlaneseq
        %v6510 = vshrl.u32 %v6509, 7
        %v6511 = vsub.s32 %v6508, %v6510
        %v6512 = vrot.slane %v6498, %v6511
        %v6513 = vcombine.low %v6354, %v6450
        %v6514 = vcombine.high %v6354, %v6450
        %v6516 = vunpack.c.l.s4 1983009808
        %v6517 = vunpack.c.0.s8 %v6516
        %v6518 = vlaneseq
        %v6519 = vshrl.u32 %v6518, 7
        %v6520 = vsub.s32 %v6517, %v6519
        %v6521 = vrot.slane %v6513, %v6520
        %v6523 = vunpack.c.l.s4 1983009808
        %v6524 = vunpack.c.0.s8 %v6523
        %v6525 = vlaneseq
        %v6526 = vshrl.u32 %v6525, 7
        %v6527 = vsub.s32 %v6524, %v6526
        %v6528 = vrot.slane %v6514, %v6527
        %v6529 = vcombine.low %v6505, %v6521
        %v6530 = vcombine.high %v6505, %v6521
        %v6532 = vunpack.c.l.s4 1934713408
        %v6533 = vunpack.c.0.s8 %v6532
        %v6534 = vlaneseq
        %v6535 = vshrl.u32 %v6534, 7
        %v6536 = vsub.s32 %v6533, %v6535
        %v6537 = vrot.slane %v6529, %v6536
        %v6539 = vunpack.c.l.s4 1934713408
        %v6540 = vunpack.c.0.s8 %v6539
        %v6541 = vlaneseq
        %v6542 = vshrl.u32 %v6541, 7
        %v6543 = vsub.s32 %v6540, %v6542
        %v6544 = vrot.slane %v6530, %v6543
        %v6545 = vcombine.low %v6512, %v6528
        %v6546 = vcombine.high %v6512, %v6528
        %v6548 = vunpack.c.l.s4 1934713408
        %v6549 = vunpack.c.0.s8 %v6548
        %v6550 = vlaneseq
        %v6551 = vshrl.u32 %v6550, 7
        %v6552 = vsub.s32 %v6549, %v6551
        %v6553 = vrot.slane %v6545, %v6552
        %v6555 = vunpack.c.l.s4 1934713408
        %v6556 = vunpack.c.0.s8 %v6555
        %v6557 = vlaneseq
        %v6558 = vshrl.u32 %v6557, 7
        %v6559 = vsub.s32 %v6556, %v6558
        %v6560 = vrot.slane %v6546, %v6559
        %v6561 = vcombine.high %v6537, 0.0
        %v6562 = vcombine.high %v6544, 0.0
        %v6563 = vcombine.high %v6553, 0.0
        %v6564 = vcombine.high %v6560, 0.0
        %v6565 = vcombine.low %v965, %v6404
        %v6566 = vcombine.high %v965, %v6404
        %v6568 = vunpack.c.l.s4 1983009808
        %v6569 = vunpack.c.0.s8 %v6568
        %v6570 = vlaneseq
        %v6571 = vshrl.u32 %v6570, 7
        %v6572 = vsub.s32 %v6569, %v6571
        %v6573 = vrot.slane %v6565, %v6572
        %v6575 = vunpack.c.l.s4 1983009808
        %v6576 = vunpack.c.0.s8 %v6575
        %v6577 = vlaneseq
        %v6578 = vshrl.u32 %v6577, 7
        %v6579 = vsub.s32 %v6576, %v6578
        %v6580 = vrot.slane %v6566, %v6579
        %v6581 = vcombine.low %v6356, %v6452
        %v6582 = vcombine.high %v6356, %v6452
        %v6584 = vunpack.c.l.s4 1983009808
        %v6585 = vunpack.c.0.s8 %v6584
        %v6586 = vlaneseq
        %v6587 = vshrl.u32 %v6586, 7
        %v6588 = vsub.s32 %v6585, %v6587
        %v6589 = vrot.slane %v6581, %v6588
        %v6591 = vunpack.c.l.s4 1983009808
        %v6592 = vunpack.c.0.s8 %v6591
        %v6593 = vlaneseq
        %v6594 = vshrl.u32 %v6593, 7
        %v6595 = vsub.s32 %v6592, %v6594
        %v6596 = vrot.slane %v6582, %v6595
        %v6597 = vcombine.low %v6573, %v6589
        %v6598 = vcombine.high %v6573, %v6589
        %v6600 = vunpack.c.l.s4 1934713408
        %v6601 = vunpack.c.0.s8 %v6600
        %v6602 = vlaneseq
        %v6603 = vshrl.u32 %v6602, 7
        %v6604 = vsub.s32 %v6601, %v6603
        %v6605 = vrot.slane %v6597, %v6604
        %v6607 = vunpack.c.l.s4 1934713408
        %v6608 = vunpack.c.0.s8 %v6607
        %v6609 = vlaneseq
        %v6610 = vshrl.u32 %v6609, 7
        %v6611 = vsub.s32 %v6608, %v6610
        %v6612 = vrot.slane %v6598, %v6611
        %v6613 = vcombine.low %v6580, %v6596
        %v6614 = vcombine.high %v6580, %v6596
        %v6616 = vunpack.c.l.s4 1934713408
        %v6617 = vunpack.c.0.s8 %v6616
        %v6618 = vlaneseq
        %v6619 = vshrl.u32 %v6618, 7
        %v6620 = vsub.s32 %v6617, %v6619
        %v6621 = vrot.slane %v6613, %v6620
        %v6623 = vunpack.c.l.s4 1934713408
        %v6624 = vunpack.c.0.s8 %v6623
        %v6625 = vlaneseq
        %v6626 = vshrl.u32 %v6625, 7
        %v6627 = vsub.s32 %v6624, %v6626
        %v6628 = vrot.slane %v6614, %v6627
        %v6629 = vcombine.high %v6605, 0.0
        %v6630 = vcombine.high %v6612, 0.0
        %v6631 = vcombine.high %v6621, 0.0
        %v6632 = vcombine.high %v6628, 0.0
        %v6633 = vcombine.low %v970, %v6406
        %v6634 = vcombine.high %v970, %v6406
        %v6636 = vunpack.c.l.s4 1983009808
        %v6637 = vunpack.c.0.s8 %v6636
        %v6638 = vlaneseq
        %v6639 = vshrl.u32 %v6638, 7
        %v6640 = vsub.s32 %v6637, %v6639
        %v6641 = vrot.slane %v6633, %v6640
        %v6643 = vunpack.c.l.s4 1983009808
        %v6644 = vunpack.c.0.s8 %v6643
        %v6645 = vlaneseq
        %v6646 = vshrl.u32 %v6645, 7
        %v6647 = vsub.s32 %v6644, %v6646
        %v6648 = vrot.slane %v6634, %v6647
        %v6649 = vcombine.low %v6358, %v6454
        %v6650 = vcombine.high %v6358, %v6454
        %v6652 = vunpack.c.l.s4 1983009808
        %v6653 = vunpack.c.0.s8 %v6652
        %v6654 = vlaneseq
        %v6655 = vshrl.u32 %v6654, 7
        %v6656 = vsub.s32 %v6653, %v6655
        %v6657 = vrot.slane %v6649, %v6656
        %v6659 = vunpack.c.l.s4 1983009808
        %v6660 = vunpack.c.0.s8 %v6659
        %v6661 = vlaneseq
        %v6662 = vshrl.u32 %v6661, 7
        %v6663 = vsub.s32 %v6660, %v6662
        %v6664 = vrot.slane %v6650, %v6663
        %v6665 = vcombine.low %v6641, %v6657
        %v6666 = vcombine.high %v6641, %v6657
        %v6668 = vunpack.c.l.s4 1934713408
        %v6669 = vunpack.c.0.s8 %v6668
        %v6670 = vlaneseq
        %v6671 = vshrl.u32 %v6670, 7
        %v6672 = vsub.s32 %v6669, %v6671
        %v6673 = vrot.slane %v6665, %v6672
        %v6675 = vunpack.c.l.s4 1934713408
        %v6676 = vunpack.c.0.s8 %v6675
        %v6677 = vlaneseq
        %v6678 = vshrl.u32 %v6677, 7
        %v6679 = vsub.s32 %v6676, %v6678
        %v6680 = vrot.slane %v6666, %v6679
        %v6681 = vcombine.low %v6648, %v6664
        %v6682 = vcombine.high %v6648, %v6664
        %v6684 = vunpack.c.l.s4 1934713408
        %v6685 = vunpack.c.0.s8 %v6684
        %v6686 = vlaneseq
        %v6687 = vshrl.u32 %v6686, 7
        %v6688 = vsub.s32 %v6685, %v6687
        %v6689 = vrot.slane %v6681, %v6688
        %v6691 = vunpack.c.l.s4 1934713408
        %v6692 = vunpack.c.0.s8 %v6691
        %v6693 = vlaneseq
        %v6694 = vshrl.u32 %v6693, 7
        %v6695 = vsub.s32 %v6692, %v6694
        %v6696 = vrot.slane %v6682, %v6695
        %v6697 = vcombine.high %v6673, 0.0
        %v6698 = vcombine.high %v6680, 0.0
        %v6699 = vcombine.high %v6689, 0.0
        %v6700 = vcombine.high %v6696, 0.0
        %v6701 = vcombine.low %v973, %v6408
        %v6702 = vcombine.high %v973, %v6408
        %v6704 = vunpack.c.l.s4 1983009808
        %v6705 = vunpack.c.0.s8 %v6704
        %v6706 = vlaneseq
        %v6707 = vshrl.u32 %v6706, 7
        %v6708 = vsub.s32 %v6705, %v6707
        %v6709 = vrot.slane %v6701, %v6708
        %v6711 = vunpack.c.l.s4 1983009808
        %v6712 = vunpack.c.0.s8 %v6711
        %v6713 = vlaneseq
        %v6714 = vshrl.u32 %v6713, 7
        %v6715 = vsub.s32 %v6712, %v6714
        %v6716 = vrot.slane %v6702, %v6715
        %v6717 = vcombine.low %v6360, %v6456
        %v6718 = vcombine.high %v6360, %v6456
        %v6720 = vunpack.c.l.s4 1983009808
        %v6721 = vunpack.c.0.s8 %v6720
        %v6722 = vlaneseq
        %v6723 = vshrl.u32 %v6722, 7
        %v6724 = vsub.s32 %v6721, %v6723
        %v6725 = vrot.slane %v6717, %v6724
        %v6727 = vunpack.c.l.s4 1983009808
        %v6728 = vunpack.c.0.s8 %v6727
        %v6729 = vlaneseq
        %v6730 = vshrl.u32 %v6729, 7
        %v6731 = vsub.s32 %v6728, %v6730
        %v6732 = vrot.slane %v6718, %v6731
        %v6733 = vcombine.low %v6709, %v6725
        %v6734 = vcombine.high %v6709, %v6725
        %v6736 = vunpack.c.l.s4 1934713408
        %v6737 = vunpack.c.0.s8 %v6736
        %v6738 = vlaneseq
        %v6739 = vshrl.u32 %v6738, 7
        %v6740 = vsub.s32 %v6737, %v6739
        %v6741 = vrot.slane %v6733, %v6740
        %v6743 = vunpack.c.l.s4 1934713408
        %v6744 = vunpack.c.0.s8 %v6743
        %v6745 = vlaneseq
        %v6746 = vshrl.u32 %v6745, 7
        %v6747 = vsub.s32 %v6744, %v6746
        %v6748 = vrot.slane %v6734, %v6747
        %v6749 = vcombine.low %v6716, %v6732
        %v6750 = vcombine.high %v6716, %v6732
        %v6752 = vunpack.c.l.s4 1934713408
        %v6753 = vunpack.c.0.s8 %v6752
        %v6754 = vlaneseq
        %v6755 = vshrl.u32 %v6754, 7
        %v6756 = vsub.s32 %v6753, %v6755
        %v6757 = vrot.slane %v6749, %v6756
        %v6759 = vunpack.c.l.s4 1934713408
        %v6760 = vunpack.c.0.s8 %v6759
        %v6761 = vlaneseq
        %v6762 = vshrl.u32 %v6761, 7
        %v6763 = vsub.s32 %v6760, %v6762
        %v6764 = vrot.slane %v6750, %v6763
        %v6765 = vcombine.high %v6741, 0.0
        %v6766 = vcombine.high %v6748, 0.0
        %v6767 = vcombine.high %v6757, 0.0
        %v6768 = vcombine.high %v6764, 0.0
        %v6769 = vcombine.low %v978, %v6410
        %v6770 = vcombine.high %v978, %v6410
        %v6772 = vunpack.c.l.s4 1983009808
        %v6773 = vunpack.c.0.s8 %v6772
        %v6774 = vlaneseq
        %v6775 = vshrl.u32 %v6774, 7
        %v6776 = vsub.s32 %v6773, %v6775
        %v6777 = vrot.slane %v6769, %v6776
        %v6779 = vunpack.c.l.s4 1983009808
        %v6780 = vunpack.c.0.s8 %v6779
        %v6781 = vlaneseq
        %v6782 = vshrl.u32 %v6781, 7
        %v6783 = vsub.s32 %v6780, %v6782
        %v6784 = vrot.slane %v6770, %v6783
        %v6785 = vcombine.low %v6362, %v6458
        %v6786 = vcombine.high %v6362, %v6458
        %v6788 = vunpack.c.l.s4 1983009808
        %v6789 = vunpack.c.0.s8 %v6788
        %v6790 = vlaneseq
        %v6791 = vshrl.u32 %v6790, 7
        %v6792 = vsub.s32 %v6789, %v6791
        %v6793 = vrot.slane %v6785, %v6792
        %v6795 = vunpack.c.l.s4 1983009808
        %v6796 = vunpack.c.0.s8 %v6795
        %v6797 = vlaneseq
        %v6798 = vshrl.u32 %v6797, 7
        %v6799 = vsub.s32 %v6796, %v6798
        %v6800 = vrot.slane %v6786, %v6799
        %v6801 = vcombine.low %v6777, %v6793
        %v6802 = vcombine.high %v6777, %v6793
        %v6804 = vunpack.c.l.s4 1934713408
        %v6805 = vunpack.c.0.s8 %v6804
        %v6806 = vlaneseq
        %v6807 = vshrl.u32 %v6806, 7
        %v6808 = vsub.s32 %v6805, %v6807
        %v6809 = vrot.slane %v6801, %v6808
        %v6811 = vunpack.c.l.s4 1934713408
        %v6812 = vunpack.c.0.s8 %v6811
        %v6813 = vlaneseq
        %v6814 = vshrl.u32 %v6813, 7
        %v6815 = vsub.s32 %v6812, %v6814
        %v6816 = vrot.slane %v6802, %v6815
        %v6817 = vcombine.low %v6784, %v6800
        %v6818 = vcombine.high %v6784, %v6800
        %v6820 = vunpack.c.l.s4 1934713408
        %v6821 = vunpack.c.0.s8 %v6820
        %v6822 = vlaneseq
        %v6823 = vshrl.u32 %v6822, 7
        %v6824 = vsub.s32 %v6821, %v6823
        %v6825 = vrot.slane %v6817, %v6824
        %v6827 = vunpack.c.l.s4 1934713408
        %v6828 = vunpack.c.0.s8 %v6827
        %v6829 = vlaneseq
        %v6830 = vshrl.u32 %v6829, 7
        %v6831 = vsub.s32 %v6828, %v6830
        %v6832 = vrot.slane %v6818, %v6831
        %v6833 = vcombine.high %v6809, 0.0
        %v6834 = vcombine.high %v6816, 0.0
        %v6835 = vcombine.high %v6825, 0.0
        %v6836 = vcombine.high %v6832, 0.0
        %v6837 = vcombine.low %v981, %v6412
        %v6838 = vcombine.high %v981, %v6412
        %v6840 = vunpack.c.l.s4 1983009808
        %v6841 = vunpack.c.0.s8 %v6840
        %v6842 = vlaneseq
        %v6843 = vshrl.u32 %v6842, 7
        %v6844 = vsub.s32 %v6841, %v6843
        %v6845 = vrot.slane %v6837, %v6844
        %v6847 = vunpack.c.l.s4 1983009808
        %v6848 = vunpack.c.0.s8 %v6847
        %v6849 = vlaneseq
        %v6850 = vshrl.u32 %v6849, 7
        %v6851 = vsub.s32 %v6848, %v6850
        %v6852 = vrot.slane %v6838, %v6851
        %v6853 = vcombine.low %v6364, %v6460
        %v6854 = vcombine.high %v6364, %v6460
        %v6856 = vunpack.c.l.s4 1983009808
        %v6857 = vunpack.c.0.s8 %v6856
        %v6858 = vlaneseq
        %v6859 = vshrl.u32 %v6858, 7
        %v6860 = vsub.s32 %v6857, %v6859
        %v6861 = vrot.slane %v6853, %v6860
        %v6863 = vunpack.c.l.s4 1983009808
        %v6864 = vunpack.c.0.s8 %v6863
        %v6865 = vlaneseq
        %v6866 = vshrl.u32 %v6865, 7
        %v6867 = vsub.s32 %v6864, %v6866
        %v6868 = vrot.slane %v6854, %v6867
        %v6869 = vcombine.low %v6845, %v6861
        %v6870 = vcombine.high %v6845, %v6861
        %v6872 = vunpack.c.l.s4 1934713408
        %v6873 = vunpack.c.0.s8 %v6872
        %v6874 = vlaneseq
        %v6875 = vshrl.u32 %v6874, 7
        %v6876 = vsub.s32 %v6873, %v6875
        %v6877 = vrot.slane %v6869, %v6876
        %v6879 = vunpack.c.l.s4 1934713408
        %v6880 = vunpack.c.0.s8 %v6879
        %v6881 = vlaneseq
        %v6882 = vshrl.u32 %v6881, 7
        %v6883 = vsub.s32 %v6880, %v6882
        %v6884 = vrot.slane %v6870, %v6883
        %v6885 = vcombine.low %v6852, %v6868
        %v6886 = vcombine.high %v6852, %v6868
        %v6888 = vunpack.c.l.s4 1934713408
        %v6889 = vunpack.c.0.s8 %v6888
        %v6890 = vlaneseq
        %v6891 = vshrl.u32 %v6890, 7
        %v6892 = vsub.s32 %v6889, %v6891
        %v6893 = vrot.slane %v6885, %v6892
        %v6895 = vunpack.c.l.s4 1934713408
        %v6896 = vunpack.c.0.s8 %v6895
        %v6897 = vlaneseq
        %v6898 = vshrl.u32 %v6897, 7
        %v6899 = vsub.s32 %v6896, %v6898
        %v6900 = vrot.slane %v6886, %v6899
        %v6901 = vcombine.high %v6877, 0.0
        %v6902 = vcombine.high %v6884, 0.0
        %v6903 = vcombine.high %v6893, 0.0
        %v6904 = vcombine.high %v6900, 0.0
        %v6905 = vcombine.low %v986, %v6414
        %v6906 = vcombine.high %v986, %v6414
        %v6908 = vunpack.c.l.s4 1983009808
        %v6909 = vunpack.c.0.s8 %v6908
        %v6910 = vlaneseq
        %v6911 = vshrl.u32 %v6910, 7
        %v6912 = vsub.s32 %v6909, %v6911
        %v6913 = vrot.slane %v6905, %v6912
        %v6915 = vunpack.c.l.s4 1983009808
        %v6916 = vunpack.c.0.s8 %v6915
        %v6917 = vlaneseq
        %v6918 = vshrl.u32 %v6917, 7
        %v6919 = vsub.s32 %v6916, %v6918
        %v6920 = vrot.slane %v6906, %v6919
        %v6921 = vcombine.low %v6366, %v6462
        %v6922 = vcombine.high %v6366, %v6462
        %v6924 = vunpack.c.l.s4 1983009808
        %v6925 = vunpack.c.0.s8 %v6924
        %v6926 = vlaneseq
        %v6927 = vshrl.u32 %v6926, 7
        %v6928 = vsub.s32 %v6925, %v6927
        %v6929 = vrot.slane %v6921, %v6928
        %v6931 = vunpack.c.l.s4 1983009808
        %v6932 = vunpack.c.0.s8 %v6931
        %v6933 = vlaneseq
        %v6934 = vshrl.u32 %v6933, 7
        %v6935 = vsub.s32 %v6932, %v6934
        %v6936 = vrot.slane %v6922, %v6935
        %v6937 = vcombine.low %v6913, %v6929
        %v6938 = vcombine.high %v6913, %v6929
        %v6940 = vunpack.c.l.s4 1934713408
        %v6941 = vunpack.c.0.s8 %v6940
        %v6942 = vlaneseq
        %v6943 = vshrl.u32 %v6942, 7
        %v6944 = vsub.s32 %v6941, %v6943
        %v6945 = vrot.slane %v6937, %v6944
        %v6947 = vunpack.c.l.s4 1934713408
        %v6948 = vunpack.c.0.s8 %v6947
        %v6949 = vlaneseq
        %v6950 = vshrl.u32 %v6949, 7
        %v6951 = vsub.s32 %v6948, %v6950
        %v6952 = vrot.slane %v6938, %v6951
        %v6953 = vcombine.low %v6920, %v6936
        %v6954 = vcombine.high %v6920, %v6936
        %v6956 = vunpack.c.l.s4 1934713408
        %v6957 = vunpack.c.0.s8 %v6956
        %v6958 = vlaneseq
        %v6959 = vshrl.u32 %v6958, 7
        %v6960 = vsub.s32 %v6957, %v6959
        %v6961 = vrot.slane %v6953, %v6960
        %v6963 = vunpack.c.l.s4 1934713408
        %v6964 = vunpack.c.0.s8 %v6963
        %v6965 = vlaneseq
        %v6966 = vshrl.u32 %v6965, 7
        %v6967 = vsub.s32 %v6964, %v6966
        %v6968 = vrot.slane %v6954, %v6967
        %v6969 = vcombine.high %v6945, 0.0
        %v6970 = vcombine.high %v6952, 0.0
        %v6971 = vcombine.high %v6961, 0.0
        %v6972 = vcombine.high %v6968, 0.0
        %v6973 = vcombine.low %v989, %v6416
        %v6974 = vcombine.high %v989, %v6416
        %v6976 = vunpack.c.l.s4 1983009808
        %v6977 = vunpack.c.0.s8 %v6976
        %v6978 = vlaneseq
        %v6979 = vshrl.u32 %v6978, 7
        %v6980 = vsub.s32 %v6977, %v6979
        %v6981 = vrot.slane %v6973, %v6980
        %v6983 = vunpack.c.l.s4 1983009808
        %v6984 = vunpack.c.0.s8 %v6983
        %v6985 = vlaneseq
        %v6986 = vshrl.u32 %v6985, 7
        %v6987 = vsub.s32 %v6984, %v6986
        %v6988 = vrot.slane %v6974, %v6987
        %v6989 = vcombine.low %v6368, %v6464
        %v6990 = vcombine.high %v6368, %v6464
        %v6992 = vunpack.c.l.s4 1983009808
        %v6993 = vunpack.c.0.s8 %v6992
        %v6994 = vlaneseq
        %v6995 = vshrl.u32 %v6994, 7
        %v6996 = vsub.s32 %v6993, %v6995
        %v6997 = vrot.slane %v6989, %v6996
        %v6999 = vunpack.c.l.s4 1983009808
        %v7000 = vunpack.c.0.s8 %v6999
        %v7001 = vlaneseq
        %v7002 = vshrl.u32 %v7001, 7
        %v7003 = vsub.s32 %v7000, %v7002
        %v7004 = vrot.slane %v6990, %v7003
        %v7005 = vcombine.low %v6981, %v6997
        %v7006 = vcombine.high %v6981, %v6997
        %v7008 = vunpack.c.l.s4 1934713408
        %v7009 = vunpack.c.0.s8 %v7008
        %v7010 = vlaneseq
        %v7011 = vshrl.u32 %v7010, 7
        %v7012 = vsub.s32 %v7009, %v7011
        %v7013 = vrot.slane %v7005, %v7012
        %v7015 = vunpack.c.l.s4 1934713408
        %v7016 = vunpack.c.0.s8 %v7015
        %v7017 = vlaneseq
        %v7018 = vshrl.u32 %v7017, 7
        %v7019 = vsub.s32 %v7016, %v7018
        %v7020 = vrot.slane %v7006, %v7019
        %v7021 = vcombine.low %v6988, %v7004
        %v7022 = vcombine.high %v6988, %v7004
        %v7024 = vunpack.c.l.s4 1934713408
        %v7025 = vunpack.c.0.s8 %v7024
        %v7026 = vlaneseq
        %v7027 = vshrl.u32 %v7026, 7
        %v7028 = vsub.s32 %v7025, %v7027
        %v7029 = vrot.slane %v7021, %v7028
        %v7031 = vunpack.c.l.s4 1934713408
        %v7032 = vunpack.c.0.s8 %v7031
        %v7033 = vlaneseq
        %v7034 = vshrl.u32 %v7033, 7
        %v7035 = vsub.s32 %v7032, %v7034
        %v7036 = vrot.slane %v7022, %v7035
        %v7037 = vcombine.high %v7013, 0.0
        %v7038 = vcombine.high %v7020, 0.0
        %v7039 = vcombine.high %v7029, 0.0
        %v7040 = vcombine.high %v7036, 0.0
        %v7041 = vcombine.low %v994, %v6418
        %v7042 = vcombine.high %v994, %v6418
        %v7044 = vunpack.c.l.s4 1983009808
        %v7045 = vunpack.c.0.s8 %v7044
        %v7046 = vlaneseq
        %v7047 = vshrl.u32 %v7046, 7
        %v7048 = vsub.s32 %v7045, %v7047
        %v7049 = vrot.slane %v7041, %v7048
        %v7051 = vunpack.c.l.s4 1983009808
        %v7052 = vunpack.c.0.s8 %v7051
        %v7053 = vlaneseq
        %v7054 = vshrl.u32 %v7053, 7
        %v7055 = vsub.s32 %v7052, %v7054
        %v7056 = vrot.slane %v7042, %v7055
        %v7057 = vcombine.low %v6370, %v6466
        %v7058 = vcombine.high %v6370, %v6466
        %v7060 = vunpack.c.l.s4 1983009808
        %v7061 = vunpack.c.0.s8 %v7060
        %v7062 = vlaneseq
        %v7063 = vshrl.u32 %v7062, 7
        %v7064 = vsub.s32 %v7061, %v7063
        %v7065 = vrot.slane %v7057, %v7064
        %v7067 = vunpack.c.l.s4 1983009808
        %v7068 = vunpack.c.0.s8 %v7067
        %v7069 = vlaneseq
        %v7070 = vshrl.u32 %v7069, 7
        %v7071 = vsub.s32 %v7068, %v7070
        %v7072 = vrot.slane %v7058, %v7071
        %v7073 = vcombine.low %v7049, %v7065
        %v7074 = vcombine.high %v7049, %v7065
        %v7076 = vunpack.c.l.s4 1934713408
        %v7077 = vunpack.c.0.s8 %v7076
        %v7078 = vlaneseq
        %v7079 = vshrl.u32 %v7078, 7
        %v7080 = vsub.s32 %v7077, %v7079
        %v7081 = vrot.slane %v7073, %v7080
        %v7083 = vunpack.c.l.s4 1934713408
        %v7084 = vunpack.c.0.s8 %v7083
        %v7085 = vlaneseq
        %v7086 = vshrl.u32 %v7085, 7
        %v7087 = vsub.s32 %v7084, %v7086
        %v7088 = vrot.slane %v7074, %v7087
        %v7089 = vcombine.low %v7056, %v7072
        %v7090 = vcombine.high %v7056, %v7072
        %v7092 = vunpack.c.l.s4 1934713408
        %v7093 = vunpack.c.0.s8 %v7092
        %v7094 = vlaneseq
        %v7095 = vshrl.u32 %v7094, 7
        %v7096 = vsub.s32 %v7093, %v7095
        %v7097 = vrot.slane %v7089, %v7096
        %v7099 = vunpack.c.l.s4 1934713408
        %v7100 = vunpack.c.0.s8 %v7099
        %v7101 = vlaneseq
        %v7102 = vshrl.u32 %v7101, 7
        %v7103 = vsub.s32 %v7100, %v7102
        %v7104 = vrot.slane %v7090, %v7103
        %v7105 = vcombine.high %v7081, 0.0
        %v7106 = vcombine.high %v7088, 0.0
        %v7107 = vcombine.high %v7097, 0.0
        %v7108 = vcombine.high %v7104, 0.0
        %v7109 = vcombine.low %v997, %v6420
        %v7110 = vcombine.high %v997, %v6420
        %v7112 = vunpack.c.l.s4 1983009808
        %v7113 = vunpack.c.0.s8 %v7112
        %v7114 = vlaneseq
        %v7115 = vshrl.u32 %v7114, 7
        %v7116 = vsub.s32 %v7113, %v7115
        %v7117 = vrot.slane %v7109, %v7116
        %v7119 = vunpack.c.l.s4 1983009808
        %v7120 = vunpack.c.0.s8 %v7119
        %v7121 = vlaneseq
        %v7122 = vshrl.u32 %v7121, 7
        %v7123 = vsub.s32 %v7120, %v7122
        %v7124 = vrot.slane %v7110, %v7123
        %v7125 = vcombine.low %v6372, %v6468
        %v7126 = vcombine.high %v6372, %v6468
        %v7128 = vunpack.c.l.s4 1983009808
        %v7129 = vunpack.c.0.s8 %v7128
        %v7130 = vlaneseq
        %v7131 = vshrl.u32 %v7130, 7
        %v7132 = vsub.s32 %v7129, %v7131
        %v7133 = vrot.slane %v7125, %v7132
        %v7135 = vunpack.c.l.s4 1983009808
        %v7136 = vunpack.c.0.s8 %v7135
        %v7137 = vlaneseq
        %v7138 = vshrl.u32 %v7137, 7
        %v7139 = vsub.s32 %v7136, %v7138
        %v7140 = vrot.slane %v7126, %v7139
        %v7141 = vcombine.low %v7117, %v7133
        %v7142 = vcombine.high %v7117, %v7133
        %v7144 = vunpack.c.l.s4 1934713408
        %v7145 = vunpack.c.0.s8 %v7144
        %v7146 = vlaneseq
        %v7147 = vshrl.u32 %v7146, 7
        %v7148 = vsub.s32 %v7145, %v7147
        %v7149 = vrot.slane %v7141, %v7148
        %v7151 = vunpack.c.l.s4 1934713408
        %v7152 = vunpack.c.0.s8 %v7151
        %v7153 = vlaneseq
        %v7154 = vshrl.u32 %v7153, 7
        %v7155 = vsub.s32 %v7152, %v7154
        %v7156 = vrot.slane %v7142, %v7155
        %v7157 = vcombine.low %v7124, %v7140
        %v7158 = vcombine.high %v7124, %v7140
        %v7160 = vunpack.c.l.s4 1934713408
        %v7161 = vunpack.c.0.s8 %v7160
        %v7162 = vlaneseq
        %v7163 = vshrl.u32 %v7162, 7
        %v7164 = vsub.s32 %v7161, %v7163
        %v7165 = vrot.slane %v7157, %v7164
        %v7167 = vunpack.c.l.s4 1934713408
        %v7168 = vunpack.c.0.s8 %v7167
        %v7169 = vlaneseq
        %v7170 = vshrl.u32 %v7169, 7
        %v7171 = vsub.s32 %v7168, %v7170
        %v7172 = vrot.slane %v7158, %v7171
        %v7173 = vcombine.high %v7149, 0.0
        %v7174 = vcombine.high %v7156, 0.0
        %v7175 = vcombine.high %v7165, 0.0
        %v7176 = vcombine.high %v7172, 0.0
        %v7177 = vcombine.low %v1002, %v6422
        %v7178 = vcombine.high %v1002, %v6422
        %v7180 = vunpack.c.l.s4 1983009808
        %v7181 = vunpack.c.0.s8 %v7180
        %v7182 = vlaneseq
        %v7183 = vshrl.u32 %v7182, 7
        %v7184 = vsub.s32 %v7181, %v7183
        %v7185 = vrot.slane %v7177, %v7184
        %v7187 = vunpack.c.l.s4 1983009808
        %v7188 = vunpack.c.0.s8 %v7187
        %v7189 = vlaneseq
        %v7190 = vshrl.u32 %v7189, 7
        %v7191 = vsub.s32 %v7188, %v7190
        %v7192 = vrot.slane %v7178, %v7191
        %v7193 = vcombine.low %v6374, %v6470
        %v7194 = vcombine.high %v6374, %v6470
        %v7196 = vunpack.c.l.s4 1983009808
        %v7197 = vunpack.c.0.s8 %v7196
        %v7198 = vlaneseq
        %v7199 = vshrl.u32 %v7198, 7
        %v7200 = vsub.s32 %v7197, %v7199
        %v7201 = vrot.slane %v7193, %v7200
        %v7203 = vunpack.c.l.s4 1983009808
        %v7204 = vunpack.c.0.s8 %v7203
        %v7205 = vlaneseq
        %v7206 = vshrl.u32 %v7205, 7
        %v7207 = vsub.s32 %v7204, %v7206
        %v7208 = vrot.slane %v7194, %v7207
        %v7209 = vcombine.low %v7185, %v7201
        %v7210 = vcombine.high %v7185, %v7201
        %v7212 = vunpack.c.l.s4 1934713408
        %v7213 = vunpack.c.0.s8 %v7212
        %v7214 = vlaneseq
        %v7215 = vshrl.u32 %v7214, 7
        %v7216 = vsub.s32 %v7213, %v7215
        %v7217 = vrot.slane %v7209, %v7216
        %v7219 = vunpack.c.l.s4 1934713408
        %v7220 = vunpack.c.0.s8 %v7219
        %v7221 = vlaneseq
        %v7222 = vshrl.u32 %v7221, 7
        %v7223 = vsub.s32 %v7220, %v7222
        %v7224 = vrot.slane %v7210, %v7223
        %v7225 = vcombine.low %v7192, %v7208
        %v7226 = vcombine.high %v7192, %v7208
        %v7228 = vunpack.c.l.s4 1934713408
        %v7229 = vunpack.c.0.s8 %v7228
        %v7230 = vlaneseq
        %v7231 = vshrl.u32 %v7230, 7
        %v7232 = vsub.s32 %v7229, %v7231
        %v7233 = vrot.slane %v7225, %v7232
        %v7235 = vunpack.c.l.s4 1934713408
        %v7236 = vunpack.c.0.s8 %v7235
        %v7237 = vlaneseq
        %v7238 = vshrl.u32 %v7237, 7
        %v7239 = vsub.s32 %v7236, %v7238
        %v7240 = vrot.slane %v7226, %v7239
        %v7241 = vcombine.high %v7217, 0.0
        %v7242 = vcombine.high %v7224, 0.0
        %v7243 = vcombine.high %v7233, 0.0
        %v7244 = vcombine.high %v7240, 0.0
        %v7245 = vcombine.low %v1005, %v6424
        %v7246 = vcombine.high %v1005, %v6424
        %v7248 = vunpack.c.l.s4 1983009808
        %v7249 = vunpack.c.0.s8 %v7248
        %v7250 = vlaneseq
        %v7251 = vshrl.u32 %v7250, 7
        %v7252 = vsub.s32 %v7249, %v7251
        %v7253 = vrot.slane %v7245, %v7252
        %v7255 = vunpack.c.l.s4 1983009808
        %v7256 = vunpack.c.0.s8 %v7255
        %v7257 = vlaneseq
        %v7258 = vshrl.u32 %v7257, 7
        %v7259 = vsub.s32 %v7256, %v7258
        %v7260 = vrot.slane %v7246, %v7259
        %v7261 = vcombine.low %v6376, %v6472
        %v7262 = vcombine.high %v6376, %v6472
        %v7264 = vunpack.c.l.s4 1983009808
        %v7265 = vunpack.c.0.s8 %v7264
        %v7266 = vlaneseq
        %v7267 = vshrl.u32 %v7266, 7
        %v7268 = vsub.s32 %v7265, %v7267
        %v7269 = vrot.slane %v7261, %v7268
        %v7271 = vunpack.c.l.s4 1983009808
        %v7272 = vunpack.c.0.s8 %v7271
        %v7273 = vlaneseq
        %v7274 = vshrl.u32 %v7273, 7
        %v7275 = vsub.s32 %v7272, %v7274
        %v7276 = vrot.slane %v7262, %v7275
        %v7277 = vcombine.low %v7253, %v7269
        %v7278 = vcombine.high %v7253, %v7269
        %v7280 = vunpack.c.l.s4 1934713408
        %v7281 = vunpack.c.0.s8 %v7280
        %v7282 = vlaneseq
        %v7283 = vshrl.u32 %v7282, 7
        %v7284 = vsub.s32 %v7281, %v7283
        %v7285 = vrot.slane %v7277, %v7284
        %v7287 = vunpack.c.l.s4 1934713408
        %v7288 = vunpack.c.0.s8 %v7287
        %v7289 = vlaneseq
        %v7290 = vshrl.u32 %v7289, 7
        %v7291 = vsub.s32 %v7288, %v7290
        %v7292 = vrot.slane %v7278, %v7291
        %v7293 = vcombine.low %v7260, %v7276
        %v7294 = vcombine.high %v7260, %v7276
        %v7296 = vunpack.c.l.s4 1934713408
        %v7297 = vunpack.c.0.s8 %v7296
        %v7298 = vlaneseq
        %v7299 = vshrl.u32 %v7298, 7
        %v7300 = vsub.s32 %v7297, %v7299
        %v7301 = vrot.slane %v7293, %v7300
        %v7303 = vunpack.c.l.s4 1934713408
        %v7304 = vunpack.c.0.s8 %v7303
        %v7305 = vlaneseq
        %v7306 = vshrl.u32 %v7305, 7
        %v7307 = vsub.s32 %v7304, %v7306
        %v7308 = vrot.slane %v7294, %v7307
        %v7309 = vcombine.high %v7285, 0.0
        %v7310 = vcombine.high %v7292, 0.0
        %v7311 = vcombine.high %v7301, 0.0
        %v7312 = vcombine.high %v7308, 0.0
        %v7313 = vcombine.low %v1010, %v6426
        %v7314 = vcombine.high %v1010, %v6426
        %v7316 = vunpack.c.l.s4 1983009808
        %v7317 = vunpack.c.0.s8 %v7316
        %v7318 = vlaneseq
        %v7319 = vshrl.u32 %v7318, 7
        %v7320 = vsub.s32 %v7317, %v7319
        %v7321 = vrot.slane %v7313, %v7320
        %v7323 = vunpack.c.l.s4 1983009808
        %v7324 = vunpack.c.0.s8 %v7323
        %v7325 = vlaneseq
        %v7326 = vshrl.u32 %v7325, 7
        %v7327 = vsub.s32 %v7324, %v7326
        %v7328 = vrot.slane %v7314, %v7327
        %v7329 = vcombine.low %v6378, %v6474
        %v7330 = vcombine.high %v6378, %v6474
        %v7332 = vunpack.c.l.s4 1983009808
        %v7333 = vunpack.c.0.s8 %v7332
        %v7334 = vlaneseq
        %v7335 = vshrl.u32 %v7334, 7
        %v7336 = vsub.s32 %v7333, %v7335
        %v7337 = vrot.slane %v7329, %v7336
        %v7339 = vunpack.c.l.s4 1983009808
        %v7340 = vunpack.c.0.s8 %v7339
        %v7341 = vlaneseq
        %v7342 = vshrl.u32 %v7341, 7
        %v7343 = vsub.s32 %v7340, %v7342
        %v7344 = vrot.slane %v7330, %v7343
        %v7345 = vcombine.low %v7321, %v7337
        %v7346 = vcombine.high %v7321, %v7337
        %v7348 = vunpack.c.l.s4 1934713408
        %v7349 = vunpack.c.0.s8 %v7348
        %v7350 = vlaneseq
        %v7351 = vshrl.u32 %v7350, 7
        %v7352 = vsub.s32 %v7349, %v7351
        %v7353 = vrot.slane %v7345, %v7352
        %v7355 = vunpack.c.l.s4 1934713408
        %v7356 = vunpack.c.0.s8 %v7355
        %v7357 = vlaneseq
        %v7358 = vshrl.u32 %v7357, 7
        %v7359 = vsub.s32 %v7356, %v7358
        %v7360 = vrot.slane %v7346, %v7359
        %v7361 = vcombine.low %v7328, %v7344
        %v7362 = vcombine.high %v7328, %v7344
        %v7364 = vunpack.c.l.s4 1934713408
        %v7365 = vunpack.c.0.s8 %v7364
        %v7366 = vlaneseq
        %v7367 = vshrl.u32 %v7366, 7
        %v7368 = vsub.s32 %v7365, %v7367
        %v7369 = vrot.slane %v7361, %v7368
        %v7371 = vunpack.c.l.s4 1934713408
        %v7372 = vunpack.c.0.s8 %v7371
        %v7373 = vlaneseq
        %v7374 = vshrl.u32 %v7373, 7
        %v7375 = vsub.s32 %v7372, %v7374
        %v7376 = vrot.slane %v7362, %v7375
        %v7377 = vcombine.high %v7353, 0.0
        %v7378 = vcombine.high %v7360, 0.0
        %v7379 = vcombine.high %v7369, 0.0
        %v7380 = vcombine.high %v7376, 0.0
        %v7381 = vcombine.low %v1013, %v6428
        %v7382 = vcombine.high %v1013, %v6428
        %v7384 = vunpack.c.l.s4 1983009808
        %v7385 = vunpack.c.0.s8 %v7384
        %v7386 = vlaneseq
        %v7387 = vshrl.u32 %v7386, 7
        %v7388 = vsub.s32 %v7385, %v7387
        %v7389 = vrot.slane %v7381, %v7388
        %v7391 = vunpack.c.l.s4 1983009808
        %v7392 = vunpack.c.0.s8 %v7391
        %v7393 = vlaneseq
        %v7394 = vshrl.u32 %v7393, 7
        %v7395 = vsub.s32 %v7392, %v7394
        %v7396 = vrot.slane %v7382, %v7395
        %v7397 = vcombine.low %v6380, %v6476
        %v7398 = vcombine.high %v6380, %v6476
        %v7400 = vunpack.c.l.s4 1983009808
        %v7401 = vunpack.c.0.s8 %v7400
        %v7402 = vlaneseq
        %v7403 = vshrl.u32 %v7402, 7
        %v7404 = vsub.s32 %v7401, %v7403
        %v7405 = vrot.slane %v7397, %v7404
        %v7407 = vunpack.c.l.s4 1983009808
        %v7408 = vunpack.c.0.s8 %v7407
        %v7409 = vlaneseq
        %v7410 = vshrl.u32 %v7409, 7
        %v7411 = vsub.s32 %v7408, %v7410
        %v7412 = vrot.slane %v7398, %v7411
        %v7413 = vcombine.low %v7389, %v7405
        %v7414 = vcombine.high %v7389, %v7405
        %v7416 = vunpack.c.l.s4 1934713408
        %v7417 = vunpack.c.0.s8 %v7416
        %v7418 = vlaneseq
        %v7419 = vshrl.u32 %v7418, 7
        %v7420 = vsub.s32 %v7417, %v7419
        %v7421 = vrot.slane %v7413, %v7420
        %v7423 = vunpack.c.l.s4 1934713408
        %v7424 = vunpack.c.0.s8 %v7423
        %v7425 = vlaneseq
        %v7426 = vshrl.u32 %v7425, 7
        %v7427 = vsub.s32 %v7424, %v7426
        %v7428 = vrot.slane %v7414, %v7427
        %v7429 = vcombine.low %v7396, %v7412
        %v7430 = vcombine.high %v7396, %v7412
        %v7432 = vunpack.c.l.s4 1934713408
        %v7433 = vunpack.c.0.s8 %v7432
        %v7434 = vlaneseq
        %v7435 = vshrl.u32 %v7434, 7
        %v7436 = vsub.s32 %v7433, %v7435
        %v7437 = vrot.slane %v7429, %v7436
        %v7439 = vunpack.c.l.s4 1934713408
        %v7440 = vunpack.c.0.s8 %v7439
        %v7441 = vlaneseq
        %v7442 = vshrl.u32 %v7441, 7
        %v7443 = vsub.s32 %v7440, %v7442
        %v7444 = vrot.slane %v7430, %v7443
        %v7445 = vcombine.high %v7421, 0.0
        %v7446 = vcombine.high %v7428, 0.0
        %v7447 = vcombine.high %v7437, 0.0
        %v7448 = vcombine.high %v7444, 0.0
        %v7449 = vcombine.low %v1018, %v6430
        %v7450 = vcombine.high %v1018, %v6430
        %v7452 = vunpack.c.l.s4 1983009808
        %v7453 = vunpack.c.0.s8 %v7452
        %v7454 = vlaneseq
        %v7455 = vshrl.u32 %v7454, 7
        %v7456 = vsub.s32 %v7453, %v7455
        %v7457 = vrot.slane %v7449, %v7456
        %v7459 = vunpack.c.l.s4 1983009808
        %v7460 = vunpack.c.0.s8 %v7459
        %v7461 = vlaneseq
        %v7462 = vshrl.u32 %v7461, 7
        %v7463 = vsub.s32 %v7460, %v7462
        %v7464 = vrot.slane %v7450, %v7463
        %v7465 = vcombine.low %v6382, %v6478
        %v7466 = vcombine.high %v6382, %v6478
        %v7468 = vunpack.c.l.s4 1983009808
        %v7469 = vunpack.c.0.s8 %v7468
        %v7470 = vlaneseq
        %v7471 = vshrl.u32 %v7470, 7
        %v7472 = vsub.s32 %v7469, %v7471
        %v7473 = vrot.slane %v7465, %v7472
        %v7475 = vunpack.c.l.s4 1983009808
        %v7476 = vunpack.c.0.s8 %v7475
        %v7477 = vlaneseq
        %v7478 = vshrl.u32 %v7477, 7
        %v7479 = vsub.s32 %v7476, %v7478
        %v7480 = vrot.slane %v7466, %v7479
        %v7481 = vcombine.low %v7457, %v7473
        %v7482 = vcombine.high %v7457, %v7473
        %v7484 = vunpack.c.l.s4 1934713408
        %v7485 = vunpack.c.0.s8 %v7484
        %v7486 = vlaneseq
        %v7487 = vshrl.u32 %v7486, 7
        %v7488 = vsub.s32 %v7485, %v7487
        %v7489 = vrot.slane %v7481, %v7488
        %v7491 = vunpack.c.l.s4 1934713408
        %v7492 = vunpack.c.0.s8 %v7491
        %v7493 = vlaneseq
        %v7494 = vshrl.u32 %v7493, 7
        %v7495 = vsub.s32 %v7492, %v7494
        %v7496 = vrot.slane %v7482, %v7495
        %v7497 = vcombine.low %v7464, %v7480
        %v7498 = vcombine.high %v7464, %v7480
        %v7500 = vunpack.c.l.s4 1934713408
        %v7501 = vunpack.c.0.s8 %v7500
        %v7502 = vlaneseq
        %v7503 = vshrl.u32 %v7502, 7
        %v7504 = vsub.s32 %v7501, %v7503
        %v7505 = vrot.slane %v7497, %v7504
        %v7507 = vunpack.c.l.s4 1934713408
        %v7508 = vunpack.c.0.s8 %v7507
        %v7509 = vlaneseq
        %v7510 = vshrl.u32 %v7509, 7
        %v7511 = vsub.s32 %v7508, %v7510
        %v7512 = vrot.slane %v7498, %v7511
        %v7513 = vcombine.high %v7489, 0.0
        %v7514 = vcombine.high %v7496, 0.0
        %v7515 = vcombine.high %v7505, 0.0
        %v7516 = vcombine.high %v7512, 0.0
        %v7517 = vcombine.low %v1021, %v6432
        %v7518 = vcombine.high %v1021, %v6432
        %v7520 = vunpack.c.l.s4 1983009808
        %v7521 = vunpack.c.0.s8 %v7520
        %v7522 = vlaneseq
        %v7523 = vshrl.u32 %v7522, 7
        %v7524 = vsub.s32 %v7521, %v7523
        %v7525 = vrot.slane %v7517, %v7524
        %v7527 = vunpack.c.l.s4 1983009808
        %v7528 = vunpack.c.0.s8 %v7527
        %v7529 = vlaneseq
        %v7530 = vshrl.u32 %v7529, 7
        %v7531 = vsub.s32 %v7528, %v7530
        %v7532 = vrot.slane %v7518, %v7531
        %v7533 = vcombine.low %v6384, %v6480
        %v7534 = vcombine.high %v6384, %v6480
        %v7536 = vunpack.c.l.s4 1983009808
        %v7537 = vunpack.c.0.s8 %v7536
        %v7538 = vlaneseq
        %v7539 = vshrl.u32 %v7538, 7
        %v7540 = vsub.s32 %v7537, %v7539
        %v7541 = vrot.slane %v7533, %v7540
        %v7543 = vunpack.c.l.s4 1983009808
        %v7544 = vunpack.c.0.s8 %v7543
        %v7545 = vlaneseq
        %v7546 = vshrl.u32 %v7545, 7
        %v7547 = vsub.s32 %v7544, %v7546
        %v7548 = vrot.slane %v7534, %v7547
        %v7549 = vcombine.low %v7525, %v7541
        %v7550 = vcombine.high %v7525, %v7541
        %v7552 = vunpack.c.l.s4 1934713408
        %v7553 = vunpack.c.0.s8 %v7552
        %v7554 = vlaneseq
        %v7555 = vshrl.u32 %v7554, 7
        %v7556 = vsub.s32 %v7553, %v7555
        %v7557 = vrot.slane %v7549, %v7556
        %v7559 = vunpack.c.l.s4 1934713408
        %v7560 = vunpack.c.0.s8 %v7559
        %v7561 = vlaneseq
        %v7562 = vshrl.u32 %v7561, 7
        %v7563 = vsub.s32 %v7560, %v7562
        %v7564 = vrot.slane %v7550, %v7563
        %v7565 = vcombine.low %v7532, %v7548
        %v7566 = vcombine.high %v7532, %v7548
        %v7568 = vunpack.c.l.s4 1934713408
        %v7569 = vunpack.c.0.s8 %v7568
        %v7570 = vlaneseq
        %v7571 = vshrl.u32 %v7570, 7
        %v7572 = vsub.s32 %v7569, %v7571
        %v7573 = vrot.slane %v7565, %v7572
        %v7575 = vunpack.c.l.s4 1934713408
        %v7576 = vunpack.c.0.s8 %v7575
        %v7577 = vlaneseq
        %v7578 = vshrl.u32 %v7577, 7
        %v7579 = vsub.s32 %v7576, %v7578
        %v7580 = vrot.slane %v7566, %v7579
        %v7581 = vcombine.high %v7557, 0.0
        %v7582 = vcombine.high %v7564, 0.0
        %v7583 = vcombine.high %v7573, 0.0
        %v7584 = vcombine.high %v7580, 0.0
        %v7585 = vcombine.low %v6537, %v6544
        %v7587 = vunpack.c.l.s4 1983009808
        %v7588 = vunpack.c.0.s8 %v7587
        %v7589 = vlaneseq
        %v7590 = vshrl.u32 %v7589, 7
        %v7591 = vsub.s32 %v7588, %v7590
        %v7592 = vrot.slane %v7585, %v7591
        %v7593 = vcombine.low %v6561, %v6562
        %v7595 = vunpack.c.l.s4 1983009808
        %v7596 = vunpack.c.0.s8 %v7595
        %v7597 = vlaneseq
        %v7598 = vshrl.u32 %v7597, 7
        %v7599 = vsub.s32 %v7596, %v7598
        %v7600 = vrot.slane %v7593, %v7599
        %v7601 = vcombine.low %v6553, %v6560
        %v7603 = vunpack.c.l.s4 1983009808
        %v7604 = vunpack.c.0.s8 %v7603
        %v7605 = vlaneseq
        %v7606 = vshrl.u32 %v7605, 7
        %v7607 = vsub.s32 %v7604, %v7606
        %v7608 = vrot.slane %v7601, %v7607
        %v7609 = vcombine.low %v6563, %v6564
        %v7611 = vunpack.c.l.s4 1983009808
        %v7612 = vunpack.c.0.s8 %v7611
        %v7613 = vlaneseq
        %v7614 = vshrl.u32 %v7613, 7
        %v7615 = vsub.s32 %v7612, %v7614
        %v7616 = vrot.slane %v7609, %v7615
        %v7617 = vcombine.low %v7592, %v7600
        %v7618 = vcombine.high %v7592, %v7600
        %v7620 = vunpack.c.l.s4 1934713408
        %v7621 = vunpack.c.0.s8 %v7620
        %v7622 = vlaneseq
        %v7623 = vshrl.u32 %v7622, 7
        %v7624 = vsub.s32 %v7621, %v7623
        %v7625 = vrot.slane %v7617, %v7624
        %v7627 = vunpack.c.l.s4 1934713408
        %v7628 = vunpack.c.0.s8 %v7627
        %v7629 = vlaneseq
        %v7630 = vshrl.u32 %v7629, 7
        %v7631 = vsub.s32 %v7628, %v7630
        %v7632 = vrot.slane %v7618, %v7631
        %v7633 = vcombine.low %v7608, %v7616
        %v7634 = vcombine.high %v7608, %v7616
        %v7636 = vunpack.c.l.s4 1934713408
        %v7637 = vunpack.c.0.s8 %v7636
        %v7638 = vlaneseq
        %v7639 = vshrl.u32 %v7638, 7
        %v7640 = vsub.s32 %v7637, %v7639
        %v7641 = vrot.slane %v7633, %v7640
        %v7643 = vunpack.c.l.s4 1934713408
        %v7644 = vunpack.c.0.s8 %v7643
        %v7645 = vlaneseq
        %v7646 = vshrl.u32 %v7645, 7
        %v7647 = vsub.s32 %v7644, %v7646
        %v7648 = vrot.slane %v7634, %v7647
        %v7649 = vcombine.low %v7625, %v7641
        %v7650 = vcombine.high %v7625, %v7641
        %v7651 = vcombine.low %v7632, %v7648
        %v7652 = vcombine.high %v7632, %v7648
        %v7653 = vcombine.low %v6605, %v6612
        %v7655 = vunpack.c.l.s4 1983009808
        %v7656 = vunpack.c.0.s8 %v7655
        %v7657 = vlaneseq
        %v7658 = vshrl.u32 %v7657, 7
        %v7659 = vsub.s32 %v7656, %v7658
        %v7660 = vrot.slane %v7653, %v7659
        %v7661 = vcombine.low %v6629, %v6630
        %v7663 = vunpack.c.l.s4 1983009808
        %v7664 = vunpack.c.0.s8 %v7663
        %v7665 = vlaneseq
        %v7666 = vshrl.u32 %v7665, 7
        %v7667 = vsub.s32 %v7664, %v7666
        %v7668 = vrot.slane %v7661, %v7667
        %v7669 = vcombine.low %v6621, %v6628
        %v7671 = vunpack.c.l.s4 1983009808
        %v7672 = vunpack.c.0.s8 %v7671
        %v7673 = vlaneseq
        %v7674 = vshrl.u32 %v7673, 7
        %v7675 = vsub.s32 %v7672, %v7674
        %v7676 = vrot.slane %v7669, %v7675
        %v7677 = vcombine.low %v6631, %v6632
        %v7679 = vunpack.c.l.s4 1983009808
        %v7680 = vunpack.c.0.s8 %v7679
        %v7681 = vlaneseq
        %v7682 = vshrl.u32 %v7681, 7
        %v7683 = vsub.s32 %v7680, %v7682
        %v7684 = vrot.slane %v7677, %v7683
        %v7685 = vcombine.low %v7660, %v7668
        %v7686 = vcombine.high %v7660, %v7668
        %v7688 = vunpack.c.l.s4 1934713408
        %v7689 = vunpack.c.0.s8 %v7688
        %v7690 = vlaneseq
        %v7691 = vshrl.u32 %v7690, 7
        %v7692 = vsub.s32 %v7689, %v7691
        %v7693 = vrot.slane %v7685, %v7692
        %v7695 = vunpack.c.l.s4 1934713408
        %v7696 = vunpack.c.0.s8 %v7695
        %v7697 = vlaneseq
        %v7698 = vshrl.u32 %v7697, 7
        %v7699 = vsub.s32 %v7696, %v7698
        %v7700 = vrot.slane %v7686, %v7699
        %v7701 = vcombine.low %v7676, %v7684
        %v7702 = vcombine.high %v7676, %v7684
        %v7704 = vunpack.c.l.s4 1934713408
        %v7705 = vunpack.c.0.s8 %v7704
        %v7706 = vlaneseq
        %v7707 = vshrl.u32 %v7706, 7
        %v7708 = vsub.s32 %v7705, %v7707
        %v7709 = vrot.slane %v7701, %v7708
        %v7711 = vunpack.c.l.s4 1934713408
        %v7712 = vunpack.c.0.s8 %v7711
        %v7713 = vlaneseq
        %v7714 = vshrl.u32 %v7713, 7
        %v7715 = vsub.s32 %v7712, %v7714
        %v7716 = vrot.slane %v7702, %v7715
        %v7717 = vcombine.low %v7693, %v7709
        %v7718 = vcombine.high %v7693, %v7709
        %v7719 = vcombine.low %v7700, %v7716
        %v7720 = vcombine.high %v7700, %v7716
        %v7721 = vcombine.low %v6673, %v6680
        %v7723 = vunpack.c.l.s4 1983009808
        %v7724 = vunpack.c.0.s8 %v7723
        %v7725 = vlaneseq
        %v7726 = vshrl.u32 %v7725, 7
        %v7727 = vsub.s32 %v7724, %v7726
        %v7728 = vrot.slane %v7721, %v7727
        %v7729 = vcombine.low %v6697, %v6698
        %v7731 = vunpack.c.l.s4 1983009808
        %v7732 = vunpack.c.0.s8 %v7731
        %v7733 = vlaneseq
        %v7734 = vshrl.u32 %v7733, 7
        %v7735 = vsub.s32 %v7732, %v7734
        %v7736 = vrot.slane %v7729, %v7735
        %v7737 = vcombine.low %v6689, %v6696
        %v7739 = vunpack.c.l.s4 1983009808
        %v7740 = vunpack.c.0.s8 %v7739
        %v7741 = vlaneseq
        %v7742 = vshrl.u32 %v7741, 7
        %v7743 = vsub.s32 %v7740, %v7742
        %v7744 = vrot.slane %v7737, %v7743
        %v7745 = vcombine.low %v6699, %v6700
        %v7747 = vunpack.c.l.s4 1983009808
        %v7748 = vunpack.c.0.s8 %v7747
        %v7749 = vlaneseq
        %v7750 = vshrl.u32 %v7749, 7
        %v7751 = vsub.s32 %v7748, %v7750
        %v7752 = vrot.slane %v7745, %v7751
        %v7753 = vcombine.low %v7728, %v7736
        %v7754 = vcombine.high %v7728, %v7736
        %v7756 = vunpack.c.l.s4 1934713408
        %v7757 = vunpack.c.0.s8 %v7756
        %v7758 = vlaneseq
        %v7759 = vshrl.u32 %v7758, 7
        %v7760 = vsub.s32 %v7757, %v7759
        %v7761 = vrot.slane %v7753, %v7760
        %v7763 = vunpack.c.l.s4 1934713408
        %v7764 = vunpack.c.0.s8 %v7763
        %v7765 = vlaneseq
        %v7766 = vshrl.u32 %v7765, 7
        %v7767 = vsub.s32 %v7764, %v7766
        %v7768 = vrot.slane %v7754, %v7767
        %v7769 = vcombine.low %v7744, %v7752
        %v7770 = vcombine.high %v7744, %v7752
        %v7772 = vunpack.c.l.s4 1934713408
        %v7773 = vunpack.c.0.s8 %v7772
        %v7774 = vlaneseq
        %v7775 = vshrl.u32 %v7774, 7
        %v7776 = vsub.s32 %v7773, %v7775
        %v7777 = vrot.slane %v7769, %v7776
        %v7779 = vunpack.c.l.s4 1934713408
        %v7780 = vunpack.c.0.s8 %v7779
        %v7781 = vlaneseq
        %v7782 = vshrl.u32 %v7781, 7
        %v7783 = vsub.s32 %v7780, %v7782
        %v7784 = vrot.slane %v7770, %v7783
        %v7785 = vcombine.low %v7761, %v7777
        %v7786 = vcombine.high %v7761, %v7777
        %v7787 = vcombine.low %v7768, %v7784
        %v7788 = vcombine.high %v7768, %v7784
        %v7789 = vcombine.low %v6741, %v6748
        %v7791 = vunpack.c.l.s4 1983009808
        %v7792 = vunpack.c.0.s8 %v7791
        %v7793 = vlaneseq
        %v7794 = vshrl.u32 %v7793, 7
        %v7795 = vsub.s32 %v7792, %v7794
        %v7796 = vrot.slane %v7789, %v7795
        %v7797 = vcombine.low %v6765, %v6766
        %v7799 = vunpack.c.l.s4 1983009808
        %v7800 = vunpack.c.0.s8 %v7799
        %v7801 = vlaneseq
        %v7802 = vshrl.u32 %v7801, 7
        %v7803 = vsub.s32 %v7800, %v7802
        %v7804 = vrot.slane %v7797, %v7803
        %v7805 = vcombine.low %v6757, %v6764
        %v7807 = vunpack.c.l.s4 1983009808
        %v7808 = vunpack.c.0.s8 %v7807
        %v7809 = vlaneseq
        %v7810 = vshrl.u32 %v7809, 7
        %v7811 = vsub.s32 %v7808, %v7810
        %v7812 = vrot.slane %v7805, %v7811
        %v7813 = vcombine.low %v6767, %v6768
        %v7815 = vunpack.c.l.s4 1983009808
        %v7816 = vunpack.c.0.s8 %v7815
        %v7817 = vlaneseq
        %v7818 = vshrl.u32 %v7817, 7
        %v7819 = vsub.s32 %v7816, %v7818
        %v7820 = vrot.slane %v7813, %v7819
        %v7821 = vcombine.low %v7796, %v7804
        %v7822 = vcombine.high %v7796, %v7804
        %v7824 = vunpack.c.l.s4 1934713408
        %v7825 = vunpack.c.0.s8 %v7824
        %v7826 = vlaneseq
        %v7827 = vshrl.u32 %v7826, 7
        %v7828 = vsub.s32 %v7825, %v7827
        %v7829 = vrot.slane %v7821, %v7828
        %v7831 = vunpack.c.l.s4 1934713408
        %v7832 = vunpack.c.0.s8 %v7831
        %v7833 = vlaneseq
        %v7834 = vshrl.u32 %v7833, 7
        %v7835 = vsub.s32 %v7832, %v7834
        %v7836 = vrot.slane %v7822, %v7835
        %v7837 = vcombine.low %v7812, %v7820
        %v7838 = vcombine.high %v7812, %v7820
        %v7840 = vunpack.c.l.s4 1934713408
        %v7841 = vunpack.c.0.s8 %v7840
        %v7842 = vlaneseq
        %v7843 = vshrl.u32 %v7842, 7
        %v7844 = vsub.s32 %v7841, %v7843
        %v7845 = vrot.slane %v7837, %v7844
        %v7847 = vunpack.c.l.s4 1934713408
        %v7848 = vunpack.c.0.s8 %v7847
        %v7849 = vlaneseq
        %v7850 = vshrl.u32 %v7849, 7
        %v7851 = vsub.s32 %v7848, %v7850
        %v7852 = vrot.slane %v7838, %v7851
        %v7853 = vcombine.low %v7829, %v7845
        %v7854 = vcombine.high %v7829, %v7845
        %v7855 = vcombine.low %v7836, %v7852
        %v7856 = vcombine.high %v7836, %v7852
        %v7857 = vcombine.low %v6809, %v6816
        %v7859 = vunpack.c.l.s4 1983009808
        %v7860 = vunpack.c.0.s8 %v7859
        %v7861 = vlaneseq
        %v7862 = vshrl.u32 %v7861, 7
        %v7863 = vsub.s32 %v7860, %v7862
        %v7864 = vrot.slane %v7857, %v7863
        %v7865 = vcombine.low %v6833, %v6834
        %v7867 = vunpack.c.l.s4 1983009808
        %v7868 = vunpack.c.0.s8 %v7867
        %v7869 = vlaneseq
        %v7870 = vshrl.u32 %v7869, 7
        %v7871 = vsub.s32 %v7868, %v7870
        %v7872 = vrot.slane %v7865, %v7871
        %v7873 = vcombine.low %v6825, %v6832
        %v7875 = vunpack.c.l.s4 1983009808
        %v7876 = vunpack.c.0.s8 %v7875
        %v7877 = vlaneseq
        %v7878 = vshrl.u32 %v7877, 7
        %v7879 = vsub.s32 %v7876, %v7878
        %v7880 = vrot.slane %v7873, %v7879
        %v7881 = vcombine.low %v6835, %v6836
        %v7883 = vunpack.c.l.s4 1983009808
        %v7884 = vunpack.c.0.s8 %v7883
        %v7885 = vlaneseq
        %v7886 = vshrl.u32 %v7885, 7
        %v7887 = vsub.s32 %v7884, %v7886
        %v7888 = vrot.slane %v7881, %v7887
        %v7889 = vcombine.low %v7864, %v7872
        %v7890 = vcombine.high %v7864, %v7872
        %v7892 = vunpack.c.l.s4 1934713408
        %v7893 = vunpack.c.0.s8 %v7892
        %v7894 = vlaneseq
        %v7895 = vshrl.u32 %v7894, 7
        %v7896 = vsub.s32 %v7893, %v7895
        %v7897 = vrot.slane %v7889, %v7896
        %v7899 = vunpack.c.l.s4 1934713408
        %v7900 = vunpack.c.0.s8 %v7899
        %v7901 = vlaneseq
        %v7902 = vshrl.u32 %v7901, 7
        %v7903 = vsub.s32 %v7900, %v7902
        %v7904 = vrot.slane %v7890, %v7903
        %v7905 = vcombine.low %v7880, %v7888
        %v7906 = vcombine.high %v7880, %v7888
        %v7908 = vunpack.c.l.s4 1934713408
        %v7909 = vunpack.c.0.s8 %v7908
        %v7910 = vlaneseq
        %v7911 = vshrl.u32 %v7910, 7
        %v7912 = vsub.s32 %v7909, %v7911
        %v7913 = vrot.slane %v7905, %v7912
        %v7915 = vunpack.c.l.s4 1934713408
        %v7916 = vunpack.c.0.s8 %v7915
        %v7917 = vlaneseq
        %v7918 = vshrl.u32 %v7917, 7
        %v7919 = vsub.s32 %v7916, %v7918
        %v7920 = vrot.slane %v7906, %v7919
        %v7921 = vcombine.low %v7897, %v7913
        %v7922 = vcombine.high %v7897, %v7913
        %v7923 = vcombine.low %v7904, %v7920
        %v7924 = vcombine.high %v7904, %v7920
        %v7925 = vcombine.low %v6877, %v6884
        %v7927 = vunpack.c.l.s4 1983009808
        %v7928 = vunpack.c.0.s8 %v7927
        %v7929 = vlaneseq
        %v7930 = vshrl.u32 %v7929, 7
        %v7931 = vsub.s32 %v7928, %v7930
        %v7932 = vrot.slane %v7925, %v7931
        %v7933 = vcombine.low %v6901, %v6902
        %v7935 = vunpack.c.l.s4 1983009808
        %v7936 = vunpack.c.0.s8 %v7935
        %v7937 = vlaneseq
        %v7938 = vshrl.u32 %v7937, 7
        %v7939 = vsub.s32 %v7936, %v7938
        %v7940 = vrot.slane %v7933, %v7939
        %v7941 = vcombine.low %v6893, %v6900
        %v7943 = vunpack.c.l.s4 1983009808
        %v7944 = vunpack.c.0.s8 %v7943
        %v7945 = vlaneseq
        %v7946 = vshrl.u32 %v7945, 7
        %v7947 = vsub.s32 %v7944, %v7946
        %v7948 = vrot.slane %v7941, %v7947
        %v7949 = vcombine.low %v6903, %v6904
        %v7951 = vunpack.c.l.s4 1983009808
        %v7952 = vunpack.c.0.s8 %v7951
        %v7953 = vlaneseq
        %v7954 = vshrl.u32 %v7953, 7
        %v7955 = vsub.s32 %v7952, %v7954
        %v7956 = vrot.slane %v7949, %v7955
        %v7957 = vcombine.low %v7932, %v7940
        %v7958 = vcombine.high %v7932, %v7940
        %v7960 = vunpack.c.l.s4 1934713408
        %v7961 = vunpack.c.0.s8 %v7960
        %v7962 = vlaneseq
        %v7963 = vshrl.u32 %v7962, 7
        %v7964 = vsub.s32 %v7961, %v7963
        %v7965 = vrot.slane %v7957, %v7964
        %v7967 = vunpack.c.l.s4 1934713408
        %v7968 = vunpack.c.0.s8 %v7967
        %v7969 = vlaneseq
        %v7970 = vshrl.u32 %v7969, 7
        %v7971 = vsub.s32 %v7968, %v7970
        %v7972 = vrot.slane %v7958, %v7971
        %v7973 = vcombine.low %v7948, %v7956
        %v7974 = vcombine.high %v7948, %v7956
        %v7976 = vunpack.c.l.s4 1934713408
        %v7977 = vunpack.c.0.s8 %v7976
        %v7978 = vlaneseq
        %v7979 = vshrl.u32 %v7978, 7
        %v7980 = vsub.s32 %v7977, %v7979
        %v7981 = vrot.slane %v7973, %v7980
        %v7983 = vunpack.c.l.s4 1934713408
        %v7984 = vunpack.c.0.s8 %v7983
        %v7985 = vlaneseq
        %v7986 = vshrl.u32 %v7985, 7
        %v7987 = vsub.s32 %v7984, %v7986
        %v7988 = vrot.slane %v7974, %v7987
        %v7989 = vcombine.low %v7965, %v7981
        %v7990 = vcombine.high %v7965, %v7981
        %v7991 = vcombine.low %v7972, %v7988
        %v7992 = vcombine.high %v7972, %v7988
        %v7993 = vcombine.low %v6945, %v6952
        %v7995 = vunpack.c.l.s4 1983009808
        %v7996 = vunpack.c.0.s8 %v7995
        %v7997 = vlaneseq
        %v7998 = vshrl.u32 %v7997, 7
        %v7999 = vsub.s32 %v7996, %v7998
        %v8000 = vrot.slane %v7993, %v7999
        %v8001 = vcombine.low %v6969, %v6970
        %v8003 = vunpack.c.l.s4 1983009808
        %v8004 = vunpack.c.0.s8 %v8003
        %v8005 = vlaneseq
        %v8006 = vshrl.u32 %v8005, 7
        %v8007 = vsub.s32 %v8004, %v8006
        %v8008 = vrot.slane %v8001, %v8007
        %v8009 = vcombine.low %v6961, %v6968
        %v8011 = vunpack.c.l.s4 1983009808
        %v8012 = vunpack.c.0.s8 %v8011
        %v8013 = vlaneseq
        %v8014 = vshrl.u32 %v8013, 7
        %v8015 = vsub.s32 %v8012, %v8014
        %v8016 = vrot.slane %v8009, %v8015
        %v8017 = vcombine.low %v6971, %v6972
        %v8019 = vunpack.c.l.s4 1983009808
        %v8020 = vunpack.c.0.s8 %v8019
        %v8021 = vlaneseq
        %v8022 = vshrl.u32 %v8021, 7
        %v8023 = vsub.s32 %v8020, %v8022
        %v8024 = vrot.slane %v8017, %v8023
        %v8025 = vcombine.low %v8000, %v8008
        %v8026 = vcombine.high %v8000, %v8008
        %v8028 = vunpack.c.l.s4 1934713408
        %v8029 = vunpack.c.0.s8 %v8028
        %v8030 = vlaneseq
        %v8031 = vshrl.u32 %v8030, 7
        %v8032 = vsub.s32 %v8029, %v8031
        %v8033 = vrot.slane %v8025, %v8032
        %v8035 = vunpack.c.l.s4 1934713408
        %v8036 = vunpack.c.0.s8 %v8035
        %v8037 = vlaneseq
        %v8038 = vshrl.u32 %v8037, 7
        %v8039 = vsub.s32 %v8036, %v8038
        %v8040 = vrot.slane %v8026, %v8039
        %v8041 = vcombine.low %v8016, %v8024
        %v8042 = vcombine.high %v8016, %v8024
        %v8044 = vunpack.c.l.s4 1934713408
        %v8045 = vunpack.c.0.s8 %v8044
        %v8046 = vlaneseq
        %v8047 = vshrl.u32 %v8046, 7
        %v8048 = vsub.s32 %v8045, %v8047
        %v8049 = vrot.slane %v8041, %v8048
        %v8051 = vunpack.c.l.s4 1934713408
        %v8052 = vunpack.c.0.s8 %v8051
        %v8053 = vlaneseq
        %v8054 = vshrl.u32 %v8053, 7
        %v8055 = vsub.s32 %v8052, %v8054
        %v8056 = vrot.slane %v8042, %v8055
        %v8057 = vcombine.low %v8033, %v8049
        %v8058 = vcombine.high %v8033, %v8049
        %v8059 = vcombine.low %v8040, %v8056
        %v8060 = vcombine.high %v8040, %v8056
        %v8061 = vcombine.low %v7013, %v7020
        %v8063 = vunpack.c.l.s4 1983009808
        %v8064 = vunpack.c.0.s8 %v8063
        %v8065 = vlaneseq
        %v8066 = vshrl.u32 %v8065, 7
        %v8067 = vsub.s32 %v8064, %v8066
        %v8068 = vrot.slane %v8061, %v8067
        %v8069 = vcombine.low %v7037, %v7038
        %v8071 = vunpack.c.l.s4 1983009808
        %v8072 = vunpack.c.0.s8 %v8071
        %v8073 = vlaneseq
        %v8074 = vshrl.u32 %v8073, 7
        %v8075 = vsub.s32 %v8072, %v8074
        %v8076 = vrot.slane %v8069, %v8075
        %v8077 = vcombine.low %v7029, %v7036
        %v8079 = vunpack.c.l.s4 1983009808
        %v8080 = vunpack.c.0.s8 %v8079
        %v8081 = vlaneseq
        %v8082 = vshrl.u32 %v8081, 7
        %v8083 = vsub.s32 %v8080, %v8082
        %v8084 = vrot.slane %v8077, %v8083
        %v8085 = vcombine.low %v7039, %v7040
        %v8087 = vunpack.c.l.s4 1983009808
        %v8088 = vunpack.c.0.s8 %v8087
        %v8089 = vlaneseq
        %v8090 = vshrl.u32 %v8089, 7
        %v8091 = vsub.s32 %v8088, %v8090
        %v8092 = vrot.slane %v8085, %v8091
        %v8093 = vcombine.low %v8068, %v8076
        %v8094 = vcombine.high %v8068, %v8076
        %v8096 = vunpack.c.l.s4 1934713408
        %v8097 = vunpack.c.0.s8 %v8096
        %v8098 = vlaneseq
        %v8099 = vshrl.u32 %v8098, 7
        %v8100 = vsub.s32 %v8097, %v8099
        %v8101 = vrot.slane %v8093, %v8100
        %v8103 = vunpack.c.l.s4 1934713408
        %v8104 = vunpack.c.0.s8 %v8103
        %v8105 = vlaneseq
        %v8106 = vshrl.u32 %v8105, 7
        %v8107 = vsub.s32 %v8104, %v8106
        %v8108 = vrot.slane %v8094, %v8107
        %v8109 = vcombine.low %v8084, %v8092
        %v8110 = vcombine.high %v8084, %v8092
        %v8112 = vunpack.c.l.s4 1934713408
        %v8113 = vunpack.c.0.s8 %v8112
        %v8114 = vlaneseq
        %v8115 = vshrl.u32 %v8114, 7
        %v8116 = vsub.s32 %v8113, %v8115
        %v8117 = vrot.slane %v8109, %v8116
        %v8119 = vunpack.c.l.s4 1934713408
        %v8120 = vunpack.c.0.s8 %v8119
        %v8121 = vlaneseq
        %v8122 = vshrl.u32 %v8121, 7
        %v8123 = vsub.s32 %v8120, %v8122
        %v8124 = vrot.slane %v8110, %v8123
        %v8125 = vcombine.low %v8101, %v8117
        %v8126 = vcombine.high %v8101, %v8117
        %v8127 = vcombine.low %v8108, %v8124
        %v8128 = vcombine.high %v8108, %v8124
        %v8129 = vcombine.low %v7081, %v7088
        %v8131 = vunpack.c.l.s4 1983009808
        %v8132 = vunpack.c.0.s8 %v8131
        %v8133 = vlaneseq
        %v8134 = vshrl.u32 %v8133, 7
        %v8135 = vsub.s32 %v8132, %v8134
        %v8136 = vrot.slane %v8129, %v8135
        %v8137 = vcombine.low %v7105, %v7106
        %v8139 = vunpack.c.l.s4 1983009808
        %v8140 = vunpack.c.0.s8 %v8139
        %v8141 = vlaneseq
        %v8142 = vshrl.u32 %v8141, 7
        %v8143 = vsub.s32 %v8140, %v8142
        %v8144 = vrot.slane %v8137, %v8143
        %v8145 = vcombine.low %v7097, %v7104
        %v8147 = vunpack.c.l.s4 1983009808
        %v8148 = vunpack.c.0.s8 %v8147
        %v8149 = vlaneseq
        %v8150 = vshrl.u32 %v8149, 7
        %v8151 = vsub.s32 %v8148, %v8150
        %v8152 = vrot.slane %v8145, %v8151
        %v8153 = vcombine.low %v7107, %v7108
        %v8155 = vunpack.c.l.s4 1983009808
        %v8156 = vunpack.c.0.s8 %v8155
        %v8157 = vlaneseq
        %v8158 = vshrl.u32 %v8157, 7
        %v8159 = vsub.s32 %v8156, %v8158
        %v8160 = vrot.slane %v8153, %v8159
        %v8161 = vcombine.low %v8136, %v8144
        %v8162 = vcombine.high %v8136, %v8144
        %v8164 = vunpack.c.l.s4 1934713408
        %v8165 = vunpack.c.0.s8 %v8164
        %v8166 = vlaneseq
        %v8167 = vshrl.u32 %v8166, 7
        %v8168 = vsub.s32 %v8165, %v8167
        %v8169 = vrot.slane %v8161, %v8168
        %v8171 = vunpack.c.l.s4 1934713408
        %v8172 = vunpack.c.0.s8 %v8171
        %v8173 = vlaneseq
        %v8174 = vshrl.u32 %v8173, 7
        %v8175 = vsub.s32 %v8172, %v8174
        %v8176 = vrot.slane %v8162, %v8175
        %v8177 = vcombine.low %v8152, %v8160
        %v8178 = vcombine.high %v8152, %v8160
        %v8180 = vunpack.c.l.s4 1934713408
        %v8181 = vunpack.c.0.s8 %v8180
        %v8182 = vlaneseq
        %v8183 = vshrl.u32 %v8182, 7
        %v8184 = vsub.s32 %v8181, %v8183
        %v8185 = vrot.slane %v8177, %v8184
        %v8187 = vunpack.c.l.s4 1934713408
        %v8188 = vunpack.c.0.s8 %v8187
        %v8189 = vlaneseq
        %v8190 = vshrl.u32 %v8189, 7
        %v8191 = vsub.s32 %v8188, %v8190
        %v8192 = vrot.slane %v8178, %v8191
        %v8193 = vcombine.low %v8169, %v8185
        %v8194 = vcombine.high %v8169, %v8185
        %v8195 = vcombine.low %v8176, %v8192
        %v8196 = vcombine.high %v8176, %v8192
        %v8197 = vcombine.low %v7149, %v7156
        %v8199 = vunpack.c.l.s4 1983009808
        %v8200 = vunpack.c.0.s8 %v8199
        %v8201 = vlaneseq
        %v8202 = vshrl.u32 %v8201, 7
        %v8203 = vsub.s32 %v8200, %v8202
        %v8204 = vrot.slane %v8197, %v8203
        %v8205 = vcombine.low %v7173, %v7174
        %v8207 = vunpack.c.l.s4 1983009808
        %v8208 = vunpack.c.0.s8 %v8207
        %v8209 = vlaneseq
        %v8210 = vshrl.u32 %v8209, 7
        %v8211 = vsub.s32 %v8208, %v8210
        %v8212 = vrot.slane %v8205, %v8211
        %v8213 = vcombine.low %v7165, %v7172
        %v8215 = vunpack.c.l.s4 1983009808
        %v8216 = vunpack.c.0.s8 %v8215
        %v8217 = vlaneseq
        %v8218 = vshrl.u32 %v8217, 7
        %v8219 = vsub.s32 %v8216, %v8218
        %v8220 = vrot.slane %v8213, %v8219
        %v8221 = vcombine.low %v7175, %v7176
        %v8223 = vunpack.c.l.s4 1983009808
        %v8224 = vunpack.c.0.s8 %v8223
        %v8225 = vlaneseq
        %v8226 = vshrl.u32 %v8225, 7
        %v8227 = vsub.s32 %v8224, %v8226
        %v8228 = vrot.slane %v8221, %v8227
        %v8229 = vcombine.low %v8204, %v8212
        %v8230 = vcombine.high %v8204, %v8212
        %v8232 = vunpack.c.l.s4 1934713408
        %v8233 = vunpack.c.0.s8 %v8232
        %v8234 = vlaneseq
        %v8235 = vshrl.u32 %v8234, 7
        %v8236 = vsub.s32 %v8233, %v8235
        %v8237 = vrot.slane %v8229, %v8236
        %v8239 = vunpack.c.l.s4 1934713408
        %v8240 = vunpack.c.0.s8 %v8239
        %v8241 = vlaneseq
        %v8242 = vshrl.u32 %v8241, 7
        %v8243 = vsub.s32 %v8240, %v8242
        %v8244 = vrot.slane %v8230, %v8243
        %v8245 = vcombine.low %v8220, %v8228
        %v8246 = vcombine.high %v8220, %v8228
        %v8248 = vunpack.c.l.s4 1934713408
        %v8249 = vunpack.c.0.s8 %v8248
        %v8250 = vlaneseq
        %v8251 = vshrl.u32 %v8250, 7
        %v8252 = vsub.s32 %v8249, %v8251
        %v8253 = vrot.slane %v8245, %v8252
        %v8255 = vunpack.c.l.s4 1934713408
        %v8256 = vunpack.c.0.s8 %v8255
        %v8257 = vlaneseq
        %v8258 = vshrl.u32 %v8257, 7
        %v8259 = vsub.s32 %v8256, %v8258
        %v8260 = vrot.slane %v8246, %v8259
        %v8261 = vcombine.low %v8237, %v8253
        %v8262 = vcombine.high %v8237, %v8253
        %v8263 = vcombine.low %v8244, %v8260
        %v8264 = vcombine.high %v8244, %v8260
        %v8265 = vcombine.low %v7217, %v7224
        %v8267 = vunpack.c.l.s4 1983009808
        %v8268 = vunpack.c.0.s8 %v8267
        %v8269 = vlaneseq
        %v8270 = vshrl.u32 %v8269, 7
        %v8271 = vsub.s32 %v8268, %v8270
        %v8272 = vrot.slane %v8265, %v8271
        %v8273 = vcombine.low %v7241, %v7242
        %v8275 = vunpack.c.l.s4 1983009808
        %v8276 = vunpack.c.0.s8 %v8275
        %v8277 = vlaneseq
        %v8278 = vshrl.u32 %v8277, 7
        %v8279 = vsub.s32 %v8276, %v8278
        %v8280 = vrot.slane %v8273, %v8279
        %v8281 = vcombine.low %v7233, %v7240
        %v8283 = vunpack.c.l.s4 1983009808
        %v8284 = vunpack.c.0.s8 %v8283
        %v8285 = vlaneseq
        %v8286 = vshrl.u32 %v8285, 7
        %v8287 = vsub.s32 %v8284, %v8286
        %v8288 = vrot.slane %v8281, %v8287
        %v8289 = vcombine.low %v7243, %v7244
        %v8291 = vunpack.c.l.s4 1983009808
        %v8292 = vunpack.c.0.s8 %v8291
        %v8293 = vlaneseq
        %v8294 = vshrl.u32 %v8293, 7
        %v8295 = vsub.s32 %v8292, %v8294
        %v8296 = vrot.slane %v8289, %v8295
        %v8297 = vcombine.low %v8272, %v8280
        %v8298 = vcombine.high %v8272, %v8280
        %v8300 = vunpack.c.l.s4 1934713408
        %v8301 = vunpack.c.0.s8 %v8300
        %v8302 = vlaneseq
        %v8303 = vshrl.u32 %v8302, 7
        %v8304 = vsub.s32 %v8301, %v8303
        %v8305 = vrot.slane %v8297, %v8304
        %v8307 = vunpack.c.l.s4 1934713408
        %v8308 = vunpack.c.0.s8 %v8307
        %v8309 = vlaneseq
        %v8310 = vshrl.u32 %v8309, 7
        %v8311 = vsub.s32 %v8308, %v8310
        %v8312 = vrot.slane %v8298, %v8311
        %v8313 = vcombine.low %v8288, %v8296
        %v8314 = vcombine.high %v8288, %v8296
        %v8316 = vunpack.c.l.s4 1934713408
        %v8317 = vunpack.c.0.s8 %v8316
        %v8318 = vlaneseq
        %v8319 = vshrl.u32 %v8318, 7
        %v8320 = vsub.s32 %v8317, %v8319
        %v8321 = vrot.slane %v8313, %v8320
        %v8323 = vunpack.c.l.s4 1934713408
        %v8324 = vunpack.c.0.s8 %v8323
        %v8325 = vlaneseq
        %v8326 = vshrl.u32 %v8325, 7
        %v8327 = vsub.s32 %v8324, %v8326
        %v8328 = vrot.slane %v8314, %v8327
        %v8329 = vcombine.low %v8305, %v8321
        %v8330 = vcombine.high %v8305, %v8321
        %v8331 = vcombine.low %v8312, %v8328
        %v8332 = vcombine.high %v8312, %v8328
        %v8333 = vcombine.low %v7285, %v7292
        %v8335 = vunpack.c.l.s4 1983009808
        %v8336 = vunpack.c.0.s8 %v8335
        %v8337 = vlaneseq
        %v8338 = vshrl.u32 %v8337, 7
        %v8339 = vsub.s32 %v8336, %v8338
        %v8340 = vrot.slane %v8333, %v8339
        %v8341 = vcombine.low %v7309, %v7310
        %v8343 = vunpack.c.l.s4 1983009808
        %v8344 = vunpack.c.0.s8 %v8343
        %v8345 = vlaneseq
        %v8346 = vshrl.u32 %v8345, 7
        %v8347 = vsub.s32 %v8344, %v8346
        %v8348 = vrot.slane %v8341, %v8347
        %v8349 = vcombine.low %v7301, %v7308
        %v8351 = vunpack.c.l.s4 1983009808
        %v8352 = vunpack.c.0.s8 %v8351
        %v8353 = vlaneseq
        %v8354 = vshrl.u32 %v8353, 7
        %v8355 = vsub.s32 %v8352, %v8354
        %v8356 = vrot.slane %v8349, %v8355
        %v8357 = vcombine.low %v7311, %v7312
        %v8359 = vunpack.c.l.s4 1983009808
        %v8360 = vunpack.c.0.s8 %v8359
        %v8361 = vlaneseq
        %v8362 = vshrl.u32 %v8361, 7
        %v8363 = vsub.s32 %v8360, %v8362
        %v8364 = vrot.slane %v8357, %v8363
        %v8365 = vcombine.low %v8340, %v8348
        %v8366 = vcombine.high %v8340, %v8348
        %v8368 = vunpack.c.l.s4 1934713408
        %v8369 = vunpack.c.0.s8 %v8368
        %v8370 = vlaneseq
        %v8371 = vshrl.u32 %v8370, 7
        %v8372 = vsub.s32 %v8369, %v8371
        %v8373 = vrot.slane %v8365, %v8372
        %v8375 = vunpack.c.l.s4 1934713408
        %v8376 = vunpack.c.0.s8 %v8375
        %v8377 = vlaneseq
        %v8378 = vshrl.u32 %v8377, 7
        %v8379 = vsub.s32 %v8376, %v8378
        %v8380 = vrot.slane %v8366, %v8379
        %v8381 = vcombine.low %v8356, %v8364
        %v8382 = vcombine.high %v8356, %v8364
        %v8384 = vunpack.c.l.s4 1934713408
        %v8385 = vunpack.c.0.s8 %v8384
        %v8386 = vlaneseq
        %v8387 = vshrl.u32 %v8386, 7
        %v8388 = vsub.s32 %v8385, %v8387
        %v8389 = vrot.slane %v8381, %v8388
        %v8391 = vunpack.c.l.s4 1934713408
        %v8392 = vunpack.c.0.s8 %v8391
        %v8393 = vlaneseq
        %v8394 = vshrl.u32 %v8393, 7
        %v8395 = vsub.s32 %v8392, %v8394
        %v8396 = vrot.slane %v8382, %v8395
        %v8397 = vcombine.low %v8373, %v8389
        %v8398 = vcombine.high %v8373, %v8389
        %v8399 = vcombine.low %v8380, %v8396
        %v8400 = vcombine.high %v8380, %v8396
        %v8401 = vcombine.low %v7353, %v7360
        %v8403 = vunpack.c.l.s4 1983009808
        %v8404 = vunpack.c.0.s8 %v8403
        %v8405 = vlaneseq
        %v8406 = vshrl.u32 %v8405, 7
        %v8407 = vsub.s32 %v8404, %v8406
        %v8408 = vrot.slane %v8401, %v8407
        %v8409 = vcombine.low %v7377, %v7378
        %v8411 = vunpack.c.l.s4 1983009808
        %v8412 = vunpack.c.0.s8 %v8411
        %v8413 = vlaneseq
        %v8414 = vshrl.u32 %v8413, 7
        %v8415 = vsub.s32 %v8412, %v8414
        %v8416 = vrot.slane %v8409, %v8415
        %v8417 = vcombine.low %v7369, %v7376
        %v8419 = vunpack.c.l.s4 1983009808
        %v8420 = vunpack.c.0.s8 %v8419
        %v8421 = vlaneseq
        %v8422 = vshrl.u32 %v8421, 7
        %v8423 = vsub.s32 %v8420, %v8422
        %v8424 = vrot.slane %v8417, %v8423
        %v8425 = vcombine.low %v7379, %v7380
        %v8427 = vunpack.c.l.s4 1983009808
        %v8428 = vunpack.c.0.s8 %v8427
        %v8429 = vlaneseq
        %v8430 = vshrl.u32 %v8429, 7
        %v8431 = vsub.s32 %v8428, %v8430
        %v8432 = vrot.slane %v8425, %v8431
        %v8433 = vcombine.low %v8408, %v8416
        %v8434 = vcombine.high %v8408, %v8416
        %v8436 = vunpack.c.l.s4 1934713408
        %v8437 = vunpack.c.0.s8 %v8436
        %v8438 = vlaneseq
        %v8439 = vshrl.u32 %v8438, 7
        %v8440 = vsub.s32 %v8437, %v8439
        %v8441 = vrot.slane %v8433, %v8440
        %v8443 = vunpack.c.l.s4 1934713408
        %v8444 = vunpack.c.0.s8 %v8443
        %v8445 = vlaneseq
        %v8446 = vshrl.u32 %v8445, 7
        %v8447 = vsub.s32 %v8444, %v8446
        %v8448 = vrot.slane %v8434, %v8447
        %v8449 = vcombine.low %v8424, %v8432
        %v8450 = vcombine.high %v8424, %v8432
        %v8452 = vunpack.c.l.s4 1934713408
        %v8453 = vunpack.c.0.s8 %v8452
        %v8454 = vlaneseq
        %v8455 = vshrl.u32 %v8454, 7
        %v8456 = vsub.s32 %v8453, %v8455
        %v8457 = vrot.slane %v8449, %v8456
        %v8459 = vunpack.c.l.s4 1934713408
        %v8460 = vunpack.c.0.s8 %v8459
        %v8461 = vlaneseq
        %v8462 = vshrl.u32 %v8461, 7
        %v8463 = vsub.s32 %v8460, %v8462
        %v8464 = vrot.slane %v8450, %v8463
        %v8465 = vcombine.low %v8441, %v8457
        %v8466 = vcombine.high %v8441, %v8457
        %v8467 = vcombine.low %v8448, %v8464
        %v8468 = vcombine.high %v8448, %v8464
        %v8469 = vcombine.low %v7421, %v7428
        %v8471 = vunpack.c.l.s4 1983009808
        %v8472 = vunpack.c.0.s8 %v8471
        %v8473 = vlaneseq
        %v8474 = vshrl.u32 %v8473, 7
        %v8475 = vsub.s32 %v8472, %v8474
        %v8476 = vrot.slane %v8469, %v8475
        %v8477 = vcombine.low %v7445, %v7446
        %v8479 = vunpack.c.l.s4 1983009808
        %v8480 = vunpack.c.0.s8 %v8479
        %v8481 = vlaneseq
        %v8482 = vshrl.u32 %v8481, 7
        %v8483 = vsub.s32 %v8480, %v8482
        %v8484 = vrot.slane %v8477, %v8483
        %v8485 = vcombine.low %v7437, %v7444
        %v8487 = vunpack.c.l.s4 1983009808
        %v8488 = vunpack.c.0.s8 %v8487
        %v8489 = vlaneseq
        %v8490 = vshrl.u32 %v8489, 7
        %v8491 = vsub.s32 %v8488, %v8490
        %v8492 = vrot.slane %v8485, %v8491
        %v8493 = vcombine.low %v7447, %v7448
        %v8495 = vunpack.c.l.s4 1983009808
        %v8496 = vunpack.c.0.s8 %v8495
        %v8497 = vlaneseq
        %v8498 = vshrl.u32 %v8497, 7
        %v8499 = vsub.s32 %v8496, %v8498
        %v8500 = vrot.slane %v8493, %v8499
        %v8501 = vcombine.low %v8476, %v8484
        %v8502 = vcombine.high %v8476, %v8484
        %v8504 = vunpack.c.l.s4 1934713408
        %v8505 = vunpack.c.0.s8 %v8504
        %v8506 = vlaneseq
        %v8507 = vshrl.u32 %v8506, 7
        %v8508 = vsub.s32 %v8505, %v8507
        %v8509 = vrot.slane %v8501, %v8508
        %v8511 = vunpack.c.l.s4 1934713408
        %v8512 = vunpack.c.0.s8 %v8511
        %v8513 = vlaneseq
        %v8514 = vshrl.u32 %v8513, 7
        %v8515 = vsub.s32 %v8512, %v8514
        %v8516 = vrot.slane %v8502, %v8515
        %v8517 = vcombine.low %v8492, %v8500
        %v8518 = vcombine.high %v8492, %v8500
        %v8520 = vunpack.c.l.s4 1934713408
        %v8521 = vunpack.c.0.s8 %v8520
        %v8522 = vlaneseq
        %v8523 = vshrl.u32 %v8522, 7
        %v8524 = vsub.s32 %v8521, %v8523
        %v8525 = vrot.slane %v8517, %v8524
        %v8527 = vunpack.c.l.s4 1934713408
        %v8528 = vunpack.c.0.s8 %v8527
        %v8529 = vlaneseq
        %v8530 = vshrl.u32 %v8529, 7
        %v8531 = vsub.s32 %v8528, %v8530
        %v8532 = vrot.slane %v8518, %v8531
        %v8533 = vcombine.low %v8509, %v8525
        %v8534 = vcombine.high %v8509, %v8525
        %v8535 = vcombine.low %v8516, %v8532
        %v8536 = vcombine.high %v8516, %v8532
        %v8537 = vcombine.low %v7489, %v7496
        %v8539 = vunpack.c.l.s4 1983009808
        %v8540 = vunpack.c.0.s8 %v8539
        %v8541 = vlaneseq
        %v8542 = vshrl.u32 %v8541, 7
        %v8543 = vsub.s32 %v8540, %v8542
        %v8544 = vrot.slane %v8537, %v8543
        %v8545 = vcombine.low %v7513, %v7514
        %v8547 = vunpack.c.l.s4 1983009808
        %v8548 = vunpack.c.0.s8 %v8547
        %v8549 = vlaneseq
        %v8550 = vshrl.u32 %v8549, 7
        %v8551 = vsub.s32 %v8548, %v8550
        %v8552 = vrot.slane %v8545, %v8551
        %v8553 = vcombine.low %v7505, %v7512
        %v8555 = vunpack.c.l.s4 1983009808
        %v8556 = vunpack.c.0.s8 %v8555
        %v8557 = vlaneseq
        %v8558 = vshrl.u32 %v8557, 7
        %v8559 = vsub.s32 %v8556, %v8558
        %v8560 = vrot.slane %v8553, %v8559
        %v8561 = vcombine.low %v7515, %v7516
        %v8563 = vunpack.c.l.s4 1983009808
        %v8564 = vunpack.c.0.s8 %v8563
        %v8565 = vlaneseq
        %v8566 = vshrl.u32 %v8565, 7
        %v8567 = vsub.s32 %v8564, %v8566
        %v8568 = vrot.slane %v8561, %v8567
        %v8569 = vcombine.low %v8544, %v8552
        %v8570 = vcombine.high %v8544, %v8552
        %v8572 = vunpack.c.l.s4 1934713408
        %v8573 = vunpack.c.0.s8 %v8572
        %v8574 = vlaneseq
        %v8575 = vshrl.u32 %v8574, 7
        %v8576 = vsub.s32 %v8573, %v8575
        %v8577 = vrot.slane %v8569, %v8576
        %v8579 = vunpack.c.l.s4 1934713408
        %v8580 = vunpack.c.0.s8 %v8579
        %v8581 = vlaneseq
        %v8582 = vshrl.u32 %v8581, 7
        %v8583 = vsub.s32 %v8580, %v8582
        %v8584 = vrot.slane %v8570, %v8583
        %v8585 = vcombine.low %v8560, %v8568
        %v8586 = vcombine.high %v8560, %v8568
        %v8588 = vunpack.c.l.s4 1934713408
        %v8589 = vunpack.c.0.s8 %v8588
        %v8590 = vlaneseq
        %v8591 = vshrl.u32 %v8590, 7
        %v8592 = vsub.s32 %v8589, %v8591
        %v8593 = vrot.slane %v8585, %v8592
        %v8595 = vunpack.c.l.s4 1934713408
        %v8596 = vunpack.c.0.s8 %v8595
        %v8597 = vlaneseq
        %v8598 = vshrl.u32 %v8597, 7
        %v8599 = vsub.s32 %v8596, %v8598
        %v8600 = vrot.slane %v8586, %v8599
        %v8601 = vcombine.low %v8577, %v8593
        %v8602 = vcombine.high %v8577, %v8593
        %v8603 = vcombine.low %v8584, %v8600
        %v8604 = vcombine.high %v8584, %v8600
        %v8605 = vcombine.low %v7557, %v7564
        %v8607 = vunpack.c.l.s4 1983009808
        %v8608 = vunpack.c.0.s8 %v8607
        %v8609 = vlaneseq
        %v8610 = vshrl.u32 %v8609, 7
        %v8611 = vsub.s32 %v8608, %v8610
        %v8612 = vrot.slane %v8605, %v8611
        %v8613 = vcombine.low %v7581, %v7582
        %v8615 = vunpack.c.l.s4 1983009808
        %v8616 = vunpack.c.0.s8 %v8615
        %v8617 = vlaneseq
        %v8618 = vshrl.u32 %v8617, 7
        %v8619 = vsub.s32 %v8616, %v8618
        %v8620 = vrot.slane %v8613, %v8619
        %v8621 = vcombine.low %v7573, %v7580
        %v8623 = vunpack.c.l.s4 1983009808
        %v8624 = vunpack.c.0.s8 %v8623
        %v8625 = vlaneseq
        %v8626 = vshrl.u32 %v8625, 7
        %v8627 = vsub.s32 %v8624, %v8626
        %v8628 = vrot.slane %v8621, %v8627
        %v8629 = vcombine.low %v7583, %v7584
        %v8631 = vunpack.c.l.s4 1983009808
        %v8632 = vunpack.c.0.s8 %v8631
        %v8633 = vlaneseq
        %v8634 = vshrl.u32 %v8633, 7
        %v8635 = vsub.s32 %v8632, %v8634
        %v8636 = vrot.slane %v8629, %v8635
        %v8637 = vcombine.low %v8612, %v8620
        %v8638 = vcombine.high %v8612, %v8620
        %v8640 = vunpack.c.l.s4 1934713408
        %v8641 = vunpack.c.0.s8 %v8640
        %v8642 = vlaneseq
        %v8643 = vshrl.u32 %v8642, 7
        %v8644 = vsub.s32 %v8641, %v8643
        %v8645 = vrot.slane %v8637, %v8644
        %v8647 = vunpack.c.l.s4 1934713408
        %v8648 = vunpack.c.0.s8 %v8647
        %v8649 = vlaneseq
        %v8650 = vshrl.u32 %v8649, 7
        %v8651 = vsub.s32 %v8648, %v8650
        %v8652 = vrot.slane %v8638, %v8651
        %v8653 = vcombine.low %v8628, %v8636
        %v8654 = vcombine.high %v8628, %v8636
        %v8656 = vunpack.c.l.s4 1934713408
        %v8657 = vunpack.c.0.s8 %v8656
        %v8658 = vlaneseq
        %v8659 = vshrl.u32 %v8658, 7
        %v8660 = vsub.s32 %v8657, %v8659
        %v8661 = vrot.slane %v8653, %v8660
        %v8663 = vunpack.c.l.s4 1934713408
        %v8664 = vunpack.c.0.s8 %v8663
        %v8665 = vlaneseq
        %v8666 = vshrl.u32 %v8665, 7
        %v8667 = vsub.s32 %v8664, %v8666
        %v8668 = vrot.slane %v8654, %v8667
        %v8669 = vcombine.low %v8645, %v8661
        %v8670 = vcombine.high %v8645, %v8661
        %v8671 = vcombine.low %v8652, %v8668
        %v8672 = vcombine.high %v8652, %v8668
        %v8673 = vpack.c.bf16 %v7717, %v7649
        %v8674 = vpack.c.bf16 %v7853, %v7785
        %v8675 = vpack.c.bf16 %v7989, %v7921
        %v8676 = vpack.c.bf16 %v8125, %v8057
        %v8677 = vpack.c.bf16 %v8261, %v8193
        %v8678 = vpack.c.bf16 %v8397, %v8329
        %v8679 = vpack.c.bf16 %v8533, %v8465
        %v8680 = vpack.c.bf16 %v8669, %v8601
        %v8681 = vpack.c.bf16 %v7718, %v7650
        %v8682 = vpack.c.bf16 %v7854, %v7786
        %v8683 = vpack.c.bf16 %v7990, %v7922
        %v8684 = vpack.c.bf16 %v8126, %v8058
        %v8685 = vpack.c.bf16 %v8262, %v8194
        %v8686 = vpack.c.bf16 %v8398, %v8330
        %v8687 = vpack.c.bf16 %v8534, %v8466
        %v8688 = vpack.c.bf16 %v8670, %v8602
        %v8689 = vpack.c.bf16 %v7719, %v7651
        %v8690 = vpack.c.bf16 %v7855, %v7787
        %v8691 = vpack.c.bf16 %v7991, %v7923
        %v8692 = vpack.c.bf16 %v8127, %v8059
        %v8693 = vpack.c.bf16 %v8263, %v8195
        %v8694 = vpack.c.bf16 %v8399, %v8331
        %v8695 = vpack.c.bf16 %v8535, %v8467
        %v8696 = vpack.c.bf16 %v8671, %v8603
        %v8697 = vpack.c.bf16 %v7720, %v7652
        %v8698 = vpack.c.bf16 %v7856, %v7788
        %v8699 = vpack.c.bf16 %v7992, %v7924
        %v8700 = vpack.c.bf16 %v8128, %v8060
        %v8701 = vpack.c.bf16 %v8264, %v8196
        %v8702 = vpack.c.bf16 %v8400, %v8332
        %v8703 = vpack.c.bf16 %v8536, %v8468
        %v8704 = vpack.c.bf16 %v8672, %v8604
        %v8737 = vunpack.c.l.b16 %v8673
        %v8738 = vunpack.c.h.b16 %v8673
        %v8739 = vunpack.c.l.b16 %v8674
        %v8740 = vunpack.c.h.b16 %v8674
        %v8741 = vunpack.c.l.b16 %v8675
        %v8742 = vunpack.c.h.b16 %v8675
        %v8743 = vunpack.c.l.b16 %v8676
        %v8744 = vunpack.c.h.b16 %v8676
        %v8745 = vunpack.c.l.b16 %v8677
        %v8746 = vunpack.c.h.b16 %v8677
        %v8747 = vunpack.c.l.b16 %v8678
        %v8748 = vunpack.c.h.b16 %v8678
        %v8749 = vunpack.c.l.b16 %v8679
        %v8750 = vunpack.c.h.b16 %v8679
        %v8751 = vunpack.c.l.b16 %v8680
        %v8752 = vunpack.c.h.b16 %v8680
        %v8753 = vunpack.c.l.b16 %v8681
        %v8754 = vunpack.c.h.b16 %v8681
        %v8755 = vunpack.c.l.b16 %v8682
        %v8756 = vunpack.c.h.b16 %v8682
        %v8757 = vunpack.c.l.b16 %v8683
        %v8758 = vunpack.c.h.b16 %v8683
        %v8759 = vunpack.c.l.b16 %v8684
        %v8760 = vunpack.c.h.b16 %v8684
        %v8761 = vunpack.c.l.b16 %v8685
        %v8762 = vunpack.c.h.b16 %v8685
        %v8763 = vunpack.c.l.b16 %v8686
        %v8764 = vunpack.c.h.b16 %v8686
        %v8765 = vunpack.c.l.b16 %v8687
        %v8766 = vunpack.c.h.b16 %v8687
        %v8767 = vunpack.c.l.b16 %v8688
        %v8768 = vunpack.c.h.b16 %v8688
        %v8769 = vunpack.c.l.b16 %v8689
        %v8770 = vunpack.c.h.b16 %v8689
        %v8771 = vunpack.c.l.b16 %v8690
        %v8772 = vunpack.c.h.b16 %v8690
        %v8773 = vunpack.c.l.b16 %v8691
        %v8774 = vunpack.c.h.b16 %v8691
        %v8775 = vunpack.c.l.b16 %v8692
        %v8776 = vunpack.c.h.b16 %v8692
        %v8777 = vunpack.c.l.b16 %v8693
        %v8778 = vunpack.c.h.b16 %v8693
        %v8779 = vunpack.c.l.b16 %v8694
        %v8780 = vunpack.c.h.b16 %v8694
        %v8781 = vunpack.c.l.b16 %v8695
        %v8782 = vunpack.c.h.b16 %v8695
        %v8783 = vunpack.c.l.b16 %v8696
        %v8784 = vunpack.c.h.b16 %v8696
        %v8785 = vunpack.c.l.b16 %v8697
        %v8786 = vunpack.c.h.b16 %v8697
        %v8787 = vunpack.c.l.b16 %v8698
        %v8788 = vunpack.c.h.b16 %v8698
        %v8789 = vunpack.c.l.b16 %v8699
        %v8790 = vunpack.c.h.b16 %v8699
        %v8791 = vunpack.c.l.b16 %v8700
        %v8792 = vunpack.c.h.b16 %v8700
        %v8793 = vunpack.c.l.b16 %v8701
        %v8794 = vunpack.c.h.b16 %v8701
        %v8795 = vunpack.c.l.b16 %v8702
        %v8796 = vunpack.c.h.b16 %v8702
        %v8797 = vunpack.c.l.b16 %v8703
        %v8798 = vunpack.c.h.b16 %v8703
        %v8799 = vunpack.c.l.b16 %v8704
        %v8800 = vunpack.c.h.b16 %v8704
        %v8801 = vpack.c.b16 %v8737, %v8737
        %v8802 = vpack.c.b16 %v8738, %v8738
        %v8803 = vpack.c.b16 %v8739, %v8739
        %v8804 = vpack.c.b16 %v8740, %v8740
        %v8805 = vpack.c.b16 %v8741, %v8741
        %v8806 = vpack.c.b16 %v8742, %v8742
        %v8807 = vpack.c.b16 %v8743, %v8743
        %v8808 = vpack.c.b16 %v8744, %v8744
        %v8809 = vpack.c.b16 %v8745, %v8745
        %v8810 = vpack.c.b16 %v8746, %v8746
        %v8811 = vpack.c.b16 %v8747, %v8747
        %v8812 = vpack.c.b16 %v8748, %v8748
        %v8813 = vpack.c.b16 %v8749, %v8749
        %v8814 = vpack.c.b16 %v8750, %v8750
        %v8815 = vpack.c.b16 %v8751, %v8751
        %v8816 = vpack.c.b16 %v8752, %v8752
        %v8817 = vpack.c.b16 %v8753, %v8753
        %v8818 = vpack.c.b16 %v8754, %v8754
        %v8819 = vpack.c.b16 %v8755, %v8755
        %v8820 = vpack.c.b16 %v8756, %v8756
        %v8821 = vpack.c.b16 %v8757, %v8757
        %v8822 = vpack.c.b16 %v8758, %v8758
        %v8823 = vpack.c.b16 %v8759, %v8759
        %v8824 = vpack.c.b16 %v8760, %v8760
        %v8825 = vpack.c.b16 %v8761, %v8761
        %v8826 = vpack.c.b16 %v8762, %v8762
        %v8827 = vpack.c.b16 %v8763, %v8763
        %v8828 = vpack.c.b16 %v8764, %v8764
        %v8829 = vpack.c.b16 %v8765, %v8765
        %v8830 = vpack.c.b16 %v8766, %v8766
        %v8831 = vpack.c.b16 %v8767, %v8767
        %v8832 = vpack.c.b16 %v8768, %v8768
        %v8833 = vpack.c.b16 %v8769, %v8769
        %v8834 = vpack.c.b16 %v8770, %v8770
        %v8835 = vpack.c.b16 %v8771, %v8771
        %v8836 = vpack.c.b16 %v8772, %v8772
        %v8837 = vpack.c.b16 %v8773, %v8773
        %v8838 = vpack.c.b16 %v8774, %v8774
        %v8839 = vpack.c.b16 %v8775, %v8775
        %v8840 = vpack.c.b16 %v8776, %v8776
        %v8841 = vpack.c.b16 %v8777, %v8777
        %v8842 = vpack.c.b16 %v8778, %v8778
        %v8843 = vpack.c.b16 %v8779, %v8779
        %v8844 = vpack.c.b16 %v8780, %v8780
        %v8845 = vpack.c.b16 %v8781, %v8781
        %v8846 = vpack.c.b16 %v8782, %v8782
        %v8847 = vpack.c.b16 %v8783, %v8783
        %v8848 = vpack.c.b16 %v8784, %v8784
        %v8849 = vpack.c.b16 %v8785, %v8785
        %v8850 = vpack.c.b16 %v8786, %v8786
        %v8851 = vpack.c.b16 %v8787, %v8787
        %v8852 = vpack.c.b16 %v8788, %v8788
        %v8853 = vpack.c.b16 %v8789, %v8789
        %v8854 = vpack.c.b16 %v8790, %v8790
        %v8855 = vpack.c.b16 %v8791, %v8791
        %v8856 = vpack.c.b16 %v8792, %v8792
        %v8857 = vpack.c.b16 %v8793, %v8793
        %v8858 = vpack.c.b16 %v8794, %v8794
        %v8859 = vpack.c.b16 %v8795, %v8795
        %v8860 = vpack.c.b16 %v8796, %v8796
        %v8861 = vpack.c.b16 %v8797, %v8797
        %v8862 = vpack.c.b16 %v8798, %v8798
        %v8863 = vpack.c.b16 %v8799, %v8799
        %v8864 = vpack.c.b16 %v8800, %v8800
        %8929 = vst.msk [vmem:[%s387] sm:$0xf] %vm3616, %v8801
        %8930 = vst.msk [vmem:[%s387 + $0x4] sm:$0xf] %vm3616, %v8802
        %8931 = vst.msk [vmem:[%s387 + $0x8] sm:$0xf] %vm3616, %v8803
        %8932 = vst.msk [vmem:[%s387 + $0xc] sm:$0xf] %vm3616, %v8804
        %8933 = vst.msk [vmem:[%s387 + $0x10] sm:$0xf] %vm3616, %v8805
        %8934 = vst.msk [vmem:[%s387 + $0x14] sm:$0xf] %vm3616, %v8806
        %8935 = vst.msk [vmem:[%s387 + $0x18] sm:$0xf] %vm3616, %v8807
        %8936 = vst.msk [vmem:[%s387 + $0x1c] sm:$0xf] %vm3616, %v8808
        %8937 = vst.msk [vmem:[%s387 + $0x20] sm:$0xf] %vm3616, %v8809
        %8938 = vst.msk [vmem:[%s387 + $0x24] sm:$0xf] %vm3616, %v8810
        %8939 = vst.msk [vmem:[%s387 + $0x28] sm:$0xf] %vm3616, %v8811
        %8940 = vst.msk [vmem:[%s387 + $0x2c] sm:$0xf] %vm3616, %v8812
        %8941 = vst.msk [vmem:[%s387 + $0x30] sm:$0xf] %vm3616, %v8813
        %8942 = vst.msk [vmem:[%s387 + $0x34] sm:$0xf] %vm3616, %v8814
        %8943 = vst.msk [vmem:[%s387 + $0x38] sm:$0xf] %vm3616, %v8815
        %8944 = vst.msk [vmem:[%s387 + $0x3c] sm:$0xf] %vm3616, %v8816
        %8945 = vst.msk [vmem:[%s387 + $0x40] sm:$0xf] %vm3616, %v8817
        %8946 = vst.msk [vmem:[%s387 + $0x44] sm:$0xf] %vm3616, %v8818
        %8947 = vst.msk [vmem:[%s387 + $0x48] sm:$0xf] %vm3616, %v8819
        %8948 = vst.msk [vmem:[%s387 + $0x4c] sm:$0xf] %vm3616, %v8820
        %8949 = vst.msk [vmem:[%s387 + $0x50] sm:$0xf] %vm3616, %v8821
        %8950 = vst.msk [vmem:[%s387 + $0x54] sm:$0xf] %vm3616, %v8822
        %8951 = vst.msk [vmem:[%s387 + $0x58] sm:$0xf] %vm3616, %v8823
        %8952 = vst.msk [vmem:[%s387 + $0x5c] sm:$0xf] %vm3616, %v8824
        %8953 = vst.msk [vmem:[%s387 + $0x60] sm:$0xf] %vm3616, %v8825
        %8954 = vst.msk [vmem:[%s387 + $0x64] sm:$0xf] %vm3616, %v8826
        %8955 = vst.msk [vmem:[%s387 + $0x68] sm:$0xf] %vm3616, %v8827
        %8956 = vst.msk [vmem:[%s387 + $0x6c] sm:$0xf] %vm3616, %v8828
        %8957 = vst.msk [vmem:[%s387 + $0x70] sm:$0xf] %vm3616, %v8829
        %8958 = vst.msk [vmem:[%s387 + $0x74] sm:$0xf] %vm3616, %v8830
        %8959 = vst.msk [vmem:[%s387 + $0x78] sm:$0xf] %vm3616, %v8831
        %8960 = vst.msk [vmem:[%s387 + $0x7c] sm:$0xf] %vm3616, %v8832
        %8961 = vst.msk [vmem:[%s387 + $0x80] sm:$0xf] %vm3616, %v8833
        %8962 = vst.msk [vmem:[%s387 + $0x84] sm:$0xf] %vm3616, %v8834
        %8963 = vst.msk [vmem:[%s387 + $0x88] sm:$0xf] %vm3616, %v8835
        %8964 = vst.msk [vmem:[%s387 + $0x8c] sm:$0xf] %vm3616, %v8836
        %8965 = vst.msk [vmem:[%s387 + $0x90] sm:$0xf] %vm3616, %v8837
        %8966 = vst.msk [vmem:[%s387 + $0x94] sm:$0xf] %vm3616, %v8838
        %8967 = vst.msk [vmem:[%s387 + $0x98] sm:$0xf] %vm3616, %v8839
        %8968 = vst.msk [vmem:[%s387 + $0x9c] sm:$0xf] %vm3616, %v8840
        %8969 = vst.msk [vmem:[%s387 + $0xa0] sm:$0xf] %vm3616, %v8841
        %8970 = vst.msk [vmem:[%s387 + $0xa4] sm:$0xf] %vm3616, %v8842
        %8971 = vst.msk [vmem:[%s387 + $0xa8] sm:$0xf] %vm3616, %v8843
        %8972 = vst.msk [vmem:[%s387 + $0xac] sm:$0xf] %vm3616, %v8844
        %8973 = vst.msk [vmem:[%s387 + $0xb0] sm:$0xf] %vm3616, %v8845
        %8974 = vst.msk [vmem:[%s387 + $0xb4] sm:$0xf] %vm3616, %v8846
        %8975 = vst.msk [vmem:[%s387 + $0xb8] sm:$0xf] %vm3616, %v8847
        %8976 = vst.msk [vmem:[%s387 + $0xbc] sm:$0xf] %vm3616, %v8848
        %8977 = vst.msk [vmem:[%s387 + $0xc0] sm:$0xf] %vm3616, %v8849
        %8978 = vst.msk [vmem:[%s387 + $0xc4] sm:$0xf] %vm3616, %v8850
        %8979 = vst.msk [vmem:[%s387 + $0xc8] sm:$0xf] %vm3616, %v8851
        %8980 = vst.msk [vmem:[%s387 + $0xcc] sm:$0xf] %vm3616, %v8852
        %8981 = vst.msk [vmem:[%s387 + $0xd0] sm:$0xf] %vm3616, %v8853
        %8982 = vst.msk [vmem:[%s387 + $0xd4] sm:$0xf] %vm3616, %v8854
        %8983 = vst.msk [vmem:[%s387 + $0xd8] sm:$0xf] %vm3616, %v8855
        %8984 = vst.msk [vmem:[%s387 + $0xdc] sm:$0xf] %vm3616, %v8856
        %8985 = vst.msk [vmem:[%s387 + $0xe0] sm:$0xf] %vm3616, %v8857
        %8986 = vst.msk [vmem:[%s387 + $0xe4] sm:$0xf] %vm3616, %v8858
        %8987 = vst.msk [vmem:[%s387 + $0xe8] sm:$0xf] %vm3616, %v8859
        %8988 = vst.msk [vmem:[%s387 + $0xec] sm:$0xf] %vm3616, %v8860
        %8989 = vst.msk [vmem:[%s387 + $0xf0] sm:$0xf] %vm3616, %v8861
        %8990 = vst.msk [vmem:[%s387 + $0xf4] sm:$0xf] %vm3616, %v8862
        %8991 = vst.msk [vmem:[%s387 + $0xf8] sm:$0xf] %vm3616, %v8863
        %8992 = vst.msk [vmem:[%s387 + $0xfc] sm:$0xf] %vm3616, %v8864
        %s8993 = smul.u32 16, %s28
        %p8994 = scmp.lt.s32.totalorder %s27, 1
        %s8995 = scalar_select %p8994, %s27, 1
        %p8996 = scmp.lt.s32.totalorder %s8993, 15
        %s8997 = scalar_select %p8996, %s8993, 15
        %s8998 = smul.addr %s8995, 64
        %s8999 = sadd.s32 %s8997, %s8998
        %s9000 = smul.addr %s8999, 4
        %s9001 = scalar_lea.vmem %s5, %s9000
        %s9002 = smul.u32 16, %s28
        %p9003 = scmp.lt.s32.totalorder %s27, 1
        %s9004 = scalar_select %p9003, %s27, 1
        %p9005 = scmp.lt.s32.totalorder %s9002, 15
        %s9006 = scalar_select %p9005, %s9002, 15
        %s9007 = smul.addr %s9004, 64
        %s9008 = sadd.s32 %s9006, %s9007
        %s9009 = smul.addr %s9008, 4
        %s9010 = scalar_lea.vmem %s6, %s9009
        %s9011 = smul.u32 16, %s28
        %p9012 = scmp.lt.s32.totalorder %s27, 1
        %s9013 = scalar_select %p9012, %s27, 1
        %p9014 = scmp.lt.s32.totalorder %s9011, 15
        %s9015 = scalar_select %p9014, %s9011, 15
        %s9016 = smul.addr %s9013, 64
        %s9017 = sadd.s32 %s9015, %s9016
        %s9018 = smul.addr %s9017, 4
        %s9019 = scalar_lea.vmem %s7, %s9018
        // Predicated region
        $region49: #{tpu_custom_call.1} parent=39 // pred_check
          %p9020 = pneg %p167
        $region50: #{tpu_custom_call.1} parent=39 // pred_check_branch
          %9022 = sbr.rel (%p9020) target = $region52
        $region51: #{tpu_custom_call.1} parent=39 // pred_region
          %s9023 = smul.u32 16, %s28
        $region52: #{tpu_custom_call.1} parent=39 // pred_fallthru
          _
        // Predicated region
        $region53: #{tpu_custom_call.1} parent=39 // pred_check
          %p9024 = pneg %p195
        $region54: #{tpu_custom_call.1} parent=39 // pred_check_branch
          %9026 = sbr.rel (%p9024) target = $region56
        $region55: #{tpu_custom_call.1} parent=39 // pred_region
          %s9027 = smul.u32 16, %s28
        $region56: #{tpu_custom_call.1} parent=39 // pred_fallthru
          _
        // Predicated region
        $region57: #{tpu_custom_call.1} parent=39 // pred_check
          %p9028 = pneg %p223
        $region58: #{tpu_custom_call.1} parent=39 // pred_check_branch
          %9030 = sbr.rel (%p9028) target = $region60
        $region59: #{tpu_custom_call.1} parent=39 // pred_region
          %s9031 = smul.u32 16, %s28
        $region60: #{tpu_custom_call.1} parent=39 // pred_fallthru
          _
      $region40: #{tpu_custom_call.1} parent=5 // pred_fallthru
        _
      %p9032 = scmp.le.s32.totalorder 2, %s18
      // Predicated region
      $region61: #{tpu_custom_call.1} parent=5 // pred_check
        %p9033 = pneg %p9032
      $region62: #{tpu_custom_call.1} parent=5 // pred_check_branch
        %9035 = sbr.rel (%p9033) target = $region64
      $region63: #{tpu_custom_call.1} parent=5 // pred_region
        %s9036 = ssub.s32 %s18, 2
        // Predicated region
        $region65: #{tpu_custom_call.1} parent=63 // pred_check
          %p9037 = pneg %p173
        $region66: #{tpu_custom_call.1} parent=63 // pred_check_branch
          %9039 = sbr.rel (%p9037) target = $region68
        $region67: #{tpu_custom_call.1} parent=63 // pred_region
          %s9040 = smul.u32 16, %s30
          %p9041 = scmp.lt.s32.totalorder %s29, 1
          %s9042 = scalar_select %p9041, %s29, 1
          %p9043 = scmp.lt.s32.totalorder %s9040, 15
          %s9044 = scalar_select %p9043, %s9040, 15
          %s9045 = smul.addr %s9042, 64
          %s9046 = sadd.s32 %s9044, %s9045
          %s9047 = smul.addr %s9046, 4
          %s9048 = scalar_lea.vmem %s5, %s9047
        $region68: #{tpu_custom_call.1} parent=63 // pred_fallthru
          _
        // Predicated region
        $region69: #{tpu_custom_call.1} parent=63 // pred_check
          %p9049 = pneg %p201
        $region70: #{tpu_custom_call.1} parent=63 // pred_check_branch
          %9051 = sbr.rel (%p9049) target = $region72
        $region71: #{tpu_custom_call.1} parent=63 // pred_region
          %s9052 = smul.u32 16, %s30
          %p9053 = scmp.lt.s32.totalorder %s29, 1
          %s9054 = scalar_select %p9053, %s29, 1
          %p9055 = scmp.lt.s32.totalorder %s9052, 15
          %s9056 = scalar_select %p9055, %s9052, 15
          %s9057 = smul.addr %s9054, 64
          %s9058 = sadd.s32 %s9056, %s9057
          %s9059 = smul.addr %s9058, 4
          %s9060 = scalar_lea.vmem %s6, %s9059
        $region72: #{tpu_custom_call.1} parent=63 // pred_fallthru
          _
        // Predicated region
        $region73: #{tpu_custom_call.1} parent=63 // pred_check
          %p9061 = pneg %p229
        $region74: #{tpu_custom_call.1} parent=63 // pred_check_branch
          %9063 = sbr.rel (%p9061) target = $region76
        $region75: #{tpu_custom_call.1} parent=63 // pred_region
          %s9064 = smul.u32 16, %s30
          %p9065 = scmp.lt.s32.totalorder %s29, 1
          %s9066 = scalar_select %p9065, %s29, 1
          %p9067 = scmp.lt.s32.totalorder %s9064, 15
          %s9068 = scalar_select %p9067, %s9064, 15
          %s9069 = smul.addr %s9066, 64
          %s9070 = sadd.s32 %s9068, %s9069
          %s9071 = smul.addr %s9070, 4
          %s9072 = scalar_lea.vmem %s7, %s9071
        $region76: #{tpu_custom_call.1} parent=63 // pred_fallthru
          _
      $region64: #{tpu_custom_call.1} parent=5 // pred_fallthru
        _
    $region6: #{tpu_custom_call.1} parent=1 // loop_footer
      %s22 = sadd.s32 1, %s18
    $region7: #{tpu_custom_call.1} parent=1 // loop_footer_branch
      %17 = sbr.rel target = $region3
    $region8: #{tpu_custom_call.1} parent=1 // loop_exit
      _
    %9073 = vsyncpa [#allocation3], 1
    %s9074 = scalar_lea.sflag [#allocation3], 1
    %9075 = vsyncpa %s9074, 1
    %9076 = vsyncpa [#allocation5], 1

</llo_original>
